<compile_context>
chip_gen: v6e
topology: v6e:2x2x1
jax: 0.10.0
libtpu: 0.0.40
codegen_flags: <defaults>
</compile_context>

<pallas_src>
import functools

import jax
import jax.numpy as jnp
from jax import lax
from jax.experimental import pallas as pl
from jax.experimental.pallas import tpu as pltpu


def _round_up(n, m):
    return ((n + m - 1) // m) * m


def _resconv_kernel(x_ref, w_ref, b_ref, o_ref, xpad_ref, acc_ref,
                    *, k, pad, H, W, C, num_blocks):
    """One batch element per grid step.

    x_ref   : (1, H, W, C)              input, channels zero-padded to lane multiple C
    w_ref   : (num_blocks, k*k, C, C)   conv weights (tap, c_in, c_out), BN scale pre-folded
    b_ref   : (num_blocks, 1, C)        folded BN bias   beta - mean * gamma/sqrt(var+eps)
    o_ref   : (1, H, W, C)              output (lane-dense)
    xpad_ref: (H+2p, W+2p, C) f32 VMEM  spatially padded activation buffer (halo in VMEM)
    acc_ref : (H*W, C)        f32 VMEM  conv accumulator
    """
    Hp = H + 2 * pad
    Wp = W + 2 * pad

    # Zero the padded buffer once: the halo stays zero forever, only the interior is rewritten.
    xpad_ref[...] = jnp.zeros((Hp, Wp, C), dtype=jnp.float32)
    xpad_ref[pad:pad + H, pad:pad + W, :] = x_ref[0].astype(jnp.float32)

    for blk in range(num_blocks):                  # static unroll over the ConvBlock2d stages
        # ---- conv: k*k shifted-window matmuls on the MXU, f32 accumulation in VMEM ----
        acc_ref[...] = jnp.zeros((H * W, C), dtype=jnp.float32)
        for dy in range(k):
            for dx in range(k):
                win = xpad_ref[dy:dy + H, dx:dx + W, :].reshape(H * W, C)
                acc_ref[...] += jnp.dot(win, w_ref[blk, dy * k + dx],
                                        preferred_element_type=jnp.float32)

        # ---- fused BatchNorm (scale folded into weights, bias here) + SiLU ----
        y = acc_ref[...] + b_ref[blk]
        y = y * jax.nn.sigmoid(y)                  # SiLU; padded channels stay exactly 0

        if blk + 1 < num_blocks:
            # Re-write only the interior for the next block; intermediate never hits HBM.
            xpad_ref[pad:pad + H, pad:pad + W, :] = y.reshape(H, W, C)
        else:
            o_ref[...] = y.reshape(1, H, W, C).astype(o_ref.dtype)


def res_conv_block_2d(x_nchw, blocks, kernel_size=3, dilation=1, eps=1e-5):
    """Forward pass of ResConvBlock2d (default config: batchnorm_first=False, SiLU activation).

    x_nchw : (B, Cin, H, W)
    blocks : list (length num_blocks) of tuples
             (conv_weight (Co, Ci, k, k), bn_gamma (Co,), bn_beta (Co,), bn_mean (Co,), bn_var (Co,))
    returns: (B, Cout, H, W)
    """
    assert kernel_size % 2 == 1 and kernel_size >= 3, "only odd kernel_size >= 3 supported"
    assert dilation == 1, "only dilation=1 (module default) supported"

    B, Cin, H, W = x_nchw.shape
    num_blocks = len(blocks)
    Cout = blocks[0][0].shape[0]
    k = kernel_size
    pad = k // 2

    C = _round_up(max(Cin, Cout), 128)             # lane-dense channel width

    # ---- pack weights: (Co, Ci, k, k) -> (k*k, C, C); fold eval-mode BN into weights + bias ----
    w_list, b_list = [], []
    for (w, g, beta, mean, var) in blocks:
        co, ci = w.shape[0], w.shape[1]
        scale = g / jnp.sqrt(var + eps)                                    # (co,)
        bias = beta - mean * scale                                         # (co,)
        wt = jnp.transpose(w, (2, 3, 1, 0)).reshape(k * k, ci, co) * scale  # [dy*k+dx, c_in, c_out]
        wt = jnp.pad(wt, ((0, 0), (0, C - ci), (0, C - co)))
        w_list.append(wt)
        b_list.append(jnp.pad(bias, (0, C - co)))                          # padded co -> bias 0
    w_all = jnp.stack(w_list)                                              # (nb, k*k, C, C)
    b_all = jnp.stack(b_list).reshape(num_blocks, 1, C)

    # NCHW -> NHWC with channel zero-pad to lane width (single fused XLA copy; the spatial
    # "same" padding happens inside the kernel, so no padded HBM plane is materialized).
    x = jnp.transpose(x_nchw, (0, 2, 3, 1))
    x = jnp.pad(x, ((0, 0), (0, 0), (0, 0), (0, C - Cin)))

    kernel = functools.partial(_resconv_kernel, k=k, pad=pad, H=H, W=W, C=C,
                               num_blocks=num_blocks)

    out_nhwc = pl.pallas_call(
        kernel,
        out_shape=jax.ShapeDtypeStruct((B, H, W, C), x_nchw.dtype),
        grid_spec=pltpu.PrefetchScalarGridSpec(
            num_scalar_prefetch=0,
            grid=(B,),
            in_specs=[
                pl.BlockSpec((1, H, W, C), lambda b: (b, 0, 0, 0)),
                pl.BlockSpec((num_blocks, k * k, C, C), lambda b: (0, 0, 0, 0)),  # fetched once
                pl.BlockSpec((num_blocks, 1, C), lambda b: (0, 0, 0)),            # fetched once
            ],
            out_specs=pl.BlockSpec((1, H, W, C), lambda b: (b, 0, 0, 0)),
            scratch_shapes=[
                pltpu.VMEM((H + 2 * pad, W + 2 * pad, C), jnp.float32),   # padded activation
                pltpu.VMEM((H * W, C), jnp.float32),                      # conv accumulator
            ],
        ),
        compiler_params=pltpu.CompilerParams(
            dimension_semantics=("parallel",),        # batch shards across TCs on v7x
            vmem_limit_bytes=32 * 1024 * 1024,        # explicit (v5e scoped default is 16 MiB)
        ),
    )(x, w_all, b_all)

    return jnp.transpose(out_nhwc[..., :Cout], (0, 3, 1, 2))              # NHWC -> NCHW


def _reference(x_nchw, blocks, kernel_size, eps=1e-5):
    """Pure-JAX reference mirroring ResConvBlock2d (eval-mode BatchNorm)."""
    p = kernel_size // 2
    y = x_nchw
    for (w, g, beta, mean, var) in blocks:
        y = lax.conv_general_dilated(
            y, w, window_strides=(1, 1), padding=((p, p), (p, p)),
            dimension_numbers=("NCHW", "OIHW", "NCHW"))
        y = (y - mean.reshape(1, -1, 1, 1)) * (g / jnp.sqrt(var + eps)).reshape(1, -1, 1, 1) \
            + beta.reshape(1, -1, 1, 1)
        y = y * jax.nn.sigmoid(y)                   # SiLU
    return y


if __name__ == "__main__":
    # Small config consistent with the module: in_channels=4, out_channels=8, kernel=3, num_blocks=2.
    B, Cin, H, W = 2, 4, 16, 16
    Cout, k, num_blocks = 8, 3, 2

    key = jax.random.PRNGKey(0)
    keys = jax.random.split(key, 1 + 5 * num_blocks)
    x = jax.random.normal(keys[0], (B, Cin, H, W), dtype=jnp.float32)

    blocks = []
    for i in range(num_blocks):
        ci = Cin if i == 0 else Cout
        kw, kg, kb, km, kv = keys[1 + 5 * i: 1 + 5 * (i + 1)]
        w = jax.random.normal(kw, (Cout, ci, k, k), dtype=jnp.float32) * 0.2   # conv weight (bias=False)
        g = 1.0 + 0.1 * jax.random.normal(kg, (Cout,), dtype=jnp.float32)      # BN gamma
        beta = 0.1 * jax.random.normal(kb, (Cout,), dtype=jnp.float32)         # BN beta
        mean = 0.1 * jax.random.normal(km, (Cout,), dtype=jnp.float32)         # BN running_mean
        var = jnp.abs(jax.random.normal(kv, (Cout,), dtype=jnp.float32)) + 0.5 # BN running_var
        blocks.append((w, g, beta, mean, var))

    out = res_conv_block_2d(x, blocks, kernel_size=k)
    out = jax.block_until_ready(out)

    ref = _reference(x, blocks, k)
    assert out.shape == (B, Cout, H, W)
    err = jnp.max(jnp.abs(out - ref))
    assert jnp.allclose(out, ref, rtol=1e-4, atol=1e-4), f"mismatch vs reference (max abs err {err})"

    print("KERNEL_OK")
</pallas_src>

<mosaic_0001>
module attributes {stable_mosaic.version = 11 : i64} {
  func.func @_resconv_kernel(%arg0: i32, %arg1: memref<1x16x16x128xf32, #tpu.memory_space<vmem>>, %arg2: memref<2x9x128x128xf32, #tpu.memory_space<vmem>>, %arg3: memref<2x1x128xf32, #tpu.memory_space<vmem>>, %arg4: memref<1x16x16x128xf32, #tpu.memory_space<vmem>>, %arg5: memref<18x18x128xf32, #tpu.memory_space<vmem>>, %arg6: memref<256x128xf32, #tpu.memory_space<vmem>>) attributes {dimension_semantics = [#tpu.dimension_semantics<parallel>], iteration_bounds = array<i64: 2>, scalar_prefetch = 0 : i64, scratch_operands = 2 : i64, tpu.core_type = #tpu.core_type<tc>, window_params = [{transform_indices = @transform_0, window_bounds = array<i64: 1, 16, 16, 128>}, {pipeline_mode = #tpu.pipeline_mode<synchronous>, transform_indices = @transform_1, window_bounds = array<i64: 2, 9, 128, 128>}, {pipeline_mode = #tpu.pipeline_mode<synchronous>, transform_indices = @transform_2, window_bounds = array<i64: 2, 1, 128>}, {transform_indices = @transform_3, window_bounds = array<i64: 1, 16, 16, 128>}]} {
    %cst = arith.constant 0.000000e+00 : f32
    %0 = vector.broadcast %cst : f32 to vector<18x18x128xf32>
    %c0 = arith.constant 0 : index
    %c0_0 = arith.constant 0 : index
    %c0_1 = arith.constant 0 : index
    %1 = vector.load %arg5[%c0, %c0_0, %c0_1] : memref<18x18x128xf32, #tpu.memory_space<vmem>>, vector<18x18x128xf32>
    tpu.vector_store %arg5[%c0, %c0_0, %c0_1], %0 {strides = array<i32>} : memref<18x18x128xf32, #tpu.memory_space<vmem>>, vector<18x18x128xf32>,
    %c0_2 = arith.constant 0 : index
    %c0_3 = arith.constant 0 : index
    %c0_4 = arith.constant 0 : index
    %c0_5 = arith.constant 0 : index
    %2 = vector.load %arg1[%c0_2, %c0_3, %c0_4, %c0_5] : memref<1x16x16x128xf32, #tpu.memory_space<vmem>>, vector<1x16x16x128xf32>
    %3 = vector.shape_cast %2 : vector<1x16x16x128xf32> to vector<16x16x128xf32>
    %c1 = arith.constant 1 : index
    %c1_6 = arith.constant 1 : index
    %c0_7 = arith.constant 0 : index
    %4 = vector.load %arg5[%c1, %c1_6, %c0_7] : memref<18x18x128xf32, #tpu.memory_space<vmem>>, vector<16x16x128xf32>
    tpu.vector_store %arg5[%c1, %c1_6, %c0_7], %3 {strides = array<i32>} : memref<18x18x128xf32, #tpu.memory_space<vmem>>, vector<16x16x128xf32>,
    %cst_8 = arith.constant 0.000000e+00 : f32
    %5 = vector.broadcast %cst_8 : f32 to vector<256x128xf32>
    %c0_9 = arith.constant 0 : index
    %c0_10 = arith.constant 0 : index
    %6 = vector.load %arg6[%c0_9, %c0_10] : memref<256x128xf32, #tpu.memory_space<vmem>>, vector<256x128xf32>
    tpu.vector_store %arg6[%c0_9, %c0_10], %5 {strides = array<i32>} : memref<256x128xf32, #tpu.memory_space<vmem>>, vector<256x128xf32>,
    %c0_11 = arith.constant 0 : index
    %c0_12 = arith.constant 0 : index
    %c0_13 = arith.constant 0 : index
    %7 = vector.load %arg5[%c0_11, %c0_12, %c0_13] : memref<18x18x128xf32, #tpu.memory_space<vmem>>, vector<16x16x128xf32>
    %8 = vector.shape_cast %7 : vector<16x16x128xf32> to vector<256x128xf32>
    %c0_14 = arith.constant 0 : index
    %c0_15 = arith.constant 0 : index
    %9 = vector.load %arg6[%c0_14, %c0_15] : memref<256x128xf32, #tpu.memory_space<vmem>>, vector<256x128xf32>
    %c0_16 = arith.constant 0 : index
    %c0_17 = arith.constant 0 : index
    %c0_18 = arith.constant 0 : index
    %c0_19 = arith.constant 0 : index
    %10 = vector.load %arg2[%c0_16, %c0_17, %c0_18, %c0_19] : memref<2x9x128x128xf32, #tpu.memory_space<vmem>>, vector<1x1x128x128xf32>
    %11 = vector.shape_cast %10 : vector<1x1x128x128xf32> to vector<128x128xf32>
    %cst_20 = arith.constant dense<0.000000e+00> : vector<256x128xf32>
    %12 = tpu.matmul %8, %11, %cst_20 {dimension_numbers = #tpu.dot_dimension_numbers<[1], [0], [0], [1], [0, 0, 1, 1], [], []>} : vector<256x128xf32>, vector<128x128xf32>, vector<256x128xf32> -> vector<256x128xf32>
    %13 = arith.addf %9, %12 : vector<256x128xf32>
    %c0_21 = arith.constant 0 : index
    %c0_22 = arith.constant 0 : index
    %14 = vector.load %arg6[%c0_21, %c0_22] : memref<256x128xf32, #tpu.memory_space<vmem>>, vector<256x128xf32>
    tpu.vector_store %arg6[%c0_21, %c0_22], %13 {strides = array<i32>} : memref<256x128xf32, #tpu.memory_space<vmem>>, vector<256x128xf32>,
    %c0_23 = arith.constant 0 : index
    %c1_24 = arith.constant 1 : index
    %c0_25 = arith.constant 0 : index
    %15 = vector.load %arg5[%c0_23, %c1_24, %c0_25] : memref<18x18x128xf32, #tpu.memory_space<vmem>>, vector<16x16x128xf32>
    %16 = vector.shape_cast %15 : vector<16x16x128xf32> to vector<256x128xf32>
    %c0_26 = arith.constant 0 : index
    %c0_27 = arith.constant 0 : index
    %17 = vector.load %arg6[%c0_26, %c0_27] : memref<256x128xf32, #tpu.memory_space<vmem>>, vector<256x128xf32>
    %c0_28 = arith.constant 0 : index
    %c1_29 = arith.constant 1 : index
    %c0_30 = arith.constant 0 : index
    %c0_31 = arith.constant 0 : index
    %18 = vector.load %arg2[%c0_28, %c1_29, %c0_30, %c0_31] : memref<2x9x128x128xf32, #tpu.memory_space<vmem>>, vector<1x1x128x128xf32>
    %19 = vector.shape_cast %18 : vector<1x1x128x128xf32> to vector<128x128xf32>
    %cst_32 = arith.constant dense<0.000000e+00> : vector<256x128xf32>
    %20 = tpu.matmul %16, %19, %cst_32 {dimension_numbers = #tpu.dot_dimension_numbers<[1], [0], [0], [1], [0, 0, 1, 1], [], []>} : vector<256x128xf32>, vector<128x128xf32>, vector<256x128xf32> -> vector<256x128xf32>
    %21 = arith.addf %17, %20 : vector<256x128xf32>
    %c0_33 = arith.constant 0 : index
    %c0_34 = arith.constant 0 : index
    %22 = vector.load %arg6[%c0_33, %c0_34] : memref<256x128xf32, #tpu.memory_space<vmem>>, vector<256x128xf32>
    tpu.vector_store %arg6[%c0_33, %c0_34], %21 {strides = array<i32>} : memref<256x128xf32, #tpu.memory_space<vmem>>, vector<256x128xf32>,
    %c0_35 = arith.constant 0 : index
    %c2 = arith.constant 2 : index
    %c0_36 = arith.constant 0 : index
    %23 = vector.load %arg5[%c0_35, %c2, %c0_36] : memref<18x18x128xf32, #tpu.memory_space<vmem>>, vector<16x16x128xf32>
    %24 = vector.shape_cast %23 : vector<16x16x128xf32> to vector<256x128xf32>
    %c0_37 = arith.constant 0 : index
    %c0_38 = arith.constant 0 : index
    %25 = vector.load %arg6[%c0_37, %c0_38] : memref<256x128xf32, #tpu.memory_space<vmem>>, vector<256x128xf32>
    %c0_39 = arith.constant 0 : index
    %c2_40 = arith.constant 2 : index
    %c0_41 = arith.constant 0 : index
    %c0_42 = arith.constant 0 : index
    %26 = vector.load %arg2[%c0_39, %c2_40, %c0_41, %c0_42] : memref<2x9x128x128xf32, #tpu.memory_space<vmem>>, vector<1x1x128x128xf32>
    %27 = vector.shape_cast %26 : vector<1x1x128x128xf32> to vector<128x128xf32>
    %cst_43 = arith.constant dense<0.000000e+00> : vector<256x128xf32>
    %28 = tpu.matmul %24, %27, %cst_43 {dimension_numbers = #tpu.dot_dimension_numbers<[1], [0], [0], [1], [0, 0, 1, 1], [], []>} : vector<256x128xf32>, vector<128x128xf32>, vector<256x128xf32> -> vector<256x128xf32>
    %29 = arith.addf %25, %28 : vector<256x128xf32>
    %c0_44 = arith.constant 0 : index
    %c0_45 = arith.constant 0 : index
    %30 = vector.load %arg6[%c0_44, %c0_45] : memref<256x128xf32, #tpu.memory_space<vmem>>, vector<256x128xf32>
    tpu.vector_store %arg6[%c0_44, %c0_45], %29 {strides = array<i32>} : memref<256x128xf32, #tpu.memory_space<vmem>>, vector<256x128xf32>,
    %c1_46 = arith.constant 1 : index
    %c0_47 = arith.constant 0 : index
    %c0_48 = arith.constant 0 : index
    %31 = vector.load %arg5[%c1_46, %c0_47, %c0_48] : memref<18x18x128xf32, #tpu.memory_space<vmem>>, vector<16x16x128xf32>
    %32 = vector.shape_cast %31 : vector<16x16x128xf32> to vector<256x128xf32>
    %c0_49 = arith.constant 0 : index
    %c0_50 = arith.constant 0 : index
    %33 = vector.load %arg6[%c0_49, %c0_50] : memref<256x128xf32, #tpu.memory_space<vmem>>, vector<256x128xf32>
    %c0_51 = arith.constant 0 : index
    %c3 = arith.constant 3 : index
    %c0_52 = arith.constant 0 : index
    %c0_53 = arith.constant 0 : index
    %34 = vector.load %arg2[%c0_51, %c3, %c0_52, %c0_53] : memref<2x9x128x128xf32, #tpu.memory_space<vmem>>, vector<1x1x128x128xf32>
    %35 = vector.shape_cast %34 : vector<1x1x128x128xf32> to vector<128x128xf32>
    %cst_54 = arith.constant dense<0.000000e+00> : vector<256x128xf32>
    %36 = tpu.matmul %32, %35, %cst_54 {dimension_numbers = #tpu.dot_dimension_numbers<[1], [0], [0], [1], [0, 0, 1, 1], [], []>} : vector<256x128xf32>, vector<128x128xf32>, vector<256x128xf32> -> vector<256x128xf32>
    %37 = arith.addf %33, %36 : vector<256x128xf32>
    %c0_55 = arith.constant 0 : index
    %c0_56 = arith.constant 0 : index
    %38 = vector.load %arg6[%c0_55, %c0_56] : memref<256x128xf32, #tpu.memory_space<vmem>>, vector<256x128xf32>
    tpu.vector_store %arg6[%c0_55, %c0_56], %37 {strides = array<i32>} : memref<256x128xf32, #tpu.memory_space<vmem>>, vector<256x128xf32>,
    %c1_57 = arith.constant 1 : index
    %c1_58 = arith.constant 1 : index
    %c0_59 = arith.constant 0 : index
    %39 = vector.load %arg5[%c1_57, %c1_58, %c0_59] : memref<18x18x128xf32, #tpu.memory_space<vmem>>, vector<16x16x128xf32>
    %40 = vector.shape_cast %39 : vector<16x16x128xf32> to vector<256x128xf32>
    %c0_60 = arith.constant 0 : index
    %c0_61 = arith.constant 0 : index
    %41 = vector.load %arg6[%c0_60, %c0_61] : memref<256x128xf32, #tpu.memory_space<vmem>>, vector<256x128xf32>
    %c0_62 = arith.constant 0 : index
    %c4 = arith.constant 4 : index
    %c0_63 = arith.constant 0 : index
    %c0_64 = arith.constant 0 : index
    %42 = vector.load %arg2[%c0_62, %c4, %c0_63, %c0_64] : memref<2x9x128x128xf32, #tpu.memory_space<vmem>>, vector<1x1x128x128xf32>
    %43 = vector.shape_cast %42 : vector<1x1x128x128xf32> to vector<128x128xf32>
    %cst_65 = arith.constant dense<0.000000e+00> : vector<256x128xf32>
    %44 = tpu.matmul %40, %43, %cst_65 {dimension_numbers = #tpu.dot_dimension_numbers<[1], [0], [0], [1], [0, 0, 1, 1], [], []>} : vector<256x128xf32>, vector<128x128xf32>, vector<256x128xf32> -> vector<256x128xf32>
    %45 = arith.addf %41, %44 : vector<256x128xf32>
    %c0_66 = arith.constant 0 : index
    %c0_67 = arith.constant 0 : index
    %46 = vector.load %arg6[%c0_66, %c0_67] : memref<256x128xf32, #tpu.memory_space<vmem>>, vector<256x128xf32>
    tpu.vector_store %arg6[%c0_66, %c0_67], %45 {strides = array<i32>} : memref<256x128xf32, #tpu.memory_space<vmem>>, vector<256x128xf32>,
    %c1_68 = arith.constant 1 : index
    %c2_69 = arith.constant 2 : index
    %c0_70 = arith.constant 0 : index
    %47 = vector.load %arg5[%c1_68, %c2_69, %c0_70] : memref<18x18x128xf32, #tpu.memory_space<vmem>>, vector<16x16x128xf32>
    %48 = vector.shape_cast %47 : vector<16x16x128xf32> to vector<256x128xf32>
    %c0_71 = arith.constant 0 : index
    %c0_72 = arith.constant 0 : index
    %49 = vector.load %arg6[%c0_71, %c0_72] : memref<256x128xf32, #tpu.memory_space<vmem>>, vector<256x128xf32>
    %c0_73 = arith.constant 0 : index
    %c5 = arith.constant 5 : index
    %c0_74 = arith.constant 0 : index
    %c0_75 = arith.constant 0 : index
    %50 = vector.load %arg2[%c0_73, %c5, %c0_74, %c0_75] : memref<2x9x128x128xf32, #tpu.memory_space<vmem>>, vector<1x1x128x128xf32>
    %51 = vector.shape_cast %50 : vector<1x1x128x128xf32> to vector<128x128xf32>
    %cst_76 = arith.constant dense<0.000000e+00> : vector<256x128xf32>
    %52 = tpu.matmul %48, %51, %cst_76 {dimension_numbers = #tpu.dot_dimension_numbers<[1], [0], [0], [1], [0, 0, 1, 1], [], []>} : vector<256x128xf32>, vector<128x128xf32>, vector<256x128xf32> -> vector<256x128xf32>
    %53 = arith.addf %49, %52 : vector<256x128xf32>
    %c0_77 = arith.constant 0 : index
    %c0_78 = arith.constant 0 : index
    %54 = vector.load %arg6[%c0_77, %c0_78] : memref<256x128xf32, #tpu.memory_space<vmem>>, vector<256x128xf32>
    tpu.vector_store %arg6[%c0_77, %c0_78], %53 {strides = array<i32>} : memref<256x128xf32, #tpu.memory_space<vmem>>, vector<256x128xf32>,
    %c2_79 = arith.constant 2 : index
    %c0_80 = arith.constant 0 : index
    %c0_81 = arith.constant 0 : index
    %55 = vector.load %arg5[%c2_79, %c0_80, %c0_81] : memref<18x18x128xf32, #tpu.memory_space<vmem>>, vector<16x16x128xf32>
    %56 = vector.shape_cast %55 : vector<16x16x128xf32> to vector<256x128xf32>
    %c0_82 = arith.constant 0 : index
    %c0_83 = arith.constant 0 : index
    %57 = vector.load %arg6[%c0_82, %c0_83] : memref<256x128xf32, #tpu.memory_space<vmem>>, vector<256x128xf32>
    %c0_84 = arith.constant 0 : index
    %c6 = arith.constant 6 : index
    %c0_85 = arith.constant 0 : index
    %c0_86 = arith.constant 0 : index
    %58 = vector.load %arg2[%c0_84, %c6, %c0_85, %c0_86] : memref<2x9x128x128xf32, #tpu.memory_space<vmem>>, vector<1x1x128x128xf32>
    %59 = vector.shape_cast %58 : vector<1x1x128x128xf32> to vector<128x128xf32>
    %cst_87 = arith.constant dense<0.000000e+00> : vector<256x128xf32>
    %60 = tpu.matmul %56, %59, %cst_87 {dimension_numbers = #tpu.dot_dimension_numbers<[1], [0], [0], [1], [0, 0, 1, 1], [], []>} : vector<256x128xf32>, vector<128x128xf32>, vector<256x128xf32> -> vector<256x128xf32>
    %61 = arith.addf %57, %60 : vector<256x128xf32>
    %c0_88 = arith.constant 0 : index
    %c0_89 = arith.constant 0 : index
    %62 = vector.load %arg6[%c0_88, %c0_89] : memref<256x128xf32, #tpu.memory_space<vmem>>, vector<256x128xf32>
    tpu.vector_store %arg6[%c0_88, %c0_89], %61 {strides = array<i32>} : memref<256x128xf32, #tpu.memory_space<vmem>>, vector<256x128xf32>,
    %c2_90 = arith.constant 2 : index
    %c1_91 = arith.constant 1 : index
    %c0_92 = arith.constant 0 : index
    %63 = vector.load %arg5[%c2_90, %c1_91, %c0_92] : memref<18x18x128xf32, #tpu.memory_space<vmem>>, vector<16x16x128xf32>
    %64 = vector.shape_cast %63 : vector<16x16x128xf32> to vector<256x128xf32>
    %c0_93 = arith.constant 0 : index
    %c0_94 = arith.constant 0 : index
    %65 = vector.load %arg6[%c0_93, %c0_94] : memref<256x128xf32, #tpu.memory_space<vmem>>, vector<256x128xf32>
    %c0_95 = arith.constant 0 : index
    %c7 = arith.constant 7 : index
    %c0_96 = arith.constant 0 : index
    %c0_97 = arith.constant 0 : index
    %66 = vector.load %arg2[%c0_95, %c7, %c0_96, %c0_97] : memref<2x9x128x128xf32, #tpu.memory_space<vmem>>, vector<1x1x128x128xf32>
    %67 = vector.shape_cast %66 : vector<1x1x128x128xf32> to vector<128x128xf32>
    %cst_98 = arith.constant dense<0.000000e+00> : vector<256x128xf32>
    %68 = tpu.matmul %64, %67, %cst_98 {dimension_numbers = #tpu.dot_dimension_numbers<[1], [0], [0], [1], [0, 0, 1, 1], [], []>} : vector<256x128xf32>, vector<128x128xf32>, vector<256x128xf32> -> vector<256x128xf32>
    %69 = arith.addf %65, %68 : vector<256x128xf32>
    %c0_99 = arith.constant 0 : index
    %c0_100 = arith.constant 0 : index
    %70 = vector.load %arg6[%c0_99, %c0_100] : memref<256x128xf32, #tpu.memory_space<vmem>>, vector<256x128xf32>
    tpu.vector_store %arg6[%c0_99, %c0_100], %69 {strides = array<i32>} : memref<256x128xf32, #tpu.memory_space<vmem>>, vector<256x128xf32>,
    %c2_101 = arith.constant 2 : index
    %c2_102 = arith.constant 2 : index
    %c0_103 = arith.constant 0 : index
    %71 = vector.load %arg5[%c2_101, %c2_102, %c0_103] : memref<18x18x128xf32, #tpu.memory_space<vmem>>, vector<16x16x128xf32>
    %72 = vector.shape_cast %71 : vector<16x16x128xf32> to vector<256x128xf32>
    %c0_104 = arith.constant 0 : index
    %c0_105 = arith.constant 0 : index
    %73 = vector.load %arg6[%c0_104, %c0_105] : memref<256x128xf32, #tpu.memory_space<vmem>>, vector<256x128xf32>
    %c0_106 = arith.constant 0 : index
    %c8 = arith.constant 8 : index
    %c0_107 = arith.constant 0 : index
    %c0_108 = arith.constant 0 : index
    %74 = vector.load %arg2[%c0_106, %c8, %c0_107, %c0_108] : memref<2x9x128x128xf32, #tpu.memory_space<vmem>>, vector<1x1x128x128xf32>
    %75 = vector.shape_cast %74 : vector<1x1x128x128xf32> to vector<128x128xf32>
    %cst_109 = arith.constant dense<0.000000e+00> : vector<256x128xf32>
    %76 = tpu.matmul %72, %75, %cst_109 {dimension_numbers = #tpu.dot_dimension_numbers<[1], [0], [0], [1], [0, 0, 1, 1], [], []>} : vector<256x128xf32>, vector<128x128xf32>, vector<256x128xf32> -> vector<256x128xf32>
    %77 = arith.addf %73, %76 : vector<256x128xf32>
    %c0_110 = arith.constant 0 : index
    %c0_111 = arith.constant 0 : index
    %78 = vector.load %arg6[%c0_110, %c0_111] : memref<256x128xf32, #tpu.memory_space<vmem>>, vector<256x128xf32>
    tpu.vector_store %arg6[%c0_110, %c0_111], %77 {strides = array<i32>} : memref<256x128xf32, #tpu.memory_space<vmem>>, vector<256x128xf32>,
    %c0_112 = arith.constant 0 : index
    %c0_113 = arith.constant 0 : index
    %79 = vector.load %arg6[%c0_112, %c0_113] : memref<256x128xf32, #tpu.memory_space<vmem>>, vector<256x128xf32>
    %c0_114 = arith.constant 0 : index
    %c0_115 = arith.constant 0 : index
    %c0_116 = arith.constant 0 : index
    %80 = vector.load %arg3[%c0_114, %c0_115, %c0_116] : memref<2x1x128xf32, #tpu.memory_space<vmem>>, vector<1x1x128xf32>
    %81 = vector.shape_cast %80 : vector<1x1x128xf32> to vector<1x128xf32>
    %82 = vector.broadcast %81 : vector<1x128xf32> to vector<256x128xf32>
    %83 = arith.addf %79, %82 : vector<256x128xf32>
    %84 = arith.negf %83 : vector<256x128xf32>
    %85 = math.exp %84 : vector<256x128xf32>
    %cst_117 = arith.constant 1.000000e+00 : f32
    %86 = vector.broadcast %cst_117 : f32 to vector<256x128xf32>
    %87 = arith.addf %86, %85 : vector<256x128xf32>
    %88 = arith.divf %86, %87 : vector<256x128xf32>
    %89 = arith.mulf %83, %88 : vector<256x128xf32>
    %90 = vector.shape_cast %89 : vector<256x128xf32> to vector<16x16x128xf32>
    %c1_118 = arith.constant 1 : index
    %c1_119 = arith.constant 1 : index
    %c0_120 = arith.constant 0 : index
    %91 = vector.load %arg5[%c1_118, %c1_119, %c0_120] : memref<18x18x128xf32, #tpu.memory_space<vmem>>, vector<16x16x128xf32>
    tpu.vector_store %arg5[%c1_118, %c1_119, %c0_120], %90 {strides = array<i32>} : memref<18x18x128xf32, #tpu.memory_space<vmem>>, vector<16x16x128xf32>,
    %cst_121 = arith.constant 0.000000e+00 : f32
    %92 = vector.broadcast %cst_121 : f32 to vector<256x128xf32>
    %c0_122 = arith.constant 0 : index
    %c0_123 = arith.constant 0 : index
    %93 = vector.load %arg6[%c0_122, %c0_123] : memref<256x128xf32, #tpu.memory_space<vmem>>, vector<256x128xf32>
    tpu.vector_store %arg6[%c0_122, %c0_123], %92 {strides = array<i32>} : memref<256x128xf32, #tpu.memory_space<vmem>>, vector<256x128xf32>,
    %c0_124 = arith.constant 0 : index
    %c0_125 = arith.constant 0 : index
    %c0_126 = arith.constant 0 : index
    %94 = vector.load %arg5[%c0_124, %c0_125, %c0_126] : memref<18x18x128xf32, #tpu.memory_space<vmem>>, vector<16x16x128xf32>
    %95 = vector.shape_cast %94 : vector<16x16x128xf32> to vector<256x128xf32>
    %c0_127 = arith.constant 0 : index
    %c0_128 = arith.constant 0 : index
    %96 = vector.load %arg6[%c0_127, %c0_128] : memref<256x128xf32, #tpu.memory_space<vmem>>, vector<256x128xf32>
    %c1_129 = arith.constant 1 : index
    %c0_130 = arith.constant 0 : index
    %c0_131 = arith.constant 0 : index
    %c0_132 = arith.constant 0 : index
    %97 = vector.load %arg2[%c1_129, %c0_130, %c0_131, %c0_132] : memref<2x9x128x128xf32, #tpu.memory_space<vmem>>, vector<1x1x128x128xf32>
    %98 = vector.shape_cast %97 : vector<1x1x128x128xf32> to vector<128x128xf32>
    %cst_133 = arith.constant dense<0.000000e+00> : vector<256x128xf32>
    %99 = tpu.matmul %95, %98, %cst_133 {dimension_numbers = #tpu.dot_dimension_numbers<[1], [0], [0], [1], [0, 0, 1, 1], [], []>} : vector<256x128xf32>, vector<128x128xf32>, vector<256x128xf32> -> vector<256x128xf32>
    %100 = arith.addf %96, %99 : vector<256x128xf32>
    %c0_134 = arith.constant 0 : index
    %c0_135 = arith.constant 0 : index
    %101 = vector.load %arg6[%c0_134, %c0_135] : memref<256x128xf32, #tpu.memory_space<vmem>>, vector<256x128xf32>
    tpu.vector_store %arg6[%c0_134, %c0_135], %100 {strides = array<i32>} : memref<256x128xf32, #tpu.memory_space<vmem>>, vector<256x128xf32>,
    %c0_136 = arith.constant 0 : index
    %c1_137 = arith.constant 1 : index
    %c0_138 = arith.constant 0 : index
    %102 = vector.load %arg5[%c0_136, %c1_137, %c0_138] : memref<18x18x128xf32, #tpu.memory_space<vmem>>, vector<16x16x128xf32>
    %103 = vector.shape_cast %102 : vector<16x16x128xf32> to vector<256x128xf32>
    %c0_139 = arith.constant 0 : index
    %c0_140 = arith.constant 0 : index
    %104 = vector.load %arg6[%c0_139, %c0_140] : memref<256x128xf32, #tpu.memory_space<vmem>>, vector<256x128xf32>
    %c1_141 = arith.constant 1 : index
    %c1_142 = arith.constant 1 : index
    %c0_143 = arith.constant 0 : index
    %c0_144 = arith.constant 0 : index
    %105 = vector.load %arg2[%c1_141, %c1_142, %c0_143, %c0_144] : memref<2x9x128x128xf32, #tpu.memory_space<vmem>>, vector<1x1x128x128xf32>
    %106 = vector.shape_cast %105 : vector<1x1x128x128xf32> to vector<128x128xf32>
    %cst_145 = arith.constant dense<0.000000e+00> : vector<256x128xf32>
    %107 = tpu.matmul %103, %106, %cst_145 {dimension_numbers = #tpu.dot_dimension_numbers<[1], [0], [0], [1], [0, 0, 1, 1], [], []>} : vector<256x128xf32>, vector<128x128xf32>, vector<256x128xf32> -> vector<256x128xf32>
    %108 = arith.addf %104, %107 : vector<256x128xf32>
    %c0_146 = arith.constant 0 : index
    %c0_147 = arith.constant 0 : index
    %109 = vector.load %arg6[%c0_146, %c0_147] : memref<256x128xf32, #tpu.memory_space<vmem>>, vector<256x128xf32>
    tpu.vector_store %arg6[%c0_146, %c0_147], %108 {strides = array<i32>} : memref<256x128xf32, #tpu.memory_space<vmem>>, vector<256x128xf32>,
    %c0_148 = arith.constant 0 : index
    %c2_149 = arith.constant 2 : index
    %c0_150 = arith.constant 0 : index
    %110 = vector.load %arg5[%c0_148, %c2_149, %c0_150] : memref<18x18x128xf32, #tpu.memory_space<vmem>>, vector<16x16x128xf32>
    %111 = vector.shape_cast %110 : vector<16x16x128xf32> to vector<256x128xf32>
    %c0_151 = arith.constant 0 : index
    %c0_152 = arith.constant 0 : index
    %112 = vector.load %arg6[%c0_151, %c0_152] : memref<256x128xf32, #tpu.memory_space<vmem>>, vector<256x128xf32>
    %c1_153 = arith.constant 1 : index
    %c2_154 = arith.constant 2 : index
    %c0_155 = arith.constant 0 : index
    %c0_156 = arith.constant 0 : index
    %113 = vector.load %arg2[%c1_153, %c2_154, %c0_155, %c0_156] : memref<2x9x128x128xf32, #tpu.memory_space<vmem>>, vector<1x1x128x128xf32>
    %114 = vector.shape_cast %113 : vector<1x1x128x128xf32> to vector<128x128xf32>
    %cst_157 = arith.constant dense<0.000000e+00> : vector<256x128xf32>
    %115 = tpu.matmul %111, %114, %cst_157 {dimension_numbers = #tpu.dot_dimension_numbers<[1], [0], [0], [1], [0, 0, 1, 1], [], []>} : vector<256x128xf32>, vector<128x128xf32>, vector<256x128xf32> -> vector<256x128xf32>
    %116 = arith.addf %112, %115 : vector<256x128xf32>
    %c0_158 = arith.constant 0 : index
    %c0_159 = arith.constant 0 : index
    %117 = vector.load %arg6[%c0_158, %c0_159] : memref<256x128xf32, #tpu.memory_space<vmem>>, vector<256x128xf32>
    tpu.vector_store %arg6[%c0_158, %c0_159], %116 {strides = array<i32>} : memref<256x128xf32, #tpu.memory_space<vmem>>, vector<256x128xf32>,
    %c1_160 = arith.constant 1 : index
    %c0_161 = arith.constant 0 : index
    %c0_162 = arith.constant 0 : index
    %118 = vector.load %arg5[%c1_160, %c0_161, %c0_162] : memref<18x18x128xf32, #tpu.memory_space<vmem>>, vector<16x16x128xf32>
    %119 = vector.shape_cast %118 : vector<16x16x128xf32> to vector<256x128xf32>
    %c0_163 = arith.constant 0 : index
    %c0_164 = arith.constant 0 : index
    %120 = vector.load %arg6[%c0_163, %c0_164] : memref<256x128xf32, #tpu.memory_space<vmem>>, vector<256x128xf32>
    %c1_165 = arith.constant 1 : index
    %c3_166 = arith.constant 3 : index
    %c0_167 = arith.constant 0 : index
    %c0_168 = arith.constant 0 : index
    %121 = vector.load %arg2[%c1_165, %c3_166, %c0_167, %c0_168] : memref<2x9x128x128xf32, #tpu.memory_space<vmem>>, vector<1x1x128x128xf32>
    %122 = vector.shape_cast %121 : vector<1x1x128x128xf32> to vector<128x128xf32>
    %cst_169 = arith.constant dense<0.000000e+00> : vector<256x128xf32>
    %123 = tpu.matmul %119, %122, %cst_169 {dimension_numbers = #tpu.dot_dimension_numbers<[1], [0], [0], [1], [0, 0, 1, 1], [], []>} : vector<256x128xf32>, vector<128x128xf32>, vector<256x128xf32> -> vector<256x128xf32>
    %124 = arith.addf %120, %123 : vector<256x128xf32>
    %c0_170 = arith.constant 0 : index
    %c0_171 = arith.constant 0 : index
    %125 = vector.load %arg6[%c0_170, %c0_171] : memref<256x128xf32, #tpu.memory_space<vmem>>, vector<256x128xf32>
    tpu.vector_store %arg6[%c0_170, %c0_171], %124 {strides = array<i32>} : memref<256x128xf32, #tpu.memory_space<vmem>>, vector<256x128xf32>,
    %c1_172 = arith.constant 1 : index
    %c1_173 = arith.constant 1 : index
    %c0_174 = arith.constant 0 : index
    %126 = vector.load %arg5[%c1_172, %c1_173, %c0_174] : memref<18x18x128xf32, #tpu.memory_space<vmem>>, vector<16x16x128xf32>
    %127 = vector.shape_cast %126 : vector<16x16x128xf32> to vector<256x128xf32>
    %c0_175 = arith.constant 0 : index
    %c0_176 = arith.constant 0 : index
    %128 = vector.load %arg6[%c0_175, %c0_176] : memref<256x128xf32, #tpu.memory_space<vmem>>, vector<256x128xf32>
    %c1_177 = arith.constant 1 : index
    %c4_178 = arith.constant 4 : index
    %c0_179 = arith.constant 0 : index
    %c0_180 = arith.constant 0 : index
    %129 = vector.load %arg2[%c1_177, %c4_178, %c0_179, %c0_180] : memref<2x9x128x128xf32, #tpu.memory_space<vmem>>, vector<1x1x128x128xf32>
    %130 = vector.shape_cast %129 : vector<1x1x128x128xf32> to vector<128x128xf32>
    %cst_181 = arith.constant dense<0.000000e+00> : vector<256x128xf32>
    %131 = tpu.matmul %127, %130, %cst_181 {dimension_numbers = #tpu.dot_dimension_numbers<[1], [0], [0], [1], [0, 0, 1, 1], [], []>} : vector<256x128xf32>, vector<128x128xf32>, vector<256x128xf32> -> vector<256x128xf32>
    %132 = arith.addf %128, %131 : vector<256x128xf32>
    %c0_182 = arith.constant 0 : index
    %c0_183 = arith.constant 0 : index
    %133 = vector.load %arg6[%c0_182, %c0_183] : memref<256x128xf32, #tpu.memory_space<vmem>>, vector<256x128xf32>
    tpu.vector_store %arg6[%c0_182, %c0_183], %132 {strides = array<i32>} : memref<256x128xf32, #tpu.memory_space<vmem>>, vector<256x128xf32>,
    %c1_184 = arith.constant 1 : index
    %c2_185 = arith.constant 2 : index
    %c0_186 = arith.constant 0 : index
    %134 = vector.load %arg5[%c1_184, %c2_185, %c0_186] : memref<18x18x128xf32, #tpu.memory_space<vmem>>, vector<16x16x128xf32>
    %135 = vector.shape_cast %134 : vector<16x16x128xf32> to vector<256x128xf32>
    %c0_187 = arith.constant 0 : index
    %c0_188 = arith.constant 0 : index
    %136 = vector.load %arg6[%c0_187, %c0_188] : memref<256x128xf32, #tpu.memory_space<vmem>>, vector<256x128xf32>
    %c1_189 = arith.constant 1 : index
    %c5_190 = arith.constant 5 : index
    %c0_191 = arith.constant 0 : index
    %c0_192 = arith.constant 0 : index
    %137 = vector.load %arg2[%c1_189, %c5_190, %c0_191, %c0_192] : memref<2x9x128x128xf32, #tpu.memory_space<vmem>>, vector<1x1x128x128xf32>
    %138 = vector.shape_cast %137 : vector<1x1x128x128xf32> to vector<128x128xf32>
    %cst_193 = arith.constant dense<0.000000e+00> : vector<256x128xf32>
    %139 = tpu.matmul %135, %138, %cst_193 {dimension_numbers = #tpu.dot_dimension_numbers<[1], [0], [0], [1], [0, 0, 1, 1], [], []>} : vector<256x128xf32>, vector<128x128xf32>, vector<256x128xf32> -> vector<256x128xf32>
    %140 = arith.addf %136, %139 : vector<256x128xf32>
    %c0_194 = arith.constant 0 : index
    %c0_195 = arith.constant 0 : index
    %141 = vector.load %arg6[%c0_194, %c0_195] : memref<256x128xf32, #tpu.memory_space<vmem>>, vector<256x128xf32>
    tpu.vector_store %arg6[%c0_194, %c0_195], %140 {strides = array<i32>} : memref<256x128xf32, #tpu.memory_space<vmem>>, vector<256x128xf32>,
    %c2_196 = arith.constant 2 : index
    %c0_197 = arith.constant 0 : index
    %c0_198 = arith.constant 0 : index
    %142 = vector.load %arg5[%c2_196, %c0_197, %c0_198] : memref<18x18x128xf32, #tpu.memory_space<vmem>>, vector<16x16x128xf32>
    %143 = vector.shape_cast %142 : vector<16x16x128xf32> to vector<256x128xf32>
    %c0_199 = arith.constant 0 : index
    %c0_200 = arith.constant 0 : index
    %144 = vector.load %arg6[%c0_199, %c0_200] : memref<256x128xf32, #tpu.memory_space<vmem>>, vector<256x128xf32>
    %c1_201 = arith.constant 1 : index
    %c6_202 = arith.constant 6 : index
    %c0_203 = arith.constant 0 : index
    %c0_204 = arith.constant 0 : index
    %145 = vector.load %arg2[%c1_201, %c6_202, %c0_203, %c0_204] : memref<2x9x128x128xf32, #tpu.memory_space<vmem>>, vector<1x1x128x128xf32>
    %146 = vector.shape_cast %145 : vector<1x1x128x128xf32> to vector<128x128xf32>
    %cst_205 = arith.constant dense<0.000000e+00> : vector<256x128xf32>
    %147 = tpu.matmul %143, %146, %cst_205 {dimension_numbers = #tpu.dot_dimension_numbers<[1], [0], [0], [1], [0, 0, 1, 1], [], []>} : vector<256x128xf32>, vector<128x128xf32>, vector<256x128xf32> -> vector<256x128xf32>
    %148 = arith.addf %144, %147 : vector<256x128xf32>
    %c0_206 = arith.constant 0 : index
    %c0_207 = arith.constant 0 : index
    %149 = vector.load %arg6[%c0_206, %c0_207] : memref<256x128xf32, #tpu.memory_space<vmem>>, vector<256x128xf32>
    tpu.vector_store %arg6[%c0_206, %c0_207], %148 {strides = array<i32>} : memref<256x128xf32, #tpu.memory_space<vmem>>, vector<256x128xf32>,
    %c2_208 = arith.constant 2 : index
    %c1_209 = arith.constant 1 : index
    %c0_210 = arith.constant 0 : index
    %150 = vector.load %arg5[%c2_208, %c1_209, %c0_210] : memref<18x18x128xf32, #tpu.memory_space<vmem>>, vector<16x16x128xf32>
    %151 = vector.shape_cast %150 : vector<16x16x128xf32> to vector<256x128xf32>
    %c0_211 = arith.constant 0 : index
    %c0_212 = arith.constant 0 : index
    %152 = vector.load %arg6[%c0_211, %c0_212] : memref<256x128xf32, #tpu.memory_space<vmem>>, vector<256x128xf32>
    %c1_213 = arith.constant 1 : index
    %c7_214 = arith.constant 7 : index
    %c0_215 = arith.constant 0 : index
    %c0_216 = arith.constant 0 : index
    %153 = vector.load %arg2[%c1_213, %c7_214, %c0_215, %c0_216] : memref<2x9x128x128xf32, #tpu.memory_space<vmem>>, vector<1x1x128x128xf32>
    %154 = vector.shape_cast %153 : vector<1x1x128x128xf32> to vector<128x128xf32>
    %cst_217 = arith.constant dense<0.000000e+00> : vector<256x128xf32>
    %155 = tpu.matmul %151, %154, %cst_217 {dimension_numbers = #tpu.dot_dimension_numbers<[1], [0], [0], [1], [0, 0, 1, 1], [], []>} : vector<256x128xf32>, vector<128x128xf32>, vector<256x128xf32> -> vector<256x128xf32>
    %156 = arith.addf %152, %155 : vector<256x128xf32>
    %c0_218 = arith.constant 0 : index
    %c0_219 = arith.constant 0 : index
    %157 = vector.load %arg6[%c0_218, %c0_219] : memref<256x128xf32, #tpu.memory_space<vmem>>, vector<256x128xf32>
    tpu.vector_store %arg6[%c0_218, %c0_219], %156 {strides = array<i32>} : memref<256x128xf32, #tpu.memory_space<vmem>>, vector<256x128xf32>,
    %c2_220 = arith.constant 2 : index
    %c2_221 = arith.constant 2 : index
    %c0_222 = arith.constant 0 : index
    %158 = vector.load %arg5[%c2_220, %c2_221, %c0_222] : memref<18x18x128xf32, #tpu.memory_space<vmem>>, vector<16x16x128xf32>
    %159 = vector.shape_cast %158 : vector<16x16x128xf32> to vector<256x128xf32>
    %c0_223 = arith.constant 0 : index
    %c0_224 = arith.constant 0 : index
    %160 = vector.load %arg6[%c0_223, %c0_224] : memref<256x128xf32, #tpu.memory_space<vmem>>, vector<256x128xf32>
    %c1_225 = arith.constant 1 : index
    %c8_226 = arith.constant 8 : index
    %c0_227 = arith.constant 0 : index
    %c0_228 = arith.constant 0 : index
    %161 = vector.load %arg2[%c1_225, %c8_226, %c0_227, %c0_228] : memref<2x9x128x128xf32, #tpu.memory_space<vmem>>, vector<1x1x128x128xf32>
    %162 = vector.shape_cast %161 : vector<1x1x128x128xf32> to vector<128x128xf32>
    %cst_229 = arith.constant dense<0.000000e+00> : vector<256x128xf32>
    %163 = tpu.matmul %159, %162, %cst_229 {dimension_numbers = #tpu.dot_dimension_numbers<[1], [0], [0], [1], [0, 0, 1, 1], [], []>} : vector<256x128xf32>, vector<128x128xf32>, vector<256x128xf32> -> vector<256x128xf32>
    %164 = arith.addf %160, %163 : vector<256x128xf32>
    %c0_230 = arith.constant 0 : index
    %c0_231 = arith.constant 0 : index
    %165 = vector.load %arg6[%c0_230, %c0_231] : memref<256x128xf32, #tpu.memory_space<vmem>>, vector<256x128xf32>
    tpu.vector_store %arg6[%c0_230, %c0_231], %164 {strides = array<i32>} : memref<256x128xf32, #tpu.memory_space<vmem>>, vector<256x128xf32>,
    %c0_232 = arith.constant 0 : index
    %c0_233 = arith.constant 0 : index
    %166 = vector.load %arg6[%c0_232, %c0_233] : memref<256x128xf32, #tpu.memory_space<vmem>>, vector<256x128xf32>
    %c1_234 = arith.constant 1 : index
    %c0_235 = arith.constant 0 : index
    %c0_236 = arith.constant 0 : index
    %167 = vector.load %arg3[%c1_234, %c0_235, %c0_236] : memref<2x1x128xf32, #tpu.memory_space<vmem>>, vector<1x1x128xf32>
    %168 = vector.shape_cast %167 : vector<1x1x128xf32> to vector<1x128xf32>
    %169 = vector.broadcast %168 : vector<1x128xf32> to vector<256x128xf32>
    %170 = arith.addf %166, %169 : vector<256x128xf32>
    %171 = arith.negf %170 : vector<256x128xf32>
    %172 = math.exp %171 : vector<256x128xf32>
    %cst_237 = arith.constant 1.000000e+00 : f32
    %173 = vector.broadcast %cst_237 : f32 to vector<256x128xf32>
    %174 = arith.addf %173, %172 : vector<256x128xf32>
    %175 = arith.divf %173, %174 : vector<256x128xf32>
    %176 = arith.mulf %170, %175 : vector<256x128xf32>
    %177 = vector.shape_cast %176 : vector<256x128xf32> to vector<1x16x16x128xf32>
    %c0_238 = arith.constant 0 : index
    %c0_239 = arith.constant 0 : index
    %c0_240 = arith.constant 0 : index
    %c0_241 = arith.constant 0 : index
    %178 = vector.load %arg4[%c0_238, %c0_239, %c0_240, %c0_241] : memref<1x16x16x128xf32, #tpu.memory_space<vmem>>, vector<1x16x16x128xf32>
    tpu.vector_store %arg4[%c0_238, %c0_239, %c0_240, %c0_241], %177 {strides = array<i32>} : memref<1x16x16x128xf32, #tpu.memory_space<vmem>>, vector<1x16x16x128xf32>,
    return
  }
  func.func @transform_0(%arg0: i32) -> (i32, i32, i32, i32) {
    %c0_i32 = arith.constant 0 : i32
    %c0_i32_0 = arith.constant 0 : i32
    %c0_i32_1 = arith.constant 0 : i32
    %c0_i32_2 = arith.constant 0 : i32
    return %arg0, %c0_i32, %c0_i32_0, %c0_i32_1 : i32, i32, i32, i32
  }
  func.func @transform_1(%arg0: i32) -> (i32, i32, i32, i32) {
    %c0_i32 = arith.constant 0 : i32
    %c0_i32_0 = arith.constant 0 : i32
    %c0_i32_1 = arith.constant 0 : i32
    %c0_i32_2 = arith.constant 0 : i32
    %c0_i32_3 = arith.constant 0 : i32
    return %c0_i32, %c0_i32_0, %c0_i32_1, %c0_i32_2 : i32, i32, i32, i32
  }
  func.func @transform_2(%arg0: i32) -> (i32, i32, i32) {
    %c0_i32 = arith.constant 0 : i32
    %c0_i32_0 = arith.constant 0 : i32
    %c0_i32_1 = arith.constant 0 : i32
    %c0_i32_2 = arith.constant 0 : i32
    return %c0_i32, %c0_i32_0, %c0_i32_1 : i32, i32, i32
  }
  func.func @transform_3(%arg0: i32) -> (i32, i32, i32, i32) {
    %c0_i32 = arith.constant 0 : i32
    %c0_i32_0 = arith.constant 0 : i32
    %c0_i32_1 = arith.constant 0 : i32
    %c0_i32_2 = arith.constant 0 : i32
    return %arg0, %c0_i32, %c0_i32_0, %c0_i32_1 : i32, i32, i32, i32
  }
}

</mosaic_0001>

<llo_original>
// kernel: tpu_custom_call.1
$region0: #{tpu_custom_call.1}
  #allocation0 [shape = 'u32[]', space=smem, size = 0x4, offset = 0x4, fixed_abs, tag = 'smem constant byte address 0x4 - core index']
  #allocation1 [shape = 'u32[144,128]{1,0:T(1,128)}', space=vmem, size = 0x12000, scoped, tag = 'internal scratch']
  #allocation2 [shape = 'f32[18,18,128]{2,1,0:T(8,128)}', space=vmem, size = 0x36000, scoped, tag = 'scratch operand']
  #allocation3 [shape = 'f32[256,128]{1,0:T(8,128)}', space=vmem, size = 0x20000, scoped, tag = 'scratch operand']
  %s0 = inlined_call_operand.hbm [shape: f32[2,16,16,128], index: 0, kind: input, shape index: {}]
  %s1 = inlined_call_operand.hbm [shape: f32[2,9,128,128], index: 1, kind: input, shape index: {}]
  %s2 = inlined_call_operand.hbm [shape: f32[2,1,128], index: 2, kind: input, shape index: {}]
  %s3 = inlined_call_operand.hbm [shape: f32[2,16,16,128], index: 3, kind: output, shape index: {}]
  %s4 = sld [smem:[#allocation0]]
  $region57: #{tpu_custom_call.1} parent=0
    _
  %s6 = ssub.s32 1, %s4
  %s7 = scalar_select 0, %s6, %s4
  $region1: #{tpu_custom_call.1} parent=0
    #allocation4 [shape = 'u8[262144]{0}', space=vmem, size = 0x40000, scoped, tag = 'input window, operand 0']
    #allocation5 [shape = 's32[2]{0}', space=sflag, size = 0x8, scoped, tag = 'scoped memory for tpu_custom_call.1']
    #allocation6 [shape = 's32[2]{0}', space=sflag, size = 0x8, scoped, tag = 'scoped memory for tpu_custom_call.1']
    #allocation7 [shape = 'u8[1179648]{0}', space=vmem, size = 0x120000, scoped, tag = 'input window, operand 1, single buffered']
    #allocation8 [shape = 's32[1]{0}', space=sflag, size = 0x4, scoped, tag = 'scoped memory for tpu_custom_call.1']
    #allocation9 [shape = 'u8[1024]{0}', space=vmem, size = 0x400, scoped, tag = 'input window, operand 2, single buffered']
    #allocation10 [shape = 'u8[262144]{0}', space=vmem, size = 0x40000, scoped, tag = 'output window, operand 0']
    %8 = vsyncpa [#allocation5], 0
    %s9 = scalar_lea.sflag [#allocation5], 1
    %10 = vsyncpa %s9, 0
    %11 = vsyncpa [#allocation8], 0
    %12 = vsyncpa [#allocation6], 0
    %s13 = scalar_lea.sflag [#allocation6], 1
    %14 = vsyncpa %s13, 0
    loop: start=0, step=1, limit=4
    $region2: #{tpu_custom_call.1} parent=1 // loop_pre_header
      _
    $region3: #{tpu_custom_call.1} parent=1 // loop_header
      %s16 = sphi 0, %s20
      %p17 = scmp.ge.s32.totalorder %s16, 4
      %s26 = sphi 0, %s28
      %s29 = sphi 0, %s26
      %s30 = sphi 0, %s29
      %s46 = sphi 0, %s30
      %s50 = sphi 0, %s50
      %s52 = sphi 0, %s50
      %s53 = sphi 0, %s52
      %s67 = sphi 0, %s53
      %s71 = sphi 0, %s71
      %s73 = sphi 0, %s71
      %s74 = sphi 0, %s73
      %s88 = sphi 0, %s74
      %s94 = sphi 0, %s96
      %s97 = sphi 0, %s94
      %s98 = sphi 0, %s97
      %s114 = sphi 0, %s98
    $region4: #{tpu_custom_call.1} parent=1 // loop_header_branch
      %19 = sbr.rel (%p17) target = $region8
    $region5: #{tpu_custom_call.1} parent=1 // loop_body
      %s21 = ssub.s32 %s16, 1
      %s22 = ssub.s32 %s16, 2
      %s23 = sadd.s32 %s16, 1
      %s24 = ssub.s32 %s16, %s23
      %p25 = scmp.eq.s32.totalorder %s24, 0
      %s27 = sadd.s32 %s26, 1
      %s28 = scalar_select %p25, %s26, %s27
      %p31 = pneg %p25
      %p32 = scmp.eq.s32.totalorder %s16, 1
      %p33 = por %p31, %p32
      %p34 = scmp.ne.s32.totalorder %s26, %s29
      %p35 = scmp.eq.s32.totalorder %s16, 0
      %p36 = por %p34, %p35
      %p37 = scmp.ne.s32.totalorder %s26, %s29
      %p38 = scmp.eq.s32.totalorder %s21, 1
      %p39 = por %p37, %p38
      %p40 = scmp.ne.s32.totalorder %s29, %s30
      %p41 = scmp.eq.s32.totalorder %s21, 0
      %p42 = por %p40, %p41
      %p43 = scmp.ne.s32.totalorder %s29, %s30
      %p44 = scmp.eq.s32.totalorder %s22, 1
      %p45 = por %p43, %p44
      %p47 = scmp.ne.s32.totalorder %s30, %s46
      %p48 = scmp.eq.s32.totalorder %s22, 0
      %p49 = por %p47, %p48
      %s51 = sadd.s32 %s50, 1
      %p54 = scmp.eq.s32.totalorder %s16, 1
      %p55 = scmp.ne.s32.totalorder %s50, %s52
      %p56 = scmp.eq.s32.totalorder %s16, 0
      %p57 = por %p55, %p56
      %p58 = scmp.ne.s32.totalorder %s50, %s52
      %p59 = scmp.eq.s32.totalorder %s21, 1
      %p60 = por %p58, %p59
      %p61 = scmp.ne.s32.totalorder %s52, %s53
      %p62 = scmp.eq.s32.totalorder %s21, 0
      %p63 = por %p61, %p62
      %p64 = scmp.ne.s32.totalorder %s52, %s53
      %p65 = scmp.eq.s32.totalorder %s22, 1
      %p66 = por %p64, %p65
      %p68 = scmp.ne.s32.totalorder %s53, %s67
      %p69 = scmp.eq.s32.totalorder %s22, 0
      %p70 = por %p68, %p69
      %s72 = sadd.s32 %s71, 1
      %p75 = scmp.eq.s32.totalorder %s16, 1
      %p76 = scmp.ne.s32.totalorder %s71, %s73
      %p77 = scmp.eq.s32.totalorder %s16, 0
      %p78 = por %p76, %p77
      %p79 = scmp.ne.s32.totalorder %s71, %s73
      %p80 = scmp.eq.s32.totalorder %s21, 1
      %p81 = por %p79, %p80
      %p82 = scmp.ne.s32.totalorder %s73, %s74
      %p83 = scmp.eq.s32.totalorder %s21, 0
      %p84 = por %p82, %p83
      %p85 = scmp.ne.s32.totalorder %s73, %s74
      %p86 = scmp.eq.s32.totalorder %s22, 1
      %p87 = por %p85, %p86
      %p89 = scmp.ne.s32.totalorder %s74, %s88
      %p90 = scmp.eq.s32.totalorder %s22, 0
      %p91 = por %p89, %p90
      %s92 = ssub.s32 %s16, %s23
      %p93 = scmp.eq.s32.totalorder %s92, 0
      %s95 = sadd.s32 %s94, 1
      %s96 = scalar_select %p93, %s94, %s95
      %p99 = pneg %p93
      %p100 = scmp.eq.s32.totalorder %s16, 1
      %p101 = por %p99, %p100
      %p102 = scmp.ne.s32.totalorder %s94, %s97
      %p103 = scmp.eq.s32.totalorder %s16, 0
      %p104 = por %p102, %p103
      %p105 = scmp.ne.s32.totalorder %s94, %s97
      %p106 = scmp.eq.s32.totalorder %s21, 1
      %p107 = por %p105, %p106
      %p108 = scmp.ne.s32.totalorder %s97, %s98
      %p109 = scmp.eq.s32.totalorder %s21, 0
      %p110 = por %p108, %p109
      %p111 = scmp.ne.s32.totalorder %s97, %s98
      %p112 = scmp.eq.s32.totalorder %s22, 1
      %p113 = por %p111, %p112
      %p115 = scmp.ne.s32.totalorder %s98, %s114
      %p116 = scmp.eq.s32.totalorder %s22, 0
      %p117 = por %p115, %p116
      %p118 = scmp.le.s32.totalorder 1, %s16
      %p119 = scmp.lt.s32.totalorder %s16, 3
      %p120 = pnand %p118, %p119
      %p121 = pneg %p120
      // Predicated region
      $region9: #{tpu_custom_call.1} parent=5 // pred_check
        _
      $region10: #{tpu_custom_call.1} parent=5 // pred_check_branch
        %123 = sbr.rel (%p120) target = $region12
      $region11: #{tpu_custom_call.1} parent=5 // pred_region
        %s124 = ssub.s32 %s16, 1
        // Predicated region
        $region13: #{tpu_custom_call.1} parent=11 // pred_check
          %p125 = pneg %p63
        $region14: #{tpu_custom_call.1} parent=11 // pred_check_branch
          %127 = sbr.rel (%p125) target = $region16
        $region15: #{tpu_custom_call.1} parent=11 // pred_region
          %s129 = ssub.s32 36864, 36864
          %130 = vsyncadd [#allocation8], %s129
          %s131 = sshll.u32 [#allocation7], 4
          %s132 = int_to_ptr.vmem [resolvable:$true] %s131
          %137 = dma.hbm_to_vmem [thread:$0]  %s1, 36864, %s132, [#allocation8], 128, 128, 8
        $region16: #{tpu_custom_call.1} parent=11 // pred_fallthru
          _
        // Predicated region
        $region17: #{tpu_custom_call.1} parent=11 // pred_check
          %p138 = pneg %p84
        $region18: #{tpu_custom_call.1} parent=11 // pred_check_branch
          %140 = sbr.rel (%p138) target = $region20
        $region19: #{tpu_custom_call.1} parent=11 // pred_region
          %s142 = ssub.s32 32, 32
          %143 = vsyncadd [#allocation8], %s142
          %s144 = sshll.u32 [#allocation9], 4
          %s145 = int_to_ptr.vmem [resolvable:$true] %s144
          %150 = dma.hbm_to_vmem [thread:$0]  %s2, 32, %s145, [#allocation8], 16, 16, 1
        $region20: #{tpu_custom_call.1} parent=11 // pred_fallthru
          _
      $region12: #{tpu_custom_call.1} parent=5 // pred_fallthru
        _
      %p151 = scmp.lt.s32.totalorder %s16, 2
      // Predicated region
      $region21: #{tpu_custom_call.1} parent=5 // pred_check
        %p152 = pneg %p151
      $region22: #{tpu_custom_call.1} parent=5 // pred_check_branch
        %154 = sbr.rel (%p152) target = $region24
      $region23: #{tpu_custom_call.1} parent=5 // pred_region
        // Predicated region
        $region25: #{tpu_custom_call.1} parent=23 // pred_check
          %p155 = pneg %p36
        $region26: #{tpu_custom_call.1} parent=23 // pred_check_branch
          %157 = sbr.rel (%p155) target = $region28
        $region27: #{tpu_custom_call.1} parent=23 // pred_region
          %s158 = sand.u32 %s26, 1
          %s159 = scalar_lea.sflag [#allocation5], %s158
          %s160 = sand.u32 %s26, 1
          %s161 = smul.addr %s160, 256
          %s162 = scalar_lea.vmem [#allocation4], %s161
          %s164 = ssub.s32 4096, 4096
          %165 = vsyncadd %s159, %s164
          %s166 = smul.addr %s16, 32
          %s167 = smul.addr %s166, 128
          %s168 = scalar_lea.hbm %s0, %s167
          %s169 = sshll.u32 %s162, 4
          %s170 = int_to_ptr.vmem [resolvable:$true] %s169
          %175 = dma.hbm_to_vmem [thread:$0]  %s168, 4096, %s170, %s159, 128, 128, 8
        $region28: #{tpu_custom_call.1} parent=23 // pred_fallthru
          _
      $region24: #{tpu_custom_call.1} parent=5 // pred_fallthru
        _
      %p176 = scmp.le.s32.totalorder 1, %s16
      %p177 = scmp.lt.s32.totalorder %s16, 3
      %p178 = pnand %p176, %p177
      %p179 = pneg %p178
      // Predicated region
      $region29: #{tpu_custom_call.1} parent=5 // pred_check
        _
      $region30: #{tpu_custom_call.1} parent=5 // pred_check_branch
        %181 = sbr.rel (%p178) target = $region32
      $region31: #{tpu_custom_call.1} parent=5 // pred_region
        %s182 = ssub.s32 %s16, 1
        %s183 = sand.u32 %s29, 1
        %s184 = scalar_lea.sflag [#allocation5], %s183
        %s185 = sand.u32 %s29, 1
        %s186 = smul.addr %s185, 256
        %s187 = scalar_lea.vmem [#allocation4], %s186
        // Predicated region
        $region33: #{tpu_custom_call.1} parent=31 // pred_check
          %p188 = pneg %p42
        $region34: #{tpu_custom_call.1} parent=31 // pred_check_branch
          %190 = sbr.rel (%p188) target = $region36
        $region35: #{tpu_custom_call.1} parent=31 // pred_region
          %191 = dma.done %s184, 4096
        $region36: #{tpu_custom_call.1} parent=31 // pred_fallthru
          _
        // Predicated region
        $region37: #{tpu_custom_call.1} parent=31 // pred_check
          %p192 = pneg %p63
        $region38: #{tpu_custom_call.1} parent=31 // pred_check_branch
          %194 = sbr.rel (%p192) target = $region40
        $region39: #{tpu_custom_call.1} parent=31 // pred_region
          %195 = dma.done [#allocation8], 36864
        $region40: #{tpu_custom_call.1} parent=31 // pred_fallthru
          _
        // Predicated region
        $region41: #{tpu_custom_call.1} parent=31 // pred_check
          %p196 = pneg %p84
        $region42: #{tpu_custom_call.1} parent=31 // pred_check_branch
          %198 = sbr.rel (%p196) target = $region44
        $region43: #{tpu_custom_call.1} parent=31 // pred_region
          %199 = dma.done [#allocation8], 32
        $region44: #{tpu_custom_call.1} parent=31 // pred_fallthru
          _
        %s200 = sand.u32 %s29, 1
        %s201 = scalar_lea.sflag [#allocation5], %s200
        %s202 = sand.u32 %s29, 1
        %s203 = smul.addr %s202, 256
        %s204 = scalar_lea.vmem [#allocation4], %s203
        %p205 = pneg %p42
        %p206 = pneg %p39
        %p207 = pneg %p63
        %p208 = pneg %p60
        %p209 = pneg %p84
        %p210 = pneg %p81
        %p211 = pneg %p110
        %p212 = pneg %p107
        %s213 = sand.u32 %s97, 1
        %s214 = scalar_lea.sflag [#allocation6], %s213
        %s215 = sand.u32 %s97, 1
        %s216 = smul.addr %s215, 256
        %s217 = scalar_lea.vmem [#allocation10], %s216
        %218 = vst [vmem:[#allocation2] sm:$0xff] 0.0
        %219 = vst [vmem:[#allocation2 + $0x8] sm:$0xff] 0.0
        %220 = vst [vmem:[#allocation2 + $0x10] sm:$0x3] 0.0
        %221 = vst [vmem:[#allocation2 + $0x18] sm:$0xff] 0.0
        %222 = vst [vmem:[#allocation2 + $0x20] sm:$0xff] 0.0
        %223 = vst [vmem:[#allocation2 + $0x28] sm:$0x3] 0.0
        %224 = vst [vmem:[#allocation2 + $0x30] sm:$0xff] 0.0
        %225 = vst [vmem:[#allocation2 + $0x38] sm:$0xff] 0.0
        %226 = vst [vmem:[#allocation2 + $0x40] sm:$0x3] 0.0
        %227 = vst [vmem:[#allocation2 + $0x48] sm:$0xff] 0.0
        %228 = vst [vmem:[#allocation2 + $0x50] sm:$0xff] 0.0
        %229 = vst [vmem:[#allocation2 + $0x58] sm:$0x3] 0.0
        %230 = vst [vmem:[#allocation2 + $0x60] sm:$0xff] 0.0
        %231 = vst [vmem:[#allocation2 + $0x68] sm:$0xff] 0.0
        %232 = vst [vmem:[#allocation2 + $0x70] sm:$0x3] 0.0
        %233 = vst [vmem:[#allocation2 + $0x78] sm:$0xff] 0.0
        %234 = vst [vmem:[#allocation2 + $0x80] sm:$0xff] 0.0
        %235 = vst [vmem:[#allocation2 + $0x88] sm:$0x3] 0.0
        %236 = vst [vmem:[#allocation2 + $0x90] sm:$0xff] 0.0
        %237 = vst [vmem:[#allocation2 + $0x98] sm:$0xff] 0.0
        %238 = vst [vmem:[#allocation2 + $0xa0] sm:$0x3] 0.0
        %239 = vst [vmem:[#allocation2 + $0xa8] sm:$0xff] 0.0
        %240 = vst [vmem:[#allocation2 + $0xb0] sm:$0xff] 0.0
        %241 = vst [vmem:[#allocation2 + $0xb8] sm:$0x3] 0.0
        %242 = vst [vmem:[#allocation2 + $0xc0] sm:$0xff] 0.0
        %243 = vst [vmem:[#allocation2 + $0xc8] sm:$0xff] 0.0
        %244 = vst [vmem:[#allocation2 + $0xd0] sm:$0x3] 0.0
        %245 = vst [vmem:[#allocation2 + $0xd8] sm:$0xff] 0.0
        %246 = vst [vmem:[#allocation2 + $0xe0] sm:$0xff] 0.0
        %247 = vst [vmem:[#allocation2 + $0xe8] sm:$0x3] 0.0
        %248 = vst [vmem:[#allocation2 + $0xf0] sm:$0xff] 0.0
        %249 = vst [vmem:[#allocation2 + $0xf8] sm:$0xff] 0.0
        %250 = vst [vmem:[#allocation2 + $0x100] sm:$0x3] 0.0
        %251 = vst [vmem:[#allocation2 + $0x108] sm:$0xff] 0.0
        %252 = vst [vmem:[#allocation2 + $0x110] sm:$0xff] 0.0
        %253 = vst [vmem:[#allocation2 + $0x118] sm:$0x3] 0.0
        %254 = vst [vmem:[#allocation2 + $0x120] sm:$0xff] 0.0
        %255 = vst [vmem:[#allocation2 + $0x128] sm:$0xff] 0.0
        %256 = vst [vmem:[#allocation2 + $0x130] sm:$0x3] 0.0
        %257 = vst [vmem:[#allocation2 + $0x138] sm:$0xff] 0.0
        %258 = vst [vmem:[#allocation2 + $0x140] sm:$0xff] 0.0
        %259 = vst [vmem:[#allocation2 + $0x148] sm:$0x3] 0.0
        %260 = vst [vmem:[#allocation2 + $0x150] sm:$0xff] 0.0
        %261 = vst [vmem:[#allocation2 + $0x158] sm:$0xff] 0.0
        %262 = vst [vmem:[#allocation2 + $0x160] sm:$0x3] 0.0
        %263 = vst [vmem:[#allocation2 + $0x168] sm:$0xff] 0.0
        %264 = vst [vmem:[#allocation2 + $0x170] sm:$0xff] 0.0
        %265 = vst [vmem:[#allocation2 + $0x178] sm:$0x3] 0.0
        %266 = vst [vmem:[#allocation2 + $0x180] sm:$0xff] 0.0
        %267 = vst [vmem:[#allocation2 + $0x188] sm:$0xff] 0.0
        %268 = vst [vmem:[#allocation2 + $0x190] sm:$0x3] 0.0
        %269 = vst [vmem:[#allocation2 + $0x198] sm:$0xff] 0.0
        %270 = vst [vmem:[#allocation2 + $0x1a0] sm:$0xff] 0.0
        %271 = vst [vmem:[#allocation2 + $0x1a8] sm:$0x3] 0.0
        %v272 = vld [vmem:[%s187] sm:$0xff]
        %v273 = vld [vmem:[%s187 + $0x8] sm:$0xff]
        %v274 = vld [vmem:[%s187 + $0x10] sm:$0xff]
        %v275 = vld [vmem:[%s187 + $0x18] sm:$0xff]
        %v276 = vld [vmem:[%s187 + $0x20] sm:$0xff]
        %v277 = vld [vmem:[%s187 + $0x28] sm:$0xff]
        %v278 = vld [vmem:[%s187 + $0x30] sm:$0xff]
        %v279 = vld [vmem:[%s187 + $0x38] sm:$0xff]
        %v280 = vld [vmem:[%s187 + $0x40] sm:$0xff]
        %v281 = vld [vmem:[%s187 + $0x48] sm:$0xff]
        %v282 = vld [vmem:[%s187 + $0x50] sm:$0xff]
        %v283 = vld [vmem:[%s187 + $0x58] sm:$0xff]
        %v284 = vld [vmem:[%s187 + $0x60] sm:$0xff]
        %v285 = vld [vmem:[%s187 + $0x68] sm:$0xff]
        %v286 = vld [vmem:[%s187 + $0x70] sm:$0xff]
        %v287 = vld [vmem:[%s187 + $0x78] sm:$0xff]
        %v288 = vld [vmem:[%s187 + $0x80] sm:$0xff]
        %v289 = vld [vmem:[%s187 + $0x88] sm:$0xff]
        %v290 = vld [vmem:[%s187 + $0x90] sm:$0xff]
        %v291 = vld [vmem:[%s187 + $0x98] sm:$0xff]
        %v292 = vld [vmem:[%s187 + $0xa0] sm:$0xff]
        %v293 = vld [vmem:[%s187 + $0xa8] sm:$0xff]
        %v294 = vld [vmem:[%s187 + $0xb0] sm:$0xff]
        %v295 = vld [vmem:[%s187 + $0xb8] sm:$0xff]
        %v296 = vld [vmem:[%s187 + $0xc0] sm:$0xff]
        %v297 = vld [vmem:[%s187 + $0xc8] sm:$0xff]
        %v298 = vld [vmem:[%s187 + $0xd0] sm:$0xff]
        %v299 = vld [vmem:[%s187 + $0xd8] sm:$0xff]
        %v300 = vld [vmem:[%s187 + $0xe0] sm:$0xff]
        %v301 = vld [vmem:[%s187 + $0xe8] sm:$0xff]
        %v302 = vld [vmem:[%s187 + $0xf0] sm:$0xff]
        %v303 = vld [vmem:[%s187 + $0xf8] sm:$0xff]
        %s304 = scalar_lea.vmem [#allocation2], 24
        %305 = vst [vmem:[%s304 + $0x1] sm:$0xff] %v272
        %306 = vst [vmem:[%s304 + $0x9] sm:$0xff] %v273
        %307 = vst [vmem:[%s304 + $0x19] sm:$0xff] %v274
        %308 = vst [vmem:[%s304 + $0x21] sm:$0xff] %v275
        %309 = vst [vmem:[%s304 + $0x31] sm:$0xff] %v276
        %310 = vst [vmem:[%s304 + $0x39] sm:$0xff] %v277
        %311 = vst [vmem:[%s304 + $0x49] sm:$0xff] %v278
        %312 = vst [vmem:[%s304 + $0x51] sm:$0xff] %v279
        %313 = vst [vmem:[%s304 + $0x61] sm:$0xff] %v280
        %314 = vst [vmem:[%s304 + $0x69] sm:$0xff] %v281
        %315 = vst [vmem:[%s304 + $0x79] sm:$0xff] %v282
        %316 = vst [vmem:[%s304 + $0x81] sm:$0xff] %v283
        %317 = vst [vmem:[%s304 + $0x91] sm:$0xff] %v284
        %318 = vst [vmem:[%s304 + $0x99] sm:$0xff] %v285
        %319 = vst [vmem:[%s304 + $0xa9] sm:$0xff] %v286
        %320 = vst [vmem:[%s304 + $0xb1] sm:$0xff] %v287
        %321 = vst [vmem:[%s304 + $0xc1] sm:$0xff] %v288
        %322 = vst [vmem:[%s304 + $0xc9] sm:$0xff] %v289
        %323 = vst [vmem:[%s304 + $0xd9] sm:$0xff] %v290
        %324 = vst [vmem:[%s304 + $0xe1] sm:$0xff] %v291
        %325 = vst [vmem:[%s304 + $0xf1] sm:$0xff] %v292
        %326 = vst [vmem:[%s304 + $0xf9] sm:$0xff] %v293
        %327 = vst [vmem:[%s304 + $0x109] sm:$0xff] %v294
        %328 = vst [vmem:[%s304 + $0x111] sm:$0xff] %v295
        %329 = vst [vmem:[%s304 + $0x121] sm:$0xff] %v296
        %330 = vst [vmem:[%s304 + $0x129] sm:$0xff] %v297
        %331 = vst [vmem:[%s304 + $0x139] sm:$0xff] %v298
        %332 = vst [vmem:[%s304 + $0x141] sm:$0xff] %v299
        %333 = vst [vmem:[%s304 + $0x151] sm:$0xff] %v300
        %334 = vst [vmem:[%s304 + $0x159] sm:$0xff] %v301
        %335 = vst [vmem:[%s304 + $0x169] sm:$0xff] %v302
        %336 = vst [vmem:[%s304 + $0x171] sm:$0xff] %v303
        %337 = vst [vmem:[#allocation3] sm:$0xff] 0.0
        %338 = vst [vmem:[#allocation3 + $0x8] sm:$0xff] 0.0
        %339 = vst [vmem:[#allocation3 + $0x10] sm:$0xff] 0.0
        %340 = vst [vmem:[#allocation3 + $0x18] sm:$0xff] 0.0
        %341 = vst [vmem:[#allocation3 + $0x20] sm:$0xff] 0.0
        %342 = vst [vmem:[#allocation3 + $0x28] sm:$0xff] 0.0
        %343 = vst [vmem:[#allocation3 + $0x30] sm:$0xff] 0.0
        %344 = vst [vmem:[#allocation3 + $0x38] sm:$0xff] 0.0
        %345 = vst [vmem:[#allocation3 + $0x40] sm:$0xff] 0.0
        %346 = vst [vmem:[#allocation3 + $0x48] sm:$0xff] 0.0
        %347 = vst [vmem:[#allocation3 + $0x50] sm:$0xff] 0.0
        %348 = vst [vmem:[#allocation3 + $0x58] sm:$0xff] 0.0
        %349 = vst [vmem:[#allocation3 + $0x60] sm:$0xff] 0.0
        %350 = vst [vmem:[#allocation3 + $0x68] sm:$0xff] 0.0
        %351 = vst [vmem:[#allocation3 + $0x70] sm:$0xff] 0.0
        %352 = vst [vmem:[#allocation3 + $0x78] sm:$0xff] 0.0
        %353 = vst [vmem:[#allocation3 + $0x80] sm:$0xff] 0.0
        %354 = vst [vmem:[#allocation3 + $0x88] sm:$0xff] 0.0
        %355 = vst [vmem:[#allocation3 + $0x90] sm:$0xff] 0.0
        %356 = vst [vmem:[#allocation3 + $0x98] sm:$0xff] 0.0
        %357 = vst [vmem:[#allocation3 + $0xa0] sm:$0xff] 0.0
        %358 = vst [vmem:[#allocation3 + $0xa8] sm:$0xff] 0.0
        %359 = vst [vmem:[#allocation3 + $0xb0] sm:$0xff] 0.0
        %360 = vst [vmem:[#allocation3 + $0xb8] sm:$0xff] 0.0
        %361 = vst [vmem:[#allocation3 + $0xc0] sm:$0xff] 0.0
        %362 = vst [vmem:[#allocation3 + $0xc8] sm:$0xff] 0.0
        %363 = vst [vmem:[#allocation3 + $0xd0] sm:$0xff] 0.0
        %364 = vst [vmem:[#allocation3 + $0xd8] sm:$0xff] 0.0
        %365 = vst [vmem:[#allocation3 + $0xe0] sm:$0xff] 0.0
        %366 = vst [vmem:[#allocation3 + $0xe8] sm:$0xff] 0.0
        %367 = vst [vmem:[#allocation3 + $0xf0] sm:$0xff] 0.0
        %368 = vst [vmem:[#allocation3 + $0xf8] sm:$0xff] 0.0
        %v369 = vld [vmem:[#allocation2] sm:$0xff]
        %v370 = vld [vmem:[#allocation2 + $0x8] sm:$0xff]
        %v371 = vld [vmem:[#allocation2 + $0x18] sm:$0xff]
        %v372 = vld [vmem:[#allocation2 + $0x20] sm:$0xff]
        %v373 = vld [vmem:[#allocation2 + $0x30] sm:$0xff]
        %v374 = vld [vmem:[#allocation2 + $0x38] sm:$0xff]
        %v375 = vld [vmem:[#allocation2 + $0x48] sm:$0xff]
        %v376 = vld [vmem:[#allocation2 + $0x50] sm:$0xff]
        %v377 = vld [vmem:[#allocation2 + $0x60] sm:$0xff]
        %v378 = vld [vmem:[#allocation2 + $0x68] sm:$0xff]
        %v379 = vld [vmem:[#allocation2 + $0x78] sm:$0xff]
        %v380 = vld [vmem:[#allocation2 + $0x80] sm:$0xff]
        %v381 = vld [vmem:[#allocation2 + $0x90] sm:$0xff]
        %v382 = vld [vmem:[#allocation2 + $0x98] sm:$0xff]
        %v383 = vld [vmem:[#allocation2 + $0xa8] sm:$0xff]
        %v384 = vld [vmem:[#allocation2 + $0xb0] sm:$0xff]
        %v385 = vld [vmem:[#allocation2 + $0xc0] sm:$0xff]
        %v386 = vld [vmem:[#allocation2 + $0xc8] sm:$0xff]
        %v387 = vld [vmem:[#allocation2 + $0xd8] sm:$0xff]
        %v388 = vld [vmem:[#allocation2 + $0xe0] sm:$0xff]
        %v389 = vld [vmem:[#allocation2 + $0xf0] sm:$0xff]
        %v390 = vld [vmem:[#allocation2 + $0xf8] sm:$0xff]
        %v391 = vld [vmem:[#allocation2 + $0x108] sm:$0xff]
        %v392 = vld [vmem:[#allocation2 + $0x110] sm:$0xff]
        %v393 = vld [vmem:[#allocation2 + $0x120] sm:$0xff]
        %v394 = vld [vmem:[#allocation2 + $0x128] sm:$0xff]
        %v395 = vld [vmem:[#allocation2 + $0x138] sm:$0xff]
        %v396 = vld [vmem:[#allocation2 + $0x140] sm:$0xff]
        %v397 = vld [vmem:[#allocation2 + $0x150] sm:$0xff]
        %v398 = vld [vmem:[#allocation2 + $0x158] sm:$0xff]
        %v399 = vld [vmem:[#allocation2 + $0x168] sm:$0xff]
        %v400 = vld [vmem:[#allocation2 + $0x170] sm:$0xff]
        %v401 = vld [vmem:[#allocation3] sm:$0xff]
        %v402 = vld [vmem:[#allocation3 + $0x8] sm:$0xff]
        %v403 = vld [vmem:[#allocation3 + $0x10] sm:$0xff]
        %v404 = vld [vmem:[#allocation3 + $0x18] sm:$0xff]
        %v405 = vld [vmem:[#allocation3 + $0x20] sm:$0xff]
        %v406 = vld [vmem:[#allocation3 + $0x28] sm:$0xff]
        %v407 = vld [vmem:[#allocation3 + $0x30] sm:$0xff]
        %v408 = vld [vmem:[#allocation3 + $0x38] sm:$0xff]
        %v409 = vld [vmem:[#allocation3 + $0x40] sm:$0xff]
        %v410 = vld [vmem:[#allocation3 + $0x48] sm:$0xff]
        %v411 = vld [vmem:[#allocation3 + $0x50] sm:$0xff]
        %v412 = vld [vmem:[#allocation3 + $0x58] sm:$0xff]
        %v413 = vld [vmem:[#allocation3 + $0x60] sm:$0xff]
        %v414 = vld [vmem:[#allocation3 + $0x68] sm:$0xff]
        %v415 = vld [vmem:[#allocation3 + $0x70] sm:$0xff]
        %v416 = vld [vmem:[#allocation3 + $0x78] sm:$0xff]
        %v417 = vld [vmem:[#allocation3 + $0x80] sm:$0xff]
        %v418 = vld [vmem:[#allocation3 + $0x88] sm:$0xff]
        %v419 = vld [vmem:[#allocation3 + $0x90] sm:$0xff]
        %v420 = vld [vmem:[#allocation3 + $0x98] sm:$0xff]
        %v421 = vld [vmem:[#allocation3 + $0xa0] sm:$0xff]
        %v422 = vld [vmem:[#allocation3 + $0xa8] sm:$0xff]
        %v423 = vld [vmem:[#allocation3 + $0xb0] sm:$0xff]
        %v424 = vld [vmem:[#allocation3 + $0xb8] sm:$0xff]
        %v425 = vld [vmem:[#allocation3 + $0xc0] sm:$0xff]
        %v426 = vld [vmem:[#allocation3 + $0xc8] sm:$0xff]
        %v427 = vld [vmem:[#allocation3 + $0xd0] sm:$0xff]
        %v428 = vld [vmem:[#allocation3 + $0xd8] sm:$0xff]
        %v429 = vld [vmem:[#allocation3 + $0xe0] sm:$0xff]
        %v430 = vld [vmem:[#allocation3 + $0xe8] sm:$0xff]
        %v431 = vld [vmem:[#allocation3 + $0xf0] sm:$0xff]
        %v432 = vld [vmem:[#allocation3 + $0xf8] sm:$0xff]
        %v433 = vld [vmem:[#allocation7] sm:$0xff]
        %v434 = vld [vmem:[#allocation7 + $0x8] sm:$0xff]
        %v435 = vld [vmem:[#allocation7 + $0x10] sm:$0xff]
        %v436 = vld [vmem:[#allocation7 + $0x18] sm:$0xff]
        %v437 = vld [vmem:[#allocation7 + $0x20] sm:$0xff]
        %v438 = vld [vmem:[#allocation7 + $0x28] sm:$0xff]
        %v439 = vld [vmem:[#allocation7 + $0x30] sm:$0xff]
        %v440 = vld [vmem:[#allocation7 + $0x38] sm:$0xff]
        %v441 = vld [vmem:[#allocation7 + $0x40] sm:$0xff]
        %v442 = vld [vmem:[#allocation7 + $0x48] sm:$0xff]
        %v443 = vld [vmem:[#allocation7 + $0x50] sm:$0xff]
        %v444 = vld [vmem:[#allocation7 + $0x58] sm:$0xff]
        %v445 = vld [vmem:[#allocation7 + $0x60] sm:$0xff]
        %v446 = vld [vmem:[#allocation7 + $0x68] sm:$0xff]
        %v447 = vld [vmem:[#allocation7 + $0x70] sm:$0xff]
        %v448 = vld [vmem:[#allocation7 + $0x78] sm:$0xff]
        %449 = vmatprep.subr.mxu0 0.0
        %450 = vmatpush1.msra.mxu0 %v448
        %451 = vmatprep.subr.mxu0 0.0
        %452 = vmatpush1.msra.mxu0 %v447
        %453 = vmatprep.subr.mxu0 0.0
        %454 = vmatpush1.msra.mxu0 %v446
        %455 = vmatprep.subr.mxu0 0.0
        %456 = vmatpush1.msra.mxu0 %v445
        %457 = vmatprep.subr.mxu0 0.0
        %458 = vmatpush1.msra.mxu0 %v444
        %459 = vmatprep.subr.mxu0 0.0
        %460 = vmatpush1.msra.mxu0 %v443
        %461 = vmatprep.subr.mxu0 0.0
        %462 = vmatpush1.msra.mxu0 %v442
        %463 = vmatprep.subr.mxu0 0.0
        %464 = vmatpush1.msra.mxu0 %v441
        %465 = vmatprep.subr.mxu0 0.0
        %466 = vmatpush1.msra.mxu0 %v440
        %467 = vmatprep.subr.mxu0 0.0
        %468 = vmatpush1.msra.mxu0 %v439
        %469 = vmatprep.subr.mxu0 0.0
        %470 = vmatpush1.msra.mxu0 %v438
        %471 = vmatprep.subr.mxu0 0.0
        %472 = vmatpush1.msra.mxu0 %v437
        %473 = vmatprep.subr.mxu0 0.0
        %474 = vmatpush1.msra.mxu0 %v436
        %475 = vmatprep.subr.mxu0 0.0
        %476 = vmatpush1.msra.mxu0 %v435
        %477 = vmatprep.subr.mxu0 0.0
        %478 = vmatpush1.msra.mxu0 %v434
        %479 = vmatprep.subr.mxu0 0.0
        %480 = vmatpush1.msra.mxu0 %v433
        %481 = vmatprep.subr.mxu0 0.0
        %482 = vmatpush2.msra.mxu0 0.0
        %483 = vmatprep.subr.mxu0 0.0
        %484 = vmatpush2.msra.mxu0 0.0
        %485 = vmatprep.subr.mxu0 0.0
        %486 = vmatpush2.msra.mxu0 0.0
        %487 = vmatprep.subr.mxu0 0.0
        %488 = vmatpush2.msra.mxu0 0.0
        %489 = vmatprep.subr.mxu0 0.0
        %490 = vmatpush2.msra.mxu0 0.0
        %491 = vmatprep.subr.mxu0 0.0
        %492 = vmatpush2.msra.mxu0 0.0
        %493 = vmatprep.subr.mxu0 0.0
        %494 = vmatpush2.msra.mxu0 0.0
        %495 = vmatprep.subr.mxu0 0.0
        %496 = vmatpush2.msra.mxu0 0.0
        %497 = vmatprep.subr.mxu0 0.0
        %498 = vmatpush2.msra.mxu0 0.0
        %499 = vmatprep.subr.mxu0 0.0
        %500 = vmatpush2.msra.mxu0 0.0
        %501 = vmatprep.subr.mxu0 0.0
        %502 = vmatpush2.msra.mxu0 0.0
        %503 = vmatprep.subr.mxu0 0.0
        %504 = vmatpush2.msra.mxu0 0.0
        %505 = vmatprep.subr.mxu0 0.0
        %506 = vmatpush2.msra.mxu0 0.0
        %507 = vmatprep.subr.mxu0 0.0
        %508 = vmatpush2.msra.mxu0 0.0
        %509 = vmatprep.subr.mxu0 0.0
        %510 = vmatpush2.msra.mxu0 0.0
        %511 = vmatprep.subr.mxu0 0.0
        %512 = vmatpush2.msra.mxu0 0.0
        %513 = vmatprep.mubr.f32.mxu0 0.0
        %514 = vmatmul.mubr.f32.gmra.mxu0 %v369
        %v515 = vpop.f32.mrf.mxu0
        %v516 = vadd.f32 0.0, %v515
        %v517 = vpop.f32.mrf.mxu0
        %518 = vmatprep.mubr.f32.mxu0 0.0
        %519 = vmatmul.mubr.f32.gmra.mxu0 %v370
        %v520 = vpop.f32.mrf.mxu0
        %v521 = vadd.f32 0.0, %v520
        %v522 = vpop.f32.mrf.mxu0
        %523 = vmatprep.mubr.f32.mxu0 0.0
        %524 = vmatmul.mubr.f32.gmra.mxu0 %v371
        %v525 = vpop.f32.mrf.mxu0
        %v526 = vadd.f32 0.0, %v525
        %v527 = vpop.f32.mrf.mxu0
        %528 = vmatprep.mubr.f32.mxu0 0.0
        %529 = vmatmul.mubr.f32.gmra.mxu0 %v372
        %v530 = vpop.f32.mrf.mxu0
        %v531 = vadd.f32 0.0, %v530
        %v532 = vpop.f32.mrf.mxu0
        %533 = vmatprep.mubr.f32.mxu0 0.0
        %534 = vmatmul.mubr.f32.gmra.mxu0 %v373
        %v535 = vpop.f32.mrf.mxu0
        %v536 = vadd.f32 0.0, %v535
        %v537 = vpop.f32.mrf.mxu0
        %538 = vmatprep.mubr.f32.mxu0 0.0
        %539 = vmatmul.mubr.f32.gmra.mxu0 %v374
        %v540 = vpop.f32.mrf.mxu0
        %v541 = vadd.f32 0.0, %v540
        %v542 = vpop.f32.mrf.mxu0
        %543 = vmatprep.mubr.f32.mxu0 0.0
        %544 = vmatmul.mubr.f32.gmra.mxu0 %v375
        %v545 = vpop.f32.mrf.mxu0
        %v546 = vadd.f32 0.0, %v545
        %v547 = vpop.f32.mrf.mxu0
        %548 = vmatprep.mubr.f32.mxu0 0.0
        %549 = vmatmul.mubr.f32.gmra.mxu0 %v376
        %v550 = vpop.f32.mrf.mxu0
        %v551 = vadd.f32 0.0, %v550
        %v552 = vpop.f32.mrf.mxu0
        %553 = vmatprep.mubr.f32.mxu0 0.0
        %554 = vmatmul.mubr.f32.gmra.mxu0 %v377
        %v555 = vpop.f32.mrf.mxu0
        %v556 = vadd.f32 0.0, %v555
        %v557 = vpop.f32.mrf.mxu0
        %558 = vmatprep.mubr.f32.mxu0 0.0
        %559 = vmatmul.mubr.f32.gmra.mxu0 %v378
        %v560 = vpop.f32.mrf.mxu0
        %v561 = vadd.f32 0.0, %v560
        %v562 = vpop.f32.mrf.mxu0
        %563 = vmatprep.mubr.f32.mxu0 0.0
        %564 = vmatmul.mubr.f32.gmra.mxu0 %v379
        %v565 = vpop.f32.mrf.mxu0
        %v566 = vadd.f32 0.0, %v565
        %v567 = vpop.f32.mrf.mxu0
        %568 = vmatprep.mubr.f32.mxu0 0.0
        %569 = vmatmul.mubr.f32.gmra.mxu0 %v380
        %v570 = vpop.f32.mrf.mxu0
        %v571 = vadd.f32 0.0, %v570
        %v572 = vpop.f32.mrf.mxu0
        %573 = vmatprep.mubr.f32.mxu0 0.0
        %574 = vmatmul.mubr.f32.gmra.mxu0 %v381
        %v575 = vpop.f32.mrf.mxu0
        %v576 = vadd.f32 0.0, %v575
        %v577 = vpop.f32.mrf.mxu0
        %578 = vmatprep.mubr.f32.mxu0 0.0
        %579 = vmatmul.mubr.f32.gmra.mxu0 %v382
        %v580 = vpop.f32.mrf.mxu0
        %v581 = vadd.f32 0.0, %v580
        %v582 = vpop.f32.mrf.mxu0
        %583 = vmatprep.mubr.f32.mxu0 0.0
        %584 = vmatmul.mubr.f32.gmra.mxu0 %v383
        %v585 = vpop.f32.mrf.mxu0
        %v586 = vadd.f32 0.0, %v585
        %v587 = vpop.f32.mrf.mxu0
        %588 = vmatprep.mubr.f32.mxu0 0.0
        %589 = vmatmul.mubr.f32.gmra.mxu0 %v384
        %v590 = vpop.f32.mrf.mxu0
        %v591 = vadd.f32 0.0, %v590
        %v592 = vpop.f32.mrf.mxu0
        %593 = vmatprep.mubr.f32.mxu0 0.0
        %594 = vmatmul.mubr.f32.gmra.mxu0 %v385
        %v595 = vpop.f32.mrf.mxu0
        %v596 = vadd.f32 0.0, %v595
        %v597 = vpop.f32.mrf.mxu0
        %598 = vmatprep.mubr.f32.mxu0 0.0
        %599 = vmatmul.mubr.f32.gmra.mxu0 %v386
        %v600 = vpop.f32.mrf.mxu0
        %v601 = vadd.f32 0.0, %v600
        %v602 = vpop.f32.mrf.mxu0
        %603 = vmatprep.mubr.f32.mxu0 0.0
        %604 = vmatmul.mubr.f32.gmra.mxu0 %v387
        %v605 = vpop.f32.mrf.mxu0
        %v606 = vadd.f32 0.0, %v605
        %v607 = vpop.f32.mrf.mxu0
        %608 = vmatprep.mubr.f32.mxu0 0.0
        %609 = vmatmul.mubr.f32.gmra.mxu0 %v388
        %v610 = vpop.f32.mrf.mxu0
        %v611 = vadd.f32 0.0, %v610
        %v612 = vpop.f32.mrf.mxu0
        %613 = vmatprep.mubr.f32.mxu0 0.0
        %614 = vmatmul.mubr.f32.gmra.mxu0 %v389
        %v615 = vpop.f32.mrf.mxu0
        %v616 = vadd.f32 0.0, %v615
        %v617 = vpop.f32.mrf.mxu0
        %618 = vmatprep.mubr.f32.mxu0 0.0
        %619 = vmatmul.mubr.f32.gmra.mxu0 %v390
        %v620 = vpop.f32.mrf.mxu0
        %v621 = vadd.f32 0.0, %v620
        %v622 = vpop.f32.mrf.mxu0
        %623 = vmatprep.mubr.f32.mxu0 0.0
        %624 = vmatmul.mubr.f32.gmra.mxu0 %v391
        %v625 = vpop.f32.mrf.mxu0
        %v626 = vadd.f32 0.0, %v625
        %v627 = vpop.f32.mrf.mxu0
        %628 = vmatprep.mubr.f32.mxu0 0.0
        %629 = vmatmul.mubr.f32.gmra.mxu0 %v392
        %v630 = vpop.f32.mrf.mxu0
        %v631 = vadd.f32 0.0, %v630
        %v632 = vpop.f32.mrf.mxu0
        %633 = vmatprep.mubr.f32.mxu0 0.0
        %634 = vmatmul.mubr.f32.gmra.mxu0 %v393
        %v635 = vpop.f32.mrf.mxu0
        %v636 = vadd.f32 0.0, %v635
        %v637 = vpop.f32.mrf.mxu0
        %638 = vmatprep.mubr.f32.mxu0 0.0
        %639 = vmatmul.mubr.f32.gmra.mxu0 %v394
        %v640 = vpop.f32.mrf.mxu0
        %v641 = vadd.f32 0.0, %v640
        %v642 = vpop.f32.mrf.mxu0
        %643 = vmatprep.mubr.f32.mxu0 0.0
        %644 = vmatmul.mubr.f32.gmra.mxu0 %v395
        %v645 = vpop.f32.mrf.mxu0
        %v646 = vadd.f32 0.0, %v645
        %v647 = vpop.f32.mrf.mxu0
        %648 = vmatprep.mubr.f32.mxu0 0.0
        %649 = vmatmul.mubr.f32.gmra.mxu0 %v396
        %v650 = vpop.f32.mrf.mxu0
        %v651 = vadd.f32 0.0, %v650
        %v652 = vpop.f32.mrf.mxu0
        %653 = vmatprep.mubr.f32.mxu0 0.0
        %654 = vmatmul.mubr.f32.gmra.mxu0 %v397
        %v655 = vpop.f32.mrf.mxu0
        %v656 = vadd.f32 0.0, %v655
        %v657 = vpop.f32.mrf.mxu0
        %658 = vmatprep.mubr.f32.mxu0 0.0
        %659 = vmatmul.mubr.f32.gmra.mxu0 %v398
        %v660 = vpop.f32.mrf.mxu0
        %v661 = vadd.f32 0.0, %v660
        %v662 = vpop.f32.mrf.mxu0
        %663 = vmatprep.mubr.f32.mxu0 0.0
        %664 = vmatmul.mubr.f32.gmra.mxu0 %v399
        %v665 = vpop.f32.mrf.mxu0
        %v666 = vadd.f32 0.0, %v665
        %v667 = vpop.f32.mrf.mxu0
        %668 = vmatprep.mubr.f32.mxu0 0.0
        %669 = vmatmul.mubr.f32.gmra.mxu0 %v400
        %v670 = vpop.f32.mrf.mxu0
        %v671 = vadd.f32 0.0, %v670
        %v672 = vpop.f32.mrf.mxu0
        %673 = vdwg.mxu0
        %v674 = vadd.f32 %v401, %v516
        %v675 = vadd.f32 %v402, %v521
        %v676 = vadd.f32 %v403, %v526
        %v677 = vadd.f32 %v404, %v531
        %v678 = vadd.f32 %v405, %v536
        %v679 = vadd.f32 %v406, %v541
        %v680 = vadd.f32 %v407, %v546
        %v681 = vadd.f32 %v408, %v551
        %v682 = vadd.f32 %v409, %v556
        %v683 = vadd.f32 %v410, %v561
        %v684 = vadd.f32 %v411, %v566
        %v685 = vadd.f32 %v412, %v571
        %v686 = vadd.f32 %v413, %v576
        %v687 = vadd.f32 %v414, %v581
        %v688 = vadd.f32 %v415, %v586
        %v689 = vadd.f32 %v416, %v591
        %v690 = vadd.f32 %v417, %v596
        %v691 = vadd.f32 %v418, %v601
        %v692 = vadd.f32 %v419, %v606
        %v693 = vadd.f32 %v420, %v611
        %v694 = vadd.f32 %v421, %v616
        %v695 = vadd.f32 %v422, %v621
        %v696 = vadd.f32 %v423, %v626
        %v697 = vadd.f32 %v424, %v631
        %v698 = vadd.f32 %v425, %v636
        %v699 = vadd.f32 %v426, %v641
        %v700 = vadd.f32 %v427, %v646
        %v701 = vadd.f32 %v428, %v651
        %v702 = vadd.f32 %v429, %v656
        %v703 = vadd.f32 %v430, %v661
        %v704 = vadd.f32 %v431, %v666
        %v705 = vadd.f32 %v432, %v671
        %706 = vst [vmem:[#allocation3] sm:$0xff] %v674
        %707 = vst [vmem:[#allocation3 + $0x8] sm:$0xff] %v675
        %708 = vst [vmem:[#allocation3 + $0x10] sm:$0xff] %v676
        %709 = vst [vmem:[#allocation3 + $0x18] sm:$0xff] %v677
        %710 = vst [vmem:[#allocation3 + $0x20] sm:$0xff] %v678
        %711 = vst [vmem:[#allocation3 + $0x28] sm:$0xff] %v679
        %712 = vst [vmem:[#allocation3 + $0x30] sm:$0xff] %v680
        %713 = vst [vmem:[#allocation3 + $0x38] sm:$0xff] %v681
        %714 = vst [vmem:[#allocation3 + $0x40] sm:$0xff] %v682
        %715 = vst [vmem:[#allocation3 + $0x48] sm:$0xff] %v683
        %716 = vst [vmem:[#allocation3 + $0x50] sm:$0xff] %v684
        %717 = vst [vmem:[#allocation3 + $0x58] sm:$0xff] %v685
        %718 = vst [vmem:[#allocation3 + $0x60] sm:$0xff] %v686
        %719 = vst [vmem:[#allocation3 + $0x68] sm:$0xff] %v687
        %720 = vst [vmem:[#allocation3 + $0x70] sm:$0xff] %v688
        %721 = vst [vmem:[#allocation3 + $0x78] sm:$0xff] %v689
        %722 = vst [vmem:[#allocation3 + $0x80] sm:$0xff] %v690
        %723 = vst [vmem:[#allocation3 + $0x88] sm:$0xff] %v691
        %724 = vst [vmem:[#allocation3 + $0x90] sm:$0xff] %v692
        %725 = vst [vmem:[#allocation3 + $0x98] sm:$0xff] %v693
        %726 = vst [vmem:[#allocation3 + $0xa0] sm:$0xff] %v694
        %727 = vst [vmem:[#allocation3 + $0xa8] sm:$0xff] %v695
        %728 = vst [vmem:[#allocation3 + $0xb0] sm:$0xff] %v696
        %729 = vst [vmem:[#allocation3 + $0xb8] sm:$0xff] %v697
        %730 = vst [vmem:[#allocation3 + $0xc0] sm:$0xff] %v698
        %731 = vst [vmem:[#allocation3 + $0xc8] sm:$0xff] %v699
        %732 = vst [vmem:[#allocation3 + $0xd0] sm:$0xff] %v700
        %733 = vst [vmem:[#allocation3 + $0xd8] sm:$0xff] %v701
        %734 = vst [vmem:[#allocation3 + $0xe0] sm:$0xff] %v702
        %735 = vst [vmem:[#allocation3 + $0xe8] sm:$0xff] %v703
        %736 = vst [vmem:[#allocation3 + $0xf0] sm:$0xff] %v704
        %737 = vst [vmem:[#allocation3 + $0xf8] sm:$0xff] %v705
        %v738 = vld [vmem:[#allocation2 + $0x1] sm:$0xff]
        %v739 = vld [vmem:[#allocation2 + $0x9] sm:$0xff]
        %v740 = vld [vmem:[#allocation2 + $0x19] sm:$0xff]
        %v741 = vld [vmem:[#allocation2 + $0x21] sm:$0xff]
        %v742 = vld [vmem:[#allocation2 + $0x31] sm:$0xff]
        %v743 = vld [vmem:[#allocation2 + $0x39] sm:$0xff]
        %v744 = vld [vmem:[#allocation2 + $0x49] sm:$0xff]
        %v745 = vld [vmem:[#allocation2 + $0x51] sm:$0xff]
        %v746 = vld [vmem:[#allocation2 + $0x61] sm:$0xff]
        %v747 = vld [vmem:[#allocation2 + $0x69] sm:$0xff]
        %v748 = vld [vmem:[#allocation2 + $0x79] sm:$0xff]
        %v749 = vld [vmem:[#allocation2 + $0x81] sm:$0xff]
        %v750 = vld [vmem:[#allocation2 + $0x91] sm:$0xff]
        %v751 = vld [vmem:[#allocation2 + $0x99] sm:$0xff]
        %v752 = vld [vmem:[#allocation2 + $0xa9] sm:$0xff]
        %v753 = vld [vmem:[#allocation2 + $0xb1] sm:$0xff]
        %v754 = vld [vmem:[#allocation2 + $0xc1] sm:$0xff]
        %v755 = vld [vmem:[#allocation2 + $0xc9] sm:$0xff]
        %v756 = vld [vmem:[#allocation2 + $0xd9] sm:$0xff]
        %v757 = vld [vmem:[#allocation2 + $0xe1] sm:$0xff]
        %v758 = vld [vmem:[#allocation2 + $0xf1] sm:$0xff]
        %v759 = vld [vmem:[#allocation2 + $0xf9] sm:$0xff]
        %v760 = vld [vmem:[#allocation2 + $0x109] sm:$0xff]
        %v761 = vld [vmem:[#allocation2 + $0x111] sm:$0xff]
        %v762 = vld [vmem:[#allocation2 + $0x121] sm:$0xff]
        %v763 = vld [vmem:[#allocation2 + $0x129] sm:$0xff]
        %v764 = vld [vmem:[#allocation2 + $0x139] sm:$0xff]
        %v765 = vld [vmem:[#allocation2 + $0x141] sm:$0xff]
        %v766 = vld [vmem:[#allocation2 + $0x151] sm:$0xff]
        %v767 = vld [vmem:[#allocation2 + $0x159] sm:$0xff]
        %v768 = vld [vmem:[#allocation2 + $0x169] sm:$0xff]
        %v769 = vld [vmem:[#allocation2 + $0x171] sm:$0xff]
        %v770 = vld [vmem:[#allocation3] sm:$0xff]
        %v771 = vld [vmem:[#allocation3 + $0x8] sm:$0xff]
        %v772 = vld [vmem:[#allocation3 + $0x10] sm:$0xff]
        %v773 = vld [vmem:[#allocation3 + $0x18] sm:$0xff]
        %v774 = vld [vmem:[#allocation3 + $0x20] sm:$0xff]
        %v775 = vld [vmem:[#allocation3 + $0x28] sm:$0xff]
        %v776 = vld [vmem:[#allocation3 + $0x30] sm:$0xff]
        %v777 = vld [vmem:[#allocation3 + $0x38] sm:$0xff]
        %v778 = vld [vmem:[#allocation3 + $0x40] sm:$0xff]
        %v779 = vld [vmem:[#allocation3 + $0x48] sm:$0xff]
        %v780 = vld [vmem:[#allocation3 + $0x50] sm:$0xff]
        %v781 = vld [vmem:[#allocation3 + $0x58] sm:$0xff]
        %v782 = vld [vmem:[#allocation3 + $0x60] sm:$0xff]
        %v783 = vld [vmem:[#allocation3 + $0x68] sm:$0xff]
        %v784 = vld [vmem:[#allocation3 + $0x70] sm:$0xff]
        %v785 = vld [vmem:[#allocation3 + $0x78] sm:$0xff]
        %v786 = vld [vmem:[#allocation3 + $0x80] sm:$0xff]
        %v787 = vld [vmem:[#allocation3 + $0x88] sm:$0xff]
        %v788 = vld [vmem:[#allocation3 + $0x90] sm:$0xff]
        %v789 = vld [vmem:[#allocation3 + $0x98] sm:$0xff]
        %v790 = vld [vmem:[#allocation3 + $0xa0] sm:$0xff]
        %v791 = vld [vmem:[#allocation3 + $0xa8] sm:$0xff]
        %v792 = vld [vmem:[#allocation3 + $0xb0] sm:$0xff]
        %v793 = vld [vmem:[#allocation3 + $0xb8] sm:$0xff]
        %v794 = vld [vmem:[#allocation3 + $0xc0] sm:$0xff]
        %v795 = vld [vmem:[#allocation3 + $0xc8] sm:$0xff]
        %v796 = vld [vmem:[#allocation3 + $0xd0] sm:$0xff]
        %v797 = vld [vmem:[#allocation3 + $0xd8] sm:$0xff]
        %v798 = vld [vmem:[#allocation3 + $0xe0] sm:$0xff]
        %v799 = vld [vmem:[#allocation3 + $0xe8] sm:$0xff]
        %v800 = vld [vmem:[#allocation3 + $0xf0] sm:$0xff]
        %v801 = vld [vmem:[#allocation3 + $0xf8] sm:$0xff]
        %s802 = scalar_lea.vmem [#allocation7], 128
        %v803 = vld [vmem:[%s802] sm:$0xff]
        %v804 = vld [vmem:[%s802 + $0x8] sm:$0xff]
        %v805 = vld [vmem:[%s802 + $0x10] sm:$0xff]
        %v806 = vld [vmem:[%s802 + $0x18] sm:$0xff]
        %v807 = vld [vmem:[%s802 + $0x20] sm:$0xff]
        %v808 = vld [vmem:[%s802 + $0x28] sm:$0xff]
        %v809 = vld [vmem:[%s802 + $0x30] sm:$0xff]
        %v810 = vld [vmem:[%s802 + $0x38] sm:$0xff]
        %v811 = vld [vmem:[%s802 + $0x40] sm:$0xff]
        %v812 = vld [vmem:[%s802 + $0x48] sm:$0xff]
        %v813 = vld [vmem:[%s802 + $0x50] sm:$0xff]
        %v814 = vld [vmem:[%s802 + $0x58] sm:$0xff]
        %v815 = vld [vmem:[%s802 + $0x60] sm:$0xff]
        %v816 = vld [vmem:[%s802 + $0x68] sm:$0xff]
        %v817 = vld [vmem:[%s802 + $0x70] sm:$0xff]
        %v818 = vld [vmem:[%s802 + $0x78] sm:$0xff]
        %819 = vmatprep.subr.mxu0 0.0
        %820 = vmatpush1.msra.mxu0 %v818
        %821 = vmatprep.subr.mxu0 0.0
        %822 = vmatpush1.msra.mxu0 %v817
        %823 = vmatprep.subr.mxu0 0.0
        %824 = vmatpush1.msra.mxu0 %v816
        %825 = vmatprep.subr.mxu0 0.0
        %826 = vmatpush1.msra.mxu0 %v815
        %827 = vmatprep.subr.mxu0 0.0
        %828 = vmatpush1.msra.mxu0 %v814
        %829 = vmatprep.subr.mxu0 0.0
        %830 = vmatpush1.msra.mxu0 %v813
        %831 = vmatprep.subr.mxu0 0.0
        %832 = vmatpush1.msra.mxu0 %v812
        %833 = vmatprep.subr.mxu0 0.0
        %834 = vmatpush1.msra.mxu0 %v811
        %835 = vmatprep.subr.mxu0 0.0
        %836 = vmatpush1.msra.mxu0 %v810
        %837 = vmatprep.subr.mxu0 0.0
        %838 = vmatpush1.msra.mxu0 %v809
        %839 = vmatprep.subr.mxu0 0.0
        %840 = vmatpush1.msra.mxu0 %v808
        %841 = vmatprep.subr.mxu0 0.0
        %842 = vmatpush1.msra.mxu0 %v807
        %843 = vmatprep.subr.mxu0 0.0
        %844 = vmatpush1.msra.mxu0 %v806
        %845 = vmatprep.subr.mxu0 0.0
        %846 = vmatpush1.msra.mxu0 %v805
        %847 = vmatprep.subr.mxu0 0.0
        %848 = vmatpush1.msra.mxu0 %v804
        %849 = vmatprep.subr.mxu0 0.0
        %850 = vmatpush1.msra.mxu0 %v803
        %851 = vmatprep.subr.mxu0 0.0
        %852 = vmatpush2.msra.mxu0 0.0
        %853 = vmatprep.subr.mxu0 0.0
        %854 = vmatpush2.msra.mxu0 0.0
        %855 = vmatprep.subr.mxu0 0.0
        %856 = vmatpush2.msra.mxu0 0.0
        %857 = vmatprep.subr.mxu0 0.0
        %858 = vmatpush2.msra.mxu0 0.0
        %859 = vmatprep.subr.mxu0 0.0
        %860 = vmatpush2.msra.mxu0 0.0
        %861 = vmatprep.subr.mxu0 0.0
        %862 = vmatpush2.msra.mxu0 0.0
        %863 = vmatprep.subr.mxu0 0.0
        %864 = vmatpush2.msra.mxu0 0.0
        %865 = vmatprep.subr.mxu0 0.0
        %866 = vmatpush2.msra.mxu0 0.0
        %867 = vmatprep.subr.mxu0 0.0
        %868 = vmatpush2.msra.mxu0 0.0
        %869 = vmatprep.subr.mxu0 0.0
        %870 = vmatpush2.msra.mxu0 0.0
        %871 = vmatprep.subr.mxu0 0.0
        %872 = vmatpush2.msra.mxu0 0.0
        %873 = vmatprep.subr.mxu0 0.0
        %874 = vmatpush2.msra.mxu0 0.0
        %875 = vmatprep.subr.mxu0 0.0
        %876 = vmatpush2.msra.mxu0 0.0
        %877 = vmatprep.subr.mxu0 0.0
        %878 = vmatpush2.msra.mxu0 0.0
        %879 = vmatprep.subr.mxu0 0.0
        %880 = vmatpush2.msra.mxu0 0.0
        %881 = vmatprep.subr.mxu0 0.0
        %882 = vmatpush2.msra.mxu0 0.0
        %883 = vmatprep.mubr.f32.mxu0 0.0
        %884 = vmatmul.mubr.f32.gmra.mxu0 %v738
        %v885 = vpop.f32.mrf.mxu0
        %v886 = vadd.f32 0.0, %v885
        %v887 = vpop.f32.mrf.mxu0
        %888 = vmatprep.mubr.f32.mxu0 0.0
        %889 = vmatmul.mubr.f32.gmra.mxu0 %v739
        %v890 = vpop.f32.mrf.mxu0
        %v891 = vadd.f32 0.0, %v890
        %v892 = vpop.f32.mrf.mxu0
        %893 = vmatprep.mubr.f32.mxu0 0.0
        %894 = vmatmul.mubr.f32.gmra.mxu0 %v740
        %v895 = vpop.f32.mrf.mxu0
        %v896 = vadd.f32 0.0, %v895
        %v897 = vpop.f32.mrf.mxu0
        %898 = vmatprep.mubr.f32.mxu0 0.0
        %899 = vmatmul.mubr.f32.gmra.mxu0 %v741
        %v900 = vpop.f32.mrf.mxu0
        %v901 = vadd.f32 0.0, %v900
        %v902 = vpop.f32.mrf.mxu0
        %903 = vmatprep.mubr.f32.mxu0 0.0
        %904 = vmatmul.mubr.f32.gmra.mxu0 %v742
        %v905 = vpop.f32.mrf.mxu0
        %v906 = vadd.f32 0.0, %v905
        %v907 = vpop.f32.mrf.mxu0
        %908 = vmatprep.mubr.f32.mxu0 0.0
        %909 = vmatmul.mubr.f32.gmra.mxu0 %v743
        %v910 = vpop.f32.mrf.mxu0
        %v911 = vadd.f32 0.0, %v910
        %v912 = vpop.f32.mrf.mxu0
        %913 = vmatprep.mubr.f32.mxu0 0.0
        %914 = vmatmul.mubr.f32.gmra.mxu0 %v744
        %v915 = vpop.f32.mrf.mxu0
        %v916 = vadd.f32 0.0, %v915
        %v917 = vpop.f32.mrf.mxu0
        %918 = vmatprep.mubr.f32.mxu0 0.0
        %919 = vmatmul.mubr.f32.gmra.mxu0 %v745
        %v920 = vpop.f32.mrf.mxu0
        %v921 = vadd.f32 0.0, %v920
        %v922 = vpop.f32.mrf.mxu0
        %923 = vmatprep.mubr.f32.mxu0 0.0
        %924 = vmatmul.mubr.f32.gmra.mxu0 %v746
        %v925 = vpop.f32.mrf.mxu0
        %v926 = vadd.f32 0.0, %v925
        %v927 = vpop.f32.mrf.mxu0
        %928 = vmatprep.mubr.f32.mxu0 0.0
        %929 = vmatmul.mubr.f32.gmra.mxu0 %v747
        %v930 = vpop.f32.mrf.mxu0
        %v931 = vadd.f32 0.0, %v930
        %v932 = vpop.f32.mrf.mxu0
        %933 = vmatprep.mubr.f32.mxu0 0.0
        %934 = vmatmul.mubr.f32.gmra.mxu0 %v748
        %v935 = vpop.f32.mrf.mxu0
        %v936 = vadd.f32 0.0, %v935
        %v937 = vpop.f32.mrf.mxu0
        %938 = vmatprep.mubr.f32.mxu0 0.0
        %939 = vmatmul.mubr.f32.gmra.mxu0 %v749
        %v940 = vpop.f32.mrf.mxu0
        %v941 = vadd.f32 0.0, %v940
        %v942 = vpop.f32.mrf.mxu0
        %943 = vmatprep.mubr.f32.mxu0 0.0
        %944 = vmatmul.mubr.f32.gmra.mxu0 %v750
        %v945 = vpop.f32.mrf.mxu0
        %v946 = vadd.f32 0.0, %v945
        %v947 = vpop.f32.mrf.mxu0
        %948 = vmatprep.mubr.f32.mxu0 0.0
        %949 = vmatmul.mubr.f32.gmra.mxu0 %v751
        %v950 = vpop.f32.mrf.mxu0
        %v951 = vadd.f32 0.0, %v950
        %v952 = vpop.f32.mrf.mxu0
        %953 = vmatprep.mubr.f32.mxu0 0.0
        %954 = vmatmul.mubr.f32.gmra.mxu0 %v752
        %v955 = vpop.f32.mrf.mxu0
        %v956 = vadd.f32 0.0, %v955
        %v957 = vpop.f32.mrf.mxu0
        %958 = vmatprep.mubr.f32.mxu0 0.0
        %959 = vmatmul.mubr.f32.gmra.mxu0 %v753
        %v960 = vpop.f32.mrf.mxu0
        %v961 = vadd.f32 0.0, %v960
        %v962 = vpop.f32.mrf.mxu0
        %963 = vmatprep.mubr.f32.mxu0 0.0
        %964 = vmatmul.mubr.f32.gmra.mxu0 %v754
        %v965 = vpop.f32.mrf.mxu0
        %v966 = vadd.f32 0.0, %v965
        %v967 = vpop.f32.mrf.mxu0
        %968 = vmatprep.mubr.f32.mxu0 0.0
        %969 = vmatmul.mubr.f32.gmra.mxu0 %v755
        %v970 = vpop.f32.mrf.mxu0
        %v971 = vadd.f32 0.0, %v970
        %v972 = vpop.f32.mrf.mxu0
        %973 = vmatprep.mubr.f32.mxu0 0.0
        %974 = vmatmul.mubr.f32.gmra.mxu0 %v756
        %v975 = vpop.f32.mrf.mxu0
        %v976 = vadd.f32 0.0, %v975
        %v977 = vpop.f32.mrf.mxu0
        %978 = vmatprep.mubr.f32.mxu0 0.0
        %979 = vmatmul.mubr.f32.gmra.mxu0 %v757
        %v980 = vpop.f32.mrf.mxu0
        %v981 = vadd.f32 0.0, %v980
        %v982 = vpop.f32.mrf.mxu0
        %983 = vmatprep.mubr.f32.mxu0 0.0
        %984 = vmatmul.mubr.f32.gmra.mxu0 %v758
        %v985 = vpop.f32.mrf.mxu0
        %v986 = vadd.f32 0.0, %v985
        %v987 = vpop.f32.mrf.mxu0
        %988 = vmatprep.mubr.f32.mxu0 0.0
        %989 = vmatmul.mubr.f32.gmra.mxu0 %v759
        %v990 = vpop.f32.mrf.mxu0
        %v991 = vadd.f32 0.0, %v990
        %v992 = vpop.f32.mrf.mxu0
        %993 = vmatprep.mubr.f32.mxu0 0.0
        %994 = vmatmul.mubr.f32.gmra.mxu0 %v760
        %v995 = vpop.f32.mrf.mxu0
        %v996 = vadd.f32 0.0, %v995
        %v997 = vpop.f32.mrf.mxu0
        %998 = vmatprep.mubr.f32.mxu0 0.0
        %999 = vmatmul.mubr.f32.gmra.mxu0 %v761
        %v1000 = vpop.f32.mrf.mxu0
        %v1001 = vadd.f32 0.0, %v1000
        %v1002 = vpop.f32.mrf.mxu0
        %1003 = vmatprep.mubr.f32.mxu0 0.0
        %1004 = vmatmul.mubr.f32.gmra.mxu0 %v762
        %v1005 = vpop.f32.mrf.mxu0
        %v1006 = vadd.f32 0.0, %v1005
        %v1007 = vpop.f32.mrf.mxu0
        %1008 = vmatprep.mubr.f32.mxu0 0.0
        %1009 = vmatmul.mubr.f32.gmra.mxu0 %v763
        %v1010 = vpop.f32.mrf.mxu0
        %v1011 = vadd.f32 0.0, %v1010
        %v1012 = vpop.f32.mrf.mxu0
        %1013 = vmatprep.mubr.f32.mxu0 0.0
        %1014 = vmatmul.mubr.f32.gmra.mxu0 %v764
        %v1015 = vpop.f32.mrf.mxu0
        %v1016 = vadd.f32 0.0, %v1015
        %v1017 = vpop.f32.mrf.mxu0
        %1018 = vmatprep.mubr.f32.mxu0 0.0
        %1019 = vmatmul.mubr.f32.gmra.mxu0 %v765
        %v1020 = vpop.f32.mrf.mxu0
        %v1021 = vadd.f32 0.0, %v1020
        %v1022 = vpop.f32.mrf.mxu0
        %1023 = vmatprep.mubr.f32.mxu0 0.0
        %1024 = vmatmul.mubr.f32.gmra.mxu0 %v766
        %v1025 = vpop.f32.mrf.mxu0
        %v1026 = vadd.f32 0.0, %v1025
        %v1027 = vpop.f32.mrf.mxu0
        %1028 = vmatprep.mubr.f32.mxu0 0.0
        %1029 = vmatmul.mubr.f32.gmra.mxu0 %v767
        %v1030 = vpop.f32.mrf.mxu0
        %v1031 = vadd.f32 0.0, %v1030
        %v1032 = vpop.f32.mrf.mxu0
        %1033 = vmatprep.mubr.f32.mxu0 0.0
        %1034 = vmatmul.mubr.f32.gmra.mxu0 %v768
        %v1035 = vpop.f32.mrf.mxu0
        %v1036 = vadd.f32 0.0, %v1035
        %v1037 = vpop.f32.mrf.mxu0
        %1038 = vmatprep.mubr.f32.mxu0 0.0
        %1039 = vmatmul.mubr.f32.gmra.mxu0 %v769
        %v1040 = vpop.f32.mrf.mxu0
        %v1041 = vadd.f32 0.0, %v1040
        %v1042 = vpop.f32.mrf.mxu0
        %1043 = vdwg.mxu0
        %v1044 = vadd.f32 %v770, %v886
        %v1045 = vadd.f32 %v771, %v891
        %v1046 = vadd.f32 %v772, %v896
        %v1047 = vadd.f32 %v773, %v901
        %v1048 = vadd.f32 %v774, %v906
        %v1049 = vadd.f32 %v775, %v911
        %v1050 = vadd.f32 %v776, %v916
        %v1051 = vadd.f32 %v777, %v921
        %v1052 = vadd.f32 %v778, %v926
        %v1053 = vadd.f32 %v779, %v931
        %v1054 = vadd.f32 %v780, %v936
        %v1055 = vadd.f32 %v781, %v941
        %v1056 = vadd.f32 %v782, %v946
        %v1057 = vadd.f32 %v783, %v951
        %v1058 = vadd.f32 %v784, %v956
        %v1059 = vadd.f32 %v785, %v961
        %v1060 = vadd.f32 %v786, %v966
        %v1061 = vadd.f32 %v787, %v971
        %v1062 = vadd.f32 %v788, %v976
        %v1063 = vadd.f32 %v789, %v981
        %v1064 = vadd.f32 %v790, %v986
        %v1065 = vadd.f32 %v791, %v991
        %v1066 = vadd.f32 %v792, %v996
        %v1067 = vadd.f32 %v793, %v1001
        %v1068 = vadd.f32 %v794, %v1006
        %v1069 = vadd.f32 %v795, %v1011
        %v1070 = vadd.f32 %v796, %v1016
        %v1071 = vadd.f32 %v797, %v1021
        %v1072 = vadd.f32 %v798, %v1026
        %v1073 = vadd.f32 %v799, %v1031
        %v1074 = vadd.f32 %v800, %v1036
        %v1075 = vadd.f32 %v801, %v1041
        %1076 = vst [vmem:[#allocation3] sm:$0xff] %v1044
        %1077 = vst [vmem:[#allocation3 + $0x8] sm:$0xff] %v1045
        %1078 = vst [vmem:[#allocation3 + $0x10] sm:$0xff] %v1046
        %1079 = vst [vmem:[#allocation3 + $0x18] sm:$0xff] %v1047
        %1080 = vst [vmem:[#allocation3 + $0x20] sm:$0xff] %v1048
        %1081 = vst [vmem:[#allocation3 + $0x28] sm:$0xff] %v1049
        %1082 = vst [vmem:[#allocation3 + $0x30] sm:$0xff] %v1050
        %1083 = vst [vmem:[#allocation3 + $0x38] sm:$0xff] %v1051
        %1084 = vst [vmem:[#allocation3 + $0x40] sm:$0xff] %v1052
        %1085 = vst [vmem:[#allocation3 + $0x48] sm:$0xff] %v1053
        %1086 = vst [vmem:[#allocation3 + $0x50] sm:$0xff] %v1054
        %1087 = vst [vmem:[#allocation3 + $0x58] sm:$0xff] %v1055
        %1088 = vst [vmem:[#allocation3 + $0x60] sm:$0xff] %v1056
        %1089 = vst [vmem:[#allocation3 + $0x68] sm:$0xff] %v1057
        %1090 = vst [vmem:[#allocation3 + $0x70] sm:$0xff] %v1058
        %1091 = vst [vmem:[#allocation3 + $0x78] sm:$0xff] %v1059
        %1092 = vst [vmem:[#allocation3 + $0x80] sm:$0xff] %v1060
        %1093 = vst [vmem:[#allocation3 + $0x88] sm:$0xff] %v1061
        %1094 = vst [vmem:[#allocation3 + $0x90] sm:$0xff] %v1062
        %1095 = vst [vmem:[#allocation3 + $0x98] sm:$0xff] %v1063
        %1096 = vst [vmem:[#allocation3 + $0xa0] sm:$0xff] %v1064
        %1097 = vst [vmem:[#allocation3 + $0xa8] sm:$0xff] %v1065
        %1098 = vst [vmem:[#allocation3 + $0xb0] sm:$0xff] %v1066
        %1099 = vst [vmem:[#allocation3 + $0xb8] sm:$0xff] %v1067
        %1100 = vst [vmem:[#allocation3 + $0xc0] sm:$0xff] %v1068
        %1101 = vst [vmem:[#allocation3 + $0xc8] sm:$0xff] %v1069
        %1102 = vst [vmem:[#allocation3 + $0xd0] sm:$0xff] %v1070
        %1103 = vst [vmem:[#allocation3 + $0xd8] sm:$0xff] %v1071
        %1104 = vst [vmem:[#allocation3 + $0xe0] sm:$0xff] %v1072
        %1105 = vst [vmem:[#allocation3 + $0xe8] sm:$0xff] %v1073
        %1106 = vst [vmem:[#allocation3 + $0xf0] sm:$0xff] %v1074
        %1107 = vst [vmem:[#allocation3 + $0xf8] sm:$0xff] %v1075
        %v1108 = vld [vmem:[#allocation2 + $0x2] sm:$0xff]
        %v1109 = vld [vmem:[#allocation2 + $0xa] sm:$0xff]
        %v1110 = vld [vmem:[#allocation2 + $0x1a] sm:$0xff]
        %v1111 = vld [vmem:[#allocation2 + $0x22] sm:$0xff]
        %v1112 = vld [vmem:[#allocation2 + $0x32] sm:$0xff]
        %v1113 = vld [vmem:[#allocation2 + $0x3a] sm:$0xff]
        %v1114 = vld [vmem:[#allocation2 + $0x4a] sm:$0xff]
        %v1115 = vld [vmem:[#allocation2 + $0x52] sm:$0xff]
        %v1116 = vld [vmem:[#allocation2 + $0x62] sm:$0xff]
        %v1117 = vld [vmem:[#allocation2 + $0x6a] sm:$0xff]
        %v1118 = vld [vmem:[#allocation2 + $0x7a] sm:$0xff]
        %v1119 = vld [vmem:[#allocation2 + $0x82] sm:$0xff]
        %v1120 = vld [vmem:[#allocation2 + $0x92] sm:$0xff]
        %v1121 = vld [vmem:[#allocation2 + $0x9a] sm:$0xff]
        %v1122 = vld [vmem:[#allocation2 + $0xaa] sm:$0xff]
        %v1123 = vld [vmem:[#allocation2 + $0xb2] sm:$0xff]
        %v1124 = vld [vmem:[#allocation2 + $0xc2] sm:$0xff]
        %v1125 = vld [vmem:[#allocation2 + $0xca] sm:$0xff]
        %v1126 = vld [vmem:[#allocation2 + $0xda] sm:$0xff]
        %v1127 = vld [vmem:[#allocation2 + $0xe2] sm:$0xff]
        %v1128 = vld [vmem:[#allocation2 + $0xf2] sm:$0xff]
        %v1129 = vld [vmem:[#allocation2 + $0xfa] sm:$0xff]
        %v1130 = vld [vmem:[#allocation2 + $0x10a] sm:$0xff]
        %v1131 = vld [vmem:[#allocation2 + $0x112] sm:$0xff]
        %v1132 = vld [vmem:[#allocation2 + $0x122] sm:$0xff]
        %v1133 = vld [vmem:[#allocation2 + $0x12a] sm:$0xff]
        %v1134 = vld [vmem:[#allocation2 + $0x13a] sm:$0xff]
        %v1135 = vld [vmem:[#allocation2 + $0x142] sm:$0xff]
        %v1136 = vld [vmem:[#allocation2 + $0x152] sm:$0xff]
        %v1137 = vld [vmem:[#allocation2 + $0x15a] sm:$0xff]
        %v1138 = vld [vmem:[#allocation2 + $0x16a] sm:$0xff]
        %v1139 = vld [vmem:[#allocation2 + $0x172] sm:$0xff]
        %v1140 = vld [vmem:[#allocation3] sm:$0xff]
        %v1141 = vld [vmem:[#allocation3 + $0x8] sm:$0xff]
        %v1142 = vld [vmem:[#allocation3 + $0x10] sm:$0xff]
        %v1143 = vld [vmem:[#allocation3 + $0x18] sm:$0xff]
        %v1144 = vld [vmem:[#allocation3 + $0x20] sm:$0xff]
        %v1145 = vld [vmem:[#allocation3 + $0x28] sm:$0xff]
        %v1146 = vld [vmem:[#allocation3 + $0x30] sm:$0xff]
        %v1147 = vld [vmem:[#allocation3 + $0x38] sm:$0xff]
        %v1148 = vld [vmem:[#allocation3 + $0x40] sm:$0xff]
        %v1149 = vld [vmem:[#allocation3 + $0x48] sm:$0xff]
        %v1150 = vld [vmem:[#allocation3 + $0x50] sm:$0xff]
        %v1151 = vld [vmem:[#allocation3 + $0x58] sm:$0xff]
        %v1152 = vld [vmem:[#allocation3 + $0x60] sm:$0xff]
        %v1153 = vld [vmem:[#allocation3 + $0x68] sm:$0xff]
        %v1154 = vld [vmem:[#allocation3 + $0x70] sm:$0xff]
        %v1155 = vld [vmem:[#allocation3 + $0x78] sm:$0xff]
        %v1156 = vld [vmem:[#allocation3 + $0x80] sm:$0xff]
        %v1157 = vld [vmem:[#allocation3 + $0x88] sm:$0xff]
        %v1158 = vld [vmem:[#allocation3 + $0x90] sm:$0xff]
        %v1159 = vld [vmem:[#allocation3 + $0x98] sm:$0xff]
        %v1160 = vld [vmem:[#allocation3 + $0xa0] sm:$0xff]
        %v1161 = vld [vmem:[#allocation3 + $0xa8] sm:$0xff]
        %v1162 = vld [vmem:[#allocation3 + $0xb0] sm:$0xff]
        %v1163 = vld [vmem:[#allocation3 + $0xb8] sm:$0xff]
        %v1164 = vld [vmem:[#allocation3 + $0xc0] sm:$0xff]
        %v1165 = vld [vmem:[#allocation3 + $0xc8] sm:$0xff]
        %v1166 = vld [vmem:[#allocation3 + $0xd0] sm:$0xff]
        %v1167 = vld [vmem:[#allocation3 + $0xd8] sm:$0xff]
        %v1168 = vld [vmem:[#allocation3 + $0xe0] sm:$0xff]
        %v1169 = vld [vmem:[#allocation3 + $0xe8] sm:$0xff]
        %v1170 = vld [vmem:[#allocation3 + $0xf0] sm:$0xff]
        %v1171 = vld [vmem:[#allocation3 + $0xf8] sm:$0xff]
        %s1172 = scalar_lea.vmem [#allocation7], 256
        %v1173 = vld [vmem:[%s1172] sm:$0xff]
        %v1174 = vld [vmem:[%s1172 + $0x8] sm:$0xff]
        %v1175 = vld [vmem:[%s1172 + $0x10] sm:$0xff]
        %v1176 = vld [vmem:[%s1172 + $0x18] sm:$0xff]
        %v1177 = vld [vmem:[%s1172 + $0x20] sm:$0xff]
        %v1178 = vld [vmem:[%s1172 + $0x28] sm:$0xff]
        %v1179 = vld [vmem:[%s1172 + $0x30] sm:$0xff]
        %v1180 = vld [vmem:[%s1172 + $0x38] sm:$0xff]
        %v1181 = vld [vmem:[%s1172 + $0x40] sm:$0xff]
        %v1182 = vld [vmem:[%s1172 + $0x48] sm:$0xff]
        %v1183 = vld [vmem:[%s1172 + $0x50] sm:$0xff]
        %v1184 = vld [vmem:[%s1172 + $0x58] sm:$0xff]
        %v1185 = vld [vmem:[%s1172 + $0x60] sm:$0xff]
        %v1186 = vld [vmem:[%s1172 + $0x68] sm:$0xff]
        %v1187 = vld [vmem:[%s1172 + $0x70] sm:$0xff]
        %v1188 = vld [vmem:[%s1172 + $0x78] sm:$0xff]
        %1189 = vmatprep.subr.mxu0 0.0
        %1190 = vmatpush1.msra.mxu0 %v1188
        %1191 = vmatprep.subr.mxu0 0.0
        %1192 = vmatpush1.msra.mxu0 %v1187
        %1193 = vmatprep.subr.mxu0 0.0
        %1194 = vmatpush1.msra.mxu0 %v1186
        %1195 = vmatprep.subr.mxu0 0.0
        %1196 = vmatpush1.msra.mxu0 %v1185
        %1197 = vmatprep.subr.mxu0 0.0
        %1198 = vmatpush1.msra.mxu0 %v1184
        %1199 = vmatprep.subr.mxu0 0.0
        %1200 = vmatpush1.msra.mxu0 %v1183
        %1201 = vmatprep.subr.mxu0 0.0
        %1202 = vmatpush1.msra.mxu0 %v1182
        %1203 = vmatprep.subr.mxu0 0.0
        %1204 = vmatpush1.msra.mxu0 %v1181
        %1205 = vmatprep.subr.mxu0 0.0
        %1206 = vmatpush1.msra.mxu0 %v1180
        %1207 = vmatprep.subr.mxu0 0.0
        %1208 = vmatpush1.msra.mxu0 %v1179
        %1209 = vmatprep.subr.mxu0 0.0
        %1210 = vmatpush1.msra.mxu0 %v1178
        %1211 = vmatprep.subr.mxu0 0.0
        %1212 = vmatpush1.msra.mxu0 %v1177
        %1213 = vmatprep.subr.mxu0 0.0
        %1214 = vmatpush1.msra.mxu0 %v1176
        %1215 = vmatprep.subr.mxu0 0.0
        %1216 = vmatpush1.msra.mxu0 %v1175
        %1217 = vmatprep.subr.mxu0 0.0
        %1218 = vmatpush1.msra.mxu0 %v1174
        %1219 = vmatprep.subr.mxu0 0.0
        %1220 = vmatpush1.msra.mxu0 %v1173
        %1221 = vmatprep.subr.mxu0 0.0
        %1222 = vmatpush2.msra.mxu0 0.0
        %1223 = vmatprep.subr.mxu0 0.0
        %1224 = vmatpush2.msra.mxu0 0.0
        %1225 = vmatprep.subr.mxu0 0.0
        %1226 = vmatpush2.msra.mxu0 0.0
        %1227 = vmatprep.subr.mxu0 0.0
        %1228 = vmatpush2.msra.mxu0 0.0
        %1229 = vmatprep.subr.mxu0 0.0
        %1230 = vmatpush2.msra.mxu0 0.0
        %1231 = vmatprep.subr.mxu0 0.0
        %1232 = vmatpush2.msra.mxu0 0.0
        %1233 = vmatprep.subr.mxu0 0.0
        %1234 = vmatpush2.msra.mxu0 0.0
        %1235 = vmatprep.subr.mxu0 0.0
        %1236 = vmatpush2.msra.mxu0 0.0
        %1237 = vmatprep.subr.mxu0 0.0
        %1238 = vmatpush2.msra.mxu0 0.0
        %1239 = vmatprep.subr.mxu0 0.0
        %1240 = vmatpush2.msra.mxu0 0.0
        %1241 = vmatprep.subr.mxu0 0.0
        %1242 = vmatpush2.msra.mxu0 0.0
        %1243 = vmatprep.subr.mxu0 0.0
        %1244 = vmatpush2.msra.mxu0 0.0
        %1245 = vmatprep.subr.mxu0 0.0
        %1246 = vmatpush2.msra.mxu0 0.0
        %1247 = vmatprep.subr.mxu0 0.0
        %1248 = vmatpush2.msra.mxu0 0.0
        %1249 = vmatprep.subr.mxu0 0.0
        %1250 = vmatpush2.msra.mxu0 0.0
        %1251 = vmatprep.subr.mxu0 0.0
        %1252 = vmatpush2.msra.mxu0 0.0
        %1253 = vmatprep.mubr.f32.mxu0 0.0
        %1254 = vmatmul.mubr.f32.gmra.mxu0 %v1108
        %v1255 = vpop.f32.mrf.mxu0
        %v1256 = vadd.f32 0.0, %v1255
        %v1257 = vpop.f32.mrf.mxu0
        %1258 = vmatprep.mubr.f32.mxu0 0.0
        %1259 = vmatmul.mubr.f32.gmra.mxu0 %v1109
        %v1260 = vpop.f32.mrf.mxu0
        %v1261 = vadd.f32 0.0, %v1260
        %v1262 = vpop.f32.mrf.mxu0
        %1263 = vmatprep.mubr.f32.mxu0 0.0
        %1264 = vmatmul.mubr.f32.gmra.mxu0 %v1110
        %v1265 = vpop.f32.mrf.mxu0
        %v1266 = vadd.f32 0.0, %v1265
        %v1267 = vpop.f32.mrf.mxu0
        %1268 = vmatprep.mubr.f32.mxu0 0.0
        %1269 = vmatmul.mubr.f32.gmra.mxu0 %v1111
        %v1270 = vpop.f32.mrf.mxu0
        %v1271 = vadd.f32 0.0, %v1270
        %v1272 = vpop.f32.mrf.mxu0
        %1273 = vmatprep.mubr.f32.mxu0 0.0
        %1274 = vmatmul.mubr.f32.gmra.mxu0 %v1112
        %v1275 = vpop.f32.mrf.mxu0
        %v1276 = vadd.f32 0.0, %v1275
        %v1277 = vpop.f32.mrf.mxu0
        %1278 = vmatprep.mubr.f32.mxu0 0.0
        %1279 = vmatmul.mubr.f32.gmra.mxu0 %v1113
        %v1280 = vpop.f32.mrf.mxu0
        %v1281 = vadd.f32 0.0, %v1280
        %v1282 = vpop.f32.mrf.mxu0
        %1283 = vmatprep.mubr.f32.mxu0 0.0
        %1284 = vmatmul.mubr.f32.gmra.mxu0 %v1114
        %v1285 = vpop.f32.mrf.mxu0
        %v1286 = vadd.f32 0.0, %v1285
        %v1287 = vpop.f32.mrf.mxu0
        %1288 = vmatprep.mubr.f32.mxu0 0.0
        %1289 = vmatmul.mubr.f32.gmra.mxu0 %v1115
        %v1290 = vpop.f32.mrf.mxu0
        %v1291 = vadd.f32 0.0, %v1290
        %v1292 = vpop.f32.mrf.mxu0
        %1293 = vmatprep.mubr.f32.mxu0 0.0
        %1294 = vmatmul.mubr.f32.gmra.mxu0 %v1116
        %v1295 = vpop.f32.mrf.mxu0
        %v1296 = vadd.f32 0.0, %v1295
        %v1297 = vpop.f32.mrf.mxu0
        %1298 = vmatprep.mubr.f32.mxu0 0.0
        %1299 = vmatmul.mubr.f32.gmra.mxu0 %v1117
        %v1300 = vpop.f32.mrf.mxu0
        %v1301 = vadd.f32 0.0, %v1300
        %v1302 = vpop.f32.mrf.mxu0
        %1303 = vmatprep.mubr.f32.mxu0 0.0
        %1304 = vmatmul.mubr.f32.gmra.mxu0 %v1118
        %v1305 = vpop.f32.mrf.mxu0
        %v1306 = vadd.f32 0.0, %v1305
        %v1307 = vpop.f32.mrf.mxu0
        %1308 = vmatprep.mubr.f32.mxu0 0.0
        %1309 = vmatmul.mubr.f32.gmra.mxu0 %v1119
        %v1310 = vpop.f32.mrf.mxu0
        %v1311 = vadd.f32 0.0, %v1310
        %v1312 = vpop.f32.mrf.mxu0
        %1313 = vmatprep.mubr.f32.mxu0 0.0
        %1314 = vmatmul.mubr.f32.gmra.mxu0 %v1120
        %v1315 = vpop.f32.mrf.mxu0
        %v1316 = vadd.f32 0.0, %v1315
        %v1317 = vpop.f32.mrf.mxu0
        %1318 = vmatprep.mubr.f32.mxu0 0.0
        %1319 = vmatmul.mubr.f32.gmra.mxu0 %v1121
        %v1320 = vpop.f32.mrf.mxu0
        %v1321 = vadd.f32 0.0, %v1320
        %v1322 = vpop.f32.mrf.mxu0
        %1323 = vmatprep.mubr.f32.mxu0 0.0
        %1324 = vmatmul.mubr.f32.gmra.mxu0 %v1122
        %v1325 = vpop.f32.mrf.mxu0
        %v1326 = vadd.f32 0.0, %v1325
        %v1327 = vpop.f32.mrf.mxu0
        %1328 = vmatprep.mubr.f32.mxu0 0.0
        %1329 = vmatmul.mubr.f32.gmra.mxu0 %v1123
        %v1330 = vpop.f32.mrf.mxu0
        %v1331 = vadd.f32 0.0, %v1330
        %v1332 = vpop.f32.mrf.mxu0
        %1333 = vmatprep.mubr.f32.mxu0 0.0
        %1334 = vmatmul.mubr.f32.gmra.mxu0 %v1124
        %v1335 = vpop.f32.mrf.mxu0
        %v1336 = vadd.f32 0.0, %v1335
        %v1337 = vpop.f32.mrf.mxu0
        %1338 = vmatprep.mubr.f32.mxu0 0.0
        %1339 = vmatmul.mubr.f32.gmra.mxu0 %v1125
        %v1340 = vpop.f32.mrf.mxu0
        %v1341 = vadd.f32 0.0, %v1340
        %v1342 = vpop.f32.mrf.mxu0
        %1343 = vmatprep.mubr.f32.mxu0 0.0
        %1344 = vmatmul.mubr.f32.gmra.mxu0 %v1126
        %v1345 = vpop.f32.mrf.mxu0
        %v1346 = vadd.f32 0.0, %v1345
        %v1347 = vpop.f32.mrf.mxu0
        %1348 = vmatprep.mubr.f32.mxu0 0.0
        %1349 = vmatmul.mubr.f32.gmra.mxu0 %v1127
        %v1350 = vpop.f32.mrf.mxu0
        %v1351 = vadd.f32 0.0, %v1350
        %v1352 = vpop.f32.mrf.mxu0
        %1353 = vmatprep.mubr.f32.mxu0 0.0
        %1354 = vmatmul.mubr.f32.gmra.mxu0 %v1128
        %v1355 = vpop.f32.mrf.mxu0
        %v1356 = vadd.f32 0.0, %v1355
        %v1357 = vpop.f32.mrf.mxu0
        %1358 = vmatprep.mubr.f32.mxu0 0.0
        %1359 = vmatmul.mubr.f32.gmra.mxu0 %v1129
        %v1360 = vpop.f32.mrf.mxu0
        %v1361 = vadd.f32 0.0, %v1360
        %v1362 = vpop.f32.mrf.mxu0
        %1363 = vmatprep.mubr.f32.mxu0 0.0
        %1364 = vmatmul.mubr.f32.gmra.mxu0 %v1130
        %v1365 = vpop.f32.mrf.mxu0
        %v1366 = vadd.f32 0.0, %v1365
        %v1367 = vpop.f32.mrf.mxu0
        %1368 = vmatprep.mubr.f32.mxu0 0.0
        %1369 = vmatmul.mubr.f32.gmra.mxu0 %v1131
        %v1370 = vpop.f32.mrf.mxu0
        %v1371 = vadd.f32 0.0, %v1370
        %v1372 = vpop.f32.mrf.mxu0
        %1373 = vmatprep.mubr.f32.mxu0 0.0
        %1374 = vmatmul.mubr.f32.gmra.mxu0 %v1132
        %v1375 = vpop.f32.mrf.mxu0
        %v1376 = vadd.f32 0.0, %v1375
        %v1377 = vpop.f32.mrf.mxu0
        %1378 = vmatprep.mubr.f32.mxu0 0.0
        %1379 = vmatmul.mubr.f32.gmra.mxu0 %v1133
        %v1380 = vpop.f32.mrf.mxu0
        %v1381 = vadd.f32 0.0, %v1380
        %v1382 = vpop.f32.mrf.mxu0
        %1383 = vmatprep.mubr.f32.mxu0 0.0
        %1384 = vmatmul.mubr.f32.gmra.mxu0 %v1134
        %v1385 = vpop.f32.mrf.mxu0
        %v1386 = vadd.f32 0.0, %v1385
        %v1387 = vpop.f32.mrf.mxu0
        %1388 = vmatprep.mubr.f32.mxu0 0.0
        %1389 = vmatmul.mubr.f32.gmra.mxu0 %v1135
        %v1390 = vpop.f32.mrf.mxu0
        %v1391 = vadd.f32 0.0, %v1390
        %v1392 = vpop.f32.mrf.mxu0
        %1393 = vmatprep.mubr.f32.mxu0 0.0
        %1394 = vmatmul.mubr.f32.gmra.mxu0 %v1136
        %v1395 = vpop.f32.mrf.mxu0
        %v1396 = vadd.f32 0.0, %v1395
        %v1397 = vpop.f32.mrf.mxu0
        %1398 = vmatprep.mubr.f32.mxu0 0.0
        %1399 = vmatmul.mubr.f32.gmra.mxu0 %v1137
        %v1400 = vpop.f32.mrf.mxu0
        %v1401 = vadd.f32 0.0, %v1400
        %v1402 = vpop.f32.mrf.mxu0
        %1403 = vmatprep.mubr.f32.mxu0 0.0
        %1404 = vmatmul.mubr.f32.gmra.mxu0 %v1138
        %v1405 = vpop.f32.mrf.mxu0
        %v1406 = vadd.f32 0.0, %v1405
        %v1407 = vpop.f32.mrf.mxu0
        %1408 = vmatprep.mubr.f32.mxu0 0.0
        %1409 = vmatmul.mubr.f32.gmra.mxu0 %v1139
        %v1410 = vpop.f32.mrf.mxu0
        %v1411 = vadd.f32 0.0, %v1410
        %v1412 = vpop.f32.mrf.mxu0
        %1413 = vdwg.mxu0
        %v1414 = vadd.f32 %v1140, %v1256
        %v1415 = vadd.f32 %v1141, %v1261
        %v1416 = vadd.f32 %v1142, %v1266
        %v1417 = vadd.f32 %v1143, %v1271
        %v1418 = vadd.f32 %v1144, %v1276
        %v1419 = vadd.f32 %v1145, %v1281
        %v1420 = vadd.f32 %v1146, %v1286
        %v1421 = vadd.f32 %v1147, %v1291
        %v1422 = vadd.f32 %v1148, %v1296
        %v1423 = vadd.f32 %v1149, %v1301
        %v1424 = vadd.f32 %v1150, %v1306
        %v1425 = vadd.f32 %v1151, %v1311
        %v1426 = vadd.f32 %v1152, %v1316
        %v1427 = vadd.f32 %v1153, %v1321
        %v1428 = vadd.f32 %v1154, %v1326
        %v1429 = vadd.f32 %v1155, %v1331
        %v1430 = vadd.f32 %v1156, %v1336
        %v1431 = vadd.f32 %v1157, %v1341
        %v1432 = vadd.f32 %v1158, %v1346
        %v1433 = vadd.f32 %v1159, %v1351
        %v1434 = vadd.f32 %v1160, %v1356
        %v1435 = vadd.f32 %v1161, %v1361
        %v1436 = vadd.f32 %v1162, %v1366
        %v1437 = vadd.f32 %v1163, %v1371
        %v1438 = vadd.f32 %v1164, %v1376
        %v1439 = vadd.f32 %v1165, %v1381
        %v1440 = vadd.f32 %v1166, %v1386
        %v1441 = vadd.f32 %v1167, %v1391
        %v1442 = vadd.f32 %v1168, %v1396
        %v1443 = vadd.f32 %v1169, %v1401
        %v1444 = vadd.f32 %v1170, %v1406
        %v1445 = vadd.f32 %v1171, %v1411
        %1446 = vst [vmem:[#allocation3] sm:$0xff] %v1414
        %1447 = vst [vmem:[#allocation3 + $0x8] sm:$0xff] %v1415
        %1448 = vst [vmem:[#allocation3 + $0x10] sm:$0xff] %v1416
        %1449 = vst [vmem:[#allocation3 + $0x18] sm:$0xff] %v1417
        %1450 = vst [vmem:[#allocation3 + $0x20] sm:$0xff] %v1418
        %1451 = vst [vmem:[#allocation3 + $0x28] sm:$0xff] %v1419
        %1452 = vst [vmem:[#allocation3 + $0x30] sm:$0xff] %v1420
        %1453 = vst [vmem:[#allocation3 + $0x38] sm:$0xff] %v1421
        %1454 = vst [vmem:[#allocation3 + $0x40] sm:$0xff] %v1422
        %1455 = vst [vmem:[#allocation3 + $0x48] sm:$0xff] %v1423
        %1456 = vst [vmem:[#allocation3 + $0x50] sm:$0xff] %v1424
        %1457 = vst [vmem:[#allocation3 + $0x58] sm:$0xff] %v1425
        %1458 = vst [vmem:[#allocation3 + $0x60] sm:$0xff] %v1426
        %1459 = vst [vmem:[#allocation3 + $0x68] sm:$0xff] %v1427
        %1460 = vst [vmem:[#allocation3 + $0x70] sm:$0xff] %v1428
        %1461 = vst [vmem:[#allocation3 + $0x78] sm:$0xff] %v1429
        %1462 = vst [vmem:[#allocation3 + $0x80] sm:$0xff] %v1430
        %1463 = vst [vmem:[#allocation3 + $0x88] sm:$0xff] %v1431
        %1464 = vst [vmem:[#allocation3 + $0x90] sm:$0xff] %v1432
        %1465 = vst [vmem:[#allocation3 + $0x98] sm:$0xff] %v1433
        %1466 = vst [vmem:[#allocation3 + $0xa0] sm:$0xff] %v1434
        %1467 = vst [vmem:[#allocation3 + $0xa8] sm:$0xff] %v1435
        %1468 = vst [vmem:[#allocation3 + $0xb0] sm:$0xff] %v1436
        %1469 = vst [vmem:[#allocation3 + $0xb8] sm:$0xff] %v1437
        %1470 = vst [vmem:[#allocation3 + $0xc0] sm:$0xff] %v1438
        %1471 = vst [vmem:[#allocation3 + $0xc8] sm:$0xff] %v1439
        %1472 = vst [vmem:[#allocation3 + $0xd0] sm:$0xff] %v1440
        %1473 = vst [vmem:[#allocation3 + $0xd8] sm:$0xff] %v1441
        %1474 = vst [vmem:[#allocation3 + $0xe0] sm:$0xff] %v1442
        %1475 = vst [vmem:[#allocation3 + $0xe8] sm:$0xff] %v1443
        %1476 = vst [vmem:[#allocation3 + $0xf0] sm:$0xff] %v1444
        %1477 = vst [vmem:[#allocation3 + $0xf8] sm:$0xff] %v1445
        %v1478 = vld [vmem:[%s304] sm:$0xff]
        %v1479 = vld [vmem:[%s304 + $0x8] sm:$0xff]
        %v1480 = vld [vmem:[%s304 + $0x18] sm:$0xff]
        %v1481 = vld [vmem:[%s304 + $0x20] sm:$0xff]
        %v1482 = vld [vmem:[%s304 + $0x30] sm:$0xff]
        %v1483 = vld [vmem:[%s304 + $0x38] sm:$0xff]
        %v1484 = vld [vmem:[%s304 + $0x48] sm:$0xff]
        %v1485 = vld [vmem:[%s304 + $0x50] sm:$0xff]
        %v1486 = vld [vmem:[%s304 + $0x60] sm:$0xff]
        %v1487 = vld [vmem:[%s304 + $0x68] sm:$0xff]
        %v1488 = vld [vmem:[%s304 + $0x78] sm:$0xff]
        %v1489 = vld [vmem:[%s304 + $0x80] sm:$0xff]
        %v1490 = vld [vmem:[%s304 + $0x90] sm:$0xff]
        %v1491 = vld [vmem:[%s304 + $0x98] sm:$0xff]
        %v1492 = vld [vmem:[%s304 + $0xa8] sm:$0xff]
        %v1493 = vld [vmem:[%s304 + $0xb0] sm:$0xff]
        %v1494 = vld [vmem:[%s304 + $0xc0] sm:$0xff]
        %v1495 = vld [vmem:[%s304 + $0xc8] sm:$0xff]
        %v1496 = vld [vmem:[%s304 + $0xd8] sm:$0xff]
        %v1497 = vld [vmem:[%s304 + $0xe0] sm:$0xff]
        %v1498 = vld [vmem:[%s304 + $0xf0] sm:$0xff]
        %v1499 = vld [vmem:[%s304 + $0xf8] sm:$0xff]
        %v1500 = vld [vmem:[%s304 + $0x108] sm:$0xff]
        %v1501 = vld [vmem:[%s304 + $0x110] sm:$0xff]
        %v1502 = vld [vmem:[%s304 + $0x120] sm:$0xff]
        %v1503 = vld [vmem:[%s304 + $0x128] sm:$0xff]
        %v1504 = vld [vmem:[%s304 + $0x138] sm:$0xff]
        %v1505 = vld [vmem:[%s304 + $0x140] sm:$0xff]
        %v1506 = vld [vmem:[%s304 + $0x150] sm:$0xff]
        %v1507 = vld [vmem:[%s304 + $0x158] sm:$0xff]
        %v1508 = vld [vmem:[%s304 + $0x168] sm:$0xff]
        %v1509 = vld [vmem:[%s304 + $0x170] sm:$0xff]
        %v1510 = vld [vmem:[#allocation3] sm:$0xff]
        %v1511 = vld [vmem:[#allocation3 + $0x8] sm:$0xff]
        %v1512 = vld [vmem:[#allocation3 + $0x10] sm:$0xff]
        %v1513 = vld [vmem:[#allocation3 + $0x18] sm:$0xff]
        %v1514 = vld [vmem:[#allocation3 + $0x20] sm:$0xff]
        %v1515 = vld [vmem:[#allocation3 + $0x28] sm:$0xff]
        %v1516 = vld [vmem:[#allocation3 + $0x30] sm:$0xff]
        %v1517 = vld [vmem:[#allocation3 + $0x38] sm:$0xff]
        %v1518 = vld [vmem:[#allocation3 + $0x40] sm:$0xff]
        %v1519 = vld [vmem:[#allocation3 + $0x48] sm:$0xff]
        %v1520 = vld [vmem:[#allocation3 + $0x50] sm:$0xff]
        %v1521 = vld [vmem:[#allocation3 + $0x58] sm:$0xff]
        %v1522 = vld [vmem:[#allocation3 + $0x60] sm:$0xff]
        %v1523 = vld [vmem:[#allocation3 + $0x68] sm:$0xff]
        %v1524 = vld [vmem:[#allocation3 + $0x70] sm:$0xff]
        %v1525 = vld [vmem:[#allocation3 + $0x78] sm:$0xff]
        %v1526 = vld [vmem:[#allocation3 + $0x80] sm:$0xff]
        %v1527 = vld [vmem:[#allocation3 + $0x88] sm:$0xff]
        %v1528 = vld [vmem:[#allocation3 + $0x90] sm:$0xff]
        %v1529 = vld [vmem:[#allocation3 + $0x98] sm:$0xff]
        %v1530 = vld [vmem:[#allocation3 + $0xa0] sm:$0xff]
        %v1531 = vld [vmem:[#allocation3 + $0xa8] sm:$0xff]
        %v1532 = vld [vmem:[#allocation3 + $0xb0] sm:$0xff]
        %v1533 = vld [vmem:[#allocation3 + $0xb8] sm:$0xff]
        %v1534 = vld [vmem:[#allocation3 + $0xc0] sm:$0xff]
        %v1535 = vld [vmem:[#allocation3 + $0xc8] sm:$0xff]
        %v1536 = vld [vmem:[#allocation3 + $0xd0] sm:$0xff]
        %v1537 = vld [vmem:[#allocation3 + $0xd8] sm:$0xff]
        %v1538 = vld [vmem:[#allocation3 + $0xe0] sm:$0xff]
        %v1539 = vld [vmem:[#allocation3 + $0xe8] sm:$0xff]
        %v1540 = vld [vmem:[#allocation3 + $0xf0] sm:$0xff]
        %v1541 = vld [vmem:[#allocation3 + $0xf8] sm:$0xff]
        %s1542 = scalar_lea.vmem [#allocation7], 384
        %v1543 = vld [vmem:[%s1542] sm:$0xff]
        %v1544 = vld [vmem:[%s1542 + $0x8] sm:$0xff]
        %v1545 = vld [vmem:[%s1542 + $0x10] sm:$0xff]
        %v1546 = vld [vmem:[%s1542 + $0x18] sm:$0xff]
        %v1547 = vld [vmem:[%s1542 + $0x20] sm:$0xff]
        %v1548 = vld [vmem:[%s1542 + $0x28] sm:$0xff]
        %v1549 = vld [vmem:[%s1542 + $0x30] sm:$0xff]
        %v1550 = vld [vmem:[%s1542 + $0x38] sm:$0xff]
        %v1551 = vld [vmem:[%s1542 + $0x40] sm:$0xff]
        %v1552 = vld [vmem:[%s1542 + $0x48] sm:$0xff]
        %v1553 = vld [vmem:[%s1542 + $0x50] sm:$0xff]
        %v1554 = vld [vmem:[%s1542 + $0x58] sm:$0xff]
        %v1555 = vld [vmem:[%s1542 + $0x60] sm:$0xff]
        %v1556 = vld [vmem:[%s1542 + $0x68] sm:$0xff]
        %v1557 = vld [vmem:[%s1542 + $0x70] sm:$0xff]
        %v1558 = vld [vmem:[%s1542 + $0x78] sm:$0xff]
        %1559 = vmatprep.subr.mxu0 0.0
        %1560 = vmatpush1.msra.mxu0 %v1558
        %1561 = vmatprep.subr.mxu0 0.0
        %1562 = vmatpush1.msra.mxu0 %v1557
        %1563 = vmatprep.subr.mxu0 0.0
        %1564 = vmatpush1.msra.mxu0 %v1556
        %1565 = vmatprep.subr.mxu0 0.0
        %1566 = vmatpush1.msra.mxu0 %v1555
        %1567 = vmatprep.subr.mxu0 0.0
        %1568 = vmatpush1.msra.mxu0 %v1554
        %1569 = vmatprep.subr.mxu0 0.0
        %1570 = vmatpush1.msra.mxu0 %v1553
        %1571 = vmatprep.subr.mxu0 0.0
        %1572 = vmatpush1.msra.mxu0 %v1552
        %1573 = vmatprep.subr.mxu0 0.0
        %1574 = vmatpush1.msra.mxu0 %v1551
        %1575 = vmatprep.subr.mxu0 0.0
        %1576 = vmatpush1.msra.mxu0 %v1550
        %1577 = vmatprep.subr.mxu0 0.0
        %1578 = vmatpush1.msra.mxu0 %v1549
        %1579 = vmatprep.subr.mxu0 0.0
        %1580 = vmatpush1.msra.mxu0 %v1548
        %1581 = vmatprep.subr.mxu0 0.0
        %1582 = vmatpush1.msra.mxu0 %v1547
        %1583 = vmatprep.subr.mxu0 0.0
        %1584 = vmatpush1.msra.mxu0 %v1546
        %1585 = vmatprep.subr.mxu0 0.0
        %1586 = vmatpush1.msra.mxu0 %v1545
        %1587 = vmatprep.subr.mxu0 0.0
        %1588 = vmatpush1.msra.mxu0 %v1544
        %1589 = vmatprep.subr.mxu0 0.0
        %1590 = vmatpush1.msra.mxu0 %v1543
        %1591 = vmatprep.subr.mxu0 0.0
        %1592 = vmatpush2.msra.mxu0 0.0
        %1593 = vmatprep.subr.mxu0 0.0
        %1594 = vmatpush2.msra.mxu0 0.0
        %1595 = vmatprep.subr.mxu0 0.0
        %1596 = vmatpush2.msra.mxu0 0.0
        %1597 = vmatprep.subr.mxu0 0.0
        %1598 = vmatpush2.msra.mxu0 0.0
        %1599 = vmatprep.subr.mxu0 0.0
        %1600 = vmatpush2.msra.mxu0 0.0
        %1601 = vmatprep.subr.mxu0 0.0
        %1602 = vmatpush2.msra.mxu0 0.0
        %1603 = vmatprep.subr.mxu0 0.0
        %1604 = vmatpush2.msra.mxu0 0.0
        %1605 = vmatprep.subr.mxu0 0.0
        %1606 = vmatpush2.msra.mxu0 0.0
        %1607 = vmatprep.subr.mxu0 0.0
        %1608 = vmatpush2.msra.mxu0 0.0
        %1609 = vmatprep.subr.mxu0 0.0
        %1610 = vmatpush2.msra.mxu0 0.0
        %1611 = vmatprep.subr.mxu0 0.0
        %1612 = vmatpush2.msra.mxu0 0.0
        %1613 = vmatprep.subr.mxu0 0.0
        %1614 = vmatpush2.msra.mxu0 0.0
        %1615 = vmatprep.subr.mxu0 0.0
        %1616 = vmatpush2.msra.mxu0 0.0
        %1617 = vmatprep.subr.mxu0 0.0
        %1618 = vmatpush2.msra.mxu0 0.0
        %1619 = vmatprep.subr.mxu0 0.0
        %1620 = vmatpush2.msra.mxu0 0.0
        %1621 = vmatprep.subr.mxu0 0.0
        %1622 = vmatpush2.msra.mxu0 0.0
        %1623 = vmatprep.mubr.f32.mxu0 0.0
        %1624 = vmatmul.mubr.f32.gmra.mxu0 %v1478
        %v1625 = vpop.f32.mrf.mxu0
        %v1626 = vadd.f32 0.0, %v1625
        %v1627 = vpop.f32.mrf.mxu0
        %1628 = vmatprep.mubr.f32.mxu0 0.0
        %1629 = vmatmul.mubr.f32.gmra.mxu0 %v1479
        %v1630 = vpop.f32.mrf.mxu0
        %v1631 = vadd.f32 0.0, %v1630
        %v1632 = vpop.f32.mrf.mxu0
        %1633 = vmatprep.mubr.f32.mxu0 0.0
        %1634 = vmatmul.mubr.f32.gmra.mxu0 %v1480
        %v1635 = vpop.f32.mrf.mxu0
        %v1636 = vadd.f32 0.0, %v1635
        %v1637 = vpop.f32.mrf.mxu0
        %1638 = vmatprep.mubr.f32.mxu0 0.0
        %1639 = vmatmul.mubr.f32.gmra.mxu0 %v1481
        %v1640 = vpop.f32.mrf.mxu0
        %v1641 = vadd.f32 0.0, %v1640
        %v1642 = vpop.f32.mrf.mxu0
        %1643 = vmatprep.mubr.f32.mxu0 0.0
        %1644 = vmatmul.mubr.f32.gmra.mxu0 %v1482
        %v1645 = vpop.f32.mrf.mxu0
        %v1646 = vadd.f32 0.0, %v1645
        %v1647 = vpop.f32.mrf.mxu0
        %1648 = vmatprep.mubr.f32.mxu0 0.0
        %1649 = vmatmul.mubr.f32.gmra.mxu0 %v1483
        %v1650 = vpop.f32.mrf.mxu0
        %v1651 = vadd.f32 0.0, %v1650
        %v1652 = vpop.f32.mrf.mxu0
        %1653 = vmatprep.mubr.f32.mxu0 0.0
        %1654 = vmatmul.mubr.f32.gmra.mxu0 %v1484
        %v1655 = vpop.f32.mrf.mxu0
        %v1656 = vadd.f32 0.0, %v1655
        %v1657 = vpop.f32.mrf.mxu0
        %1658 = vmatprep.mubr.f32.mxu0 0.0
        %1659 = vmatmul.mubr.f32.gmra.mxu0 %v1485
        %v1660 = vpop.f32.mrf.mxu0
        %v1661 = vadd.f32 0.0, %v1660
        %v1662 = vpop.f32.mrf.mxu0
        %1663 = vmatprep.mubr.f32.mxu0 0.0
        %1664 = vmatmul.mubr.f32.gmra.mxu0 %v1486
        %v1665 = vpop.f32.mrf.mxu0
        %v1666 = vadd.f32 0.0, %v1665
        %v1667 = vpop.f32.mrf.mxu0
        %1668 = vmatprep.mubr.f32.mxu0 0.0
        %1669 = vmatmul.mubr.f32.gmra.mxu0 %v1487
        %v1670 = vpop.f32.mrf.mxu0
        %v1671 = vadd.f32 0.0, %v1670
        %v1672 = vpop.f32.mrf.mxu0
        %1673 = vmatprep.mubr.f32.mxu0 0.0
        %1674 = vmatmul.mubr.f32.gmra.mxu0 %v1488
        %v1675 = vpop.f32.mrf.mxu0
        %v1676 = vadd.f32 0.0, %v1675
        %v1677 = vpop.f32.mrf.mxu0
        %1678 = vmatprep.mubr.f32.mxu0 0.0
        %1679 = vmatmul.mubr.f32.gmra.mxu0 %v1489
        %v1680 = vpop.f32.mrf.mxu0
        %v1681 = vadd.f32 0.0, %v1680
        %v1682 = vpop.f32.mrf.mxu0
        %1683 = vmatprep.mubr.f32.mxu0 0.0
        %1684 = vmatmul.mubr.f32.gmra.mxu0 %v1490
        %v1685 = vpop.f32.mrf.mxu0
        %v1686 = vadd.f32 0.0, %v1685
        %v1687 = vpop.f32.mrf.mxu0
        %1688 = vmatprep.mubr.f32.mxu0 0.0
        %1689 = vmatmul.mubr.f32.gmra.mxu0 %v1491
        %v1690 = vpop.f32.mrf.mxu0
        %v1691 = vadd.f32 0.0, %v1690
        %v1692 = vpop.f32.mrf.mxu0
        %1693 = vmatprep.mubr.f32.mxu0 0.0
        %1694 = vmatmul.mubr.f32.gmra.mxu0 %v1492
        %v1695 = vpop.f32.mrf.mxu0
        %v1696 = vadd.f32 0.0, %v1695
        %v1697 = vpop.f32.mrf.mxu0
        %1698 = vmatprep.mubr.f32.mxu0 0.0
        %1699 = vmatmul.mubr.f32.gmra.mxu0 %v1493
        %v1700 = vpop.f32.mrf.mxu0
        %v1701 = vadd.f32 0.0, %v1700
        %v1702 = vpop.f32.mrf.mxu0
        %1703 = vmatprep.mubr.f32.mxu0 0.0
        %1704 = vmatmul.mubr.f32.gmra.mxu0 %v1494
        %v1705 = vpop.f32.mrf.mxu0
        %v1706 = vadd.f32 0.0, %v1705
        %v1707 = vpop.f32.mrf.mxu0
        %1708 = vmatprep.mubr.f32.mxu0 0.0
        %1709 = vmatmul.mubr.f32.gmra.mxu0 %v1495
        %v1710 = vpop.f32.mrf.mxu0
        %v1711 = vadd.f32 0.0, %v1710
        %v1712 = vpop.f32.mrf.mxu0
        %1713 = vmatprep.mubr.f32.mxu0 0.0
        %1714 = vmatmul.mubr.f32.gmra.mxu0 %v1496
        %v1715 = vpop.f32.mrf.mxu0
        %v1716 = vadd.f32 0.0, %v1715
        %v1717 = vpop.f32.mrf.mxu0
        %1718 = vmatprep.mubr.f32.mxu0 0.0
        %1719 = vmatmul.mubr.f32.gmra.mxu0 %v1497
        %v1720 = vpop.f32.mrf.mxu0
        %v1721 = vadd.f32 0.0, %v1720
        %v1722 = vpop.f32.mrf.mxu0
        %1723 = vmatprep.mubr.f32.mxu0 0.0
        %1724 = vmatmul.mubr.f32.gmra.mxu0 %v1498
        %v1725 = vpop.f32.mrf.mxu0
        %v1726 = vadd.f32 0.0, %v1725
        %v1727 = vpop.f32.mrf.mxu0
        %1728 = vmatprep.mubr.f32.mxu0 0.0
        %1729 = vmatmul.mubr.f32.gmra.mxu0 %v1499
        %v1730 = vpop.f32.mrf.mxu0
        %v1731 = vadd.f32 0.0, %v1730
        %v1732 = vpop.f32.mrf.mxu0
        %1733 = vmatprep.mubr.f32.mxu0 0.0
        %1734 = vmatmul.mubr.f32.gmra.mxu0 %v1500
        %v1735 = vpop.f32.mrf.mxu0
        %v1736 = vadd.f32 0.0, %v1735
        %v1737 = vpop.f32.mrf.mxu0
        %1738 = vmatprep.mubr.f32.mxu0 0.0
        %1739 = vmatmul.mubr.f32.gmra.mxu0 %v1501
        %v1740 = vpop.f32.mrf.mxu0
        %v1741 = vadd.f32 0.0, %v1740
        %v1742 = vpop.f32.mrf.mxu0
        %1743 = vmatprep.mubr.f32.mxu0 0.0
        %1744 = vmatmul.mubr.f32.gmra.mxu0 %v1502
        %v1745 = vpop.f32.mrf.mxu0
        %v1746 = vadd.f32 0.0, %v1745
        %v1747 = vpop.f32.mrf.mxu0
        %1748 = vmatprep.mubr.f32.mxu0 0.0
        %1749 = vmatmul.mubr.f32.gmra.mxu0 %v1503
        %v1750 = vpop.f32.mrf.mxu0
        %v1751 = vadd.f32 0.0, %v1750
        %v1752 = vpop.f32.mrf.mxu0
        %1753 = vmatprep.mubr.f32.mxu0 0.0
        %1754 = vmatmul.mubr.f32.gmra.mxu0 %v1504
        %v1755 = vpop.f32.mrf.mxu0
        %v1756 = vadd.f32 0.0, %v1755
        %v1757 = vpop.f32.mrf.mxu0
        %1758 = vmatprep.mubr.f32.mxu0 0.0
        %1759 = vmatmul.mubr.f32.gmra.mxu0 %v1505
        %v1760 = vpop.f32.mrf.mxu0
        %v1761 = vadd.f32 0.0, %v1760
        %v1762 = vpop.f32.mrf.mxu0
        %1763 = vmatprep.mubr.f32.mxu0 0.0
        %1764 = vmatmul.mubr.f32.gmra.mxu0 %v1506
        %v1765 = vpop.f32.mrf.mxu0
        %v1766 = vadd.f32 0.0, %v1765
        %v1767 = vpop.f32.mrf.mxu0
        %1768 = vmatprep.mubr.f32.mxu0 0.0
        %1769 = vmatmul.mubr.f32.gmra.mxu0 %v1507
        %v1770 = vpop.f32.mrf.mxu0
        %v1771 = vadd.f32 0.0, %v1770
        %v1772 = vpop.f32.mrf.mxu0
        %1773 = vmatprep.mubr.f32.mxu0 0.0
        %1774 = vmatmul.mubr.f32.gmra.mxu0 %v1508
        %v1775 = vpop.f32.mrf.mxu0
        %v1776 = vadd.f32 0.0, %v1775
        %v1777 = vpop.f32.mrf.mxu0
        %1778 = vmatprep.mubr.f32.mxu0 0.0
        %1779 = vmatmul.mubr.f32.gmra.mxu0 %v1509
        %v1780 = vpop.f32.mrf.mxu0
        %v1781 = vadd.f32 0.0, %v1780
        %v1782 = vpop.f32.mrf.mxu0
        %1783 = vdwg.mxu0
        %v1784 = vadd.f32 %v1510, %v1626
        %v1785 = vadd.f32 %v1511, %v1631
        %v1786 = vadd.f32 %v1512, %v1636
        %v1787 = vadd.f32 %v1513, %v1641
        %v1788 = vadd.f32 %v1514, %v1646
        %v1789 = vadd.f32 %v1515, %v1651
        %v1790 = vadd.f32 %v1516, %v1656
        %v1791 = vadd.f32 %v1517, %v1661
        %v1792 = vadd.f32 %v1518, %v1666
        %v1793 = vadd.f32 %v1519, %v1671
        %v1794 = vadd.f32 %v1520, %v1676
        %v1795 = vadd.f32 %v1521, %v1681
        %v1796 = vadd.f32 %v1522, %v1686
        %v1797 = vadd.f32 %v1523, %v1691
        %v1798 = vadd.f32 %v1524, %v1696
        %v1799 = vadd.f32 %v1525, %v1701
        %v1800 = vadd.f32 %v1526, %v1706
        %v1801 = vadd.f32 %v1527, %v1711
        %v1802 = vadd.f32 %v1528, %v1716
        %v1803 = vadd.f32 %v1529, %v1721
        %v1804 = vadd.f32 %v1530, %v1726
        %v1805 = vadd.f32 %v1531, %v1731
        %v1806 = vadd.f32 %v1532, %v1736
        %v1807 = vadd.f32 %v1533, %v1741
        %v1808 = vadd.f32 %v1534, %v1746
        %v1809 = vadd.f32 %v1535, %v1751
        %v1810 = vadd.f32 %v1536, %v1756
        %v1811 = vadd.f32 %v1537, %v1761
        %v1812 = vadd.f32 %v1538, %v1766
        %v1813 = vadd.f32 %v1539, %v1771
        %v1814 = vadd.f32 %v1540, %v1776
        %v1815 = vadd.f32 %v1541, %v1781
        %1816 = vst [vmem:[#allocation3] sm:$0xff] %v1784
        %1817 = vst [vmem:[#allocation3 + $0x8] sm:$0xff] %v1785
        %1818 = vst [vmem:[#allocation3 + $0x10] sm:$0xff] %v1786
        %1819 = vst [vmem:[#allocation3 + $0x18] sm:$0xff] %v1787
        %1820 = vst [vmem:[#allocation3 + $0x20] sm:$0xff] %v1788
        %1821 = vst [vmem:[#allocation3 + $0x28] sm:$0xff] %v1789
        %1822 = vst [vmem:[#allocation3 + $0x30] sm:$0xff] %v1790
        %1823 = vst [vmem:[#allocation3 + $0x38] sm:$0xff] %v1791
        %1824 = vst [vmem:[#allocation3 + $0x40] sm:$0xff] %v1792
        %1825 = vst [vmem:[#allocation3 + $0x48] sm:$0xff] %v1793
        %1826 = vst [vmem:[#allocation3 + $0x50] sm:$0xff] %v1794
        %1827 = vst [vmem:[#allocation3 + $0x58] sm:$0xff] %v1795
        %1828 = vst [vmem:[#allocation3 + $0x60] sm:$0xff] %v1796
        %1829 = vst [vmem:[#allocation3 + $0x68] sm:$0xff] %v1797
        %1830 = vst [vmem:[#allocation3 + $0x70] sm:$0xff] %v1798
        %1831 = vst [vmem:[#allocation3 + $0x78] sm:$0xff] %v1799
        %1832 = vst [vmem:[#allocation3 + $0x80] sm:$0xff] %v1800
        %1833 = vst [vmem:[#allocation3 + $0x88] sm:$0xff] %v1801
        %1834 = vst [vmem:[#allocation3 + $0x90] sm:$0xff] %v1802
        %1835 = vst [vmem:[#allocation3 + $0x98] sm:$0xff] %v1803
        %1836 = vst [vmem:[#allocation3 + $0xa0] sm:$0xff] %v1804
        %1837 = vst [vmem:[#allocation3 + $0xa8] sm:$0xff] %v1805
        %1838 = vst [vmem:[#allocation3 + $0xb0] sm:$0xff] %v1806
        %1839 = vst [vmem:[#allocation3 + $0xb8] sm:$0xff] %v1807
        %1840 = vst [vmem:[#allocation3 + $0xc0] sm:$0xff] %v1808
        %1841 = vst [vmem:[#allocation3 + $0xc8] sm:$0xff] %v1809
        %1842 = vst [vmem:[#allocation3 + $0xd0] sm:$0xff] %v1810
        %1843 = vst [vmem:[#allocation3 + $0xd8] sm:$0xff] %v1811
        %1844 = vst [vmem:[#allocation3 + $0xe0] sm:$0xff] %v1812
        %1845 = vst [vmem:[#allocation3 + $0xe8] sm:$0xff] %v1813
        %1846 = vst [vmem:[#allocation3 + $0xf0] sm:$0xff] %v1814
        %1847 = vst [vmem:[#allocation3 + $0xf8] sm:$0xff] %v1815
        %v1848 = vld [vmem:[%s304 + $0x1] sm:$0xff]
        %v1849 = vld [vmem:[%s304 + $0x9] sm:$0xff]
        %v1850 = vld [vmem:[%s304 + $0x19] sm:$0xff]
        %v1851 = vld [vmem:[%s304 + $0x21] sm:$0xff]
        %v1852 = vld [vmem:[%s304 + $0x31] sm:$0xff]
        %v1853 = vld [vmem:[%s304 + $0x39] sm:$0xff]
        %v1854 = vld [vmem:[%s304 + $0x49] sm:$0xff]
        %v1855 = vld [vmem:[%s304 + $0x51] sm:$0xff]
        %v1856 = vld [vmem:[%s304 + $0x61] sm:$0xff]
        %v1857 = vld [vmem:[%s304 + $0x69] sm:$0xff]
        %v1858 = vld [vmem:[%s304 + $0x79] sm:$0xff]
        %v1859 = vld [vmem:[%s304 + $0x81] sm:$0xff]
        %v1860 = vld [vmem:[%s304 + $0x91] sm:$0xff]
        %v1861 = vld [vmem:[%s304 + $0x99] sm:$0xff]
        %v1862 = vld [vmem:[%s304 + $0xa9] sm:$0xff]
        %v1863 = vld [vmem:[%s304 + $0xb1] sm:$0xff]
        %v1864 = vld [vmem:[%s304 + $0xc1] sm:$0xff]
        %v1865 = vld [vmem:[%s304 + $0xc9] sm:$0xff]
        %v1866 = vld [vmem:[%s304 + $0xd9] sm:$0xff]
        %v1867 = vld [vmem:[%s304 + $0xe1] sm:$0xff]
        %v1868 = vld [vmem:[%s304 + $0xf1] sm:$0xff]
        %v1869 = vld [vmem:[%s304 + $0xf9] sm:$0xff]
        %v1870 = vld [vmem:[%s304 + $0x109] sm:$0xff]
        %v1871 = vld [vmem:[%s304 + $0x111] sm:$0xff]
        %v1872 = vld [vmem:[%s304 + $0x121] sm:$0xff]
        %v1873 = vld [vmem:[%s304 + $0x129] sm:$0xff]
        %v1874 = vld [vmem:[%s304 + $0x139] sm:$0xff]
        %v1875 = vld [vmem:[%s304 + $0x141] sm:$0xff]
        %v1876 = vld [vmem:[%s304 + $0x151] sm:$0xff]
        %v1877 = vld [vmem:[%s304 + $0x159] sm:$0xff]
        %v1878 = vld [vmem:[%s304 + $0x169] sm:$0xff]
        %v1879 = vld [vmem:[%s304 + $0x171] sm:$0xff]
        %v1880 = vld [vmem:[#allocation3] sm:$0xff]
        %v1881 = vld [vmem:[#allocation3 + $0x8] sm:$0xff]
        %v1882 = vld [vmem:[#allocation3 + $0x10] sm:$0xff]
        %v1883 = vld [vmem:[#allocation3 + $0x18] sm:$0xff]
        %v1884 = vld [vmem:[#allocation3 + $0x20] sm:$0xff]
        %v1885 = vld [vmem:[#allocation3 + $0x28] sm:$0xff]
        %v1886 = vld [vmem:[#allocation3 + $0x30] sm:$0xff]
        %v1887 = vld [vmem:[#allocation3 + $0x38] sm:$0xff]
        %v1888 = vld [vmem:[#allocation3 + $0x40] sm:$0xff]
        %v1889 = vld [vmem:[#allocation3 + $0x48] sm:$0xff]
        %v1890 = vld [vmem:[#allocation3 + $0x50] sm:$0xff]
        %v1891 = vld [vmem:[#allocation3 + $0x58] sm:$0xff]
        %v1892 = vld [vmem:[#allocation3 + $0x60] sm:$0xff]
        %v1893 = vld [vmem:[#allocation3 + $0x68] sm:$0xff]
        %v1894 = vld [vmem:[#allocation3 + $0x70] sm:$0xff]
        %v1895 = vld [vmem:[#allocation3 + $0x78] sm:$0xff]
        %v1896 = vld [vmem:[#allocation3 + $0x80] sm:$0xff]
        %v1897 = vld [vmem:[#allocation3 + $0x88] sm:$0xff]
        %v1898 = vld [vmem:[#allocation3 + $0x90] sm:$0xff]
        %v1899 = vld [vmem:[#allocation3 + $0x98] sm:$0xff]
        %v1900 = vld [vmem:[#allocation3 + $0xa0] sm:$0xff]
        %v1901 = vld [vmem:[#allocation3 + $0xa8] sm:$0xff]
        %v1902 = vld [vmem:[#allocation3 + $0xb0] sm:$0xff]
        %v1903 = vld [vmem:[#allocation3 + $0xb8] sm:$0xff]
        %v1904 = vld [vmem:[#allocation3 + $0xc0] sm:$0xff]
        %v1905 = vld [vmem:[#allocation3 + $0xc8] sm:$0xff]
        %v1906 = vld [vmem:[#allocation3 + $0xd0] sm:$0xff]
        %v1907 = vld [vmem:[#allocation3 + $0xd8] sm:$0xff]
        %v1908 = vld [vmem:[#allocation3 + $0xe0] sm:$0xff]
        %v1909 = vld [vmem:[#allocation3 + $0xe8] sm:$0xff]
        %v1910 = vld [vmem:[#allocation3 + $0xf0] sm:$0xff]
        %v1911 = vld [vmem:[#allocation3 + $0xf8] sm:$0xff]
        %s1912 = scalar_lea.vmem [#allocation7], 512
        %v1913 = vld [vmem:[%s1912] sm:$0xff]
        %v1914 = vld [vmem:[%s1912 + $0x8] sm:$0xff]
        %v1915 = vld [vmem:[%s1912 + $0x10] sm:$0xff]
        %v1916 = vld [vmem:[%s1912 + $0x18] sm:$0xff]
        %v1917 = vld [vmem:[%s1912 + $0x20] sm:$0xff]
        %v1918 = vld [vmem:[%s1912 + $0x28] sm:$0xff]
        %v1919 = vld [vmem:[%s1912 + $0x30] sm:$0xff]
        %v1920 = vld [vmem:[%s1912 + $0x38] sm:$0xff]
        %v1921 = vld [vmem:[%s1912 + $0x40] sm:$0xff]
        %v1922 = vld [vmem:[%s1912 + $0x48] sm:$0xff]
        %v1923 = vld [vmem:[%s1912 + $0x50] sm:$0xff]
        %v1924 = vld [vmem:[%s1912 + $0x58] sm:$0xff]
        %v1925 = vld [vmem:[%s1912 + $0x60] sm:$0xff]
        %v1926 = vld [vmem:[%s1912 + $0x68] sm:$0xff]
        %v1927 = vld [vmem:[%s1912 + $0x70] sm:$0xff]
        %v1928 = vld [vmem:[%s1912 + $0x78] sm:$0xff]
        %1929 = vmatprep.subr.mxu0 0.0
        %1930 = vmatpush1.msra.mxu0 %v1928
        %1931 = vmatprep.subr.mxu0 0.0
        %1932 = vmatpush1.msra.mxu0 %v1927
        %1933 = vmatprep.subr.mxu0 0.0
        %1934 = vmatpush1.msra.mxu0 %v1926
        %1935 = vmatprep.subr.mxu0 0.0
        %1936 = vmatpush1.msra.mxu0 %v1925
        %1937 = vmatprep.subr.mxu0 0.0
        %1938 = vmatpush1.msra.mxu0 %v1924
        %1939 = vmatprep.subr.mxu0 0.0
        %1940 = vmatpush1.msra.mxu0 %v1923
        %1941 = vmatprep.subr.mxu0 0.0
        %1942 = vmatpush1.msra.mxu0 %v1922
        %1943 = vmatprep.subr.mxu0 0.0
        %1944 = vmatpush1.msra.mxu0 %v1921
        %1945 = vmatprep.subr.mxu0 0.0
        %1946 = vmatpush1.msra.mxu0 %v1920
        %1947 = vmatprep.subr.mxu0 0.0
        %1948 = vmatpush1.msra.mxu0 %v1919
        %1949 = vmatprep.subr.mxu0 0.0
        %1950 = vmatpush1.msra.mxu0 %v1918
        %1951 = vmatprep.subr.mxu0 0.0
        %1952 = vmatpush1.msra.mxu0 %v1917
        %1953 = vmatprep.subr.mxu0 0.0
        %1954 = vmatpush1.msra.mxu0 %v1916
        %1955 = vmatprep.subr.mxu0 0.0
        %1956 = vmatpush1.msra.mxu0 %v1915
        %1957 = vmatprep.subr.mxu0 0.0
        %1958 = vmatpush1.msra.mxu0 %v1914
        %1959 = vmatprep.subr.mxu0 0.0
        %1960 = vmatpush1.msra.mxu0 %v1913
        %1961 = vmatprep.subr.mxu0 0.0
        %1962 = vmatpush2.msra.mxu0 0.0
        %1963 = vmatprep.subr.mxu0 0.0
        %1964 = vmatpush2.msra.mxu0 0.0
        %1965 = vmatprep.subr.mxu0 0.0
        %1966 = vmatpush2.msra.mxu0 0.0
        %1967 = vmatprep.subr.mxu0 0.0
        %1968 = vmatpush2.msra.mxu0 0.0
        %1969 = vmatprep.subr.mxu0 0.0
        %1970 = vmatpush2.msra.mxu0 0.0
        %1971 = vmatprep.subr.mxu0 0.0
        %1972 = vmatpush2.msra.mxu0 0.0
        %1973 = vmatprep.subr.mxu0 0.0
        %1974 = vmatpush2.msra.mxu0 0.0
        %1975 = vmatprep.subr.mxu0 0.0
        %1976 = vmatpush2.msra.mxu0 0.0
        %1977 = vmatprep.subr.mxu0 0.0
        %1978 = vmatpush2.msra.mxu0 0.0
        %1979 = vmatprep.subr.mxu0 0.0
        %1980 = vmatpush2.msra.mxu0 0.0
        %1981 = vmatprep.subr.mxu0 0.0
        %1982 = vmatpush2.msra.mxu0 0.0
        %1983 = vmatprep.subr.mxu0 0.0
        %1984 = vmatpush2.msra.mxu0 0.0
        %1985 = vmatprep.subr.mxu0 0.0
        %1986 = vmatpush2.msra.mxu0 0.0
        %1987 = vmatprep.subr.mxu0 0.0
        %1988 = vmatpush2.msra.mxu0 0.0
        %1989 = vmatprep.subr.mxu0 0.0
        %1990 = vmatpush2.msra.mxu0 0.0
        %1991 = vmatprep.subr.mxu0 0.0
        %1992 = vmatpush2.msra.mxu0 0.0
        %1993 = vmatprep.mubr.f32.mxu0 0.0
        %1994 = vmatmul.mubr.f32.gmra.mxu0 %v1848
        %v1995 = vpop.f32.mrf.mxu0
        %v1996 = vadd.f32 0.0, %v1995
        %v1997 = vpop.f32.mrf.mxu0
        %1998 = vmatprep.mubr.f32.mxu0 0.0
        %1999 = vmatmul.mubr.f32.gmra.mxu0 %v1849
        %v2000 = vpop.f32.mrf.mxu0
        %v2001 = vadd.f32 0.0, %v2000
        %v2002 = vpop.f32.mrf.mxu0
        %2003 = vmatprep.mubr.f32.mxu0 0.0
        %2004 = vmatmul.mubr.f32.gmra.mxu0 %v1850
        %v2005 = vpop.f32.mrf.mxu0
        %v2006 = vadd.f32 0.0, %v2005
        %v2007 = vpop.f32.mrf.mxu0
        %2008 = vmatprep.mubr.f32.mxu0 0.0
        %2009 = vmatmul.mubr.f32.gmra.mxu0 %v1851
        %v2010 = vpop.f32.mrf.mxu0
        %v2011 = vadd.f32 0.0, %v2010
        %v2012 = vpop.f32.mrf.mxu0
        %2013 = vmatprep.mubr.f32.mxu0 0.0
        %2014 = vmatmul.mubr.f32.gmra.mxu0 %v1852
        %v2015 = vpop.f32.mrf.mxu0
        %v2016 = vadd.f32 0.0, %v2015
        %v2017 = vpop.f32.mrf.mxu0
        %2018 = vmatprep.mubr.f32.mxu0 0.0
        %2019 = vmatmul.mubr.f32.gmra.mxu0 %v1853
        %v2020 = vpop.f32.mrf.mxu0
        %v2021 = vadd.f32 0.0, %v2020
        %v2022 = vpop.f32.mrf.mxu0
        %2023 = vmatprep.mubr.f32.mxu0 0.0
        %2024 = vmatmul.mubr.f32.gmra.mxu0 %v1854
        %v2025 = vpop.f32.mrf.mxu0
        %v2026 = vadd.f32 0.0, %v2025
        %v2027 = vpop.f32.mrf.mxu0
        %2028 = vmatprep.mubr.f32.mxu0 0.0
        %2029 = vmatmul.mubr.f32.gmra.mxu0 %v1855
        %v2030 = vpop.f32.mrf.mxu0
        %v2031 = vadd.f32 0.0, %v2030
        %v2032 = vpop.f32.mrf.mxu0
        %2033 = vmatprep.mubr.f32.mxu0 0.0
        %2034 = vmatmul.mubr.f32.gmra.mxu0 %v1856
        %v2035 = vpop.f32.mrf.mxu0
        %v2036 = vadd.f32 0.0, %v2035
        %v2037 = vpop.f32.mrf.mxu0
        %2038 = vmatprep.mubr.f32.mxu0 0.0
        %2039 = vmatmul.mubr.f32.gmra.mxu0 %v1857
        %v2040 = vpop.f32.mrf.mxu0
        %v2041 = vadd.f32 0.0, %v2040
        %v2042 = vpop.f32.mrf.mxu0
        %2043 = vmatprep.mubr.f32.mxu0 0.0
        %2044 = vmatmul.mubr.f32.gmra.mxu0 %v1858
        %v2045 = vpop.f32.mrf.mxu0
        %v2046 = vadd.f32 0.0, %v2045
        %v2047 = vpop.f32.mrf.mxu0
        %2048 = vmatprep.mubr.f32.mxu0 0.0
        %2049 = vmatmul.mubr.f32.gmra.mxu0 %v1859
        %v2050 = vpop.f32.mrf.mxu0
        %v2051 = vadd.f32 0.0, %v2050
        %v2052 = vpop.f32.mrf.mxu0
        %2053 = vmatprep.mubr.f32.mxu0 0.0
        %2054 = vmatmul.mubr.f32.gmra.mxu0 %v1860
        %v2055 = vpop.f32.mrf.mxu0
        %v2056 = vadd.f32 0.0, %v2055
        %v2057 = vpop.f32.mrf.mxu0
        %2058 = vmatprep.mubr.f32.mxu0 0.0
        %2059 = vmatmul.mubr.f32.gmra.mxu0 %v1861
        %v2060 = vpop.f32.mrf.mxu0
        %v2061 = vadd.f32 0.0, %v2060
        %v2062 = vpop.f32.mrf.mxu0
        %2063 = vmatprep.mubr.f32.mxu0 0.0
        %2064 = vmatmul.mubr.f32.gmra.mxu0 %v1862
        %v2065 = vpop.f32.mrf.mxu0
        %v2066 = vadd.f32 0.0, %v2065
        %v2067 = vpop.f32.mrf.mxu0
        %2068 = vmatprep.mubr.f32.mxu0 0.0
        %2069 = vmatmul.mubr.f32.gmra.mxu0 %v1863
        %v2070 = vpop.f32.mrf.mxu0
        %v2071 = vadd.f32 0.0, %v2070
        %v2072 = vpop.f32.mrf.mxu0
        %2073 = vmatprep.mubr.f32.mxu0 0.0
        %2074 = vmatmul.mubr.f32.gmra.mxu0 %v1864
        %v2075 = vpop.f32.mrf.mxu0
        %v2076 = vadd.f32 0.0, %v2075
        %v2077 = vpop.f32.mrf.mxu0
        %2078 = vmatprep.mubr.f32.mxu0 0.0
        %2079 = vmatmul.mubr.f32.gmra.mxu0 %v1865
        %v2080 = vpop.f32.mrf.mxu0
        %v2081 = vadd.f32 0.0, %v2080
        %v2082 = vpop.f32.mrf.mxu0
        %2083 = vmatprep.mubr.f32.mxu0 0.0
        %2084 = vmatmul.mubr.f32.gmra.mxu0 %v1866
        %v2085 = vpop.f32.mrf.mxu0
        %v2086 = vadd.f32 0.0, %v2085
        %v2087 = vpop.f32.mrf.mxu0
        %2088 = vmatprep.mubr.f32.mxu0 0.0
        %2089 = vmatmul.mubr.f32.gmra.mxu0 %v1867
        %v2090 = vpop.f32.mrf.mxu0
        %v2091 = vadd.f32 0.0, %v2090
        %v2092 = vpop.f32.mrf.mxu0
        %2093 = vmatprep.mubr.f32.mxu0 0.0
        %2094 = vmatmul.mubr.f32.gmra.mxu0 %v1868
        %v2095 = vpop.f32.mrf.mxu0
        %v2096 = vadd.f32 0.0, %v2095
        %v2097 = vpop.f32.mrf.mxu0
        %2098 = vmatprep.mubr.f32.mxu0 0.0
        %2099 = vmatmul.mubr.f32.gmra.mxu0 %v1869
        %v2100 = vpop.f32.mrf.mxu0
        %v2101 = vadd.f32 0.0, %v2100
        %v2102 = vpop.f32.mrf.mxu0
        %2103 = vmatprep.mubr.f32.mxu0 0.0
        %2104 = vmatmul.mubr.f32.gmra.mxu0 %v1870
        %v2105 = vpop.f32.mrf.mxu0
        %v2106 = vadd.f32 0.0, %v2105
        %v2107 = vpop.f32.mrf.mxu0
        %2108 = vmatprep.mubr.f32.mxu0 0.0
        %2109 = vmatmul.mubr.f32.gmra.mxu0 %v1871
        %v2110 = vpop.f32.mrf.mxu0
        %v2111 = vadd.f32 0.0, %v2110
        %v2112 = vpop.f32.mrf.mxu0
        %2113 = vmatprep.mubr.f32.mxu0 0.0
        %2114 = vmatmul.mubr.f32.gmra.mxu0 %v1872
        %v2115 = vpop.f32.mrf.mxu0
        %v2116 = vadd.f32 0.0, %v2115
        %v2117 = vpop.f32.mrf.mxu0
        %2118 = vmatprep.mubr.f32.mxu0 0.0
        %2119 = vmatmul.mubr.f32.gmra.mxu0 %v1873
        %v2120 = vpop.f32.mrf.mxu0
        %v2121 = vadd.f32 0.0, %v2120
        %v2122 = vpop.f32.mrf.mxu0
        %2123 = vmatprep.mubr.f32.mxu0 0.0
        %2124 = vmatmul.mubr.f32.gmra.mxu0 %v1874
        %v2125 = vpop.f32.mrf.mxu0
        %v2126 = vadd.f32 0.0, %v2125
        %v2127 = vpop.f32.mrf.mxu0
        %2128 = vmatprep.mubr.f32.mxu0 0.0
        %2129 = vmatmul.mubr.f32.gmra.mxu0 %v1875
        %v2130 = vpop.f32.mrf.mxu0
        %v2131 = vadd.f32 0.0, %v2130
        %v2132 = vpop.f32.mrf.mxu0
        %2133 = vmatprep.mubr.f32.mxu0 0.0
        %2134 = vmatmul.mubr.f32.gmra.mxu0 %v1876
        %v2135 = vpop.f32.mrf.mxu0
        %v2136 = vadd.f32 0.0, %v2135
        %v2137 = vpop.f32.mrf.mxu0
        %2138 = vmatprep.mubr.f32.mxu0 0.0
        %2139 = vmatmul.mubr.f32.gmra.mxu0 %v1877
        %v2140 = vpop.f32.mrf.mxu0
        %v2141 = vadd.f32 0.0, %v2140
        %v2142 = vpop.f32.mrf.mxu0
        %2143 = vmatprep.mubr.f32.mxu0 0.0
        %2144 = vmatmul.mubr.f32.gmra.mxu0 %v1878
        %v2145 = vpop.f32.mrf.mxu0
        %v2146 = vadd.f32 0.0, %v2145
        %v2147 = vpop.f32.mrf.mxu0
        %2148 = vmatprep.mubr.f32.mxu0 0.0
        %2149 = vmatmul.mubr.f32.gmra.mxu0 %v1879
        %v2150 = vpop.f32.mrf.mxu0
        %v2151 = vadd.f32 0.0, %v2150
        %v2152 = vpop.f32.mrf.mxu0
        %2153 = vdwg.mxu0
        %v2154 = vadd.f32 %v1880, %v1996
        %v2155 = vadd.f32 %v1881, %v2001
        %v2156 = vadd.f32 %v1882, %v2006
        %v2157 = vadd.f32 %v1883, %v2011
        %v2158 = vadd.f32 %v1884, %v2016
        %v2159 = vadd.f32 %v1885, %v2021
        %v2160 = vadd.f32 %v1886, %v2026
        %v2161 = vadd.f32 %v1887, %v2031
        %v2162 = vadd.f32 %v1888, %v2036
        %v2163 = vadd.f32 %v1889, %v2041
        %v2164 = vadd.f32 %v1890, %v2046
        %v2165 = vadd.f32 %v1891, %v2051
        %v2166 = vadd.f32 %v1892, %v2056
        %v2167 = vadd.f32 %v1893, %v2061
        %v2168 = vadd.f32 %v1894, %v2066
        %v2169 = vadd.f32 %v1895, %v2071
        %v2170 = vadd.f32 %v1896, %v2076
        %v2171 = vadd.f32 %v1897, %v2081
        %v2172 = vadd.f32 %v1898, %v2086
        %v2173 = vadd.f32 %v1899, %v2091
        %v2174 = vadd.f32 %v1900, %v2096
        %v2175 = vadd.f32 %v1901, %v2101
        %v2176 = vadd.f32 %v1902, %v2106
        %v2177 = vadd.f32 %v1903, %v2111
        %v2178 = vadd.f32 %v1904, %v2116
        %v2179 = vadd.f32 %v1905, %v2121
        %v2180 = vadd.f32 %v1906, %v2126
        %v2181 = vadd.f32 %v1907, %v2131
        %v2182 = vadd.f32 %v1908, %v2136
        %v2183 = vadd.f32 %v1909, %v2141
        %v2184 = vadd.f32 %v1910, %v2146
        %v2185 = vadd.f32 %v1911, %v2151
        %2186 = vst [vmem:[#allocation3] sm:$0xff] %v2154
        %2187 = vst [vmem:[#allocation3 + $0x8] sm:$0xff] %v2155
        %2188 = vst [vmem:[#allocation3 + $0x10] sm:$0xff] %v2156
        %2189 = vst [vmem:[#allocation3 + $0x18] sm:$0xff] %v2157
        %2190 = vst [vmem:[#allocation3 + $0x20] sm:$0xff] %v2158
        %2191 = vst [vmem:[#allocation3 + $0x28] sm:$0xff] %v2159
        %2192 = vst [vmem:[#allocation3 + $0x30] sm:$0xff] %v2160
        %2193 = vst [vmem:[#allocation3 + $0x38] sm:$0xff] %v2161
        %2194 = vst [vmem:[#allocation3 + $0x40] sm:$0xff] %v2162
        %2195 = vst [vmem:[#allocation3 + $0x48] sm:$0xff] %v2163
        %2196 = vst [vmem:[#allocation3 + $0x50] sm:$0xff] %v2164
        %2197 = vst [vmem:[#allocation3 + $0x58] sm:$0xff] %v2165
        %2198 = vst [vmem:[#allocation3 + $0x60] sm:$0xff] %v2166
        %2199 = vst [vmem:[#allocation3 + $0x68] sm:$0xff] %v2167
        %2200 = vst [vmem:[#allocation3 + $0x70] sm:$0xff] %v2168
        %2201 = vst [vmem:[#allocation3 + $0x78] sm:$0xff] %v2169
        %2202 = vst [vmem:[#allocation3 + $0x80] sm:$0xff] %v2170
        %2203 = vst [vmem:[#allocation3 + $0x88] sm:$0xff] %v2171
        %2204 = vst [vmem:[#allocation3 + $0x90] sm:$0xff] %v2172
        %2205 = vst [vmem:[#allocation3 + $0x98] sm:$0xff] %v2173
        %2206 = vst [vmem:[#allocation3 + $0xa0] sm:$0xff] %v2174
        %2207 = vst [vmem:[#allocation3 + $0xa8] sm:$0xff] %v2175
        %2208 = vst [vmem:[#allocation3 + $0xb0] sm:$0xff] %v2176
        %2209 = vst [vmem:[#allocation3 + $0xb8] sm:$0xff] %v2177
        %2210 = vst [vmem:[#allocation3 + $0xc0] sm:$0xff] %v2178
        %2211 = vst [vmem:[#allocation3 + $0xc8] sm:$0xff] %v2179
        %2212 = vst [vmem:[#allocation3 + $0xd0] sm:$0xff] %v2180
        %2213 = vst [vmem:[#allocation3 + $0xd8] sm:$0xff] %v2181
        %2214 = vst [vmem:[#allocation3 + $0xe0] sm:$0xff] %v2182
        %2215 = vst [vmem:[#allocation3 + $0xe8] sm:$0xff] %v2183
        %2216 = vst [vmem:[#allocation3 + $0xf0] sm:$0xff] %v2184
        %2217 = vst [vmem:[#allocation3 + $0xf8] sm:$0xff] %v2185
        %v2218 = vld [vmem:[%s304 + $0x2] sm:$0xff]
        %v2219 = vld [vmem:[%s304 + $0xa] sm:$0xff]
        %v2220 = vld [vmem:[%s304 + $0x1a] sm:$0xff]
        %v2221 = vld [vmem:[%s304 + $0x22] sm:$0xff]
        %v2222 = vld [vmem:[%s304 + $0x32] sm:$0xff]
        %v2223 = vld [vmem:[%s304 + $0x3a] sm:$0xff]
        %v2224 = vld [vmem:[%s304 + $0x4a] sm:$0xff]
        %v2225 = vld [vmem:[%s304 + $0x52] sm:$0xff]
        %v2226 = vld [vmem:[%s304 + $0x62] sm:$0xff]
        %v2227 = vld [vmem:[%s304 + $0x6a] sm:$0xff]
        %v2228 = vld [vmem:[%s304 + $0x7a] sm:$0xff]
        %v2229 = vld [vmem:[%s304 + $0x82] sm:$0xff]
        %v2230 = vld [vmem:[%s304 + $0x92] sm:$0xff]
        %v2231 = vld [vmem:[%s304 + $0x9a] sm:$0xff]
        %v2232 = vld [vmem:[%s304 + $0xaa] sm:$0xff]
        %v2233 = vld [vmem:[%s304 + $0xb2] sm:$0xff]
        %v2234 = vld [vmem:[%s304 + $0xc2] sm:$0xff]
        %v2235 = vld [vmem:[%s304 + $0xca] sm:$0xff]
        %v2236 = vld [vmem:[%s304 + $0xda] sm:$0xff]
        %v2237 = vld [vmem:[%s304 + $0xe2] sm:$0xff]
        %v2238 = vld [vmem:[%s304 + $0xf2] sm:$0xff]
        %v2239 = vld [vmem:[%s304 + $0xfa] sm:$0xff]
        %v2240 = vld [vmem:[%s304 + $0x10a] sm:$0xff]
        %v2241 = vld [vmem:[%s304 + $0x112] sm:$0xff]
        %v2242 = vld [vmem:[%s304 + $0x122] sm:$0xff]
        %v2243 = vld [vmem:[%s304 + $0x12a] sm:$0xff]
        %v2244 = vld [vmem:[%s304 + $0x13a] sm:$0xff]
        %v2245 = vld [vmem:[%s304 + $0x142] sm:$0xff]
        %v2246 = vld [vmem:[%s304 + $0x152] sm:$0xff]
        %v2247 = vld [vmem:[%s304 + $0x15a] sm:$0xff]
        %v2248 = vld [vmem:[%s304 + $0x16a] sm:$0xff]
        %v2249 = vld [vmem:[%s304 + $0x172] sm:$0xff]
        %v2250 = vld [vmem:[#allocation3] sm:$0xff]
        %v2251 = vld [vmem:[#allocation3 + $0x8] sm:$0xff]
        %v2252 = vld [vmem:[#allocation3 + $0x10] sm:$0xff]
        %v2253 = vld [vmem:[#allocation3 + $0x18] sm:$0xff]
        %v2254 = vld [vmem:[#allocation3 + $0x20] sm:$0xff]
        %v2255 = vld [vmem:[#allocation3 + $0x28] sm:$0xff]
        %v2256 = vld [vmem:[#allocation3 + $0x30] sm:$0xff]
        %v2257 = vld [vmem:[#allocation3 + $0x38] sm:$0xff]
        %v2258 = vld [vmem:[#allocation3 + $0x40] sm:$0xff]
        %v2259 = vld [vmem:[#allocation3 + $0x48] sm:$0xff]
        %v2260 = vld [vmem:[#allocation3 + $0x50] sm:$0xff]
        %v2261 = vld [vmem:[#allocation3 + $0x58] sm:$0xff]
        %v2262 = vld [vmem:[#allocation3 + $0x60] sm:$0xff]
        %v2263 = vld [vmem:[#allocation3 + $0x68] sm:$0xff]
        %v2264 = vld [vmem:[#allocation3 + $0x70] sm:$0xff]
        %v2265 = vld [vmem:[#allocation3 + $0x78] sm:$0xff]
        %v2266 = vld [vmem:[#allocation3 + $0x80] sm:$0xff]
        %v2267 = vld [vmem:[#allocation3 + $0x88] sm:$0xff]
        %v2268 = vld [vmem:[#allocation3 + $0x90] sm:$0xff]
        %v2269 = vld [vmem:[#allocation3 + $0x98] sm:$0xff]
        %v2270 = vld [vmem:[#allocation3 + $0xa0] sm:$0xff]
        %v2271 = vld [vmem:[#allocation3 + $0xa8] sm:$0xff]
        %v2272 = vld [vmem:[#allocation3 + $0xb0] sm:$0xff]
        %v2273 = vld [vmem:[#allocation3 + $0xb8] sm:$0xff]
        %v2274 = vld [vmem:[#allocation3 + $0xc0] sm:$0xff]
        %v2275 = vld [vmem:[#allocation3 + $0xc8] sm:$0xff]
        %v2276 = vld [vmem:[#allocation3 + $0xd0] sm:$0xff]
        %v2277 = vld [vmem:[#allocation3 + $0xd8] sm:$0xff]
        %v2278 = vld [vmem:[#allocation3 + $0xe0] sm:$0xff]
        %v2279 = vld [vmem:[#allocation3 + $0xe8] sm:$0xff]
        %v2280 = vld [vmem:[#allocation3 + $0xf0] sm:$0xff]
        %v2281 = vld [vmem:[#allocation3 + $0xf8] sm:$0xff]
        %s2282 = scalar_lea.vmem [#allocation7], 640
        %v2283 = vld [vmem:[%s2282] sm:$0xff]
        %v2284 = vld [vmem:[%s2282 + $0x8] sm:$0xff]
        %v2285 = vld [vmem:[%s2282 + $0x10] sm:$0xff]
        %v2286 = vld [vmem:[%s2282 + $0x18] sm:$0xff]
        %v2287 = vld [vmem:[%s2282 + $0x20] sm:$0xff]
        %v2288 = vld [vmem:[%s2282 + $0x28] sm:$0xff]
        %v2289 = vld [vmem:[%s2282 + $0x30] sm:$0xff]
        %v2290 = vld [vmem:[%s2282 + $0x38] sm:$0xff]
        %v2291 = vld [vmem:[%s2282 + $0x40] sm:$0xff]
        %v2292 = vld [vmem:[%s2282 + $0x48] sm:$0xff]
        %v2293 = vld [vmem:[%s2282 + $0x50] sm:$0xff]
        %v2294 = vld [vmem:[%s2282 + $0x58] sm:$0xff]
        %v2295 = vld [vmem:[%s2282 + $0x60] sm:$0xff]
        %v2296 = vld [vmem:[%s2282 + $0x68] sm:$0xff]
        %v2297 = vld [vmem:[%s2282 + $0x70] sm:$0xff]
        %v2298 = vld [vmem:[%s2282 + $0x78] sm:$0xff]
        %2299 = vmatprep.subr.mxu0 0.0
        %2300 = vmatpush1.msra.mxu0 %v2298
        %2301 = vmatprep.subr.mxu0 0.0
        %2302 = vmatpush1.msra.mxu0 %v2297
        %2303 = vmatprep.subr.mxu0 0.0
        %2304 = vmatpush1.msra.mxu0 %v2296
        %2305 = vmatprep.subr.mxu0 0.0
        %2306 = vmatpush1.msra.mxu0 %v2295
        %2307 = vmatprep.subr.mxu0 0.0
        %2308 = vmatpush1.msra.mxu0 %v2294
        %2309 = vmatprep.subr.mxu0 0.0
        %2310 = vmatpush1.msra.mxu0 %v2293
        %2311 = vmatprep.subr.mxu0 0.0
        %2312 = vmatpush1.msra.mxu0 %v2292
        %2313 = vmatprep.subr.mxu0 0.0
        %2314 = vmatpush1.msra.mxu0 %v2291
        %2315 = vmatprep.subr.mxu0 0.0
        %2316 = vmatpush1.msra.mxu0 %v2290
        %2317 = vmatprep.subr.mxu0 0.0
        %2318 = vmatpush1.msra.mxu0 %v2289
        %2319 = vmatprep.subr.mxu0 0.0
        %2320 = vmatpush1.msra.mxu0 %v2288
        %2321 = vmatprep.subr.mxu0 0.0
        %2322 = vmatpush1.msra.mxu0 %v2287
        %2323 = vmatprep.subr.mxu0 0.0
        %2324 = vmatpush1.msra.mxu0 %v2286
        %2325 = vmatprep.subr.mxu0 0.0
        %2326 = vmatpush1.msra.mxu0 %v2285
        %2327 = vmatprep.subr.mxu0 0.0
        %2328 = vmatpush1.msra.mxu0 %v2284
        %2329 = vmatprep.subr.mxu0 0.0
        %2330 = vmatpush1.msra.mxu0 %v2283
        %2331 = vmatprep.subr.mxu0 0.0
        %2332 = vmatpush2.msra.mxu0 0.0
        %2333 = vmatprep.subr.mxu0 0.0
        %2334 = vmatpush2.msra.mxu0 0.0
        %2335 = vmatprep.subr.mxu0 0.0
        %2336 = vmatpush2.msra.mxu0 0.0
        %2337 = vmatprep.subr.mxu0 0.0
        %2338 = vmatpush2.msra.mxu0 0.0
        %2339 = vmatprep.subr.mxu0 0.0
        %2340 = vmatpush2.msra.mxu0 0.0
        %2341 = vmatprep.subr.mxu0 0.0
        %2342 = vmatpush2.msra.mxu0 0.0
        %2343 = vmatprep.subr.mxu0 0.0
        %2344 = vmatpush2.msra.mxu0 0.0
        %2345 = vmatprep.subr.mxu0 0.0
        %2346 = vmatpush2.msra.mxu0 0.0
        %2347 = vmatprep.subr.mxu0 0.0
        %2348 = vmatpush2.msra.mxu0 0.0
        %2349 = vmatprep.subr.mxu0 0.0
        %2350 = vmatpush2.msra.mxu0 0.0
        %2351 = vmatprep.subr.mxu0 0.0
        %2352 = vmatpush2.msra.mxu0 0.0
        %2353 = vmatprep.subr.mxu0 0.0
        %2354 = vmatpush2.msra.mxu0 0.0
        %2355 = vmatprep.subr.mxu0 0.0
        %2356 = vmatpush2.msra.mxu0 0.0
        %2357 = vmatprep.subr.mxu0 0.0
        %2358 = vmatpush2.msra.mxu0 0.0
        %2359 = vmatprep.subr.mxu0 0.0
        %2360 = vmatpush2.msra.mxu0 0.0
        %2361 = vmatprep.subr.mxu0 0.0
        %2362 = vmatpush2.msra.mxu0 0.0
        %2363 = vmatprep.mubr.f32.mxu0 0.0
        %2364 = vmatmul.mubr.f32.gmra.mxu0 %v2218
        %v2365 = vpop.f32.mrf.mxu0
        %v2366 = vadd.f32 0.0, %v2365
        %v2367 = vpop.f32.mrf.mxu0
        %2368 = vmatprep.mubr.f32.mxu0 0.0
        %2369 = vmatmul.mubr.f32.gmra.mxu0 %v2219
        %v2370 = vpop.f32.mrf.mxu0
        %v2371 = vadd.f32 0.0, %v2370
        %v2372 = vpop.f32.mrf.mxu0
        %2373 = vmatprep.mubr.f32.mxu0 0.0
        %2374 = vmatmul.mubr.f32.gmra.mxu0 %v2220
        %v2375 = vpop.f32.mrf.mxu0
        %v2376 = vadd.f32 0.0, %v2375
        %v2377 = vpop.f32.mrf.mxu0
        %2378 = vmatprep.mubr.f32.mxu0 0.0
        %2379 = vmatmul.mubr.f32.gmra.mxu0 %v2221
        %v2380 = vpop.f32.mrf.mxu0
        %v2381 = vadd.f32 0.0, %v2380
        %v2382 = vpop.f32.mrf.mxu0
        %2383 = vmatprep.mubr.f32.mxu0 0.0
        %2384 = vmatmul.mubr.f32.gmra.mxu0 %v2222
        %v2385 = vpop.f32.mrf.mxu0
        %v2386 = vadd.f32 0.0, %v2385
        %v2387 = vpop.f32.mrf.mxu0
        %2388 = vmatprep.mubr.f32.mxu0 0.0
        %2389 = vmatmul.mubr.f32.gmra.mxu0 %v2223
        %v2390 = vpop.f32.mrf.mxu0
        %v2391 = vadd.f32 0.0, %v2390
        %v2392 = vpop.f32.mrf.mxu0
        %2393 = vmatprep.mubr.f32.mxu0 0.0
        %2394 = vmatmul.mubr.f32.gmra.mxu0 %v2224
        %v2395 = vpop.f32.mrf.mxu0
        %v2396 = vadd.f32 0.0, %v2395
        %v2397 = vpop.f32.mrf.mxu0
        %2398 = vmatprep.mubr.f32.mxu0 0.0
        %2399 = vmatmul.mubr.f32.gmra.mxu0 %v2225
        %v2400 = vpop.f32.mrf.mxu0
        %v2401 = vadd.f32 0.0, %v2400
        %v2402 = vpop.f32.mrf.mxu0
        %2403 = vmatprep.mubr.f32.mxu0 0.0
        %2404 = vmatmul.mubr.f32.gmra.mxu0 %v2226
        %v2405 = vpop.f32.mrf.mxu0
        %v2406 = vadd.f32 0.0, %v2405
        %v2407 = vpop.f32.mrf.mxu0
        %2408 = vmatprep.mubr.f32.mxu0 0.0
        %2409 = vmatmul.mubr.f32.gmra.mxu0 %v2227
        %v2410 = vpop.f32.mrf.mxu0
        %v2411 = vadd.f32 0.0, %v2410
        %v2412 = vpop.f32.mrf.mxu0
        %2413 = vmatprep.mubr.f32.mxu0 0.0
        %2414 = vmatmul.mubr.f32.gmra.mxu0 %v2228
        %v2415 = vpop.f32.mrf.mxu0
        %v2416 = vadd.f32 0.0, %v2415
        %v2417 = vpop.f32.mrf.mxu0
        %2418 = vmatprep.mubr.f32.mxu0 0.0
        %2419 = vmatmul.mubr.f32.gmra.mxu0 %v2229
        %v2420 = vpop.f32.mrf.mxu0
        %v2421 = vadd.f32 0.0, %v2420
        %v2422 = vpop.f32.mrf.mxu0
        %2423 = vmatprep.mubr.f32.mxu0 0.0
        %2424 = vmatmul.mubr.f32.gmra.mxu0 %v2230
        %v2425 = vpop.f32.mrf.mxu0
        %v2426 = vadd.f32 0.0, %v2425
        %v2427 = vpop.f32.mrf.mxu0
        %2428 = vmatprep.mubr.f32.mxu0 0.0
        %2429 = vmatmul.mubr.f32.gmra.mxu0 %v2231
        %v2430 = vpop.f32.mrf.mxu0
        %v2431 = vadd.f32 0.0, %v2430
        %v2432 = vpop.f32.mrf.mxu0
        %2433 = vmatprep.mubr.f32.mxu0 0.0
        %2434 = vmatmul.mubr.f32.gmra.mxu0 %v2232
        %v2435 = vpop.f32.mrf.mxu0
        %v2436 = vadd.f32 0.0, %v2435
        %v2437 = vpop.f32.mrf.mxu0
        %2438 = vmatprep.mubr.f32.mxu0 0.0
        %2439 = vmatmul.mubr.f32.gmra.mxu0 %v2233
        %v2440 = vpop.f32.mrf.mxu0
        %v2441 = vadd.f32 0.0, %v2440
        %v2442 = vpop.f32.mrf.mxu0
        %2443 = vmatprep.mubr.f32.mxu0 0.0
        %2444 = vmatmul.mubr.f32.gmra.mxu0 %v2234
        %v2445 = vpop.f32.mrf.mxu0
        %v2446 = vadd.f32 0.0, %v2445
        %v2447 = vpop.f32.mrf.mxu0
        %2448 = vmatprep.mubr.f32.mxu0 0.0
        %2449 = vmatmul.mubr.f32.gmra.mxu0 %v2235
        %v2450 = vpop.f32.mrf.mxu0
        %v2451 = vadd.f32 0.0, %v2450
        %v2452 = vpop.f32.mrf.mxu0
        %2453 = vmatprep.mubr.f32.mxu0 0.0
        %2454 = vmatmul.mubr.f32.gmra.mxu0 %v2236
        %v2455 = vpop.f32.mrf.mxu0
        %v2456 = vadd.f32 0.0, %v2455
        %v2457 = vpop.f32.mrf.mxu0
        %2458 = vmatprep.mubr.f32.mxu0 0.0
        %2459 = vmatmul.mubr.f32.gmra.mxu0 %v2237
        %v2460 = vpop.f32.mrf.mxu0
        %v2461 = vadd.f32 0.0, %v2460
        %v2462 = vpop.f32.mrf.mxu0
        %2463 = vmatprep.mubr.f32.mxu0 0.0
        %2464 = vmatmul.mubr.f32.gmra.mxu0 %v2238
        %v2465 = vpop.f32.mrf.mxu0
        %v2466 = vadd.f32 0.0, %v2465
        %v2467 = vpop.f32.mrf.mxu0
        %2468 = vmatprep.mubr.f32.mxu0 0.0
        %2469 = vmatmul.mubr.f32.gmra.mxu0 %v2239
        %v2470 = vpop.f32.mrf.mxu0
        %v2471 = vadd.f32 0.0, %v2470
        %v2472 = vpop.f32.mrf.mxu0
        %2473 = vmatprep.mubr.f32.mxu0 0.0
        %2474 = vmatmul.mubr.f32.gmra.mxu0 %v2240
        %v2475 = vpop.f32.mrf.mxu0
        %v2476 = vadd.f32 0.0, %v2475
        %v2477 = vpop.f32.mrf.mxu0
        %2478 = vmatprep.mubr.f32.mxu0 0.0
        %2479 = vmatmul.mubr.f32.gmra.mxu0 %v2241
        %v2480 = vpop.f32.mrf.mxu0
        %v2481 = vadd.f32 0.0, %v2480
        %v2482 = vpop.f32.mrf.mxu0
        %2483 = vmatprep.mubr.f32.mxu0 0.0
        %2484 = vmatmul.mubr.f32.gmra.mxu0 %v2242
        %v2485 = vpop.f32.mrf.mxu0
        %v2486 = vadd.f32 0.0, %v2485
        %v2487 = vpop.f32.mrf.mxu0
        %2488 = vmatprep.mubr.f32.mxu0 0.0
        %2489 = vmatmul.mubr.f32.gmra.mxu0 %v2243
        %v2490 = vpop.f32.mrf.mxu0
        %v2491 = vadd.f32 0.0, %v2490
        %v2492 = vpop.f32.mrf.mxu0
        %2493 = vmatprep.mubr.f32.mxu0 0.0
        %2494 = vmatmul.mubr.f32.gmra.mxu0 %v2244
        %v2495 = vpop.f32.mrf.mxu0
        %v2496 = vadd.f32 0.0, %v2495
        %v2497 = vpop.f32.mrf.mxu0
        %2498 = vmatprep.mubr.f32.mxu0 0.0
        %2499 = vmatmul.mubr.f32.gmra.mxu0 %v2245
        %v2500 = vpop.f32.mrf.mxu0
        %v2501 = vadd.f32 0.0, %v2500
        %v2502 = vpop.f32.mrf.mxu0
        %2503 = vmatprep.mubr.f32.mxu0 0.0
        %2504 = vmatmul.mubr.f32.gmra.mxu0 %v2246
        %v2505 = vpop.f32.mrf.mxu0
        %v2506 = vadd.f32 0.0, %v2505
        %v2507 = vpop.f32.mrf.mxu0
        %2508 = vmatprep.mubr.f32.mxu0 0.0
        %2509 = vmatmul.mubr.f32.gmra.mxu0 %v2247
        %v2510 = vpop.f32.mrf.mxu0
        %v2511 = vadd.f32 0.0, %v2510
        %v2512 = vpop.f32.mrf.mxu0
        %2513 = vmatprep.mubr.f32.mxu0 0.0
        %2514 = vmatmul.mubr.f32.gmra.mxu0 %v2248
        %v2515 = vpop.f32.mrf.mxu0
        %v2516 = vadd.f32 0.0, %v2515
        %v2517 = vpop.f32.mrf.mxu0
        %2518 = vmatprep.mubr.f32.mxu0 0.0
        %2519 = vmatmul.mubr.f32.gmra.mxu0 %v2249
        %v2520 = vpop.f32.mrf.mxu0
        %v2521 = vadd.f32 0.0, %v2520
        %v2522 = vpop.f32.mrf.mxu0
        %2523 = vdwg.mxu0
        %v2524 = vadd.f32 %v2250, %v2366
        %v2525 = vadd.f32 %v2251, %v2371
        %v2526 = vadd.f32 %v2252, %v2376
        %v2527 = vadd.f32 %v2253, %v2381
        %v2528 = vadd.f32 %v2254, %v2386
        %v2529 = vadd.f32 %v2255, %v2391
        %v2530 = vadd.f32 %v2256, %v2396
        %v2531 = vadd.f32 %v2257, %v2401
        %v2532 = vadd.f32 %v2258, %v2406
        %v2533 = vadd.f32 %v2259, %v2411
        %v2534 = vadd.f32 %v2260, %v2416
        %v2535 = vadd.f32 %v2261, %v2421
        %v2536 = vadd.f32 %v2262, %v2426
        %v2537 = vadd.f32 %v2263, %v2431
        %v2538 = vadd.f32 %v2264, %v2436
        %v2539 = vadd.f32 %v2265, %v2441
        %v2540 = vadd.f32 %v2266, %v2446
        %v2541 = vadd.f32 %v2267, %v2451
        %v2542 = vadd.f32 %v2268, %v2456
        %v2543 = vadd.f32 %v2269, %v2461
        %v2544 = vadd.f32 %v2270, %v2466
        %v2545 = vadd.f32 %v2271, %v2471
        %v2546 = vadd.f32 %v2272, %v2476
        %v2547 = vadd.f32 %v2273, %v2481
        %v2548 = vadd.f32 %v2274, %v2486
        %v2549 = vadd.f32 %v2275, %v2491
        %v2550 = vadd.f32 %v2276, %v2496
        %v2551 = vadd.f32 %v2277, %v2501
        %v2552 = vadd.f32 %v2278, %v2506
        %v2553 = vadd.f32 %v2279, %v2511
        %v2554 = vadd.f32 %v2280, %v2516
        %v2555 = vadd.f32 %v2281, %v2521
        %2556 = vst [vmem:[#allocation3] sm:$0xff] %v2524
        %2557 = vst [vmem:[#allocation3 + $0x8] sm:$0xff] %v2525
        %2558 = vst [vmem:[#allocation3 + $0x10] sm:$0xff] %v2526
        %2559 = vst [vmem:[#allocation3 + $0x18] sm:$0xff] %v2527
        %2560 = vst [vmem:[#allocation3 + $0x20] sm:$0xff] %v2528
        %2561 = vst [vmem:[#allocation3 + $0x28] sm:$0xff] %v2529
        %2562 = vst [vmem:[#allocation3 + $0x30] sm:$0xff] %v2530
        %2563 = vst [vmem:[#allocation3 + $0x38] sm:$0xff] %v2531
        %2564 = vst [vmem:[#allocation3 + $0x40] sm:$0xff] %v2532
        %2565 = vst [vmem:[#allocation3 + $0x48] sm:$0xff] %v2533
        %2566 = vst [vmem:[#allocation3 + $0x50] sm:$0xff] %v2534
        %2567 = vst [vmem:[#allocation3 + $0x58] sm:$0xff] %v2535
        %2568 = vst [vmem:[#allocation3 + $0x60] sm:$0xff] %v2536
        %2569 = vst [vmem:[#allocation3 + $0x68] sm:$0xff] %v2537
        %2570 = vst [vmem:[#allocation3 + $0x70] sm:$0xff] %v2538
        %2571 = vst [vmem:[#allocation3 + $0x78] sm:$0xff] %v2539
        %2572 = vst [vmem:[#allocation3 + $0x80] sm:$0xff] %v2540
        %2573 = vst [vmem:[#allocation3 + $0x88] sm:$0xff] %v2541
        %2574 = vst [vmem:[#allocation3 + $0x90] sm:$0xff] %v2542
        %2575 = vst [vmem:[#allocation3 + $0x98] sm:$0xff] %v2543
        %2576 = vst [vmem:[#allocation3 + $0xa0] sm:$0xff] %v2544
        %2577 = vst [vmem:[#allocation3 + $0xa8] sm:$0xff] %v2545
        %2578 = vst [vmem:[#allocation3 + $0xb0] sm:$0xff] %v2546
        %2579 = vst [vmem:[#allocation3 + $0xb8] sm:$0xff] %v2547
        %2580 = vst [vmem:[#allocation3 + $0xc0] sm:$0xff] %v2548
        %2581 = vst [vmem:[#allocation3 + $0xc8] sm:$0xff] %v2549
        %2582 = vst [vmem:[#allocation3 + $0xd0] sm:$0xff] %v2550
        %2583 = vst [vmem:[#allocation3 + $0xd8] sm:$0xff] %v2551
        %2584 = vst [vmem:[#allocation3 + $0xe0] sm:$0xff] %v2552
        %2585 = vst [vmem:[#allocation3 + $0xe8] sm:$0xff] %v2553
        %2586 = vst [vmem:[#allocation3 + $0xf0] sm:$0xff] %v2554
        %2587 = vst [vmem:[#allocation3 + $0xf8] sm:$0xff] %v2555
        %s2588 = scalar_lea.vmem [#allocation2], 48
        %v2589 = vld [vmem:[%s2588] sm:$0xff]
        %v2590 = vld [vmem:[%s2588 + $0x8] sm:$0xff]
        %v2591 = vld [vmem:[%s2588 + $0x18] sm:$0xff]
        %v2592 = vld [vmem:[%s2588 + $0x20] sm:$0xff]
        %v2593 = vld [vmem:[%s2588 + $0x30] sm:$0xff]
        %v2594 = vld [vmem:[%s2588 + $0x38] sm:$0xff]
        %v2595 = vld [vmem:[%s2588 + $0x48] sm:$0xff]
        %v2596 = vld [vmem:[%s2588 + $0x50] sm:$0xff]
        %v2597 = vld [vmem:[%s2588 + $0x60] sm:$0xff]
        %v2598 = vld [vmem:[%s2588 + $0x68] sm:$0xff]
        %v2599 = vld [vmem:[%s2588 + $0x78] sm:$0xff]
        %v2600 = vld [vmem:[%s2588 + $0x80] sm:$0xff]
        %v2601 = vld [vmem:[%s2588 + $0x90] sm:$0xff]
        %v2602 = vld [vmem:[%s2588 + $0x98] sm:$0xff]
        %v2603 = vld [vmem:[%s2588 + $0xa8] sm:$0xff]
        %v2604 = vld [vmem:[%s2588 + $0xb0] sm:$0xff]
        %v2605 = vld [vmem:[%s2588 + $0xc0] sm:$0xff]
        %v2606 = vld [vmem:[%s2588 + $0xc8] sm:$0xff]
        %v2607 = vld [vmem:[%s2588 + $0xd8] sm:$0xff]
        %v2608 = vld [vmem:[%s2588 + $0xe0] sm:$0xff]
        %v2609 = vld [vmem:[%s2588 + $0xf0] sm:$0xff]
        %v2610 = vld [vmem:[%s2588 + $0xf8] sm:$0xff]
        %v2611 = vld [vmem:[%s2588 + $0x108] sm:$0xff]
        %v2612 = vld [vmem:[%s2588 + $0x110] sm:$0xff]
        %v2613 = vld [vmem:[%s2588 + $0x120] sm:$0xff]
        %v2614 = vld [vmem:[%s2588 + $0x128] sm:$0xff]
        %v2615 = vld [vmem:[%s2588 + $0x138] sm:$0xff]
        %v2616 = vld [vmem:[%s2588 + $0x140] sm:$0xff]
        %v2617 = vld [vmem:[%s2588 + $0x150] sm:$0xff]
        %v2618 = vld [vmem:[%s2588 + $0x158] sm:$0xff]
        %v2619 = vld [vmem:[%s2588 + $0x168] sm:$0xff]
        %v2620 = vld [vmem:[%s2588 + $0x170] sm:$0xff]
        %v2621 = vld [vmem:[#allocation3] sm:$0xff]
        %v2622 = vld [vmem:[#allocation3 + $0x8] sm:$0xff]
        %v2623 = vld [vmem:[#allocation3 + $0x10] sm:$0xff]
        %v2624 = vld [vmem:[#allocation3 + $0x18] sm:$0xff]
        %v2625 = vld [vmem:[#allocation3 + $0x20] sm:$0xff]
        %v2626 = vld [vmem:[#allocation3 + $0x28] sm:$0xff]
        %v2627 = vld [vmem:[#allocation3 + $0x30] sm:$0xff]
        %v2628 = vld [vmem:[#allocation3 + $0x38] sm:$0xff]
        %v2629 = vld [vmem:[#allocation3 + $0x40] sm:$0xff]
        %v2630 = vld [vmem:[#allocation3 + $0x48] sm:$0xff]
        %v2631 = vld [vmem:[#allocation3 + $0x50] sm:$0xff]
        %v2632 = vld [vmem:[#allocation3 + $0x58] sm:$0xff]
        %v2633 = vld [vmem:[#allocation3 + $0x60] sm:$0xff]
        %v2634 = vld [vmem:[#allocation3 + $0x68] sm:$0xff]
        %v2635 = vld [vmem:[#allocation3 + $0x70] sm:$0xff]
        %v2636 = vld [vmem:[#allocation3 + $0x78] sm:$0xff]
        %v2637 = vld [vmem:[#allocation3 + $0x80] sm:$0xff]
        %v2638 = vld [vmem:[#allocation3 + $0x88] sm:$0xff]
        %v2639 = vld [vmem:[#allocation3 + $0x90] sm:$0xff]
        %v2640 = vld [vmem:[#allocation3 + $0x98] sm:$0xff]
        %v2641 = vld [vmem:[#allocation3 + $0xa0] sm:$0xff]
        %v2642 = vld [vmem:[#allocation3 + $0xa8] sm:$0xff]
        %v2643 = vld [vmem:[#allocation3 + $0xb0] sm:$0xff]
        %v2644 = vld [vmem:[#allocation3 + $0xb8] sm:$0xff]
        %v2645 = vld [vmem:[#allocation3 + $0xc0] sm:$0xff]
        %v2646 = vld [vmem:[#allocation3 + $0xc8] sm:$0xff]
        %v2647 = vld [vmem:[#allocation3 + $0xd0] sm:$0xff]
        %v2648 = vld [vmem:[#allocation3 + $0xd8] sm:$0xff]
        %v2649 = vld [vmem:[#allocation3 + $0xe0] sm:$0xff]
        %v2650 = vld [vmem:[#allocation3 + $0xe8] sm:$0xff]
        %v2651 = vld [vmem:[#allocation3 + $0xf0] sm:$0xff]
        %v2652 = vld [vmem:[#allocation3 + $0xf8] sm:$0xff]
        %s2653 = scalar_lea.vmem [#allocation7], 768
        %v2654 = vld [vmem:[%s2653] sm:$0xff]
        %v2655 = vld [vmem:[%s2653 + $0x8] sm:$0xff]
        %v2656 = vld [vmem:[%s2653 + $0x10] sm:$0xff]
        %v2657 = vld [vmem:[%s2653 + $0x18] sm:$0xff]
        %v2658 = vld [vmem:[%s2653 + $0x20] sm:$0xff]
        %v2659 = vld [vmem:[%s2653 + $0x28] sm:$0xff]
        %v2660 = vld [vmem:[%s2653 + $0x30] sm:$0xff]
        %v2661 = vld [vmem:[%s2653 + $0x38] sm:$0xff]
        %v2662 = vld [vmem:[%s2653 + $0x40] sm:$0xff]
        %v2663 = vld [vmem:[%s2653 + $0x48] sm:$0xff]
        %v2664 = vld [vmem:[%s2653 + $0x50] sm:$0xff]
        %v2665 = vld [vmem:[%s2653 + $0x58] sm:$0xff]
        %v2666 = vld [vmem:[%s2653 + $0x60] sm:$0xff]
        %v2667 = vld [vmem:[%s2653 + $0x68] sm:$0xff]
        %v2668 = vld [vmem:[%s2653 + $0x70] sm:$0xff]
        %v2669 = vld [vmem:[%s2653 + $0x78] sm:$0xff]
        %2670 = vmatprep.subr.mxu0 0.0
        %2671 = vmatpush1.msra.mxu0 %v2669
        %2672 = vmatprep.subr.mxu0 0.0
        %2673 = vmatpush1.msra.mxu0 %v2668
        %2674 = vmatprep.subr.mxu0 0.0
        %2675 = vmatpush1.msra.mxu0 %v2667
        %2676 = vmatprep.subr.mxu0 0.0
        %2677 = vmatpush1.msra.mxu0 %v2666
        %2678 = vmatprep.subr.mxu0 0.0
        %2679 = vmatpush1.msra.mxu0 %v2665
        %2680 = vmatprep.subr.mxu0 0.0
        %2681 = vmatpush1.msra.mxu0 %v2664
        %2682 = vmatprep.subr.mxu0 0.0
        %2683 = vmatpush1.msra.mxu0 %v2663
        %2684 = vmatprep.subr.mxu0 0.0
        %2685 = vmatpush1.msra.mxu0 %v2662
        %2686 = vmatprep.subr.mxu0 0.0
        %2687 = vmatpush1.msra.mxu0 %v2661
        %2688 = vmatprep.subr.mxu0 0.0
        %2689 = vmatpush1.msra.mxu0 %v2660
        %2690 = vmatprep.subr.mxu0 0.0
        %2691 = vmatpush1.msra.mxu0 %v2659
        %2692 = vmatprep.subr.mxu0 0.0
        %2693 = vmatpush1.msra.mxu0 %v2658
        %2694 = vmatprep.subr.mxu0 0.0
        %2695 = vmatpush1.msra.mxu0 %v2657
        %2696 = vmatprep.subr.mxu0 0.0
        %2697 = vmatpush1.msra.mxu0 %v2656
        %2698 = vmatprep.subr.mxu0 0.0
        %2699 = vmatpush1.msra.mxu0 %v2655
        %2700 = vmatprep.subr.mxu0 0.0
        %2701 = vmatpush1.msra.mxu0 %v2654
        %2702 = vmatprep.subr.mxu0 0.0
        %2703 = vmatpush2.msra.mxu0 0.0
        %2704 = vmatprep.subr.mxu0 0.0
        %2705 = vmatpush2.msra.mxu0 0.0
        %2706 = vmatprep.subr.mxu0 0.0
        %2707 = vmatpush2.msra.mxu0 0.0
        %2708 = vmatprep.subr.mxu0 0.0
        %2709 = vmatpush2.msra.mxu0 0.0
        %2710 = vmatprep.subr.mxu0 0.0
        %2711 = vmatpush2.msra.mxu0 0.0
        %2712 = vmatprep.subr.mxu0 0.0
        %2713 = vmatpush2.msra.mxu0 0.0
        %2714 = vmatprep.subr.mxu0 0.0
        %2715 = vmatpush2.msra.mxu0 0.0
        %2716 = vmatprep.subr.mxu0 0.0
        %2717 = vmatpush2.msra.mxu0 0.0
        %2718 = vmatprep.subr.mxu0 0.0
        %2719 = vmatpush2.msra.mxu0 0.0
        %2720 = vmatprep.subr.mxu0 0.0
        %2721 = vmatpush2.msra.mxu0 0.0
        %2722 = vmatprep.subr.mxu0 0.0
        %2723 = vmatpush2.msra.mxu0 0.0
        %2724 = vmatprep.subr.mxu0 0.0
        %2725 = vmatpush2.msra.mxu0 0.0
        %2726 = vmatprep.subr.mxu0 0.0
        %2727 = vmatpush2.msra.mxu0 0.0
        %2728 = vmatprep.subr.mxu0 0.0
        %2729 = vmatpush2.msra.mxu0 0.0
        %2730 = vmatprep.subr.mxu0 0.0
        %2731 = vmatpush2.msra.mxu0 0.0
        %2732 = vmatprep.subr.mxu0 0.0
        %2733 = vmatpush2.msra.mxu0 0.0
        %2734 = vmatprep.mubr.f32.mxu0 0.0
        %2735 = vmatmul.mubr.f32.gmra.mxu0 %v2589
        %v2736 = vpop.f32.mrf.mxu0
        %v2737 = vadd.f32 0.0, %v2736
        %v2738 = vpop.f32.mrf.mxu0
        %2739 = vmatprep.mubr.f32.mxu0 0.0
        %2740 = vmatmul.mubr.f32.gmra.mxu0 %v2590
        %v2741 = vpop.f32.mrf.mxu0
        %v2742 = vadd.f32 0.0, %v2741
        %v2743 = vpop.f32.mrf.mxu0
        %2744 = vmatprep.mubr.f32.mxu0 0.0
        %2745 = vmatmul.mubr.f32.gmra.mxu0 %v2591
        %v2746 = vpop.f32.mrf.mxu0
        %v2747 = vadd.f32 0.0, %v2746
        %v2748 = vpop.f32.mrf.mxu0
        %2749 = vmatprep.mubr.f32.mxu0 0.0
        %2750 = vmatmul.mubr.f32.gmra.mxu0 %v2592
        %v2751 = vpop.f32.mrf.mxu0
        %v2752 = vadd.f32 0.0, %v2751
        %v2753 = vpop.f32.mrf.mxu0
        %2754 = vmatprep.mubr.f32.mxu0 0.0
        %2755 = vmatmul.mubr.f32.gmra.mxu0 %v2593
        %v2756 = vpop.f32.mrf.mxu0
        %v2757 = vadd.f32 0.0, %v2756
        %v2758 = vpop.f32.mrf.mxu0
        %2759 = vmatprep.mubr.f32.mxu0 0.0
        %2760 = vmatmul.mubr.f32.gmra.mxu0 %v2594
        %v2761 = vpop.f32.mrf.mxu0
        %v2762 = vadd.f32 0.0, %v2761
        %v2763 = vpop.f32.mrf.mxu0
        %2764 = vmatprep.mubr.f32.mxu0 0.0
        %2765 = vmatmul.mubr.f32.gmra.mxu0 %v2595
        %v2766 = vpop.f32.mrf.mxu0
        %v2767 = vadd.f32 0.0, %v2766
        %v2768 = vpop.f32.mrf.mxu0
        %2769 = vmatprep.mubr.f32.mxu0 0.0
        %2770 = vmatmul.mubr.f32.gmra.mxu0 %v2596
        %v2771 = vpop.f32.mrf.mxu0
        %v2772 = vadd.f32 0.0, %v2771
        %v2773 = vpop.f32.mrf.mxu0
        %2774 = vmatprep.mubr.f32.mxu0 0.0
        %2775 = vmatmul.mubr.f32.gmra.mxu0 %v2597
        %v2776 = vpop.f32.mrf.mxu0
        %v2777 = vadd.f32 0.0, %v2776
        %v2778 = vpop.f32.mrf.mxu0
        %2779 = vmatprep.mubr.f32.mxu0 0.0
        %2780 = vmatmul.mubr.f32.gmra.mxu0 %v2598
        %v2781 = vpop.f32.mrf.mxu0
        %v2782 = vadd.f32 0.0, %v2781
        %v2783 = vpop.f32.mrf.mxu0
        %2784 = vmatprep.mubr.f32.mxu0 0.0
        %2785 = vmatmul.mubr.f32.gmra.mxu0 %v2599
        %v2786 = vpop.f32.mrf.mxu0
        %v2787 = vadd.f32 0.0, %v2786
        %v2788 = vpop.f32.mrf.mxu0
        %2789 = vmatprep.mubr.f32.mxu0 0.0
        %2790 = vmatmul.mubr.f32.gmra.mxu0 %v2600
        %v2791 = vpop.f32.mrf.mxu0
        %v2792 = vadd.f32 0.0, %v2791
        %v2793 = vpop.f32.mrf.mxu0
        %2794 = vmatprep.mubr.f32.mxu0 0.0
        %2795 = vmatmul.mubr.f32.gmra.mxu0 %v2601
        %v2796 = vpop.f32.mrf.mxu0
        %v2797 = vadd.f32 0.0, %v2796
        %v2798 = vpop.f32.mrf.mxu0
        %2799 = vmatprep.mubr.f32.mxu0 0.0
        %2800 = vmatmul.mubr.f32.gmra.mxu0 %v2602
        %v2801 = vpop.f32.mrf.mxu0
        %v2802 = vadd.f32 0.0, %v2801
        %v2803 = vpop.f32.mrf.mxu0
        %2804 = vmatprep.mubr.f32.mxu0 0.0
        %2805 = vmatmul.mubr.f32.gmra.mxu0 %v2603
        %v2806 = vpop.f32.mrf.mxu0
        %v2807 = vadd.f32 0.0, %v2806
        %v2808 = vpop.f32.mrf.mxu0
        %2809 = vmatprep.mubr.f32.mxu0 0.0
        %2810 = vmatmul.mubr.f32.gmra.mxu0 %v2604
        %v2811 = vpop.f32.mrf.mxu0
        %v2812 = vadd.f32 0.0, %v2811
        %v2813 = vpop.f32.mrf.mxu0
        %2814 = vmatprep.mubr.f32.mxu0 0.0
        %2815 = vmatmul.mubr.f32.gmra.mxu0 %v2605
        %v2816 = vpop.f32.mrf.mxu0
        %v2817 = vadd.f32 0.0, %v2816
        %v2818 = vpop.f32.mrf.mxu0
        %2819 = vmatprep.mubr.f32.mxu0 0.0
        %2820 = vmatmul.mubr.f32.gmra.mxu0 %v2606
        %v2821 = vpop.f32.mrf.mxu0
        %v2822 = vadd.f32 0.0, %v2821
        %v2823 = vpop.f32.mrf.mxu0
        %2824 = vmatprep.mubr.f32.mxu0 0.0
        %2825 = vmatmul.mubr.f32.gmra.mxu0 %v2607
        %v2826 = vpop.f32.mrf.mxu0
        %v2827 = vadd.f32 0.0, %v2826
        %v2828 = vpop.f32.mrf.mxu0
        %2829 = vmatprep.mubr.f32.mxu0 0.0
        %2830 = vmatmul.mubr.f32.gmra.mxu0 %v2608
        %v2831 = vpop.f32.mrf.mxu0
        %v2832 = vadd.f32 0.0, %v2831
        %v2833 = vpop.f32.mrf.mxu0
        %2834 = vmatprep.mubr.f32.mxu0 0.0
        %2835 = vmatmul.mubr.f32.gmra.mxu0 %v2609
        %v2836 = vpop.f32.mrf.mxu0
        %v2837 = vadd.f32 0.0, %v2836
        %v2838 = vpop.f32.mrf.mxu0
        %2839 = vmatprep.mubr.f32.mxu0 0.0
        %2840 = vmatmul.mubr.f32.gmra.mxu0 %v2610
        %v2841 = vpop.f32.mrf.mxu0
        %v2842 = vadd.f32 0.0, %v2841
        %v2843 = vpop.f32.mrf.mxu0
        %2844 = vmatprep.mubr.f32.mxu0 0.0
        %2845 = vmatmul.mubr.f32.gmra.mxu0 %v2611
        %v2846 = vpop.f32.mrf.mxu0
        %v2847 = vadd.f32 0.0, %v2846
        %v2848 = vpop.f32.mrf.mxu0
        %2849 = vmatprep.mubr.f32.mxu0 0.0
        %2850 = vmatmul.mubr.f32.gmra.mxu0 %v2612
        %v2851 = vpop.f32.mrf.mxu0
        %v2852 = vadd.f32 0.0, %v2851
        %v2853 = vpop.f32.mrf.mxu0
        %2854 = vmatprep.mubr.f32.mxu0 0.0
        %2855 = vmatmul.mubr.f32.gmra.mxu0 %v2613
        %v2856 = vpop.f32.mrf.mxu0
        %v2857 = vadd.f32 0.0, %v2856
        %v2858 = vpop.f32.mrf.mxu0
        %2859 = vmatprep.mubr.f32.mxu0 0.0
        %2860 = vmatmul.mubr.f32.gmra.mxu0 %v2614
        %v2861 = vpop.f32.mrf.mxu0
        %v2862 = vadd.f32 0.0, %v2861
        %v2863 = vpop.f32.mrf.mxu0
        %2864 = vmatprep.mubr.f32.mxu0 0.0
        %2865 = vmatmul.mubr.f32.gmra.mxu0 %v2615
        %v2866 = vpop.f32.mrf.mxu0
        %v2867 = vadd.f32 0.0, %v2866
        %v2868 = vpop.f32.mrf.mxu0
        %2869 = vmatprep.mubr.f32.mxu0 0.0
        %2870 = vmatmul.mubr.f32.gmra.mxu0 %v2616
        %v2871 = vpop.f32.mrf.mxu0
        %v2872 = vadd.f32 0.0, %v2871
        %v2873 = vpop.f32.mrf.mxu0
        %2874 = vmatprep.mubr.f32.mxu0 0.0
        %2875 = vmatmul.mubr.f32.gmra.mxu0 %v2617
        %v2876 = vpop.f32.mrf.mxu0
        %v2877 = vadd.f32 0.0, %v2876
        %v2878 = vpop.f32.mrf.mxu0
        %2879 = vmatprep.mubr.f32.mxu0 0.0
        %2880 = vmatmul.mubr.f32.gmra.mxu0 %v2618
        %v2881 = vpop.f32.mrf.mxu0
        %v2882 = vadd.f32 0.0, %v2881
        %v2883 = vpop.f32.mrf.mxu0
        %2884 = vmatprep.mubr.f32.mxu0 0.0
        %2885 = vmatmul.mubr.f32.gmra.mxu0 %v2619
        %v2886 = vpop.f32.mrf.mxu0
        %v2887 = vadd.f32 0.0, %v2886
        %v2888 = vpop.f32.mrf.mxu0
        %2889 = vmatprep.mubr.f32.mxu0 0.0
        %2890 = vmatmul.mubr.f32.gmra.mxu0 %v2620
        %v2891 = vpop.f32.mrf.mxu0
        %v2892 = vadd.f32 0.0, %v2891
        %v2893 = vpop.f32.mrf.mxu0
        %2894 = vdwg.mxu0
        %v2895 = vadd.f32 %v2621, %v2737
        %v2896 = vadd.f32 %v2622, %v2742
        %v2897 = vadd.f32 %v2623, %v2747
        %v2898 = vadd.f32 %v2624, %v2752
        %v2899 = vadd.f32 %v2625, %v2757
        %v2900 = vadd.f32 %v2626, %v2762
        %v2901 = vadd.f32 %v2627, %v2767
        %v2902 = vadd.f32 %v2628, %v2772
        %v2903 = vadd.f32 %v2629, %v2777
        %v2904 = vadd.f32 %v2630, %v2782
        %v2905 = vadd.f32 %v2631, %v2787
        %v2906 = vadd.f32 %v2632, %v2792
        %v2907 = vadd.f32 %v2633, %v2797
        %v2908 = vadd.f32 %v2634, %v2802
        %v2909 = vadd.f32 %v2635, %v2807
        %v2910 = vadd.f32 %v2636, %v2812
        %v2911 = vadd.f32 %v2637, %v2817
        %v2912 = vadd.f32 %v2638, %v2822
        %v2913 = vadd.f32 %v2639, %v2827
        %v2914 = vadd.f32 %v2640, %v2832
        %v2915 = vadd.f32 %v2641, %v2837
        %v2916 = vadd.f32 %v2642, %v2842
        %v2917 = vadd.f32 %v2643, %v2847
        %v2918 = vadd.f32 %v2644, %v2852
        %v2919 = vadd.f32 %v2645, %v2857
        %v2920 = vadd.f32 %v2646, %v2862
        %v2921 = vadd.f32 %v2647, %v2867
        %v2922 = vadd.f32 %v2648, %v2872
        %v2923 = vadd.f32 %v2649, %v2877
        %v2924 = vadd.f32 %v2650, %v2882
        %v2925 = vadd.f32 %v2651, %v2887
        %v2926 = vadd.f32 %v2652, %v2892
        %2927 = vst [vmem:[#allocation3] sm:$0xff] %v2895
        %2928 = vst [vmem:[#allocation3 + $0x8] sm:$0xff] %v2896
        %2929 = vst [vmem:[#allocation3 + $0x10] sm:$0xff] %v2897
        %2930 = vst [vmem:[#allocation3 + $0x18] sm:$0xff] %v2898
        %2931 = vst [vmem:[#allocation3 + $0x20] sm:$0xff] %v2899
        %2932 = vst [vmem:[#allocation3 + $0x28] sm:$0xff] %v2900
        %2933 = vst [vmem:[#allocation3 + $0x30] sm:$0xff] %v2901
        %2934 = vst [vmem:[#allocation3 + $0x38] sm:$0xff] %v2902
        %2935 = vst [vmem:[#allocation3 + $0x40] sm:$0xff] %v2903
        %2936 = vst [vmem:[#allocation3 + $0x48] sm:$0xff] %v2904
        %2937 = vst [vmem:[#allocation3 + $0x50] sm:$0xff] %v2905
        %2938 = vst [vmem:[#allocation3 + $0x58] sm:$0xff] %v2906
        %2939 = vst [vmem:[#allocation3 + $0x60] sm:$0xff] %v2907
        %2940 = vst [vmem:[#allocation3 + $0x68] sm:$0xff] %v2908
        %2941 = vst [vmem:[#allocation3 + $0x70] sm:$0xff] %v2909
        %2942 = vst [vmem:[#allocation3 + $0x78] sm:$0xff] %v2910
        %2943 = vst [vmem:[#allocation3 + $0x80] sm:$0xff] %v2911
        %2944 = vst [vmem:[#allocation3 + $0x88] sm:$0xff] %v2912
        %2945 = vst [vmem:[#allocation3 + $0x90] sm:$0xff] %v2913
        %2946 = vst [vmem:[#allocation3 + $0x98] sm:$0xff] %v2914
        %2947 = vst [vmem:[#allocation3 + $0xa0] sm:$0xff] %v2915
        %2948 = vst [vmem:[#allocation3 + $0xa8] sm:$0xff] %v2916
        %2949 = vst [vmem:[#allocation3 + $0xb0] sm:$0xff] %v2917
        %2950 = vst [vmem:[#allocation3 + $0xb8] sm:$0xff] %v2918
        %2951 = vst [vmem:[#allocation3 + $0xc0] sm:$0xff] %v2919
        %2952 = vst [vmem:[#allocation3 + $0xc8] sm:$0xff] %v2920
        %2953 = vst [vmem:[#allocation3 + $0xd0] sm:$0xff] %v2921
        %2954 = vst [vmem:[#allocation3 + $0xd8] sm:$0xff] %v2922
        %2955 = vst [vmem:[#allocation3 + $0xe0] sm:$0xff] %v2923
        %2956 = vst [vmem:[#allocation3 + $0xe8] sm:$0xff] %v2924
        %2957 = vst [vmem:[#allocation3 + $0xf0] sm:$0xff] %v2925
        %2958 = vst [vmem:[#allocation3 + $0xf8] sm:$0xff] %v2926
        %v2959 = vld [vmem:[%s2588 + $0x1] sm:$0xff]
        %v2960 = vld [vmem:[%s2588 + $0x9] sm:$0xff]
        %v2961 = vld [vmem:[%s2588 + $0x19] sm:$0xff]
        %v2962 = vld [vmem:[%s2588 + $0x21] sm:$0xff]
        %v2963 = vld [vmem:[%s2588 + $0x31] sm:$0xff]
        %v2964 = vld [vmem:[%s2588 + $0x39] sm:$0xff]
        %v2965 = vld [vmem:[%s2588 + $0x49] sm:$0xff]
        %v2966 = vld [vmem:[%s2588 + $0x51] sm:$0xff]
        %v2967 = vld [vmem:[%s2588 + $0x61] sm:$0xff]
        %v2968 = vld [vmem:[%s2588 + $0x69] sm:$0xff]
        %v2969 = vld [vmem:[%s2588 + $0x79] sm:$0xff]
        %v2970 = vld [vmem:[%s2588 + $0x81] sm:$0xff]
        %v2971 = vld [vmem:[%s2588 + $0x91] sm:$0xff]
        %v2972 = vld [vmem:[%s2588 + $0x99] sm:$0xff]
        %v2973 = vld [vmem:[%s2588 + $0xa9] sm:$0xff]
        %v2974 = vld [vmem:[%s2588 + $0xb1] sm:$0xff]
        %v2975 = vld [vmem:[%s2588 + $0xc1] sm:$0xff]
        %v2976 = vld [vmem:[%s2588 + $0xc9] sm:$0xff]
        %v2977 = vld [vmem:[%s2588 + $0xd9] sm:$0xff]
        %v2978 = vld [vmem:[%s2588 + $0xe1] sm:$0xff]
        %v2979 = vld [vmem:[%s2588 + $0xf1] sm:$0xff]
        %v2980 = vld [vmem:[%s2588 + $0xf9] sm:$0xff]
        %v2981 = vld [vmem:[%s2588 + $0x109] sm:$0xff]
        %v2982 = vld [vmem:[%s2588 + $0x111] sm:$0xff]
        %v2983 = vld [vmem:[%s2588 + $0x121] sm:$0xff]
        %v2984 = vld [vmem:[%s2588 + $0x129] sm:$0xff]
        %v2985 = vld [vmem:[%s2588 + $0x139] sm:$0xff]
        %v2986 = vld [vmem:[%s2588 + $0x141] sm:$0xff]
        %v2987 = vld [vmem:[%s2588 + $0x151] sm:$0xff]
        %v2988 = vld [vmem:[%s2588 + $0x159] sm:$0xff]
        %v2989 = vld [vmem:[%s2588 + $0x169] sm:$0xff]
        %v2990 = vld [vmem:[%s2588 + $0x171] sm:$0xff]
        %v2991 = vld [vmem:[#allocation3] sm:$0xff]
        %v2992 = vld [vmem:[#allocation3 + $0x8] sm:$0xff]
        %v2993 = vld [vmem:[#allocation3 + $0x10] sm:$0xff]
        %v2994 = vld [vmem:[#allocation3 + $0x18] sm:$0xff]
        %v2995 = vld [vmem:[#allocation3 + $0x20] sm:$0xff]
        %v2996 = vld [vmem:[#allocation3 + $0x28] sm:$0xff]
        %v2997 = vld [vmem:[#allocation3 + $0x30] sm:$0xff]
        %v2998 = vld [vmem:[#allocation3 + $0x38] sm:$0xff]
        %v2999 = vld [vmem:[#allocation3 + $0x40] sm:$0xff]
        %v3000 = vld [vmem:[#allocation3 + $0x48] sm:$0xff]
        %v3001 = vld [vmem:[#allocation3 + $0x50] sm:$0xff]
        %v3002 = vld [vmem:[#allocation3 + $0x58] sm:$0xff]
        %v3003 = vld [vmem:[#allocation3 + $0x60] sm:$0xff]
        %v3004 = vld [vmem:[#allocation3 + $0x68] sm:$0xff]
        %v3005 = vld [vmem:[#allocation3 + $0x70] sm:$0xff]
        %v3006 = vld [vmem:[#allocation3 + $0x78] sm:$0xff]
        %v3007 = vld [vmem:[#allocation3 + $0x80] sm:$0xff]
        %v3008 = vld [vmem:[#allocation3 + $0x88] sm:$0xff]
        %v3009 = vld [vmem:[#allocation3 + $0x90] sm:$0xff]
        %v3010 = vld [vmem:[#allocation3 + $0x98] sm:$0xff]
        %v3011 = vld [vmem:[#allocation3 + $0xa0] sm:$0xff]
        %v3012 = vld [vmem:[#allocation3 + $0xa8] sm:$0xff]
        %v3013 = vld [vmem:[#allocation3 + $0xb0] sm:$0xff]
        %v3014 = vld [vmem:[#allocation3 + $0xb8] sm:$0xff]
        %v3015 = vld [vmem:[#allocation3 + $0xc0] sm:$0xff]
        %v3016 = vld [vmem:[#allocation3 + $0xc8] sm:$0xff]
        %v3017 = vld [vmem:[#allocation3 + $0xd0] sm:$0xff]
        %v3018 = vld [vmem:[#allocation3 + $0xd8] sm:$0xff]
        %v3019 = vld [vmem:[#allocation3 + $0xe0] sm:$0xff]
        %v3020 = vld [vmem:[#allocation3 + $0xe8] sm:$0xff]
        %v3021 = vld [vmem:[#allocation3 + $0xf0] sm:$0xff]
        %v3022 = vld [vmem:[#allocation3 + $0xf8] sm:$0xff]
        %s3023 = scalar_lea.vmem [#allocation7], 896
        %v3024 = vld [vmem:[%s3023] sm:$0xff]
        %v3025 = vld [vmem:[%s3023 + $0x8] sm:$0xff]
        %v3026 = vld [vmem:[%s3023 + $0x10] sm:$0xff]
        %v3027 = vld [vmem:[%s3023 + $0x18] sm:$0xff]
        %v3028 = vld [vmem:[%s3023 + $0x20] sm:$0xff]
        %v3029 = vld [vmem:[%s3023 + $0x28] sm:$0xff]
        %v3030 = vld [vmem:[%s3023 + $0x30] sm:$0xff]
        %v3031 = vld [vmem:[%s3023 + $0x38] sm:$0xff]
        %v3032 = vld [vmem:[%s3023 + $0x40] sm:$0xff]
        %v3033 = vld [vmem:[%s3023 + $0x48] sm:$0xff]
        %v3034 = vld [vmem:[%s3023 + $0x50] sm:$0xff]
        %v3035 = vld [vmem:[%s3023 + $0x58] sm:$0xff]
        %v3036 = vld [vmem:[%s3023 + $0x60] sm:$0xff]
        %v3037 = vld [vmem:[%s3023 + $0x68] sm:$0xff]
        %v3038 = vld [vmem:[%s3023 + $0x70] sm:$0xff]
        %v3039 = vld [vmem:[%s3023 + $0x78] sm:$0xff]
        %3040 = vmatprep.subr.mxu0 0.0
        %3041 = vmatpush1.msra.mxu0 %v3039
        %3042 = vmatprep.subr.mxu0 0.0
        %3043 = vmatpush1.msra.mxu0 %v3038
        %3044 = vmatprep.subr.mxu0 0.0
        %3045 = vmatpush1.msra.mxu0 %v3037
        %3046 = vmatprep.subr.mxu0 0.0
        %3047 = vmatpush1.msra.mxu0 %v3036
        %3048 = vmatprep.subr.mxu0 0.0
        %3049 = vmatpush1.msra.mxu0 %v3035
        %3050 = vmatprep.subr.mxu0 0.0
        %3051 = vmatpush1.msra.mxu0 %v3034
        %3052 = vmatprep.subr.mxu0 0.0
        %3053 = vmatpush1.msra.mxu0 %v3033
        %3054 = vmatprep.subr.mxu0 0.0
        %3055 = vmatpush1.msra.mxu0 %v3032
        %3056 = vmatprep.subr.mxu0 0.0
        %3057 = vmatpush1.msra.mxu0 %v3031
        %3058 = vmatprep.subr.mxu0 0.0
        %3059 = vmatpush1.msra.mxu0 %v3030
        %3060 = vmatprep.subr.mxu0 0.0
        %3061 = vmatpush1.msra.mxu0 %v3029
        %3062 = vmatprep.subr.mxu0 0.0
        %3063 = vmatpush1.msra.mxu0 %v3028
        %3064 = vmatprep.subr.mxu0 0.0
        %3065 = vmatpush1.msra.mxu0 %v3027
        %3066 = vmatprep.subr.mxu0 0.0
        %3067 = vmatpush1.msra.mxu0 %v3026
        %3068 = vmatprep.subr.mxu0 0.0
        %3069 = vmatpush1.msra.mxu0 %v3025
        %3070 = vmatprep.subr.mxu0 0.0
        %3071 = vmatpush1.msra.mxu0 %v3024
        %3072 = vmatprep.subr.mxu0 0.0
        %3073 = vmatpush2.msra.mxu0 0.0
        %3074 = vmatprep.subr.mxu0 0.0
        %3075 = vmatpush2.msra.mxu0 0.0
        %3076 = vmatprep.subr.mxu0 0.0
        %3077 = vmatpush2.msra.mxu0 0.0
        %3078 = vmatprep.subr.mxu0 0.0
        %3079 = vmatpush2.msra.mxu0 0.0
        %3080 = vmatprep.subr.mxu0 0.0
        %3081 = vmatpush2.msra.mxu0 0.0
        %3082 = vmatprep.subr.mxu0 0.0
        %3083 = vmatpush2.msra.mxu0 0.0
        %3084 = vmatprep.subr.mxu0 0.0
        %3085 = vmatpush2.msra.mxu0 0.0
        %3086 = vmatprep.subr.mxu0 0.0
        %3087 = vmatpush2.msra.mxu0 0.0
        %3088 = vmatprep.subr.mxu0 0.0
        %3089 = vmatpush2.msra.mxu0 0.0
        %3090 = vmatprep.subr.mxu0 0.0
        %3091 = vmatpush2.msra.mxu0 0.0
        %3092 = vmatprep.subr.mxu0 0.0
        %3093 = vmatpush2.msra.mxu0 0.0
        %3094 = vmatprep.subr.mxu0 0.0
        %3095 = vmatpush2.msra.mxu0 0.0
        %3096 = vmatprep.subr.mxu0 0.0
        %3097 = vmatpush2.msra.mxu0 0.0
        %3098 = vmatprep.subr.mxu0 0.0
        %3099 = vmatpush2.msra.mxu0 0.0
        %3100 = vmatprep.subr.mxu0 0.0
        %3101 = vmatpush2.msra.mxu0 0.0
        %3102 = vmatprep.subr.mxu0 0.0
        %3103 = vmatpush2.msra.mxu0 0.0
        %3104 = vmatprep.mubr.f32.mxu0 0.0
        %3105 = vmatmul.mubr.f32.gmra.mxu0 %v2959
        %v3106 = vpop.f32.mrf.mxu0
        %v3107 = vadd.f32 0.0, %v3106
        %v3108 = vpop.f32.mrf.mxu0
        %3109 = vmatprep.mubr.f32.mxu0 0.0
        %3110 = vmatmul.mubr.f32.gmra.mxu0 %v2960
        %v3111 = vpop.f32.mrf.mxu0
        %v3112 = vadd.f32 0.0, %v3111
        %v3113 = vpop.f32.mrf.mxu0
        %3114 = vmatprep.mubr.f32.mxu0 0.0
        %3115 = vmatmul.mubr.f32.gmra.mxu0 %v2961
        %v3116 = vpop.f32.mrf.mxu0
        %v3117 = vadd.f32 0.0, %v3116
        %v3118 = vpop.f32.mrf.mxu0
        %3119 = vmatprep.mubr.f32.mxu0 0.0
        %3120 = vmatmul.mubr.f32.gmra.mxu0 %v2962
        %v3121 = vpop.f32.mrf.mxu0
        %v3122 = vadd.f32 0.0, %v3121
        %v3123 = vpop.f32.mrf.mxu0
        %3124 = vmatprep.mubr.f32.mxu0 0.0
        %3125 = vmatmul.mubr.f32.gmra.mxu0 %v2963
        %v3126 = vpop.f32.mrf.mxu0
        %v3127 = vadd.f32 0.0, %v3126
        %v3128 = vpop.f32.mrf.mxu0
        %3129 = vmatprep.mubr.f32.mxu0 0.0
        %3130 = vmatmul.mubr.f32.gmra.mxu0 %v2964
        %v3131 = vpop.f32.mrf.mxu0
        %v3132 = vadd.f32 0.0, %v3131
        %v3133 = vpop.f32.mrf.mxu0
        %3134 = vmatprep.mubr.f32.mxu0 0.0
        %3135 = vmatmul.mubr.f32.gmra.mxu0 %v2965
        %v3136 = vpop.f32.mrf.mxu0
        %v3137 = vadd.f32 0.0, %v3136
        %v3138 = vpop.f32.mrf.mxu0
        %3139 = vmatprep.mubr.f32.mxu0 0.0
        %3140 = vmatmul.mubr.f32.gmra.mxu0 %v2966
        %v3141 = vpop.f32.mrf.mxu0
        %v3142 = vadd.f32 0.0, %v3141
        %v3143 = vpop.f32.mrf.mxu0
        %3144 = vmatprep.mubr.f32.mxu0 0.0
        %3145 = vmatmul.mubr.f32.gmra.mxu0 %v2967
        %v3146 = vpop.f32.mrf.mxu0
        %v3147 = vadd.f32 0.0, %v3146
        %v3148 = vpop.f32.mrf.mxu0
        %3149 = vmatprep.mubr.f32.mxu0 0.0
        %3150 = vmatmul.mubr.f32.gmra.mxu0 %v2968
        %v3151 = vpop.f32.mrf.mxu0
        %v3152 = vadd.f32 0.0, %v3151
        %v3153 = vpop.f32.mrf.mxu0
        %3154 = vmatprep.mubr.f32.mxu0 0.0
        %3155 = vmatmul.mubr.f32.gmra.mxu0 %v2969
        %v3156 = vpop.f32.mrf.mxu0
        %v3157 = vadd.f32 0.0, %v3156
        %v3158 = vpop.f32.mrf.mxu0
        %3159 = vmatprep.mubr.f32.mxu0 0.0
        %3160 = vmatmul.mubr.f32.gmra.mxu0 %v2970
        %v3161 = vpop.f32.mrf.mxu0
        %v3162 = vadd.f32 0.0, %v3161
        %v3163 = vpop.f32.mrf.mxu0
        %3164 = vmatprep.mubr.f32.mxu0 0.0
        %3165 = vmatmul.mubr.f32.gmra.mxu0 %v2971
        %v3166 = vpop.f32.mrf.mxu0
        %v3167 = vadd.f32 0.0, %v3166
        %v3168 = vpop.f32.mrf.mxu0
        %3169 = vmatprep.mubr.f32.mxu0 0.0
        %3170 = vmatmul.mubr.f32.gmra.mxu0 %v2972
        %v3171 = vpop.f32.mrf.mxu0
        %v3172 = vadd.f32 0.0, %v3171
        %v3173 = vpop.f32.mrf.mxu0
        %3174 = vmatprep.mubr.f32.mxu0 0.0
        %3175 = vmatmul.mubr.f32.gmra.mxu0 %v2973
        %v3176 = vpop.f32.mrf.mxu0
        %v3177 = vadd.f32 0.0, %v3176
        %v3178 = vpop.f32.mrf.mxu0
        %3179 = vmatprep.mubr.f32.mxu0 0.0
        %3180 = vmatmul.mubr.f32.gmra.mxu0 %v2974
        %v3181 = vpop.f32.mrf.mxu0
        %v3182 = vadd.f32 0.0, %v3181
        %v3183 = vpop.f32.mrf.mxu0
        %3184 = vmatprep.mubr.f32.mxu0 0.0
        %3185 = vmatmul.mubr.f32.gmra.mxu0 %v2975
        %v3186 = vpop.f32.mrf.mxu0
        %v3187 = vadd.f32 0.0, %v3186
        %v3188 = vpop.f32.mrf.mxu0
        %3189 = vmatprep.mubr.f32.mxu0 0.0
        %3190 = vmatmul.mubr.f32.gmra.mxu0 %v2976
        %v3191 = vpop.f32.mrf.mxu0
        %v3192 = vadd.f32 0.0, %v3191
        %v3193 = vpop.f32.mrf.mxu0
        %3194 = vmatprep.mubr.f32.mxu0 0.0
        %3195 = vmatmul.mubr.f32.gmra.mxu0 %v2977
        %v3196 = vpop.f32.mrf.mxu0
        %v3197 = vadd.f32 0.0, %v3196
        %v3198 = vpop.f32.mrf.mxu0
        %3199 = vmatprep.mubr.f32.mxu0 0.0
        %3200 = vmatmul.mubr.f32.gmra.mxu0 %v2978
        %v3201 = vpop.f32.mrf.mxu0
        %v3202 = vadd.f32 0.0, %v3201
        %v3203 = vpop.f32.mrf.mxu0
        %3204 = vmatprep.mubr.f32.mxu0 0.0
        %3205 = vmatmul.mubr.f32.gmra.mxu0 %v2979
        %v3206 = vpop.f32.mrf.mxu0
        %v3207 = vadd.f32 0.0, %v3206
        %v3208 = vpop.f32.mrf.mxu0
        %3209 = vmatprep.mubr.f32.mxu0 0.0
        %3210 = vmatmul.mubr.f32.gmra.mxu0 %v2980
        %v3211 = vpop.f32.mrf.mxu0
        %v3212 = vadd.f32 0.0, %v3211
        %v3213 = vpop.f32.mrf.mxu0
        %3214 = vmatprep.mubr.f32.mxu0 0.0
        %3215 = vmatmul.mubr.f32.gmra.mxu0 %v2981
        %v3216 = vpop.f32.mrf.mxu0
        %v3217 = vadd.f32 0.0, %v3216
        %v3218 = vpop.f32.mrf.mxu0
        %3219 = vmatprep.mubr.f32.mxu0 0.0
        %3220 = vmatmul.mubr.f32.gmra.mxu0 %v2982
        %v3221 = vpop.f32.mrf.mxu0
        %v3222 = vadd.f32 0.0, %v3221
        %v3223 = vpop.f32.mrf.mxu0
        %3224 = vmatprep.mubr.f32.mxu0 0.0
        %3225 = vmatmul.mubr.f32.gmra.mxu0 %v2983
        %v3226 = vpop.f32.mrf.mxu0
        %v3227 = vadd.f32 0.0, %v3226
        %v3228 = vpop.f32.mrf.mxu0
        %3229 = vmatprep.mubr.f32.mxu0 0.0
        %3230 = vmatmul.mubr.f32.gmra.mxu0 %v2984
        %v3231 = vpop.f32.mrf.mxu0
        %v3232 = vadd.f32 0.0, %v3231
        %v3233 = vpop.f32.mrf.mxu0
        %3234 = vmatprep.mubr.f32.mxu0 0.0
        %3235 = vmatmul.mubr.f32.gmra.mxu0 %v2985
        %v3236 = vpop.f32.mrf.mxu0
        %v3237 = vadd.f32 0.0, %v3236
        %v3238 = vpop.f32.mrf.mxu0
        %3239 = vmatprep.mubr.f32.mxu0 0.0
        %3240 = vmatmul.mubr.f32.gmra.mxu0 %v2986
        %v3241 = vpop.f32.mrf.mxu0
        %v3242 = vadd.f32 0.0, %v3241
        %v3243 = vpop.f32.mrf.mxu0
        %3244 = vmatprep.mubr.f32.mxu0 0.0
        %3245 = vmatmul.mubr.f32.gmra.mxu0 %v2987
        %v3246 = vpop.f32.mrf.mxu0
        %v3247 = vadd.f32 0.0, %v3246
        %v3248 = vpop.f32.mrf.mxu0
        %3249 = vmatprep.mubr.f32.mxu0 0.0
        %3250 = vmatmul.mubr.f32.gmra.mxu0 %v2988
        %v3251 = vpop.f32.mrf.mxu0
        %v3252 = vadd.f32 0.0, %v3251
        %v3253 = vpop.f32.mrf.mxu0
        %3254 = vmatprep.mubr.f32.mxu0 0.0
        %3255 = vmatmul.mubr.f32.gmra.mxu0 %v2989
        %v3256 = vpop.f32.mrf.mxu0
        %v3257 = vadd.f32 0.0, %v3256
        %v3258 = vpop.f32.mrf.mxu0
        %3259 = vmatprep.mubr.f32.mxu0 0.0
        %3260 = vmatmul.mubr.f32.gmra.mxu0 %v2990
        %v3261 = vpop.f32.mrf.mxu0
        %v3262 = vadd.f32 0.0, %v3261
        %v3263 = vpop.f32.mrf.mxu0
        %3264 = vdwg.mxu0
        %v3265 = vadd.f32 %v2991, %v3107
        %v3266 = vadd.f32 %v2992, %v3112
        %v3267 = vadd.f32 %v2993, %v3117
        %v3268 = vadd.f32 %v2994, %v3122
        %v3269 = vadd.f32 %v2995, %v3127
        %v3270 = vadd.f32 %v2996, %v3132
        %v3271 = vadd.f32 %v2997, %v3137
        %v3272 = vadd.f32 %v2998, %v3142
        %v3273 = vadd.f32 %v2999, %v3147
        %v3274 = vadd.f32 %v3000, %v3152
        %v3275 = vadd.f32 %v3001, %v3157
        %v3276 = vadd.f32 %v3002, %v3162
        %v3277 = vadd.f32 %v3003, %v3167
        %v3278 = vadd.f32 %v3004, %v3172
        %v3279 = vadd.f32 %v3005, %v3177
        %v3280 = vadd.f32 %v3006, %v3182
        %v3281 = vadd.f32 %v3007, %v3187
        %v3282 = vadd.f32 %v3008, %v3192
        %v3283 = vadd.f32 %v3009, %v3197
        %v3284 = vadd.f32 %v3010, %v3202
        %v3285 = vadd.f32 %v3011, %v3207
        %v3286 = vadd.f32 %v3012, %v3212
        %v3287 = vadd.f32 %v3013, %v3217
        %v3288 = vadd.f32 %v3014, %v3222
        %v3289 = vadd.f32 %v3015, %v3227
        %v3290 = vadd.f32 %v3016, %v3232
        %v3291 = vadd.f32 %v3017, %v3237
        %v3292 = vadd.f32 %v3018, %v3242
        %v3293 = vadd.f32 %v3019, %v3247
        %v3294 = vadd.f32 %v3020, %v3252
        %v3295 = vadd.f32 %v3021, %v3257
        %v3296 = vadd.f32 %v3022, %v3262
        %3297 = vst [vmem:[#allocation3] sm:$0xff] %v3265
        %3298 = vst [vmem:[#allocation3 + $0x8] sm:$0xff] %v3266
        %3299 = vst [vmem:[#allocation3 + $0x10] sm:$0xff] %v3267
        %3300 = vst [vmem:[#allocation3 + $0x18] sm:$0xff] %v3268
        %3301 = vst [vmem:[#allocation3 + $0x20] sm:$0xff] %v3269
        %3302 = vst [vmem:[#allocation3 + $0x28] sm:$0xff] %v3270
        %3303 = vst [vmem:[#allocation3 + $0x30] sm:$0xff] %v3271
        %3304 = vst [vmem:[#allocation3 + $0x38] sm:$0xff] %v3272
        %3305 = vst [vmem:[#allocation3 + $0x40] sm:$0xff] %v3273
        %3306 = vst [vmem:[#allocation3 + $0x48] sm:$0xff] %v3274
        %3307 = vst [vmem:[#allocation3 + $0x50] sm:$0xff] %v3275
        %3308 = vst [vmem:[#allocation3 + $0x58] sm:$0xff] %v3276
        %3309 = vst [vmem:[#allocation3 + $0x60] sm:$0xff] %v3277
        %3310 = vst [vmem:[#allocation3 + $0x68] sm:$0xff] %v3278
        %3311 = vst [vmem:[#allocation3 + $0x70] sm:$0xff] %v3279
        %3312 = vst [vmem:[#allocation3 + $0x78] sm:$0xff] %v3280
        %3313 = vst [vmem:[#allocation3 + $0x80] sm:$0xff] %v3281
        %3314 = vst [vmem:[#allocation3 + $0x88] sm:$0xff] %v3282
        %3315 = vst [vmem:[#allocation3 + $0x90] sm:$0xff] %v3283
        %3316 = vst [vmem:[#allocation3 + $0x98] sm:$0xff] %v3284
        %3317 = vst [vmem:[#allocation3 + $0xa0] sm:$0xff] %v3285
        %3318 = vst [vmem:[#allocation3 + $0xa8] sm:$0xff] %v3286
        %3319 = vst [vmem:[#allocation3 + $0xb0] sm:$0xff] %v3287
        %3320 = vst [vmem:[#allocation3 + $0xb8] sm:$0xff] %v3288
        %3321 = vst [vmem:[#allocation3 + $0xc0] sm:$0xff] %v3289
        %3322 = vst [vmem:[#allocation3 + $0xc8] sm:$0xff] %v3290
        %3323 = vst [vmem:[#allocation3 + $0xd0] sm:$0xff] %v3291
        %3324 = vst [vmem:[#allocation3 + $0xd8] sm:$0xff] %v3292
        %3325 = vst [vmem:[#allocation3 + $0xe0] sm:$0xff] %v3293
        %3326 = vst [vmem:[#allocation3 + $0xe8] sm:$0xff] %v3294
        %3327 = vst [vmem:[#allocation3 + $0xf0] sm:$0xff] %v3295
        %3328 = vst [vmem:[#allocation3 + $0xf8] sm:$0xff] %v3296
        %v3329 = vld [vmem:[%s2588 + $0x2] sm:$0xff]
        %v3330 = vld [vmem:[%s2588 + $0xa] sm:$0xff]
        %v3331 = vld [vmem:[%s2588 + $0x1a] sm:$0xff]
        %v3332 = vld [vmem:[%s2588 + $0x22] sm:$0xff]
        %v3333 = vld [vmem:[%s2588 + $0x32] sm:$0xff]
        %v3334 = vld [vmem:[%s2588 + $0x3a] sm:$0xff]
        %v3335 = vld [vmem:[%s2588 + $0x4a] sm:$0xff]
        %v3336 = vld [vmem:[%s2588 + $0x52] sm:$0xff]
        %v3337 = vld [vmem:[%s2588 + $0x62] sm:$0xff]
        %v3338 = vld [vmem:[%s2588 + $0x6a] sm:$0xff]
        %v3339 = vld [vmem:[%s2588 + $0x7a] sm:$0xff]
        %v3340 = vld [vmem:[%s2588 + $0x82] sm:$0xff]
        %v3341 = vld [vmem:[%s2588 + $0x92] sm:$0xff]
        %v3342 = vld [vmem:[%s2588 + $0x9a] sm:$0xff]
        %v3343 = vld [vmem:[%s2588 + $0xaa] sm:$0xff]
        %v3344 = vld [vmem:[%s2588 + $0xb2] sm:$0xff]
        %v3345 = vld [vmem:[%s2588 + $0xc2] sm:$0xff]
        %v3346 = vld [vmem:[%s2588 + $0xca] sm:$0xff]
        %v3347 = vld [vmem:[%s2588 + $0xda] sm:$0xff]
        %v3348 = vld [vmem:[%s2588 + $0xe2] sm:$0xff]
        %v3349 = vld [vmem:[%s2588 + $0xf2] sm:$0xff]
        %v3350 = vld [vmem:[%s2588 + $0xfa] sm:$0xff]
        %v3351 = vld [vmem:[%s2588 + $0x10a] sm:$0xff]
        %v3352 = vld [vmem:[%s2588 + $0x112] sm:$0xff]
        %v3353 = vld [vmem:[%s2588 + $0x122] sm:$0xff]
        %v3354 = vld [vmem:[%s2588 + $0x12a] sm:$0xff]
        %v3355 = vld [vmem:[%s2588 + $0x13a] sm:$0xff]
        %v3356 = vld [vmem:[%s2588 + $0x142] sm:$0xff]
        %v3357 = vld [vmem:[%s2588 + $0x152] sm:$0xff]
        %v3358 = vld [vmem:[%s2588 + $0x15a] sm:$0xff]
        %v3359 = vld [vmem:[%s2588 + $0x16a] sm:$0xff]
        %v3360 = vld [vmem:[%s2588 + $0x172] sm:$0xff]
        %v3361 = vld [vmem:[#allocation3] sm:$0xff]
        %v3362 = vld [vmem:[#allocation3 + $0x8] sm:$0xff]
        %v3363 = vld [vmem:[#allocation3 + $0x10] sm:$0xff]
        %v3364 = vld [vmem:[#allocation3 + $0x18] sm:$0xff]
        %v3365 = vld [vmem:[#allocation3 + $0x20] sm:$0xff]
        %v3366 = vld [vmem:[#allocation3 + $0x28] sm:$0xff]
        %v3367 = vld [vmem:[#allocation3 + $0x30] sm:$0xff]
        %v3368 = vld [vmem:[#allocation3 + $0x38] sm:$0xff]
        %v3369 = vld [vmem:[#allocation3 + $0x40] sm:$0xff]
        %v3370 = vld [vmem:[#allocation3 + $0x48] sm:$0xff]
        %v3371 = vld [vmem:[#allocation3 + $0x50] sm:$0xff]
        %v3372 = vld [vmem:[#allocation3 + $0x58] sm:$0xff]
        %v3373 = vld [vmem:[#allocation3 + $0x60] sm:$0xff]
        %v3374 = vld [vmem:[#allocation3 + $0x68] sm:$0xff]
        %v3375 = vld [vmem:[#allocation3 + $0x70] sm:$0xff]
        %v3376 = vld [vmem:[#allocation3 + $0x78] sm:$0xff]
        %v3377 = vld [vmem:[#allocation3 + $0x80] sm:$0xff]
        %v3378 = vld [vmem:[#allocation3 + $0x88] sm:$0xff]
        %v3379 = vld [vmem:[#allocation3 + $0x90] sm:$0xff]
        %v3380 = vld [vmem:[#allocation3 + $0x98] sm:$0xff]
        %v3381 = vld [vmem:[#allocation3 + $0xa0] sm:$0xff]
        %v3382 = vld [vmem:[#allocation3 + $0xa8] sm:$0xff]
        %v3383 = vld [vmem:[#allocation3 + $0xb0] sm:$0xff]
        %v3384 = vld [vmem:[#allocation3 + $0xb8] sm:$0xff]
        %v3385 = vld [vmem:[#allocation3 + $0xc0] sm:$0xff]
        %v3386 = vld [vmem:[#allocation3 + $0xc8] sm:$0xff]
        %v3387 = vld [vmem:[#allocation3 + $0xd0] sm:$0xff]
        %v3388 = vld [vmem:[#allocation3 + $0xd8] sm:$0xff]
        %v3389 = vld [vmem:[#allocation3 + $0xe0] sm:$0xff]
        %v3390 = vld [vmem:[#allocation3 + $0xe8] sm:$0xff]
        %v3391 = vld [vmem:[#allocation3 + $0xf0] sm:$0xff]
        %v3392 = vld [vmem:[#allocation3 + $0xf8] sm:$0xff]
        %s3393 = scalar_lea.vmem [#allocation7], 1024
        %v3394 = vld [vmem:[%s3393] sm:$0xff]
        %v3395 = vld [vmem:[%s3393 + $0x8] sm:$0xff]
        %v3396 = vld [vmem:[%s3393 + $0x10] sm:$0xff]
        %v3397 = vld [vmem:[%s3393 + $0x18] sm:$0xff]
        %v3398 = vld [vmem:[%s3393 + $0x20] sm:$0xff]
        %v3399 = vld [vmem:[%s3393 + $0x28] sm:$0xff]
        %v3400 = vld [vmem:[%s3393 + $0x30] sm:$0xff]
        %v3401 = vld [vmem:[%s3393 + $0x38] sm:$0xff]
        %v3402 = vld [vmem:[%s3393 + $0x40] sm:$0xff]
        %v3403 = vld [vmem:[%s3393 + $0x48] sm:$0xff]
        %v3404 = vld [vmem:[%s3393 + $0x50] sm:$0xff]
        %v3405 = vld [vmem:[%s3393 + $0x58] sm:$0xff]
        %v3406 = vld [vmem:[%s3393 + $0x60] sm:$0xff]
        %v3407 = vld [vmem:[%s3393 + $0x68] sm:$0xff]
        %v3408 = vld [vmem:[%s3393 + $0x70] sm:$0xff]
        %v3409 = vld [vmem:[%s3393 + $0x78] sm:$0xff]
        %3410 = vmatprep.subr.mxu0 0.0
        %3411 = vmatpush1.msra.mxu0 %v3409
        %3412 = vmatprep.subr.mxu0 0.0
        %3413 = vmatpush1.msra.mxu0 %v3408
        %3414 = vmatprep.subr.mxu0 0.0
        %3415 = vmatpush1.msra.mxu0 %v3407
        %3416 = vmatprep.subr.mxu0 0.0
        %3417 = vmatpush1.msra.mxu0 %v3406
        %3418 = vmatprep.subr.mxu0 0.0
        %3419 = vmatpush1.msra.mxu0 %v3405
        %3420 = vmatprep.subr.mxu0 0.0
        %3421 = vmatpush1.msra.mxu0 %v3404
        %3422 = vmatprep.subr.mxu0 0.0
        %3423 = vmatpush1.msra.mxu0 %v3403
        %3424 = vmatprep.subr.mxu0 0.0
        %3425 = vmatpush1.msra.mxu0 %v3402
        %3426 = vmatprep.subr.mxu0 0.0
        %3427 = vmatpush1.msra.mxu0 %v3401
        %3428 = vmatprep.subr.mxu0 0.0
        %3429 = vmatpush1.msra.mxu0 %v3400
        %3430 = vmatprep.subr.mxu0 0.0
        %3431 = vmatpush1.msra.mxu0 %v3399
        %3432 = vmatprep.subr.mxu0 0.0
        %3433 = vmatpush1.msra.mxu0 %v3398
        %3434 = vmatprep.subr.mxu0 0.0
        %3435 = vmatpush1.msra.mxu0 %v3397
        %3436 = vmatprep.subr.mxu0 0.0
        %3437 = vmatpush1.msra.mxu0 %v3396
        %3438 = vmatprep.subr.mxu0 0.0
        %3439 = vmatpush1.msra.mxu0 %v3395
        %3440 = vmatprep.subr.mxu0 0.0
        %3441 = vmatpush1.msra.mxu0 %v3394
        %3442 = vmatprep.subr.mxu0 0.0
        %3443 = vmatpush2.msra.mxu0 0.0
        %3444 = vmatprep.subr.mxu0 0.0
        %3445 = vmatpush2.msra.mxu0 0.0
        %3446 = vmatprep.subr.mxu0 0.0
        %3447 = vmatpush2.msra.mxu0 0.0
        %3448 = vmatprep.subr.mxu0 0.0
        %3449 = vmatpush2.msra.mxu0 0.0
        %3450 = vmatprep.subr.mxu0 0.0
        %3451 = vmatpush2.msra.mxu0 0.0
        %3452 = vmatprep.subr.mxu0 0.0
        %3453 = vmatpush2.msra.mxu0 0.0
        %3454 = vmatprep.subr.mxu0 0.0
        %3455 = vmatpush2.msra.mxu0 0.0
        %3456 = vmatprep.subr.mxu0 0.0
        %3457 = vmatpush2.msra.mxu0 0.0
        %3458 = vmatprep.subr.mxu0 0.0
        %3459 = vmatpush2.msra.mxu0 0.0
        %3460 = vmatprep.subr.mxu0 0.0
        %3461 = vmatpush2.msra.mxu0 0.0
        %3462 = vmatprep.subr.mxu0 0.0
        %3463 = vmatpush2.msra.mxu0 0.0
        %3464 = vmatprep.subr.mxu0 0.0
        %3465 = vmatpush2.msra.mxu0 0.0
        %3466 = vmatprep.subr.mxu0 0.0
        %3467 = vmatpush2.msra.mxu0 0.0
        %3468 = vmatprep.subr.mxu0 0.0
        %3469 = vmatpush2.msra.mxu0 0.0
        %3470 = vmatprep.subr.mxu0 0.0
        %3471 = vmatpush2.msra.mxu0 0.0
        %3472 = vmatprep.subr.mxu0 0.0
        %3473 = vmatpush2.msra.mxu0 0.0
        %3474 = vmatprep.mubr.f32.mxu0 0.0
        %3475 = vmatmul.mubr.f32.gmra.mxu0 %v3329
        %v3476 = vpop.f32.mrf.mxu0
        %v3477 = vadd.f32 0.0, %v3476
        %v3478 = vpop.f32.mrf.mxu0
        %3479 = vmatprep.mubr.f32.mxu0 0.0
        %3480 = vmatmul.mubr.f32.gmra.mxu0 %v3330
        %v3481 = vpop.f32.mrf.mxu0
        %v3482 = vadd.f32 0.0, %v3481
        %v3483 = vpop.f32.mrf.mxu0
        %3484 = vmatprep.mubr.f32.mxu0 0.0
        %3485 = vmatmul.mubr.f32.gmra.mxu0 %v3331
        %v3486 = vpop.f32.mrf.mxu0
        %v3487 = vadd.f32 0.0, %v3486
        %v3488 = vpop.f32.mrf.mxu0
        %3489 = vmatprep.mubr.f32.mxu0 0.0
        %3490 = vmatmul.mubr.f32.gmra.mxu0 %v3332
        %v3491 = vpop.f32.mrf.mxu0
        %v3492 = vadd.f32 0.0, %v3491
        %v3493 = vpop.f32.mrf.mxu0
        %3494 = vmatprep.mubr.f32.mxu0 0.0
        %3495 = vmatmul.mubr.f32.gmra.mxu0 %v3333
        %v3496 = vpop.f32.mrf.mxu0
        %v3497 = vadd.f32 0.0, %v3496
        %v3498 = vpop.f32.mrf.mxu0
        %3499 = vmatprep.mubr.f32.mxu0 0.0
        %3500 = vmatmul.mubr.f32.gmra.mxu0 %v3334
        %v3501 = vpop.f32.mrf.mxu0
        %v3502 = vadd.f32 0.0, %v3501
        %v3503 = vpop.f32.mrf.mxu0
        %3504 = vmatprep.mubr.f32.mxu0 0.0
        %3505 = vmatmul.mubr.f32.gmra.mxu0 %v3335
        %v3506 = vpop.f32.mrf.mxu0
        %v3507 = vadd.f32 0.0, %v3506
        %v3508 = vpop.f32.mrf.mxu0
        %3509 = vmatprep.mubr.f32.mxu0 0.0
        %3510 = vmatmul.mubr.f32.gmra.mxu0 %v3336
        %v3511 = vpop.f32.mrf.mxu0
        %v3512 = vadd.f32 0.0, %v3511
        %v3513 = vpop.f32.mrf.mxu0
        %3514 = vmatprep.mubr.f32.mxu0 0.0
        %3515 = vmatmul.mubr.f32.gmra.mxu0 %v3337
        %v3516 = vpop.f32.mrf.mxu0
        %v3517 = vadd.f32 0.0, %v3516
        %v3518 = vpop.f32.mrf.mxu0
        %3519 = vmatprep.mubr.f32.mxu0 0.0
        %3520 = vmatmul.mubr.f32.gmra.mxu0 %v3338
        %v3521 = vpop.f32.mrf.mxu0
        %v3522 = vadd.f32 0.0, %v3521
        %v3523 = vpop.f32.mrf.mxu0
        %3524 = vmatprep.mubr.f32.mxu0 0.0
        %3525 = vmatmul.mubr.f32.gmra.mxu0 %v3339
        %v3526 = vpop.f32.mrf.mxu0
        %v3527 = vadd.f32 0.0, %v3526
        %v3528 = vpop.f32.mrf.mxu0
        %3529 = vmatprep.mubr.f32.mxu0 0.0
        %3530 = vmatmul.mubr.f32.gmra.mxu0 %v3340
        %v3531 = vpop.f32.mrf.mxu0
        %v3532 = vadd.f32 0.0, %v3531
        %v3533 = vpop.f32.mrf.mxu0
        %3534 = vmatprep.mubr.f32.mxu0 0.0
        %3535 = vmatmul.mubr.f32.gmra.mxu0 %v3341
        %v3536 = vpop.f32.mrf.mxu0
        %v3537 = vadd.f32 0.0, %v3536
        %v3538 = vpop.f32.mrf.mxu0
        %3539 = vmatprep.mubr.f32.mxu0 0.0
        %3540 = vmatmul.mubr.f32.gmra.mxu0 %v3342
        %v3541 = vpop.f32.mrf.mxu0
        %v3542 = vadd.f32 0.0, %v3541
        %v3543 = vpop.f32.mrf.mxu0
        %3544 = vmatprep.mubr.f32.mxu0 0.0
        %3545 = vmatmul.mubr.f32.gmra.mxu0 %v3343
        %v3546 = vpop.f32.mrf.mxu0
        %v3547 = vadd.f32 0.0, %v3546
        %v3548 = vpop.f32.mrf.mxu0
        %3549 = vmatprep.mubr.f32.mxu0 0.0
        %3550 = vmatmul.mubr.f32.gmra.mxu0 %v3344
        %v3551 = vpop.f32.mrf.mxu0
        %v3552 = vadd.f32 0.0, %v3551
        %v3553 = vpop.f32.mrf.mxu0
        %3554 = vmatprep.mubr.f32.mxu0 0.0
        %3555 = vmatmul.mubr.f32.gmra.mxu0 %v3345
        %v3556 = vpop.f32.mrf.mxu0
        %v3557 = vadd.f32 0.0, %v3556
        %v3558 = vpop.f32.mrf.mxu0
        %3559 = vmatprep.mubr.f32.mxu0 0.0
        %3560 = vmatmul.mubr.f32.gmra.mxu0 %v3346
        %v3561 = vpop.f32.mrf.mxu0
        %v3562 = vadd.f32 0.0, %v3561
        %v3563 = vpop.f32.mrf.mxu0
        %3564 = vmatprep.mubr.f32.mxu0 0.0
        %3565 = vmatmul.mubr.f32.gmra.mxu0 %v3347
        %v3566 = vpop.f32.mrf.mxu0
        %v3567 = vadd.f32 0.0, %v3566
        %v3568 = vpop.f32.mrf.mxu0
        %3569 = vmatprep.mubr.f32.mxu0 0.0
        %3570 = vmatmul.mubr.f32.gmra.mxu0 %v3348
        %v3571 = vpop.f32.mrf.mxu0
        %v3572 = vadd.f32 0.0, %v3571
        %v3573 = vpop.f32.mrf.mxu0
        %3574 = vmatprep.mubr.f32.mxu0 0.0
        %3575 = vmatmul.mubr.f32.gmra.mxu0 %v3349
        %v3576 = vpop.f32.mrf.mxu0
        %v3577 = vadd.f32 0.0, %v3576
        %v3578 = vpop.f32.mrf.mxu0
        %3579 = vmatprep.mubr.f32.mxu0 0.0
        %3580 = vmatmul.mubr.f32.gmra.mxu0 %v3350
        %v3581 = vpop.f32.mrf.mxu0
        %v3582 = vadd.f32 0.0, %v3581
        %v3583 = vpop.f32.mrf.mxu0
        %3584 = vmatprep.mubr.f32.mxu0 0.0
        %3585 = vmatmul.mubr.f32.gmra.mxu0 %v3351
        %v3586 = vpop.f32.mrf.mxu0
        %v3587 = vadd.f32 0.0, %v3586
        %v3588 = vpop.f32.mrf.mxu0
        %3589 = vmatprep.mubr.f32.mxu0 0.0
        %3590 = vmatmul.mubr.f32.gmra.mxu0 %v3352
        %v3591 = vpop.f32.mrf.mxu0
        %v3592 = vadd.f32 0.0, %v3591
        %v3593 = vpop.f32.mrf.mxu0
        %3594 = vmatprep.mubr.f32.mxu0 0.0
        %3595 = vmatmul.mubr.f32.gmra.mxu0 %v3353
        %v3596 = vpop.f32.mrf.mxu0
        %v3597 = vadd.f32 0.0, %v3596
        %v3598 = vpop.f32.mrf.mxu0
        %3599 = vmatprep.mubr.f32.mxu0 0.0
        %3600 = vmatmul.mubr.f32.gmra.mxu0 %v3354
        %v3601 = vpop.f32.mrf.mxu0
        %v3602 = vadd.f32 0.0, %v3601
        %v3603 = vpop.f32.mrf.mxu0
        %3604 = vmatprep.mubr.f32.mxu0 0.0
        %3605 = vmatmul.mubr.f32.gmra.mxu0 %v3355
        %v3606 = vpop.f32.mrf.mxu0
        %v3607 = vadd.f32 0.0, %v3606
        %v3608 = vpop.f32.mrf.mxu0
        %3609 = vmatprep.mubr.f32.mxu0 0.0
        %3610 = vmatmul.mubr.f32.gmra.mxu0 %v3356
        %v3611 = vpop.f32.mrf.mxu0
        %v3612 = vadd.f32 0.0, %v3611
        %v3613 = vpop.f32.mrf.mxu0
        %3614 = vmatprep.mubr.f32.mxu0 0.0
        %3615 = vmatmul.mubr.f32.gmra.mxu0 %v3357
        %v3616 = vpop.f32.mrf.mxu0
        %v3617 = vadd.f32 0.0, %v3616
        %v3618 = vpop.f32.mrf.mxu0
        %3619 = vmatprep.mubr.f32.mxu0 0.0
        %3620 = vmatmul.mubr.f32.gmra.mxu0 %v3358
        %v3621 = vpop.f32.mrf.mxu0
        %v3622 = vadd.f32 0.0, %v3621
        %v3623 = vpop.f32.mrf.mxu0
        %3624 = vmatprep.mubr.f32.mxu0 0.0
        %3625 = vmatmul.mubr.f32.gmra.mxu0 %v3359
        %v3626 = vpop.f32.mrf.mxu0
        %v3627 = vadd.f32 0.0, %v3626
        %v3628 = vpop.f32.mrf.mxu0
        %3629 = vmatprep.mubr.f32.mxu0 0.0
        %3630 = vmatmul.mubr.f32.gmra.mxu0 %v3360
        %v3631 = vpop.f32.mrf.mxu0
        %v3632 = vadd.f32 0.0, %v3631
        %v3633 = vpop.f32.mrf.mxu0
        %3634 = vdwg.mxu0
        %v3635 = vadd.f32 %v3361, %v3477
        %v3636 = vadd.f32 %v3362, %v3482
        %v3637 = vadd.f32 %v3363, %v3487
        %v3638 = vadd.f32 %v3364, %v3492
        %v3639 = vadd.f32 %v3365, %v3497
        %v3640 = vadd.f32 %v3366, %v3502
        %v3641 = vadd.f32 %v3367, %v3507
        %v3642 = vadd.f32 %v3368, %v3512
        %v3643 = vadd.f32 %v3369, %v3517
        %v3644 = vadd.f32 %v3370, %v3522
        %v3645 = vadd.f32 %v3371, %v3527
        %v3646 = vadd.f32 %v3372, %v3532
        %v3647 = vadd.f32 %v3373, %v3537
        %v3648 = vadd.f32 %v3374, %v3542
        %v3649 = vadd.f32 %v3375, %v3547
        %v3650 = vadd.f32 %v3376, %v3552
        %v3651 = vadd.f32 %v3377, %v3557
        %v3652 = vadd.f32 %v3378, %v3562
        %v3653 = vadd.f32 %v3379, %v3567
        %v3654 = vadd.f32 %v3380, %v3572
        %v3655 = vadd.f32 %v3381, %v3577
        %v3656 = vadd.f32 %v3382, %v3582
        %v3657 = vadd.f32 %v3383, %v3587
        %v3658 = vadd.f32 %v3384, %v3592
        %v3659 = vadd.f32 %v3385, %v3597
        %v3660 = vadd.f32 %v3386, %v3602
        %v3661 = vadd.f32 %v3387, %v3607
        %v3662 = vadd.f32 %v3388, %v3612
        %v3663 = vadd.f32 %v3389, %v3617
        %v3664 = vadd.f32 %v3390, %v3622
        %v3665 = vadd.f32 %v3391, %v3627
        %v3666 = vadd.f32 %v3392, %v3632
        %3667 = vst [vmem:[#allocation3] sm:$0xff] %v3635
        %3668 = vst [vmem:[#allocation3 + $0x8] sm:$0xff] %v3636
        %3669 = vst [vmem:[#allocation3 + $0x10] sm:$0xff] %v3637
        %3670 = vst [vmem:[#allocation3 + $0x18] sm:$0xff] %v3638
        %3671 = vst [vmem:[#allocation3 + $0x20] sm:$0xff] %v3639
        %3672 = vst [vmem:[#allocation3 + $0x28] sm:$0xff] %v3640
        %3673 = vst [vmem:[#allocation3 + $0x30] sm:$0xff] %v3641
        %3674 = vst [vmem:[#allocation3 + $0x38] sm:$0xff] %v3642
        %3675 = vst [vmem:[#allocation3 + $0x40] sm:$0xff] %v3643
        %3676 = vst [vmem:[#allocation3 + $0x48] sm:$0xff] %v3644
        %3677 = vst [vmem:[#allocation3 + $0x50] sm:$0xff] %v3645
        %3678 = vst [vmem:[#allocation3 + $0x58] sm:$0xff] %v3646
        %3679 = vst [vmem:[#allocation3 + $0x60] sm:$0xff] %v3647
        %3680 = vst [vmem:[#allocation3 + $0x68] sm:$0xff] %v3648
        %3681 = vst [vmem:[#allocation3 + $0x70] sm:$0xff] %v3649
        %3682 = vst [vmem:[#allocation3 + $0x78] sm:$0xff] %v3650
        %3683 = vst [vmem:[#allocation3 + $0x80] sm:$0xff] %v3651
        %3684 = vst [vmem:[#allocation3 + $0x88] sm:$0xff] %v3652
        %3685 = vst [vmem:[#allocation3 + $0x90] sm:$0xff] %v3653
        %3686 = vst [vmem:[#allocation3 + $0x98] sm:$0xff] %v3654
        %3687 = vst [vmem:[#allocation3 + $0xa0] sm:$0xff] %v3655
        %3688 = vst [vmem:[#allocation3 + $0xa8] sm:$0xff] %v3656
        %3689 = vst [vmem:[#allocation3 + $0xb0] sm:$0xff] %v3657
        %3690 = vst [vmem:[#allocation3 + $0xb8] sm:$0xff] %v3658
        %3691 = vst [vmem:[#allocation3 + $0xc0] sm:$0xff] %v3659
        %3692 = vst [vmem:[#allocation3 + $0xc8] sm:$0xff] %v3660
        %3693 = vst [vmem:[#allocation3 + $0xd0] sm:$0xff] %v3661
        %3694 = vst [vmem:[#allocation3 + $0xd8] sm:$0xff] %v3662
        %3695 = vst [vmem:[#allocation3 + $0xe0] sm:$0xff] %v3663
        %3696 = vst [vmem:[#allocation3 + $0xe8] sm:$0xff] %v3664
        %3697 = vst [vmem:[#allocation3 + $0xf0] sm:$0xff] %v3665
        %3698 = vst [vmem:[#allocation3 + $0xf8] sm:$0xff] %v3666
        %v3699 = vld [vmem:[#allocation3] sm:$0xff]
        %v3700 = vld [vmem:[#allocation3 + $0x8] sm:$0xff]
        %v3701 = vld [vmem:[#allocation3 + $0x10] sm:$0xff]
        %v3702 = vld [vmem:[#allocation3 + $0x18] sm:$0xff]
        %v3703 = vld [vmem:[#allocation3 + $0x20] sm:$0xff]
        %v3704 = vld [vmem:[#allocation3 + $0x28] sm:$0xff]
        %v3705 = vld [vmem:[#allocation3 + $0x30] sm:$0xff]
        %v3706 = vld [vmem:[#allocation3 + $0x38] sm:$0xff]
        %v3707 = vld [vmem:[#allocation3 + $0x40] sm:$0xff]
        %v3708 = vld [vmem:[#allocation3 + $0x48] sm:$0xff]
        %v3709 = vld [vmem:[#allocation3 + $0x50] sm:$0xff]
        %v3710 = vld [vmem:[#allocation3 + $0x58] sm:$0xff]
        %v3711 = vld [vmem:[#allocation3 + $0x60] sm:$0xff]
        %v3712 = vld [vmem:[#allocation3 + $0x68] sm:$0xff]
        %v3713 = vld [vmem:[#allocation3 + $0x70] sm:$0xff]
        %v3714 = vld [vmem:[#allocation3 + $0x78] sm:$0xff]
        %v3715 = vld [vmem:[#allocation3 + $0x80] sm:$0xff]
        %v3716 = vld [vmem:[#allocation3 + $0x88] sm:$0xff]
        %v3717 = vld [vmem:[#allocation3 + $0x90] sm:$0xff]
        %v3718 = vld [vmem:[#allocation3 + $0x98] sm:$0xff]
        %v3719 = vld [vmem:[#allocation3 + $0xa0] sm:$0xff]
        %v3720 = vld [vmem:[#allocation3 + $0xa8] sm:$0xff]
        %v3721 = vld [vmem:[#allocation3 + $0xb0] sm:$0xff]
        %v3722 = vld [vmem:[#allocation3 + $0xb8] sm:$0xff]
        %v3723 = vld [vmem:[#allocation3 + $0xc0] sm:$0xff]
        %v3724 = vld [vmem:[#allocation3 + $0xc8] sm:$0xff]
        %v3725 = vld [vmem:[#allocation3 + $0xd0] sm:$0xff]
        %v3726 = vld [vmem:[#allocation3 + $0xd8] sm:$0xff]
        %v3727 = vld [vmem:[#allocation3 + $0xe0] sm:$0xff]
        %v3728 = vld [vmem:[#allocation3 + $0xe8] sm:$0xff]
        %v3729 = vld [vmem:[#allocation3 + $0xf0] sm:$0xff]
        %v3730 = vld [vmem:[#allocation3 + $0xf8] sm:$0xff]
        %v3731 = vld [vmem:[#allocation9] sm:$0x1]
        %v3733 = vlaneseq
        %v3734 = vshrl.u32 %v3733, 7
        %v3735 = vsub.s32 0, %v3734
        %v3736 = vrot.slane %v3731, %v3735
        %v3738 = vadd.f32 %v3699, %v3736
        %v3739 = vadd.f32 %v3700, %v3736
        %v3740 = vadd.f32 %v3701, %v3736
        %v3741 = vadd.f32 %v3702, %v3736
        %v3742 = vadd.f32 %v3703, %v3736
        %v3743 = vadd.f32 %v3704, %v3736
        %v3744 = vadd.f32 %v3705, %v3736
        %v3745 = vadd.f32 %v3706, %v3736
        %v3746 = vadd.f32 %v3707, %v3736
        %v3747 = vadd.f32 %v3708, %v3736
        %v3748 = vadd.f32 %v3709, %v3736
        %v3749 = vadd.f32 %v3710, %v3736
        %v3750 = vadd.f32 %v3711, %v3736
        %v3751 = vadd.f32 %v3712, %v3736
        %v3752 = vadd.f32 %v3713, %v3736
        %v3753 = vadd.f32 %v3714, %v3736
        %v3754 = vadd.f32 %v3715, %v3736
        %v3755 = vadd.f32 %v3716, %v3736
        %v3756 = vadd.f32 %v3717, %v3736
        %v3757 = vadd.f32 %v3718, %v3736
        %v3758 = vadd.f32 %v3719, %v3736
        %v3759 = vadd.f32 %v3720, %v3736
        %v3760 = vadd.f32 %v3721, %v3736
        %v3761 = vadd.f32 %v3722, %v3736
        %v3762 = vadd.f32 %v3723, %v3736
        %v3763 = vadd.f32 %v3724, %v3736
        %v3764 = vadd.f32 %v3725, %v3736
        %v3765 = vadd.f32 %v3726, %v3736
        %v3766 = vadd.f32 %v3727, %v3736
        %v3767 = vadd.f32 %v3728, %v3736
        %v3768 = vadd.f32 %v3729, %v3736
        %v3769 = vadd.f32 %v3730, %v3736
        %v3770 = vxor.u32 %v3738, 2147483648
        %v3771 = vxor.u32 %v3739, 2147483648
        %v3772 = vxor.u32 %v3740, 2147483648
        %v3773 = vxor.u32 %v3741, 2147483648
        %v3774 = vxor.u32 %v3742, 2147483648
        %v3775 = vxor.u32 %v3743, 2147483648
        %v3776 = vxor.u32 %v3744, 2147483648
        %v3777 = vxor.u32 %v3745, 2147483648
        %v3778 = vxor.u32 %v3746, 2147483648
        %v3779 = vxor.u32 %v3747, 2147483648
        %v3780 = vxor.u32 %v3748, 2147483648
        %v3781 = vxor.u32 %v3749, 2147483648
        %v3782 = vxor.u32 %v3750, 2147483648
        %v3783 = vxor.u32 %v3751, 2147483648
        %v3784 = vxor.u32 %v3752, 2147483648
        %v3785 = vxor.u32 %v3753, 2147483648
        %v3786 = vxor.u32 %v3754, 2147483648
        %v3787 = vxor.u32 %v3755, 2147483648
        %v3788 = vxor.u32 %v3756, 2147483648
        %v3789 = vxor.u32 %v3757, 2147483648
        %v3790 = vxor.u32 %v3758, 2147483648
        %v3791 = vxor.u32 %v3759, 2147483648
        %v3792 = vxor.u32 %v3760, 2147483648
        %v3793 = vxor.u32 %v3761, 2147483648
        %v3794 = vxor.u32 %v3762, 2147483648
        %v3795 = vxor.u32 %v3763, 2147483648
        %v3796 = vxor.u32 %v3764, 2147483648
        %v3797 = vxor.u32 %v3765, 2147483648
        %v3798 = vxor.u32 %v3766, 2147483648
        %v3799 = vxor.u32 %v3767, 2147483648
        %v3800 = vxor.u32 %v3768, 2147483648
        %v3801 = vxor.u32 %v3769, 2147483648
        %v3802 = vmul.f32 %v3770, 1.442695
        %v3803 = vpow.pop %v3802
        %v3804 = vmul.f32 %v3771, 1.442695
        %v3805 = vpow.pop %v3804
        %v3806 = vmul.f32 %v3772, 1.442695
        %v3807 = vpow.pop %v3806
        %v3808 = vmul.f32 %v3773, 1.442695
        %v3809 = vpow.pop %v3808
        %v3810 = vmul.f32 %v3774, 1.442695
        %v3811 = vpow.pop %v3810
        %v3812 = vmul.f32 %v3775, 1.442695
        %v3813 = vpow.pop %v3812
        %v3814 = vmul.f32 %v3776, 1.442695
        %v3815 = vpow.pop %v3814
        %v3816 = vmul.f32 %v3777, 1.442695
        %v3817 = vpow.pop %v3816
        %v3818 = vmul.f32 %v3778, 1.442695
        %v3819 = vpow.pop %v3818
        %v3820 = vmul.f32 %v3779, 1.442695
        %v3821 = vpow.pop %v3820
        %v3822 = vmul.f32 %v3780, 1.442695
        %v3823 = vpow.pop %v3822
        %v3824 = vmul.f32 %v3781, 1.442695
        %v3825 = vpow.pop %v3824
        %v3826 = vmul.f32 %v3782, 1.442695
        %v3827 = vpow.pop %v3826
        %v3828 = vmul.f32 %v3783, 1.442695
        %v3829 = vpow.pop %v3828
        %v3830 = vmul.f32 %v3784, 1.442695
        %v3831 = vpow.pop %v3830
        %v3832 = vmul.f32 %v3785, 1.442695
        %v3833 = vpow.pop %v3832
        %v3834 = vmul.f32 %v3786, 1.442695
        %v3835 = vpow.pop %v3834
        %v3836 = vmul.f32 %v3787, 1.442695
        %v3837 = vpow.pop %v3836
        %v3838 = vmul.f32 %v3788, 1.442695
        %v3839 = vpow.pop %v3838
        %v3840 = vmul.f32 %v3789, 1.442695
        %v3841 = vpow.pop %v3840
        %v3842 = vmul.f32 %v3790, 1.442695
        %v3843 = vpow.pop %v3842
        %v3844 = vmul.f32 %v3791, 1.442695
        %v3845 = vpow.pop %v3844
        %v3846 = vmul.f32 %v3792, 1.442695
        %v3847 = vpow.pop %v3846
        %v3848 = vmul.f32 %v3793, 1.442695
        %v3849 = vpow.pop %v3848
        %v3850 = vmul.f32 %v3794, 1.442695
        %v3851 = vpow.pop %v3850
        %v3852 = vmul.f32 %v3795, 1.442695
        %v3853 = vpow.pop %v3852
        %v3854 = vmul.f32 %v3796, 1.442695
        %v3855 = vpow.pop %v3854
        %v3856 = vmul.f32 %v3797, 1.442695
        %v3857 = vpow.pop %v3856
        %v3858 = vmul.f32 %v3798, 1.442695
        %v3859 = vpow.pop %v3858
        %v3860 = vmul.f32 %v3799, 1.442695
        %v3861 = vpow.pop %v3860
        %v3862 = vmul.f32 %v3800, 1.442695
        %v3863 = vpow.pop %v3862
        %v3864 = vmul.f32 %v3801, 1.442695
        %v3865 = vpow.pop %v3864
        %v3866 = vadd.f32 %v3803, 1.0
        %v3867 = vadd.f32 %v3805, 1.0
        %v3868 = vadd.f32 %v3807, 1.0
        %v3869 = vadd.f32 %v3809, 1.0
        %v3870 = vadd.f32 %v3811, 1.0
        %v3871 = vadd.f32 %v3813, 1.0
        %v3872 = vadd.f32 %v3815, 1.0
        %v3873 = vadd.f32 %v3817, 1.0
        %v3874 = vadd.f32 %v3819, 1.0
        %v3875 = vadd.f32 %v3821, 1.0
        %v3876 = vadd.f32 %v3823, 1.0
        %v3877 = vadd.f32 %v3825, 1.0
        %v3878 = vadd.f32 %v3827, 1.0
        %v3879 = vadd.f32 %v3829, 1.0
        %v3880 = vadd.f32 %v3831, 1.0
        %v3881 = vadd.f32 %v3833, 1.0
        %v3882 = vadd.f32 %v3835, 1.0
        %v3883 = vadd.f32 %v3837, 1.0
        %v3884 = vadd.f32 %v3839, 1.0
        %v3885 = vadd.f32 %v3841, 1.0
        %v3886 = vadd.f32 %v3843, 1.0
        %v3887 = vadd.f32 %v3845, 1.0
        %v3888 = vadd.f32 %v3847, 1.0
        %v3889 = vadd.f32 %v3849, 1.0
        %v3890 = vadd.f32 %v3851, 1.0
        %v3891 = vadd.f32 %v3853, 1.0
        %v3892 = vadd.f32 %v3855, 1.0
        %v3893 = vadd.f32 %v3857, 1.0
        %v3894 = vadd.f32 %v3859, 1.0
        %v3895 = vadd.f32 %v3861, 1.0
        %v3896 = vadd.f32 %v3863, 1.0
        %v3897 = vadd.f32 %v3865, 1.0
        %v3898 = vrcp.pop %v3866
        %v3899 = vmul.f32 1.0, %v3898
        %v3900 = vrcp.pop %v3867
        %v3901 = vmul.f32 1.0, %v3900
        %v3902 = vrcp.pop %v3868
        %v3903 = vmul.f32 1.0, %v3902
        %v3904 = vrcp.pop %v3869
        %v3905 = vmul.f32 1.0, %v3904
        %v3906 = vrcp.pop %v3870
        %v3907 = vmul.f32 1.0, %v3906
        %v3908 = vrcp.pop %v3871
        %v3909 = vmul.f32 1.0, %v3908
        %v3910 = vrcp.pop %v3872
        %v3911 = vmul.f32 1.0, %v3910
        %v3912 = vrcp.pop %v3873
        %v3913 = vmul.f32 1.0, %v3912
        %v3914 = vrcp.pop %v3874
        %v3915 = vmul.f32 1.0, %v3914
        %v3916 = vrcp.pop %v3875
        %v3917 = vmul.f32 1.0, %v3916
        %v3918 = vrcp.pop %v3876
        %v3919 = vmul.f32 1.0, %v3918
        %v3920 = vrcp.pop %v3877
        %v3921 = vmul.f32 1.0, %v3920
        %v3922 = vrcp.pop %v3878
        %v3923 = vmul.f32 1.0, %v3922
        %v3924 = vrcp.pop %v3879
        %v3925 = vmul.f32 1.0, %v3924
        %v3926 = vrcp.pop %v3880
        %v3927 = vmul.f32 1.0, %v3926
        %v3928 = vrcp.pop %v3881
        %v3929 = vmul.f32 1.0, %v3928
        %v3930 = vrcp.pop %v3882
        %v3931 = vmul.f32 1.0, %v3930
        %v3932 = vrcp.pop %v3883
        %v3933 = vmul.f32 1.0, %v3932
        %v3934 = vrcp.pop %v3884
        %v3935 = vmul.f32 1.0, %v3934
        %v3936 = vrcp.pop %v3885
        %v3937 = vmul.f32 1.0, %v3936
        %v3938 = vrcp.pop %v3886
        %v3939 = vmul.f32 1.0, %v3938
        %v3940 = vrcp.pop %v3887
        %v3941 = vmul.f32 1.0, %v3940
        %v3942 = vrcp.pop %v3888
        %v3943 = vmul.f32 1.0, %v3942
        %v3944 = vrcp.pop %v3889
        %v3945 = vmul.f32 1.0, %v3944
        %v3946 = vrcp.pop %v3890
        %v3947 = vmul.f32 1.0, %v3946
        %v3948 = vrcp.pop %v3891
        %v3949 = vmul.f32 1.0, %v3948
        %v3950 = vrcp.pop %v3892
        %v3951 = vmul.f32 1.0, %v3950
        %v3952 = vrcp.pop %v3893
        %v3953 = vmul.f32 1.0, %v3952
        %v3954 = vrcp.pop %v3894
        %v3955 = vmul.f32 1.0, %v3954
        %v3956 = vrcp.pop %v3895
        %v3957 = vmul.f32 1.0, %v3956
        %v3958 = vrcp.pop %v3896
        %v3959 = vmul.f32 1.0, %v3958
        %v3960 = vrcp.pop %v3897
        %v3961 = vmul.f32 1.0, %v3960
        %v3962 = vmul.f32 %v3738, %v3899
        %v3963 = vmul.f32 %v3739, %v3901
        %v3964 = vmul.f32 %v3740, %v3903
        %v3965 = vmul.f32 %v3741, %v3905
        %v3966 = vmul.f32 %v3742, %v3907
        %v3967 = vmul.f32 %v3743, %v3909
        %v3968 = vmul.f32 %v3744, %v3911
        %v3969 = vmul.f32 %v3745, %v3913
        %v3970 = vmul.f32 %v3746, %v3915
        %v3971 = vmul.f32 %v3747, %v3917
        %v3972 = vmul.f32 %v3748, %v3919
        %v3973 = vmul.f32 %v3749, %v3921
        %v3974 = vmul.f32 %v3750, %v3923
        %v3975 = vmul.f32 %v3751, %v3925
        %v3976 = vmul.f32 %v3752, %v3927
        %v3977 = vmul.f32 %v3753, %v3929
        %v3978 = vmul.f32 %v3754, %v3931
        %v3979 = vmul.f32 %v3755, %v3933
        %v3980 = vmul.f32 %v3756, %v3935
        %v3981 = vmul.f32 %v3757, %v3937
        %v3982 = vmul.f32 %v3758, %v3939
        %v3983 = vmul.f32 %v3759, %v3941
        %v3984 = vmul.f32 %v3760, %v3943
        %v3985 = vmul.f32 %v3761, %v3945
        %v3986 = vmul.f32 %v3762, %v3947
        %v3987 = vmul.f32 %v3763, %v3949
        %v3988 = vmul.f32 %v3764, %v3951
        %v3989 = vmul.f32 %v3765, %v3953
        %v3990 = vmul.f32 %v3766, %v3955
        %v3991 = vmul.f32 %v3767, %v3957
        %v3992 = vmul.f32 %v3768, %v3959
        %v3993 = vmul.f32 %v3769, %v3961
        %3994 = vst [vmem:[%s304 + $0x1] sm:$0xff] %v3962
        %3995 = vst [vmem:[%s304 + $0x9] sm:$0xff] %v3963
        %3996 = vst [vmem:[%s304 + $0x19] sm:$0xff] %v3964
        %3997 = vst [vmem:[%s304 + $0x21] sm:$0xff] %v3965
        %3998 = vst [vmem:[%s304 + $0x31] sm:$0xff] %v3966
        %3999 = vst [vmem:[%s304 + $0x39] sm:$0xff] %v3967
        %4000 = vst [vmem:[%s304 + $0x49] sm:$0xff] %v3968
        %4001 = vst [vmem:[%s304 + $0x51] sm:$0xff] %v3969
        %4002 = vst [vmem:[%s304 + $0x61] sm:$0xff] %v3970
        %4003 = vst [vmem:[%s304 + $0x69] sm:$0xff] %v3971
        %4004 = vst [vmem:[%s304 + $0x79] sm:$0xff] %v3972
        %4005 = vst [vmem:[%s304 + $0x81] sm:$0xff] %v3973
        %4006 = vst [vmem:[%s304 + $0x91] sm:$0xff] %v3974
        %4007 = vst [vmem:[%s304 + $0x99] sm:$0xff] %v3975
        %4008 = vst [vmem:[%s304 + $0xa9] sm:$0xff] %v3976
        %4009 = vst [vmem:[%s304 + $0xb1] sm:$0xff] %v3977
        %4010 = vst [vmem:[%s304 + $0xc1] sm:$0xff] %v3978
        %4011 = vst [vmem:[%s304 + $0xc9] sm:$0xff] %v3979
        %4012 = vst [vmem:[%s304 + $0xd9] sm:$0xff] %v3980
        %4013 = vst [vmem:[%s304 + $0xe1] sm:$0xff] %v3981
        %4014 = vst [vmem:[%s304 + $0xf1] sm:$0xff] %v3982
        %4015 = vst [vmem:[%s304 + $0xf9] sm:$0xff] %v3983
        %4016 = vst [vmem:[%s304 + $0x109] sm:$0xff] %v3984
        %4017 = vst [vmem:[%s304 + $0x111] sm:$0xff] %v3985
        %4018 = vst [vmem:[%s304 + $0x121] sm:$0xff] %v3986
        %4019 = vst [vmem:[%s304 + $0x129] sm:$0xff] %v3987
        %4020 = vst [vmem:[%s304 + $0x139] sm:$0xff] %v3988
        %4021 = vst [vmem:[%s304 + $0x141] sm:$0xff] %v3989
        %4022 = vst [vmem:[%s304 + $0x151] sm:$0xff] %v3990
        %4023 = vst [vmem:[%s304 + $0x159] sm:$0xff] %v3991
        %4024 = vst [vmem:[%s304 + $0x169] sm:$0xff] %v3992
        %4025 = vst [vmem:[%s304 + $0x171] sm:$0xff] %v3993
        %4026 = vst [vmem:[#allocation3] sm:$0xff] 0.0
        %4027 = vst [vmem:[#allocation3 + $0x8] sm:$0xff] 0.0
        %4028 = vst [vmem:[#allocation3 + $0x10] sm:$0xff] 0.0
        %4029 = vst [vmem:[#allocation3 + $0x18] sm:$0xff] 0.0
        %4030 = vst [vmem:[#allocation3 + $0x20] sm:$0xff] 0.0
        %4031 = vst [vmem:[#allocation3 + $0x28] sm:$0xff] 0.0
        %4032 = vst [vmem:[#allocation3 + $0x30] sm:$0xff] 0.0
        %4033 = vst [vmem:[#allocation3 + $0x38] sm:$0xff] 0.0
        %4034 = vst [vmem:[#allocation3 + $0x40] sm:$0xff] 0.0
        %4035 = vst [vmem:[#allocation3 + $0x48] sm:$0xff] 0.0
        %4036 = vst [vmem:[#allocation3 + $0x50] sm:$0xff] 0.0
        %4037 = vst [vmem:[#allocation3 + $0x58] sm:$0xff] 0.0
        %4038 = vst [vmem:[#allocation3 + $0x60] sm:$0xff] 0.0
        %4039 = vst [vmem:[#allocation3 + $0x68] sm:$0xff] 0.0
        %4040 = vst [vmem:[#allocation3 + $0x70] sm:$0xff] 0.0
        %4041 = vst [vmem:[#allocation3 + $0x78] sm:$0xff] 0.0
        %4042 = vst [vmem:[#allocation3 + $0x80] sm:$0xff] 0.0
        %4043 = vst [vmem:[#allocation3 + $0x88] sm:$0xff] 0.0
        %4044 = vst [vmem:[#allocation3 + $0x90] sm:$0xff] 0.0
        %4045 = vst [vmem:[#allocation3 + $0x98] sm:$0xff] 0.0
        %4046 = vst [vmem:[#allocation3 + $0xa0] sm:$0xff] 0.0
        %4047 = vst [vmem:[#allocation3 + $0xa8] sm:$0xff] 0.0
        %4048 = vst [vmem:[#allocation3 + $0xb0] sm:$0xff] 0.0
        %4049 = vst [vmem:[#allocation3 + $0xb8] sm:$0xff] 0.0
        %4050 = vst [vmem:[#allocation3 + $0xc0] sm:$0xff] 0.0
        %4051 = vst [vmem:[#allocation3 + $0xc8] sm:$0xff] 0.0
        %4052 = vst [vmem:[#allocation3 + $0xd0] sm:$0xff] 0.0
        %4053 = vst [vmem:[#allocation3 + $0xd8] sm:$0xff] 0.0
        %4054 = vst [vmem:[#allocation3 + $0xe0] sm:$0xff] 0.0
        %4055 = vst [vmem:[#allocation3 + $0xe8] sm:$0xff] 0.0
        %4056 = vst [vmem:[#allocation3 + $0xf0] sm:$0xff] 0.0
        %4057 = vst [vmem:[#allocation3 + $0xf8] sm:$0xff] 0.0
        %v4058 = vld [vmem:[#allocation2] sm:$0xff]
        %v4059 = vld [vmem:[#allocation2 + $0x8] sm:$0xff]
        %v4060 = vld [vmem:[#allocation2 + $0x18] sm:$0xff]
        %v4061 = vld [vmem:[#allocation2 + $0x20] sm:$0xff]
        %v4062 = vld [vmem:[#allocation2 + $0x30] sm:$0xff]
        %v4063 = vld [vmem:[#allocation2 + $0x38] sm:$0xff]
        %v4064 = vld [vmem:[#allocation2 + $0x48] sm:$0xff]
        %v4065 = vld [vmem:[#allocation2 + $0x50] sm:$0xff]
        %v4066 = vld [vmem:[#allocation2 + $0x60] sm:$0xff]
        %v4067 = vld [vmem:[#allocation2 + $0x68] sm:$0xff]
        %v4068 = vld [vmem:[#allocation2 + $0x78] sm:$0xff]
        %v4069 = vld [vmem:[#allocation2 + $0x80] sm:$0xff]
        %v4070 = vld [vmem:[#allocation2 + $0x90] sm:$0xff]
        %v4071 = vld [vmem:[#allocation2 + $0x98] sm:$0xff]
        %v4072 = vld [vmem:[#allocation2 + $0xa8] sm:$0xff]
        %v4073 = vld [vmem:[#allocation2 + $0xb0] sm:$0xff]
        %v4074 = vld [vmem:[#allocation2 + $0xc0] sm:$0xff]
        %v4075 = vld [vmem:[#allocation2 + $0xc8] sm:$0xff]
        %v4076 = vld [vmem:[#allocation2 + $0xd8] sm:$0xff]
        %v4077 = vld [vmem:[#allocation2 + $0xe0] sm:$0xff]
        %v4078 = vld [vmem:[#allocation2 + $0xf0] sm:$0xff]
        %v4079 = vld [vmem:[#allocation2 + $0xf8] sm:$0xff]
        %v4080 = vld [vmem:[#allocation2 + $0x108] sm:$0xff]
        %v4081 = vld [vmem:[#allocation2 + $0x110] sm:$0xff]
        %v4082 = vld [vmem:[#allocation2 + $0x120] sm:$0xff]
        %v4083 = vld [vmem:[#allocation2 + $0x128] sm:$0xff]
        %v4084 = vld [vmem:[#allocation2 + $0x138] sm:$0xff]
        %v4085 = vld [vmem:[#allocation2 + $0x140] sm:$0xff]
        %v4086 = vld [vmem:[#allocation2 + $0x150] sm:$0xff]
        %v4087 = vld [vmem:[#allocation2 + $0x158] sm:$0xff]
        %v4088 = vld [vmem:[#allocation2 + $0x168] sm:$0xff]
        %v4089 = vld [vmem:[#allocation2 + $0x170] sm:$0xff]
        %v4090 = vld [vmem:[#allocation3] sm:$0xff]
        %v4091 = vld [vmem:[#allocation3 + $0x8] sm:$0xff]
        %v4092 = vld [vmem:[#allocation3 + $0x10] sm:$0xff]
        %v4093 = vld [vmem:[#allocation3 + $0x18] sm:$0xff]
        %v4094 = vld [vmem:[#allocation3 + $0x20] sm:$0xff]
        %v4095 = vld [vmem:[#allocation3 + $0x28] sm:$0xff]
        %v4096 = vld [vmem:[#allocation3 + $0x30] sm:$0xff]
        %v4097 = vld [vmem:[#allocation3 + $0x38] sm:$0xff]
        %v4098 = vld [vmem:[#allocation3 + $0x40] sm:$0xff]
        %v4099 = vld [vmem:[#allocation3 + $0x48] sm:$0xff]
        %v4100 = vld [vmem:[#allocation3 + $0x50] sm:$0xff]
        %v4101 = vld [vmem:[#allocation3 + $0x58] sm:$0xff]
        %v4102 = vld [vmem:[#allocation3 + $0x60] sm:$0xff]
        %v4103 = vld [vmem:[#allocation3 + $0x68] sm:$0xff]
        %v4104 = vld [vmem:[#allocation3 + $0x70] sm:$0xff]
        %v4105 = vld [vmem:[#allocation3 + $0x78] sm:$0xff]
        %v4106 = vld [vmem:[#allocation3 + $0x80] sm:$0xff]
        %v4107 = vld [vmem:[#allocation3 + $0x88] sm:$0xff]
        %v4108 = vld [vmem:[#allocation3 + $0x90] sm:$0xff]
        %v4109 = vld [vmem:[#allocation3 + $0x98] sm:$0xff]
        %v4110 = vld [vmem:[#allocation3 + $0xa0] sm:$0xff]
        %v4111 = vld [vmem:[#allocation3 + $0xa8] sm:$0xff]
        %v4112 = vld [vmem:[#allocation3 + $0xb0] sm:$0xff]
        %v4113 = vld [vmem:[#allocation3 + $0xb8] sm:$0xff]
        %v4114 = vld [vmem:[#allocation3 + $0xc0] sm:$0xff]
        %v4115 = vld [vmem:[#allocation3 + $0xc8] sm:$0xff]
        %v4116 = vld [vmem:[#allocation3 + $0xd0] sm:$0xff]
        %v4117 = vld [vmem:[#allocation3 + $0xd8] sm:$0xff]
        %v4118 = vld [vmem:[#allocation3 + $0xe0] sm:$0xff]
        %v4119 = vld [vmem:[#allocation3 + $0xe8] sm:$0xff]
        %v4120 = vld [vmem:[#allocation3 + $0xf0] sm:$0xff]
        %v4121 = vld [vmem:[#allocation3 + $0xf8] sm:$0xff]
        %s4122 = scalar_lea.vmem [#allocation7], 1152
        %v4123 = vld [vmem:[%s4122] sm:$0xff]
        %v4124 = vld [vmem:[%s4122 + $0x8] sm:$0xff]
        %v4125 = vld [vmem:[%s4122 + $0x10] sm:$0xff]
        %v4126 = vld [vmem:[%s4122 + $0x18] sm:$0xff]
        %v4127 = vld [vmem:[%s4122 + $0x20] sm:$0xff]
        %v4128 = vld [vmem:[%s4122 + $0x28] sm:$0xff]
        %v4129 = vld [vmem:[%s4122 + $0x30] sm:$0xff]
        %v4130 = vld [vmem:[%s4122 + $0x38] sm:$0xff]
        %v4131 = vld [vmem:[%s4122 + $0x40] sm:$0xff]
        %v4132 = vld [vmem:[%s4122 + $0x48] sm:$0xff]
        %v4133 = vld [vmem:[%s4122 + $0x50] sm:$0xff]
        %v4134 = vld [vmem:[%s4122 + $0x58] sm:$0xff]
        %v4135 = vld [vmem:[%s4122 + $0x60] sm:$0xff]
        %v4136 = vld [vmem:[%s4122 + $0x68] sm:$0xff]
        %v4137 = vld [vmem:[%s4122 + $0x70] sm:$0xff]
        %v4138 = vld [vmem:[%s4122 + $0x78] sm:$0xff]
        %4139 = vmatprep.subr.mxu0 0.0
        %4140 = vmatpush1.msra.mxu0 %v4138
        %4141 = vmatprep.subr.mxu0 0.0
        %4142 = vmatpush1.msra.mxu0 %v4137
        %4143 = vmatprep.subr.mxu0 0.0
        %4144 = vmatpush1.msra.mxu0 %v4136
        %4145 = vmatprep.subr.mxu0 0.0
        %4146 = vmatpush1.msra.mxu0 %v4135
        %4147 = vmatprep.subr.mxu0 0.0
        %4148 = vmatpush1.msra.mxu0 %v4134
        %4149 = vmatprep.subr.mxu0 0.0
        %4150 = vmatpush1.msra.mxu0 %v4133
        %4151 = vmatprep.subr.mxu0 0.0
        %4152 = vmatpush1.msra.mxu0 %v4132
        %4153 = vmatprep.subr.mxu0 0.0
        %4154 = vmatpush1.msra.mxu0 %v4131
        %4155 = vmatprep.subr.mxu0 0.0
        %4156 = vmatpush1.msra.mxu0 %v4130
        %4157 = vmatprep.subr.mxu0 0.0
        %4158 = vmatpush1.msra.mxu0 %v4129
        %4159 = vmatprep.subr.mxu0 0.0
        %4160 = vmatpush1.msra.mxu0 %v4128
        %4161 = vmatprep.subr.mxu0 0.0
        %4162 = vmatpush1.msra.mxu0 %v4127
        %4163 = vmatprep.subr.mxu0 0.0
        %4164 = vmatpush1.msra.mxu0 %v4126
        %4165 = vmatprep.subr.mxu0 0.0
        %4166 = vmatpush1.msra.mxu0 %v4125
        %4167 = vmatprep.subr.mxu0 0.0
        %4168 = vmatpush1.msra.mxu0 %v4124
        %4169 = vmatprep.subr.mxu0 0.0
        %4170 = vmatpush1.msra.mxu0 %v4123
        %4171 = vmatprep.subr.mxu0 0.0
        %4172 = vmatpush2.msra.mxu0 0.0
        %4173 = vmatprep.subr.mxu0 0.0
        %4174 = vmatpush2.msra.mxu0 0.0
        %4175 = vmatprep.subr.mxu0 0.0
        %4176 = vmatpush2.msra.mxu0 0.0
        %4177 = vmatprep.subr.mxu0 0.0
        %4178 = vmatpush2.msra.mxu0 0.0
        %4179 = vmatprep.subr.mxu0 0.0
        %4180 = vmatpush2.msra.mxu0 0.0
        %4181 = vmatprep.subr.mxu0 0.0
        %4182 = vmatpush2.msra.mxu0 0.0
        %4183 = vmatprep.subr.mxu0 0.0
        %4184 = vmatpush2.msra.mxu0 0.0
        %4185 = vmatprep.subr.mxu0 0.0
        %4186 = vmatpush2.msra.mxu0 0.0
        %4187 = vmatprep.subr.mxu0 0.0
        %4188 = vmatpush2.msra.mxu0 0.0
        %4189 = vmatprep.subr.mxu0 0.0
        %4190 = vmatpush2.msra.mxu0 0.0
        %4191 = vmatprep.subr.mxu0 0.0
        %4192 = vmatpush2.msra.mxu0 0.0
        %4193 = vmatprep.subr.mxu0 0.0
        %4194 = vmatpush2.msra.mxu0 0.0
        %4195 = vmatprep.subr.mxu0 0.0
        %4196 = vmatpush2.msra.mxu0 0.0
        %4197 = vmatprep.subr.mxu0 0.0
        %4198 = vmatpush2.msra.mxu0 0.0
        %4199 = vmatprep.subr.mxu0 0.0
        %4200 = vmatpush2.msra.mxu0 0.0
        %4201 = vmatprep.subr.mxu0 0.0
        %4202 = vmatpush2.msra.mxu0 0.0
        %4203 = vmatprep.mubr.f32.mxu0 0.0
        %4204 = vmatmul.mubr.f32.gmra.mxu0 %v4058
        %v4205 = vpop.f32.mrf.mxu0
        %v4206 = vadd.f32 0.0, %v4205
        %v4207 = vpop.f32.mrf.mxu0
        %4208 = vmatprep.mubr.f32.mxu0 0.0
        %4209 = vmatmul.mubr.f32.gmra.mxu0 %v4059
        %v4210 = vpop.f32.mrf.mxu0
        %v4211 = vadd.f32 0.0, %v4210
        %v4212 = vpop.f32.mrf.mxu0
        %4213 = vmatprep.mubr.f32.mxu0 0.0
        %4214 = vmatmul.mubr.f32.gmra.mxu0 %v4060
        %v4215 = vpop.f32.mrf.mxu0
        %v4216 = vadd.f32 0.0, %v4215
        %v4217 = vpop.f32.mrf.mxu0
        %4218 = vmatprep.mubr.f32.mxu0 0.0
        %4219 = vmatmul.mubr.f32.gmra.mxu0 %v4061
        %v4220 = vpop.f32.mrf.mxu0
        %v4221 = vadd.f32 0.0, %v4220
        %v4222 = vpop.f32.mrf.mxu0
        %4223 = vmatprep.mubr.f32.mxu0 0.0
        %4224 = vmatmul.mubr.f32.gmra.mxu0 %v4062
        %v4225 = vpop.f32.mrf.mxu0
        %v4226 = vadd.f32 0.0, %v4225
        %v4227 = vpop.f32.mrf.mxu0
        %4228 = vmatprep.mubr.f32.mxu0 0.0
        %4229 = vmatmul.mubr.f32.gmra.mxu0 %v4063
        %v4230 = vpop.f32.mrf.mxu0
        %v4231 = vadd.f32 0.0, %v4230
        %v4232 = vpop.f32.mrf.mxu0
        %4233 = vmatprep.mubr.f32.mxu0 0.0
        %4234 = vmatmul.mubr.f32.gmra.mxu0 %v4064
        %v4235 = vpop.f32.mrf.mxu0
        %v4236 = vadd.f32 0.0, %v4235
        %v4237 = vpop.f32.mrf.mxu0
        %4238 = vmatprep.mubr.f32.mxu0 0.0
        %4239 = vmatmul.mubr.f32.gmra.mxu0 %v4065
        %v4240 = vpop.f32.mrf.mxu0
        %v4241 = vadd.f32 0.0, %v4240
        %v4242 = vpop.f32.mrf.mxu0
        %4243 = vmatprep.mubr.f32.mxu0 0.0
        %4244 = vmatmul.mubr.f32.gmra.mxu0 %v4066
        %v4245 = vpop.f32.mrf.mxu0
        %v4246 = vadd.f32 0.0, %v4245
        %v4247 = vpop.f32.mrf.mxu0
        %4248 = vmatprep.mubr.f32.mxu0 0.0
        %4249 = vmatmul.mubr.f32.gmra.mxu0 %v4067
        %v4250 = vpop.f32.mrf.mxu0
        %v4251 = vadd.f32 0.0, %v4250
        %v4252 = vpop.f32.mrf.mxu0
        %4253 = vmatprep.mubr.f32.mxu0 0.0
        %4254 = vmatmul.mubr.f32.gmra.mxu0 %v4068
        %v4255 = vpop.f32.mrf.mxu0
        %v4256 = vadd.f32 0.0, %v4255
        %v4257 = vpop.f32.mrf.mxu0
        %4258 = vmatprep.mubr.f32.mxu0 0.0
        %4259 = vmatmul.mubr.f32.gmra.mxu0 %v4069
        %v4260 = vpop.f32.mrf.mxu0
        %v4261 = vadd.f32 0.0, %v4260
        %v4262 = vpop.f32.mrf.mxu0
        %4263 = vmatprep.mubr.f32.mxu0 0.0
        %4264 = vmatmul.mubr.f32.gmra.mxu0 %v4070
        %v4265 = vpop.f32.mrf.mxu0
        %v4266 = vadd.f32 0.0, %v4265
        %v4267 = vpop.f32.mrf.mxu0
        %4268 = vmatprep.mubr.f32.mxu0 0.0
        %4269 = vmatmul.mubr.f32.gmra.mxu0 %v4071
        %v4270 = vpop.f32.mrf.mxu0
        %v4271 = vadd.f32 0.0, %v4270
        %v4272 = vpop.f32.mrf.mxu0
        %4273 = vmatprep.mubr.f32.mxu0 0.0
        %4274 = vmatmul.mubr.f32.gmra.mxu0 %v4072
        %v4275 = vpop.f32.mrf.mxu0
        %v4276 = vadd.f32 0.0, %v4275
        %v4277 = vpop.f32.mrf.mxu0
        %4278 = vmatprep.mubr.f32.mxu0 0.0
        %4279 = vmatmul.mubr.f32.gmra.mxu0 %v4073
        %v4280 = vpop.f32.mrf.mxu0
        %v4281 = vadd.f32 0.0, %v4280
        %v4282 = vpop.f32.mrf.mxu0
        %4283 = vmatprep.mubr.f32.mxu0 0.0
        %4284 = vmatmul.mubr.f32.gmra.mxu0 %v4074
        %v4285 = vpop.f32.mrf.mxu0
        %v4286 = vadd.f32 0.0, %v4285
        %v4287 = vpop.f32.mrf.mxu0
        %4288 = vmatprep.mubr.f32.mxu0 0.0
        %4289 = vmatmul.mubr.f32.gmra.mxu0 %v4075
        %v4290 = vpop.f32.mrf.mxu0
        %v4291 = vadd.f32 0.0, %v4290
        %v4292 = vpop.f32.mrf.mxu0
        %4293 = vmatprep.mubr.f32.mxu0 0.0
        %4294 = vmatmul.mubr.f32.gmra.mxu0 %v4076
        %v4295 = vpop.f32.mrf.mxu0
        %v4296 = vadd.f32 0.0, %v4295
        %v4297 = vpop.f32.mrf.mxu0
        %4298 = vmatprep.mubr.f32.mxu0 0.0
        %4299 = vmatmul.mubr.f32.gmra.mxu0 %v4077
        %v4300 = vpop.f32.mrf.mxu0
        %v4301 = vadd.f32 0.0, %v4300
        %v4302 = vpop.f32.mrf.mxu0
        %4303 = vmatprep.mubr.f32.mxu0 0.0
        %4304 = vmatmul.mubr.f32.gmra.mxu0 %v4078
        %v4305 = vpop.f32.mrf.mxu0
        %v4306 = vadd.f32 0.0, %v4305
        %v4307 = vpop.f32.mrf.mxu0
        %4308 = vmatprep.mubr.f32.mxu0 0.0
        %4309 = vmatmul.mubr.f32.gmra.mxu0 %v4079
        %v4310 = vpop.f32.mrf.mxu0
        %v4311 = vadd.f32 0.0, %v4310
        %v4312 = vpop.f32.mrf.mxu0
        %4313 = vmatprep.mubr.f32.mxu0 0.0
        %4314 = vmatmul.mubr.f32.gmra.mxu0 %v4080
        %v4315 = vpop.f32.mrf.mxu0
        %v4316 = vadd.f32 0.0, %v4315
        %v4317 = vpop.f32.mrf.mxu0
        %4318 = vmatprep.mubr.f32.mxu0 0.0
        %4319 = vmatmul.mubr.f32.gmra.mxu0 %v4081
        %v4320 = vpop.f32.mrf.mxu0
        %v4321 = vadd.f32 0.0, %v4320
        %v4322 = vpop.f32.mrf.mxu0
        %4323 = vmatprep.mubr.f32.mxu0 0.0
        %4324 = vmatmul.mubr.f32.gmra.mxu0 %v4082
        %v4325 = vpop.f32.mrf.mxu0
        %v4326 = vadd.f32 0.0, %v4325
        %v4327 = vpop.f32.mrf.mxu0
        %4328 = vmatprep.mubr.f32.mxu0 0.0
        %4329 = vmatmul.mubr.f32.gmra.mxu0 %v4083
        %v4330 = vpop.f32.mrf.mxu0
        %v4331 = vadd.f32 0.0, %v4330
        %v4332 = vpop.f32.mrf.mxu0
        %4333 = vmatprep.mubr.f32.mxu0 0.0
        %4334 = vmatmul.mubr.f32.gmra.mxu0 %v4084
        %v4335 = vpop.f32.mrf.mxu0
        %v4336 = vadd.f32 0.0, %v4335
        %v4337 = vpop.f32.mrf.mxu0
        %4338 = vmatprep.mubr.f32.mxu0 0.0
        %4339 = vmatmul.mubr.f32.gmra.mxu0 %v4085
        %v4340 = vpop.f32.mrf.mxu0
        %v4341 = vadd.f32 0.0, %v4340
        %v4342 = vpop.f32.mrf.mxu0
        %4343 = vmatprep.mubr.f32.mxu0 0.0
        %4344 = vmatmul.mubr.f32.gmra.mxu0 %v4086
        %v4345 = vpop.f32.mrf.mxu0
        %v4346 = vadd.f32 0.0, %v4345
        %v4347 = vpop.f32.mrf.mxu0
        %4348 = vmatprep.mubr.f32.mxu0 0.0
        %4349 = vmatmul.mubr.f32.gmra.mxu0 %v4087
        %v4350 = vpop.f32.mrf.mxu0
        %v4351 = vadd.f32 0.0, %v4350
        %v4352 = vpop.f32.mrf.mxu0
        %4353 = vmatprep.mubr.f32.mxu0 0.0
        %4354 = vmatmul.mubr.f32.gmra.mxu0 %v4088
        %v4355 = vpop.f32.mrf.mxu0
        %v4356 = vadd.f32 0.0, %v4355
        %v4357 = vpop.f32.mrf.mxu0
        %4358 = vmatprep.mubr.f32.mxu0 0.0
        %4359 = vmatmul.mubr.f32.gmra.mxu0 %v4089
        %v4360 = vpop.f32.mrf.mxu0
        %v4361 = vadd.f32 0.0, %v4360
        %v4362 = vpop.f32.mrf.mxu0
        %4363 = vdwg.mxu0
        %v4364 = vadd.f32 %v4090, %v4206
        %v4365 = vadd.f32 %v4091, %v4211
        %v4366 = vadd.f32 %v4092, %v4216
        %v4367 = vadd.f32 %v4093, %v4221
        %v4368 = vadd.f32 %v4094, %v4226
        %v4369 = vadd.f32 %v4095, %v4231
        %v4370 = vadd.f32 %v4096, %v4236
        %v4371 = vadd.f32 %v4097, %v4241
        %v4372 = vadd.f32 %v4098, %v4246
        %v4373 = vadd.f32 %v4099, %v4251
        %v4374 = vadd.f32 %v4100, %v4256
        %v4375 = vadd.f32 %v4101, %v4261
        %v4376 = vadd.f32 %v4102, %v4266
        %v4377 = vadd.f32 %v4103, %v4271
        %v4378 = vadd.f32 %v4104, %v4276
        %v4379 = vadd.f32 %v4105, %v4281
        %v4380 = vadd.f32 %v4106, %v4286
        %v4381 = vadd.f32 %v4107, %v4291
        %v4382 = vadd.f32 %v4108, %v4296
        %v4383 = vadd.f32 %v4109, %v4301
        %v4384 = vadd.f32 %v4110, %v4306
        %v4385 = vadd.f32 %v4111, %v4311
        %v4386 = vadd.f32 %v4112, %v4316
        %v4387 = vadd.f32 %v4113, %v4321
        %v4388 = vadd.f32 %v4114, %v4326
        %v4389 = vadd.f32 %v4115, %v4331
        %v4390 = vadd.f32 %v4116, %v4336
        %v4391 = vadd.f32 %v4117, %v4341
        %v4392 = vadd.f32 %v4118, %v4346
        %v4393 = vadd.f32 %v4119, %v4351
        %v4394 = vadd.f32 %v4120, %v4356
        %v4395 = vadd.f32 %v4121, %v4361
        %4396 = vst [vmem:[#allocation3] sm:$0xff] %v4364
        %4397 = vst [vmem:[#allocation3 + $0x8] sm:$0xff] %v4365
        %4398 = vst [vmem:[#allocation3 + $0x10] sm:$0xff] %v4366
        %4399 = vst [vmem:[#allocation3 + $0x18] sm:$0xff] %v4367
        %4400 = vst [vmem:[#allocation3 + $0x20] sm:$0xff] %v4368
        %4401 = vst [vmem:[#allocation3 + $0x28] sm:$0xff] %v4369
        %4402 = vst [vmem:[#allocation3 + $0x30] sm:$0xff] %v4370
        %4403 = vst [vmem:[#allocation3 + $0x38] sm:$0xff] %v4371
        %4404 = vst [vmem:[#allocation3 + $0x40] sm:$0xff] %v4372
        %4405 = vst [vmem:[#allocation3 + $0x48] sm:$0xff] %v4373
        %4406 = vst [vmem:[#allocation3 + $0x50] sm:$0xff] %v4374
        %4407 = vst [vmem:[#allocation3 + $0x58] sm:$0xff] %v4375
        %4408 = vst [vmem:[#allocation3 + $0x60] sm:$0xff] %v4376
        %4409 = vst [vmem:[#allocation3 + $0x68] sm:$0xff] %v4377
        %4410 = vst [vmem:[#allocation3 + $0x70] sm:$0xff] %v4378
        %4411 = vst [vmem:[#allocation3 + $0x78] sm:$0xff] %v4379
        %4412 = vst [vmem:[#allocation3 + $0x80] sm:$0xff] %v4380
        %4413 = vst [vmem:[#allocation3 + $0x88] sm:$0xff] %v4381
        %4414 = vst [vmem:[#allocation3 + $0x90] sm:$0xff] %v4382
        %4415 = vst [vmem:[#allocation3 + $0x98] sm:$0xff] %v4383
        %4416 = vst [vmem:[#allocation3 + $0xa0] sm:$0xff] %v4384
        %4417 = vst [vmem:[#allocation3 + $0xa8] sm:$0xff] %v4385
        %4418 = vst [vmem:[#allocation3 + $0xb0] sm:$0xff] %v4386
        %4419 = vst [vmem:[#allocation3 + $0xb8] sm:$0xff] %v4387
        %4420 = vst [vmem:[#allocation3 + $0xc0] sm:$0xff] %v4388
        %4421 = vst [vmem:[#allocation3 + $0xc8] sm:$0xff] %v4389
        %4422 = vst [vmem:[#allocation3 + $0xd0] sm:$0xff] %v4390
        %4423 = vst [vmem:[#allocation3 + $0xd8] sm:$0xff] %v4391
        %4424 = vst [vmem:[#allocation3 + $0xe0] sm:$0xff] %v4392
        %4425 = vst [vmem:[#allocation3 + $0xe8] sm:$0xff] %v4393
        %4426 = vst [vmem:[#allocation3 + $0xf0] sm:$0xff] %v4394
        %4427 = vst [vmem:[#allocation3 + $0xf8] sm:$0xff] %v4395
        %v4428 = vld [vmem:[#allocation2 + $0x1] sm:$0xff]
        %v4429 = vld [vmem:[#allocation2 + $0x9] sm:$0xff]
        %v4430 = vld [vmem:[#allocation2 + $0x19] sm:$0xff]
        %v4431 = vld [vmem:[#allocation2 + $0x21] sm:$0xff]
        %v4432 = vld [vmem:[#allocation2 + $0x31] sm:$0xff]
        %v4433 = vld [vmem:[#allocation2 + $0x39] sm:$0xff]
        %v4434 = vld [vmem:[#allocation2 + $0x49] sm:$0xff]
        %v4435 = vld [vmem:[#allocation2 + $0x51] sm:$0xff]
        %v4436 = vld [vmem:[#allocation2 + $0x61] sm:$0xff]
        %v4437 = vld [vmem:[#allocation2 + $0x69] sm:$0xff]
        %v4438 = vld [vmem:[#allocation2 + $0x79] sm:$0xff]
        %v4439 = vld [vmem:[#allocation2 + $0x81] sm:$0xff]
        %v4440 = vld [vmem:[#allocation2 + $0x91] sm:$0xff]
        %v4441 = vld [vmem:[#allocation2 + $0x99] sm:$0xff]
        %v4442 = vld [vmem:[#allocation2 + $0xa9] sm:$0xff]
        %v4443 = vld [vmem:[#allocation2 + $0xb1] sm:$0xff]
        %v4444 = vld [vmem:[#allocation2 + $0xc1] sm:$0xff]
        %v4445 = vld [vmem:[#allocation2 + $0xc9] sm:$0xff]
        %v4446 = vld [vmem:[#allocation2 + $0xd9] sm:$0xff]
        %v4447 = vld [vmem:[#allocation2 + $0xe1] sm:$0xff]
        %v4448 = vld [vmem:[#allocation2 + $0xf1] sm:$0xff]
        %v4449 = vld [vmem:[#allocation2 + $0xf9] sm:$0xff]
        %v4450 = vld [vmem:[#allocation2 + $0x109] sm:$0xff]
        %v4451 = vld [vmem:[#allocation2 + $0x111] sm:$0xff]
        %v4452 = vld [vmem:[#allocation2 + $0x121] sm:$0xff]
        %v4453 = vld [vmem:[#allocation2 + $0x129] sm:$0xff]
        %v4454 = vld [vmem:[#allocation2 + $0x139] sm:$0xff]
        %v4455 = vld [vmem:[#allocation2 + $0x141] sm:$0xff]
        %v4456 = vld [vmem:[#allocation2 + $0x151] sm:$0xff]
        %v4457 = vld [vmem:[#allocation2 + $0x159] sm:$0xff]
        %v4458 = vld [vmem:[#allocation2 + $0x169] sm:$0xff]
        %v4459 = vld [vmem:[#allocation2 + $0x171] sm:$0xff]
        %v4460 = vld [vmem:[#allocation3] sm:$0xff]
        %v4461 = vld [vmem:[#allocation3 + $0x8] sm:$0xff]
        %v4462 = vld [vmem:[#allocation3 + $0x10] sm:$0xff]
        %v4463 = vld [vmem:[#allocation3 + $0x18] sm:$0xff]
        %v4464 = vld [vmem:[#allocation3 + $0x20] sm:$0xff]
        %v4465 = vld [vmem:[#allocation3 + $0x28] sm:$0xff]
        %v4466 = vld [vmem:[#allocation3 + $0x30] sm:$0xff]
        %v4467 = vld [vmem:[#allocation3 + $0x38] sm:$0xff]
        %v4468 = vld [vmem:[#allocation3 + $0x40] sm:$0xff]
        %v4469 = vld [vmem:[#allocation3 + $0x48] sm:$0xff]
        %v4470 = vld [vmem:[#allocation3 + $0x50] sm:$0xff]
        %v4471 = vld [vmem:[#allocation3 + $0x58] sm:$0xff]
        %v4472 = vld [vmem:[#allocation3 + $0x60] sm:$0xff]
        %v4473 = vld [vmem:[#allocation3 + $0x68] sm:$0xff]
        %v4474 = vld [vmem:[#allocation3 + $0x70] sm:$0xff]
        %v4475 = vld [vmem:[#allocation3 + $0x78] sm:$0xff]
        %v4476 = vld [vmem:[#allocation3 + $0x80] sm:$0xff]
        %v4477 = vld [vmem:[#allocation3 + $0x88] sm:$0xff]
        %v4478 = vld [vmem:[#allocation3 + $0x90] sm:$0xff]
        %v4479 = vld [vmem:[#allocation3 + $0x98] sm:$0xff]
        %v4480 = vld [vmem:[#allocation3 + $0xa0] sm:$0xff]
        %v4481 = vld [vmem:[#allocation3 + $0xa8] sm:$0xff]
        %v4482 = vld [vmem:[#allocation3 + $0xb0] sm:$0xff]
        %v4483 = vld [vmem:[#allocation3 + $0xb8] sm:$0xff]
        %v4484 = vld [vmem:[#allocation3 + $0xc0] sm:$0xff]
        %v4485 = vld [vmem:[#allocation3 + $0xc8] sm:$0xff]
        %v4486 = vld [vmem:[#allocation3 + $0xd0] sm:$0xff]
        %v4487 = vld [vmem:[#allocation3 + $0xd8] sm:$0xff]
        %v4488 = vld [vmem:[#allocation3 + $0xe0] sm:$0xff]
        %v4489 = vld [vmem:[#allocation3 + $0xe8] sm:$0xff]
        %v4490 = vld [vmem:[#allocation3 + $0xf0] sm:$0xff]
        %v4491 = vld [vmem:[#allocation3 + $0xf8] sm:$0xff]
        %s4492 = scalar_lea.vmem [#allocation7], 1280
        %v4493 = vld [vmem:[%s4492] sm:$0xff]
        %v4494 = vld [vmem:[%s4492 + $0x8] sm:$0xff]
        %v4495 = vld [vmem:[%s4492 + $0x10] sm:$0xff]
        %v4496 = vld [vmem:[%s4492 + $0x18] sm:$0xff]
        %v4497 = vld [vmem:[%s4492 + $0x20] sm:$0xff]
        %v4498 = vld [vmem:[%s4492 + $0x28] sm:$0xff]
        %v4499 = vld [vmem:[%s4492 + $0x30] sm:$0xff]
        %v4500 = vld [vmem:[%s4492 + $0x38] sm:$0xff]
        %v4501 = vld [vmem:[%s4492 + $0x40] sm:$0xff]
        %v4502 = vld [vmem:[%s4492 + $0x48] sm:$0xff]
        %v4503 = vld [vmem:[%s4492 + $0x50] sm:$0xff]
        %v4504 = vld [vmem:[%s4492 + $0x58] sm:$0xff]
        %v4505 = vld [vmem:[%s4492 + $0x60] sm:$0xff]
        %v4506 = vld [vmem:[%s4492 + $0x68] sm:$0xff]
        %v4507 = vld [vmem:[%s4492 + $0x70] sm:$0xff]
        %v4508 = vld [vmem:[%s4492 + $0x78] sm:$0xff]
        %4509 = vmatprep.subr.mxu0 0.0
        %4510 = vmatpush1.msra.mxu0 %v4508
        %4511 = vmatprep.subr.mxu0 0.0
        %4512 = vmatpush1.msra.mxu0 %v4507
        %4513 = vmatprep.subr.mxu0 0.0
        %4514 = vmatpush1.msra.mxu0 %v4506
        %4515 = vmatprep.subr.mxu0 0.0
        %4516 = vmatpush1.msra.mxu0 %v4505
        %4517 = vmatprep.subr.mxu0 0.0
        %4518 = vmatpush1.msra.mxu0 %v4504
        %4519 = vmatprep.subr.mxu0 0.0
        %4520 = vmatpush1.msra.mxu0 %v4503
        %4521 = vmatprep.subr.mxu0 0.0
        %4522 = vmatpush1.msra.mxu0 %v4502
        %4523 = vmatprep.subr.mxu0 0.0
        %4524 = vmatpush1.msra.mxu0 %v4501
        %4525 = vmatprep.subr.mxu0 0.0
        %4526 = vmatpush1.msra.mxu0 %v4500
        %4527 = vmatprep.subr.mxu0 0.0
        %4528 = vmatpush1.msra.mxu0 %v4499
        %4529 = vmatprep.subr.mxu0 0.0
        %4530 = vmatpush1.msra.mxu0 %v4498
        %4531 = vmatprep.subr.mxu0 0.0
        %4532 = vmatpush1.msra.mxu0 %v4497
        %4533 = vmatprep.subr.mxu0 0.0
        %4534 = vmatpush1.msra.mxu0 %v4496
        %4535 = vmatprep.subr.mxu0 0.0
        %4536 = vmatpush1.msra.mxu0 %v4495
        %4537 = vmatprep.subr.mxu0 0.0
        %4538 = vmatpush1.msra.mxu0 %v4494
        %4539 = vmatprep.subr.mxu0 0.0
        %4540 = vmatpush1.msra.mxu0 %v4493
        %4541 = vmatprep.subr.mxu0 0.0
        %4542 = vmatpush2.msra.mxu0 0.0
        %4543 = vmatprep.subr.mxu0 0.0
        %4544 = vmatpush2.msra.mxu0 0.0
        %4545 = vmatprep.subr.mxu0 0.0
        %4546 = vmatpush2.msra.mxu0 0.0
        %4547 = vmatprep.subr.mxu0 0.0
        %4548 = vmatpush2.msra.mxu0 0.0
        %4549 = vmatprep.subr.mxu0 0.0
        %4550 = vmatpush2.msra.mxu0 0.0
        %4551 = vmatprep.subr.mxu0 0.0
        %4552 = vmatpush2.msra.mxu0 0.0
        %4553 = vmatprep.subr.mxu0 0.0
        %4554 = vmatpush2.msra.mxu0 0.0
        %4555 = vmatprep.subr.mxu0 0.0
        %4556 = vmatpush2.msra.mxu0 0.0
        %4557 = vmatprep.subr.mxu0 0.0
        %4558 = vmatpush2.msra.mxu0 0.0
        %4559 = vmatprep.subr.mxu0 0.0
        %4560 = vmatpush2.msra.mxu0 0.0
        %4561 = vmatprep.subr.mxu0 0.0
        %4562 = vmatpush2.msra.mxu0 0.0
        %4563 = vmatprep.subr.mxu0 0.0
        %4564 = vmatpush2.msra.mxu0 0.0
        %4565 = vmatprep.subr.mxu0 0.0
        %4566 = vmatpush2.msra.mxu0 0.0
        %4567 = vmatprep.subr.mxu0 0.0
        %4568 = vmatpush2.msra.mxu0 0.0
        %4569 = vmatprep.subr.mxu0 0.0
        %4570 = vmatpush2.msra.mxu0 0.0
        %4571 = vmatprep.subr.mxu0 0.0
        %4572 = vmatpush2.msra.mxu0 0.0
        %4573 = vmatprep.mubr.f32.mxu0 0.0
        %4574 = vmatmul.mubr.f32.gmra.mxu0 %v4428
        %v4575 = vpop.f32.mrf.mxu0
        %v4576 = vadd.f32 0.0, %v4575
        %v4577 = vpop.f32.mrf.mxu0
        %4578 = vmatprep.mubr.f32.mxu0 0.0
        %4579 = vmatmul.mubr.f32.gmra.mxu0 %v4429
        %v4580 = vpop.f32.mrf.mxu0
        %v4581 = vadd.f32 0.0, %v4580
        %v4582 = vpop.f32.mrf.mxu0
        %4583 = vmatprep.mubr.f32.mxu0 0.0
        %4584 = vmatmul.mubr.f32.gmra.mxu0 %v4430
        %v4585 = vpop.f32.mrf.mxu0
        %v4586 = vadd.f32 0.0, %v4585
        %v4587 = vpop.f32.mrf.mxu0
        %4588 = vmatprep.mubr.f32.mxu0 0.0
        %4589 = vmatmul.mubr.f32.gmra.mxu0 %v4431
        %v4590 = vpop.f32.mrf.mxu0
        %v4591 = vadd.f32 0.0, %v4590
        %v4592 = vpop.f32.mrf.mxu0
        %4593 = vmatprep.mubr.f32.mxu0 0.0
        %4594 = vmatmul.mubr.f32.gmra.mxu0 %v4432
        %v4595 = vpop.f32.mrf.mxu0
        %v4596 = vadd.f32 0.0, %v4595
        %v4597 = vpop.f32.mrf.mxu0
        %4598 = vmatprep.mubr.f32.mxu0 0.0
        %4599 = vmatmul.mubr.f32.gmra.mxu0 %v4433
        %v4600 = vpop.f32.mrf.mxu0
        %v4601 = vadd.f32 0.0, %v4600
        %v4602 = vpop.f32.mrf.mxu0
        %4603 = vmatprep.mubr.f32.mxu0 0.0
        %4604 = vmatmul.mubr.f32.gmra.mxu0 %v4434
        %v4605 = vpop.f32.mrf.mxu0
        %v4606 = vadd.f32 0.0, %v4605
        %v4607 = vpop.f32.mrf.mxu0
        %4608 = vmatprep.mubr.f32.mxu0 0.0
        %4609 = vmatmul.mubr.f32.gmra.mxu0 %v4435
        %v4610 = vpop.f32.mrf.mxu0
        %v4611 = vadd.f32 0.0, %v4610
        %v4612 = vpop.f32.mrf.mxu0
        %4613 = vmatprep.mubr.f32.mxu0 0.0
        %4614 = vmatmul.mubr.f32.gmra.mxu0 %v4436
        %v4615 = vpop.f32.mrf.mxu0
        %v4616 = vadd.f32 0.0, %v4615
        %v4617 = vpop.f32.mrf.mxu0
        %4618 = vmatprep.mubr.f32.mxu0 0.0
        %4619 = vmatmul.mubr.f32.gmra.mxu0 %v4437
        %v4620 = vpop.f32.mrf.mxu0
        %v4621 = vadd.f32 0.0, %v4620
        %v4622 = vpop.f32.mrf.mxu0
        %4623 = vmatprep.mubr.f32.mxu0 0.0
        %4624 = vmatmul.mubr.f32.gmra.mxu0 %v4438
        %v4625 = vpop.f32.mrf.mxu0
        %v4626 = vadd.f32 0.0, %v4625
        %v4627 = vpop.f32.mrf.mxu0
        %4628 = vmatprep.mubr.f32.mxu0 0.0
        %4629 = vmatmul.mubr.f32.gmra.mxu0 %v4439
        %v4630 = vpop.f32.mrf.mxu0
        %v4631 = vadd.f32 0.0, %v4630
        %v4632 = vpop.f32.mrf.mxu0
        %4633 = vmatprep.mubr.f32.mxu0 0.0
        %4634 = vmatmul.mubr.f32.gmra.mxu0 %v4440
        %v4635 = vpop.f32.mrf.mxu0
        %v4636 = vadd.f32 0.0, %v4635
        %v4637 = vpop.f32.mrf.mxu0
        %4638 = vmatprep.mubr.f32.mxu0 0.0
        %4639 = vmatmul.mubr.f32.gmra.mxu0 %v4441
        %v4640 = vpop.f32.mrf.mxu0
        %v4641 = vadd.f32 0.0, %v4640
        %v4642 = vpop.f32.mrf.mxu0
        %4643 = vmatprep.mubr.f32.mxu0 0.0
        %4644 = vmatmul.mubr.f32.gmra.mxu0 %v4442
        %v4645 = vpop.f32.mrf.mxu0
        %v4646 = vadd.f32 0.0, %v4645
        %v4647 = vpop.f32.mrf.mxu0
        %4648 = vmatprep.mubr.f32.mxu0 0.0
        %4649 = vmatmul.mubr.f32.gmra.mxu0 %v4443
        %v4650 = vpop.f32.mrf.mxu0
        %v4651 = vadd.f32 0.0, %v4650
        %v4652 = vpop.f32.mrf.mxu0
        %4653 = vmatprep.mubr.f32.mxu0 0.0
        %4654 = vmatmul.mubr.f32.gmra.mxu0 %v4444
        %v4655 = vpop.f32.mrf.mxu0
        %v4656 = vadd.f32 0.0, %v4655
        %v4657 = vpop.f32.mrf.mxu0
        %4658 = vmatprep.mubr.f32.mxu0 0.0
        %4659 = vmatmul.mubr.f32.gmra.mxu0 %v4445
        %v4660 = vpop.f32.mrf.mxu0
        %v4661 = vadd.f32 0.0, %v4660
        %v4662 = vpop.f32.mrf.mxu0
        %4663 = vmatprep.mubr.f32.mxu0 0.0
        %4664 = vmatmul.mubr.f32.gmra.mxu0 %v4446
        %v4665 = vpop.f32.mrf.mxu0
        %v4666 = vadd.f32 0.0, %v4665
        %v4667 = vpop.f32.mrf.mxu0
        %4668 = vmatprep.mubr.f32.mxu0 0.0
        %4669 = vmatmul.mubr.f32.gmra.mxu0 %v4447
        %v4670 = vpop.f32.mrf.mxu0
        %v4671 = vadd.f32 0.0, %v4670
        %v4672 = vpop.f32.mrf.mxu0
        %4673 = vmatprep.mubr.f32.mxu0 0.0
        %4674 = vmatmul.mubr.f32.gmra.mxu0 %v4448
        %v4675 = vpop.f32.mrf.mxu0
        %v4676 = vadd.f32 0.0, %v4675
        %v4677 = vpop.f32.mrf.mxu0
        %4678 = vmatprep.mubr.f32.mxu0 0.0
        %4679 = vmatmul.mubr.f32.gmra.mxu0 %v4449
        %v4680 = vpop.f32.mrf.mxu0
        %v4681 = vadd.f32 0.0, %v4680
        %v4682 = vpop.f32.mrf.mxu0
        %4683 = vmatprep.mubr.f32.mxu0 0.0
        %4684 = vmatmul.mubr.f32.gmra.mxu0 %v4450
        %v4685 = vpop.f32.mrf.mxu0
        %v4686 = vadd.f32 0.0, %v4685
        %v4687 = vpop.f32.mrf.mxu0
        %4688 = vmatprep.mubr.f32.mxu0 0.0
        %4689 = vmatmul.mubr.f32.gmra.mxu0 %v4451
        %v4690 = vpop.f32.mrf.mxu0
        %v4691 = vadd.f32 0.0, %v4690
        %v4692 = vpop.f32.mrf.mxu0
        %4693 = vmatprep.mubr.f32.mxu0 0.0
        %4694 = vmatmul.mubr.f32.gmra.mxu0 %v4452
        %v4695 = vpop.f32.mrf.mxu0
        %v4696 = vadd.f32 0.0, %v4695
        %v4697 = vpop.f32.mrf.mxu0
        %4698 = vmatprep.mubr.f32.mxu0 0.0
        %4699 = vmatmul.mubr.f32.gmra.mxu0 %v4453
        %v4700 = vpop.f32.mrf.mxu0
        %v4701 = vadd.f32 0.0, %v4700
        %v4702 = vpop.f32.mrf.mxu0
        %4703 = vmatprep.mubr.f32.mxu0 0.0
        %4704 = vmatmul.mubr.f32.gmra.mxu0 %v4454
        %v4705 = vpop.f32.mrf.mxu0
        %v4706 = vadd.f32 0.0, %v4705
        %v4707 = vpop.f32.mrf.mxu0
        %4708 = vmatprep.mubr.f32.mxu0 0.0
        %4709 = vmatmul.mubr.f32.gmra.mxu0 %v4455
        %v4710 = vpop.f32.mrf.mxu0
        %v4711 = vadd.f32 0.0, %v4710
        %v4712 = vpop.f32.mrf.mxu0
        %4713 = vmatprep.mubr.f32.mxu0 0.0
        %4714 = vmatmul.mubr.f32.gmra.mxu0 %v4456
        %v4715 = vpop.f32.mrf.mxu0
        %v4716 = vadd.f32 0.0, %v4715
        %v4717 = vpop.f32.mrf.mxu0
        %4718 = vmatprep.mubr.f32.mxu0 0.0
        %4719 = vmatmul.mubr.f32.gmra.mxu0 %v4457
        %v4720 = vpop.f32.mrf.mxu0
        %v4721 = vadd.f32 0.0, %v4720
        %v4722 = vpop.f32.mrf.mxu0
        %4723 = vmatprep.mubr.f32.mxu0 0.0
        %4724 = vmatmul.mubr.f32.gmra.mxu0 %v4458
        %v4725 = vpop.f32.mrf.mxu0
        %v4726 = vadd.f32 0.0, %v4725
        %v4727 = vpop.f32.mrf.mxu0
        %4728 = vmatprep.mubr.f32.mxu0 0.0
        %4729 = vmatmul.mubr.f32.gmra.mxu0 %v4459
        %v4730 = vpop.f32.mrf.mxu0
        %v4731 = vadd.f32 0.0, %v4730
        %v4732 = vpop.f32.mrf.mxu0
        %4733 = vdwg.mxu0
        %v4734 = vadd.f32 %v4460, %v4576
        %v4735 = vadd.f32 %v4461, %v4581
        %v4736 = vadd.f32 %v4462, %v4586
        %v4737 = vadd.f32 %v4463, %v4591
        %v4738 = vadd.f32 %v4464, %v4596
        %v4739 = vadd.f32 %v4465, %v4601
        %v4740 = vadd.f32 %v4466, %v4606
        %v4741 = vadd.f32 %v4467, %v4611
        %v4742 = vadd.f32 %v4468, %v4616
        %v4743 = vadd.f32 %v4469, %v4621
        %v4744 = vadd.f32 %v4470, %v4626
        %v4745 = vadd.f32 %v4471, %v4631
        %v4746 = vadd.f32 %v4472, %v4636
        %v4747 = vadd.f32 %v4473, %v4641
        %v4748 = vadd.f32 %v4474, %v4646
        %v4749 = vadd.f32 %v4475, %v4651
        %v4750 = vadd.f32 %v4476, %v4656
        %v4751 = vadd.f32 %v4477, %v4661
        %v4752 = vadd.f32 %v4478, %v4666
        %v4753 = vadd.f32 %v4479, %v4671
        %v4754 = vadd.f32 %v4480, %v4676
        %v4755 = vadd.f32 %v4481, %v4681
        %v4756 = vadd.f32 %v4482, %v4686
        %v4757 = vadd.f32 %v4483, %v4691
        %v4758 = vadd.f32 %v4484, %v4696
        %v4759 = vadd.f32 %v4485, %v4701
        %v4760 = vadd.f32 %v4486, %v4706
        %v4761 = vadd.f32 %v4487, %v4711
        %v4762 = vadd.f32 %v4488, %v4716
        %v4763 = vadd.f32 %v4489, %v4721
        %v4764 = vadd.f32 %v4490, %v4726
        %v4765 = vadd.f32 %v4491, %v4731
        %4766 = vst [vmem:[#allocation3] sm:$0xff] %v4734
        %4767 = vst [vmem:[#allocation3 + $0x8] sm:$0xff] %v4735
        %4768 = vst [vmem:[#allocation3 + $0x10] sm:$0xff] %v4736
        %4769 = vst [vmem:[#allocation3 + $0x18] sm:$0xff] %v4737
        %4770 = vst [vmem:[#allocation3 + $0x20] sm:$0xff] %v4738
        %4771 = vst [vmem:[#allocation3 + $0x28] sm:$0xff] %v4739
        %4772 = vst [vmem:[#allocation3 + $0x30] sm:$0xff] %v4740
        %4773 = vst [vmem:[#allocation3 + $0x38] sm:$0xff] %v4741
        %4774 = vst [vmem:[#allocation3 + $0x40] sm:$0xff] %v4742
        %4775 = vst [vmem:[#allocation3 + $0x48] sm:$0xff] %v4743
        %4776 = vst [vmem:[#allocation3 + $0x50] sm:$0xff] %v4744
        %4777 = vst [vmem:[#allocation3 + $0x58] sm:$0xff] %v4745
        %4778 = vst [vmem:[#allocation3 + $0x60] sm:$0xff] %v4746
        %4779 = vst [vmem:[#allocation3 + $0x68] sm:$0xff] %v4747
        %4780 = vst [vmem:[#allocation3 + $0x70] sm:$0xff] %v4748
        %4781 = vst [vmem:[#allocation3 + $0x78] sm:$0xff] %v4749
        %4782 = vst [vmem:[#allocation3 + $0x80] sm:$0xff] %v4750
        %4783 = vst [vmem:[#allocation3 + $0x88] sm:$0xff] %v4751
        %4784 = vst [vmem:[#allocation3 + $0x90] sm:$0xff] %v4752
        %4785 = vst [vmem:[#allocation3 + $0x98] sm:$0xff] %v4753
        %4786 = vst [vmem:[#allocation3 + $0xa0] sm:$0xff] %v4754
        %4787 = vst [vmem:[#allocation3 + $0xa8] sm:$0xff] %v4755
        %4788 = vst [vmem:[#allocation3 + $0xb0] sm:$0xff] %v4756
        %4789 = vst [vmem:[#allocation3 + $0xb8] sm:$0xff] %v4757
        %4790 = vst [vmem:[#allocation3 + $0xc0] sm:$0xff] %v4758
        %4791 = vst [vmem:[#allocation3 + $0xc8] sm:$0xff] %v4759
        %4792 = vst [vmem:[#allocation3 + $0xd0] sm:$0xff] %v4760
        %4793 = vst [vmem:[#allocation3 + $0xd8] sm:$0xff] %v4761
        %4794 = vst [vmem:[#allocation3 + $0xe0] sm:$0xff] %v4762
        %4795 = vst [vmem:[#allocation3 + $0xe8] sm:$0xff] %v4763
        %4796 = vst [vmem:[#allocation3 + $0xf0] sm:$0xff] %v4764
        %4797 = vst [vmem:[#allocation3 + $0xf8] sm:$0xff] %v4765
        %v4798 = vld [vmem:[#allocation2 + $0x2] sm:$0xff]
        %v4799 = vld [vmem:[#allocation2 + $0xa] sm:$0xff]
        %v4800 = vld [vmem:[#allocation2 + $0x1a] sm:$0xff]
        %v4801 = vld [vmem:[#allocation2 + $0x22] sm:$0xff]
        %v4802 = vld [vmem:[#allocation2 + $0x32] sm:$0xff]
        %v4803 = vld [vmem:[#allocation2 + $0x3a] sm:$0xff]
        %v4804 = vld [vmem:[#allocation2 + $0x4a] sm:$0xff]
        %v4805 = vld [vmem:[#allocation2 + $0x52] sm:$0xff]
        %v4806 = vld [vmem:[#allocation2 + $0x62] sm:$0xff]
        %v4807 = vld [vmem:[#allocation2 + $0x6a] sm:$0xff]
        %v4808 = vld [vmem:[#allocation2 + $0x7a] sm:$0xff]
        %v4809 = vld [vmem:[#allocation2 + $0x82] sm:$0xff]
        %v4810 = vld [vmem:[#allocation2 + $0x92] sm:$0xff]
        %v4811 = vld [vmem:[#allocation2 + $0x9a] sm:$0xff]
        %v4812 = vld [vmem:[#allocation2 + $0xaa] sm:$0xff]
        %v4813 = vld [vmem:[#allocation2 + $0xb2] sm:$0xff]
        %v4814 = vld [vmem:[#allocation2 + $0xc2] sm:$0xff]
        %v4815 = vld [vmem:[#allocation2 + $0xca] sm:$0xff]
        %v4816 = vld [vmem:[#allocation2 + $0xda] sm:$0xff]
        %v4817 = vld [vmem:[#allocation2 + $0xe2] sm:$0xff]
        %v4818 = vld [vmem:[#allocation2 + $0xf2] sm:$0xff]
        %v4819 = vld [vmem:[#allocation2 + $0xfa] sm:$0xff]
        %v4820 = vld [vmem:[#allocation2 + $0x10a] sm:$0xff]
        %v4821 = vld [vmem:[#allocation2 + $0x112] sm:$0xff]
        %v4822 = vld [vmem:[#allocation2 + $0x122] sm:$0xff]
        %v4823 = vld [vmem:[#allocation2 + $0x12a] sm:$0xff]
        %v4824 = vld [vmem:[#allocation2 + $0x13a] sm:$0xff]
        %v4825 = vld [vmem:[#allocation2 + $0x142] sm:$0xff]
        %v4826 = vld [vmem:[#allocation2 + $0x152] sm:$0xff]
        %v4827 = vld [vmem:[#allocation2 + $0x15a] sm:$0xff]
        %v4828 = vld [vmem:[#allocation2 + $0x16a] sm:$0xff]
        %v4829 = vld [vmem:[#allocation2 + $0x172] sm:$0xff]
        %v4830 = vld [vmem:[#allocation3] sm:$0xff]
        %v4831 = vld [vmem:[#allocation3 + $0x8] sm:$0xff]
        %v4832 = vld [vmem:[#allocation3 + $0x10] sm:$0xff]
        %v4833 = vld [vmem:[#allocation3 + $0x18] sm:$0xff]
        %v4834 = vld [vmem:[#allocation3 + $0x20] sm:$0xff]
        %v4835 = vld [vmem:[#allocation3 + $0x28] sm:$0xff]
        %v4836 = vld [vmem:[#allocation3 + $0x30] sm:$0xff]
        %v4837 = vld [vmem:[#allocation3 + $0x38] sm:$0xff]
        %v4838 = vld [vmem:[#allocation3 + $0x40] sm:$0xff]
        %v4839 = vld [vmem:[#allocation3 + $0x48] sm:$0xff]
        %v4840 = vld [vmem:[#allocation3 + $0x50] sm:$0xff]
        %v4841 = vld [vmem:[#allocation3 + $0x58] sm:$0xff]
        %v4842 = vld [vmem:[#allocation3 + $0x60] sm:$0xff]
        %v4843 = vld [vmem:[#allocation3 + $0x68] sm:$0xff]
        %v4844 = vld [vmem:[#allocation3 + $0x70] sm:$0xff]
        %v4845 = vld [vmem:[#allocation3 + $0x78] sm:$0xff]
        %v4846 = vld [vmem:[#allocation3 + $0x80] sm:$0xff]
        %v4847 = vld [vmem:[#allocation3 + $0x88] sm:$0xff]
        %v4848 = vld [vmem:[#allocation3 + $0x90] sm:$0xff]
        %v4849 = vld [vmem:[#allocation3 + $0x98] sm:$0xff]
        %v4850 = vld [vmem:[#allocation3 + $0xa0] sm:$0xff]
        %v4851 = vld [vmem:[#allocation3 + $0xa8] sm:$0xff]
        %v4852 = vld [vmem:[#allocation3 + $0xb0] sm:$0xff]
        %v4853 = vld [vmem:[#allocation3 + $0xb8] sm:$0xff]
        %v4854 = vld [vmem:[#allocation3 + $0xc0] sm:$0xff]
        %v4855 = vld [vmem:[#allocation3 + $0xc8] sm:$0xff]
        %v4856 = vld [vmem:[#allocation3 + $0xd0] sm:$0xff]
        %v4857 = vld [vmem:[#allocation3 + $0xd8] sm:$0xff]
        %v4858 = vld [vmem:[#allocation3 + $0xe0] sm:$0xff]
        %v4859 = vld [vmem:[#allocation3 + $0xe8] sm:$0xff]
        %v4860 = vld [vmem:[#allocation3 + $0xf0] sm:$0xff]
        %v4861 = vld [vmem:[#allocation3 + $0xf8] sm:$0xff]
        %s4862 = scalar_lea.vmem [#allocation7], 1408
        %v4863 = vld [vmem:[%s4862] sm:$0xff]
        %v4864 = vld [vmem:[%s4862 + $0x8] sm:$0xff]
        %v4865 = vld [vmem:[%s4862 + $0x10] sm:$0xff]
        %v4866 = vld [vmem:[%s4862 + $0x18] sm:$0xff]
        %v4867 = vld [vmem:[%s4862 + $0x20] sm:$0xff]
        %v4868 = vld [vmem:[%s4862 + $0x28] sm:$0xff]
        %v4869 = vld [vmem:[%s4862 + $0x30] sm:$0xff]
        %v4870 = vld [vmem:[%s4862 + $0x38] sm:$0xff]
        %v4871 = vld [vmem:[%s4862 + $0x40] sm:$0xff]
        %v4872 = vld [vmem:[%s4862 + $0x48] sm:$0xff]
        %v4873 = vld [vmem:[%s4862 + $0x50] sm:$0xff]
        %v4874 = vld [vmem:[%s4862 + $0x58] sm:$0xff]
        %v4875 = vld [vmem:[%s4862 + $0x60] sm:$0xff]
        %v4876 = vld [vmem:[%s4862 + $0x68] sm:$0xff]
        %v4877 = vld [vmem:[%s4862 + $0x70] sm:$0xff]
        %v4878 = vld [vmem:[%s4862 + $0x78] sm:$0xff]
        %4879 = vmatprep.subr.mxu0 0.0
        %4880 = vmatpush1.msra.mxu0 %v4878
        %4881 = vmatprep.subr.mxu0 0.0
        %4882 = vmatpush1.msra.mxu0 %v4877
        %4883 = vmatprep.subr.mxu0 0.0
        %4884 = vmatpush1.msra.mxu0 %v4876
        %4885 = vmatprep.subr.mxu0 0.0
        %4886 = vmatpush1.msra.mxu0 %v4875
        %4887 = vmatprep.subr.mxu0 0.0
        %4888 = vmatpush1.msra.mxu0 %v4874
        %4889 = vmatprep.subr.mxu0 0.0
        %4890 = vmatpush1.msra.mxu0 %v4873
        %4891 = vmatprep.subr.mxu0 0.0
        %4892 = vmatpush1.msra.mxu0 %v4872
        %4893 = vmatprep.subr.mxu0 0.0
        %4894 = vmatpush1.msra.mxu0 %v4871
        %4895 = vmatprep.subr.mxu0 0.0
        %4896 = vmatpush1.msra.mxu0 %v4870
        %4897 = vmatprep.subr.mxu0 0.0
        %4898 = vmatpush1.msra.mxu0 %v4869
        %4899 = vmatprep.subr.mxu0 0.0
        %4900 = vmatpush1.msra.mxu0 %v4868
        %4901 = vmatprep.subr.mxu0 0.0
        %4902 = vmatpush1.msra.mxu0 %v4867
        %4903 = vmatprep.subr.mxu0 0.0
        %4904 = vmatpush1.msra.mxu0 %v4866
        %4905 = vmatprep.subr.mxu0 0.0
        %4906 = vmatpush1.msra.mxu0 %v4865
        %4907 = vmatprep.subr.mxu0 0.0
        %4908 = vmatpush1.msra.mxu0 %v4864
        %4909 = vmatprep.subr.mxu0 0.0
        %4910 = vmatpush1.msra.mxu0 %v4863
        %4911 = vmatprep.subr.mxu0 0.0
        %4912 = vmatpush2.msra.mxu0 0.0
        %4913 = vmatprep.subr.mxu0 0.0
        %4914 = vmatpush2.msra.mxu0 0.0
        %4915 = vmatprep.subr.mxu0 0.0
        %4916 = vmatpush2.msra.mxu0 0.0
        %4917 = vmatprep.subr.mxu0 0.0
        %4918 = vmatpush2.msra.mxu0 0.0
        %4919 = vmatprep.subr.mxu0 0.0
        %4920 = vmatpush2.msra.mxu0 0.0
        %4921 = vmatprep.subr.mxu0 0.0
        %4922 = vmatpush2.msra.mxu0 0.0
        %4923 = vmatprep.subr.mxu0 0.0
        %4924 = vmatpush2.msra.mxu0 0.0
        %4925 = vmatprep.subr.mxu0 0.0
        %4926 = vmatpush2.msra.mxu0 0.0
        %4927 = vmatprep.subr.mxu0 0.0
        %4928 = vmatpush2.msra.mxu0 0.0
        %4929 = vmatprep.subr.mxu0 0.0
        %4930 = vmatpush2.msra.mxu0 0.0
        %4931 = vmatprep.subr.mxu0 0.0
        %4932 = vmatpush2.msra.mxu0 0.0
        %4933 = vmatprep.subr.mxu0 0.0
        %4934 = vmatpush2.msra.mxu0 0.0
        %4935 = vmatprep.subr.mxu0 0.0
        %4936 = vmatpush2.msra.mxu0 0.0
        %4937 = vmatprep.subr.mxu0 0.0
        %4938 = vmatpush2.msra.mxu0 0.0
        %4939 = vmatprep.subr.mxu0 0.0
        %4940 = vmatpush2.msra.mxu0 0.0
        %4941 = vmatprep.subr.mxu0 0.0
        %4942 = vmatpush2.msra.mxu0 0.0
        %4943 = vmatprep.mubr.f32.mxu0 0.0
        %4944 = vmatmul.mubr.f32.gmra.mxu0 %v4798
        %v4945 = vpop.f32.mrf.mxu0
        %v4946 = vadd.f32 0.0, %v4945
        %v4947 = vpop.f32.mrf.mxu0
        %4948 = vmatprep.mubr.f32.mxu0 0.0
        %4949 = vmatmul.mubr.f32.gmra.mxu0 %v4799
        %v4950 = vpop.f32.mrf.mxu0
        %v4951 = vadd.f32 0.0, %v4950
        %v4952 = vpop.f32.mrf.mxu0
        %4953 = vmatprep.mubr.f32.mxu0 0.0
        %4954 = vmatmul.mubr.f32.gmra.mxu0 %v4800
        %v4955 = vpop.f32.mrf.mxu0
        %v4956 = vadd.f32 0.0, %v4955
        %v4957 = vpop.f32.mrf.mxu0
        %4958 = vmatprep.mubr.f32.mxu0 0.0
        %4959 = vmatmul.mubr.f32.gmra.mxu0 %v4801
        %v4960 = vpop.f32.mrf.mxu0
        %v4961 = vadd.f32 0.0, %v4960
        %v4962 = vpop.f32.mrf.mxu0
        %4963 = vmatprep.mubr.f32.mxu0 0.0
        %4964 = vmatmul.mubr.f32.gmra.mxu0 %v4802
        %v4965 = vpop.f32.mrf.mxu0
        %v4966 = vadd.f32 0.0, %v4965
        %v4967 = vpop.f32.mrf.mxu0
        %4968 = vmatprep.mubr.f32.mxu0 0.0
        %4969 = vmatmul.mubr.f32.gmra.mxu0 %v4803
        %v4970 = vpop.f32.mrf.mxu0
        %v4971 = vadd.f32 0.0, %v4970
        %v4972 = vpop.f32.mrf.mxu0
        %4973 = vmatprep.mubr.f32.mxu0 0.0
        %4974 = vmatmul.mubr.f32.gmra.mxu0 %v4804
        %v4975 = vpop.f32.mrf.mxu0
        %v4976 = vadd.f32 0.0, %v4975
        %v4977 = vpop.f32.mrf.mxu0
        %4978 = vmatprep.mubr.f32.mxu0 0.0
        %4979 = vmatmul.mubr.f32.gmra.mxu0 %v4805
        %v4980 = vpop.f32.mrf.mxu0
        %v4981 = vadd.f32 0.0, %v4980
        %v4982 = vpop.f32.mrf.mxu0
        %4983 = vmatprep.mubr.f32.mxu0 0.0
        %4984 = vmatmul.mubr.f32.gmra.mxu0 %v4806
        %v4985 = vpop.f32.mrf.mxu0
        %v4986 = vadd.f32 0.0, %v4985
        %v4987 = vpop.f32.mrf.mxu0
        %4988 = vmatprep.mubr.f32.mxu0 0.0
        %4989 = vmatmul.mubr.f32.gmra.mxu0 %v4807
        %v4990 = vpop.f32.mrf.mxu0
        %v4991 = vadd.f32 0.0, %v4990
        %v4992 = vpop.f32.mrf.mxu0
        %4993 = vmatprep.mubr.f32.mxu0 0.0
        %4994 = vmatmul.mubr.f32.gmra.mxu0 %v4808
        %v4995 = vpop.f32.mrf.mxu0
        %v4996 = vadd.f32 0.0, %v4995
        %v4997 = vpop.f32.mrf.mxu0
        %4998 = vmatprep.mubr.f32.mxu0 0.0
        %4999 = vmatmul.mubr.f32.gmra.mxu0 %v4809
        %v5000 = vpop.f32.mrf.mxu0
        %v5001 = vadd.f32 0.0, %v5000
        %v5002 = vpop.f32.mrf.mxu0
        %5003 = vmatprep.mubr.f32.mxu0 0.0
        %5004 = vmatmul.mubr.f32.gmra.mxu0 %v4810
        %v5005 = vpop.f32.mrf.mxu0
        %v5006 = vadd.f32 0.0, %v5005
        %v5007 = vpop.f32.mrf.mxu0
        %5008 = vmatprep.mubr.f32.mxu0 0.0
        %5009 = vmatmul.mubr.f32.gmra.mxu0 %v4811
        %v5010 = vpop.f32.mrf.mxu0
        %v5011 = vadd.f32 0.0, %v5010
        %v5012 = vpop.f32.mrf.mxu0
        %5013 = vmatprep.mubr.f32.mxu0 0.0
        %5014 = vmatmul.mubr.f32.gmra.mxu0 %v4812
        %v5015 = vpop.f32.mrf.mxu0
        %v5016 = vadd.f32 0.0, %v5015
        %v5017 = vpop.f32.mrf.mxu0
        %5018 = vmatprep.mubr.f32.mxu0 0.0
        %5019 = vmatmul.mubr.f32.gmra.mxu0 %v4813
        %v5020 = vpop.f32.mrf.mxu0
        %v5021 = vadd.f32 0.0, %v5020
        %v5022 = vpop.f32.mrf.mxu0
        %5023 = vmatprep.mubr.f32.mxu0 0.0
        %5024 = vmatmul.mubr.f32.gmra.mxu0 %v4814
        %v5025 = vpop.f32.mrf.mxu0
        %v5026 = vadd.f32 0.0, %v5025
        %v5027 = vpop.f32.mrf.mxu0
        %5028 = vmatprep.mubr.f32.mxu0 0.0
        %5029 = vmatmul.mubr.f32.gmra.mxu0 %v4815
        %v5030 = vpop.f32.mrf.mxu0
        %v5031 = vadd.f32 0.0, %v5030
        %v5032 = vpop.f32.mrf.mxu0
        %5033 = vmatprep.mubr.f32.mxu0 0.0
        %5034 = vmatmul.mubr.f32.gmra.mxu0 %v4816
        %v5035 = vpop.f32.mrf.mxu0
        %v5036 = vadd.f32 0.0, %v5035
        %v5037 = vpop.f32.mrf.mxu0
        %5038 = vmatprep.mubr.f32.mxu0 0.0
        %5039 = vmatmul.mubr.f32.gmra.mxu0 %v4817
        %v5040 = vpop.f32.mrf.mxu0
        %v5041 = vadd.f32 0.0, %v5040
        %v5042 = vpop.f32.mrf.mxu0
        %5043 = vmatprep.mubr.f32.mxu0 0.0
        %5044 = vmatmul.mubr.f32.gmra.mxu0 %v4818
        %v5045 = vpop.f32.mrf.mxu0
        %v5046 = vadd.f32 0.0, %v5045
        %v5047 = vpop.f32.mrf.mxu0
        %5048 = vmatprep.mubr.f32.mxu0 0.0
        %5049 = vmatmul.mubr.f32.gmra.mxu0 %v4819
        %v5050 = vpop.f32.mrf.mxu0
        %v5051 = vadd.f32 0.0, %v5050
        %v5052 = vpop.f32.mrf.mxu0
        %5053 = vmatprep.mubr.f32.mxu0 0.0
        %5054 = vmatmul.mubr.f32.gmra.mxu0 %v4820
        %v5055 = vpop.f32.mrf.mxu0
        %v5056 = vadd.f32 0.0, %v5055
        %v5057 = vpop.f32.mrf.mxu0
        %5058 = vmatprep.mubr.f32.mxu0 0.0
        %5059 = vmatmul.mubr.f32.gmra.mxu0 %v4821
        %v5060 = vpop.f32.mrf.mxu0
        %v5061 = vadd.f32 0.0, %v5060
        %v5062 = vpop.f32.mrf.mxu0
        %5063 = vmatprep.mubr.f32.mxu0 0.0
        %5064 = vmatmul.mubr.f32.gmra.mxu0 %v4822
        %v5065 = vpop.f32.mrf.mxu0
        %v5066 = vadd.f32 0.0, %v5065
        %v5067 = vpop.f32.mrf.mxu0
        %5068 = vmatprep.mubr.f32.mxu0 0.0
        %5069 = vmatmul.mubr.f32.gmra.mxu0 %v4823
        %v5070 = vpop.f32.mrf.mxu0
        %v5071 = vadd.f32 0.0, %v5070
        %v5072 = vpop.f32.mrf.mxu0
        %5073 = vmatprep.mubr.f32.mxu0 0.0
        %5074 = vmatmul.mubr.f32.gmra.mxu0 %v4824
        %v5075 = vpop.f32.mrf.mxu0
        %v5076 = vadd.f32 0.0, %v5075
        %v5077 = vpop.f32.mrf.mxu0
        %5078 = vmatprep.mubr.f32.mxu0 0.0
        %5079 = vmatmul.mubr.f32.gmra.mxu0 %v4825
        %v5080 = vpop.f32.mrf.mxu0
        %v5081 = vadd.f32 0.0, %v5080
        %v5082 = vpop.f32.mrf.mxu0
        %5083 = vmatprep.mubr.f32.mxu0 0.0
        %5084 = vmatmul.mubr.f32.gmra.mxu0 %v4826
        %v5085 = vpop.f32.mrf.mxu0
        %v5086 = vadd.f32 0.0, %v5085
        %v5087 = vpop.f32.mrf.mxu0
        %5088 = vmatprep.mubr.f32.mxu0 0.0
        %5089 = vmatmul.mubr.f32.gmra.mxu0 %v4827
        %v5090 = vpop.f32.mrf.mxu0
        %v5091 = vadd.f32 0.0, %v5090
        %v5092 = vpop.f32.mrf.mxu0
        %5093 = vmatprep.mubr.f32.mxu0 0.0
        %5094 = vmatmul.mubr.f32.gmra.mxu0 %v4828
        %v5095 = vpop.f32.mrf.mxu0
        %v5096 = vadd.f32 0.0, %v5095
        %v5097 = vpop.f32.mrf.mxu0
        %5098 = vmatprep.mubr.f32.mxu0 0.0
        %5099 = vmatmul.mubr.f32.gmra.mxu0 %v4829
        %v5100 = vpop.f32.mrf.mxu0
        %v5101 = vadd.f32 0.0, %v5100
        %v5102 = vpop.f32.mrf.mxu0
        %5103 = vdwg.mxu0
        %v5104 = vadd.f32 %v4830, %v4946
        %v5105 = vadd.f32 %v4831, %v4951
        %v5106 = vadd.f32 %v4832, %v4956
        %v5107 = vadd.f32 %v4833, %v4961
        %v5108 = vadd.f32 %v4834, %v4966
        %v5109 = vadd.f32 %v4835, %v4971
        %v5110 = vadd.f32 %v4836, %v4976
        %v5111 = vadd.f32 %v4837, %v4981
        %v5112 = vadd.f32 %v4838, %v4986
        %v5113 = vadd.f32 %v4839, %v4991
        %v5114 = vadd.f32 %v4840, %v4996
        %v5115 = vadd.f32 %v4841, %v5001
        %v5116 = vadd.f32 %v4842, %v5006
        %v5117 = vadd.f32 %v4843, %v5011
        %v5118 = vadd.f32 %v4844, %v5016
        %v5119 = vadd.f32 %v4845, %v5021
        %v5120 = vadd.f32 %v4846, %v5026
        %v5121 = vadd.f32 %v4847, %v5031
        %v5122 = vadd.f32 %v4848, %v5036
        %v5123 = vadd.f32 %v4849, %v5041
        %v5124 = vadd.f32 %v4850, %v5046
        %v5125 = vadd.f32 %v4851, %v5051
        %v5126 = vadd.f32 %v4852, %v5056
        %v5127 = vadd.f32 %v4853, %v5061
        %v5128 = vadd.f32 %v4854, %v5066
        %v5129 = vadd.f32 %v4855, %v5071
        %v5130 = vadd.f32 %v4856, %v5076
        %v5131 = vadd.f32 %v4857, %v5081
        %v5132 = vadd.f32 %v4858, %v5086
        %v5133 = vadd.f32 %v4859, %v5091
        %v5134 = vadd.f32 %v4860, %v5096
        %v5135 = vadd.f32 %v4861, %v5101
        %5136 = vst [vmem:[#allocation3] sm:$0xff] %v5104
        %5137 = vst [vmem:[#allocation3 + $0x8] sm:$0xff] %v5105
        %5138 = vst [vmem:[#allocation3 + $0x10] sm:$0xff] %v5106
        %5139 = vst [vmem:[#allocation3 + $0x18] sm:$0xff] %v5107
        %5140 = vst [vmem:[#allocation3 + $0x20] sm:$0xff] %v5108
        %5141 = vst [vmem:[#allocation3 + $0x28] sm:$0xff] %v5109
        %5142 = vst [vmem:[#allocation3 + $0x30] sm:$0xff] %v5110
        %5143 = vst [vmem:[#allocation3 + $0x38] sm:$0xff] %v5111
        %5144 = vst [vmem:[#allocation3 + $0x40] sm:$0xff] %v5112
        %5145 = vst [vmem:[#allocation3 + $0x48] sm:$0xff] %v5113
        %5146 = vst [vmem:[#allocation3 + $0x50] sm:$0xff] %v5114
        %5147 = vst [vmem:[#allocation3 + $0x58] sm:$0xff] %v5115
        %5148 = vst [vmem:[#allocation3 + $0x60] sm:$0xff] %v5116
        %5149 = vst [vmem:[#allocation3 + $0x68] sm:$0xff] %v5117
        %5150 = vst [vmem:[#allocation3 + $0x70] sm:$0xff] %v5118
        %5151 = vst [vmem:[#allocation3 + $0x78] sm:$0xff] %v5119
        %5152 = vst [vmem:[#allocation3 + $0x80] sm:$0xff] %v5120
        %5153 = vst [vmem:[#allocation3 + $0x88] sm:$0xff] %v5121
        %5154 = vst [vmem:[#allocation3 + $0x90] sm:$0xff] %v5122
        %5155 = vst [vmem:[#allocation3 + $0x98] sm:$0xff] %v5123
        %5156 = vst [vmem:[#allocation3 + $0xa0] sm:$0xff] %v5124
        %5157 = vst [vmem:[#allocation3 + $0xa8] sm:$0xff] %v5125
        %5158 = vst [vmem:[#allocation3 + $0xb0] sm:$0xff] %v5126
        %5159 = vst [vmem:[#allocation3 + $0xb8] sm:$0xff] %v5127
        %5160 = vst [vmem:[#allocation3 + $0xc0] sm:$0xff] %v5128
        %5161 = vst [vmem:[#allocation3 + $0xc8] sm:$0xff] %v5129
        %5162 = vst [vmem:[#allocation3 + $0xd0] sm:$0xff] %v5130
        %5163 = vst [vmem:[#allocation3 + $0xd8] sm:$0xff] %v5131
        %5164 = vst [vmem:[#allocation3 + $0xe0] sm:$0xff] %v5132
        %5165 = vst [vmem:[#allocation3 + $0xe8] sm:$0xff] %v5133
        %5166 = vst [vmem:[#allocation3 + $0xf0] sm:$0xff] %v5134
        %5167 = vst [vmem:[#allocation3 + $0xf8] sm:$0xff] %v5135
        %v5168 = vld [vmem:[%s304] sm:$0xff]
        %v5169 = vld [vmem:[%s304 + $0x8] sm:$0xff]
        %v5170 = vld [vmem:[%s304 + $0x18] sm:$0xff]
        %v5171 = vld [vmem:[%s304 + $0x20] sm:$0xff]
        %v5172 = vld [vmem:[%s304 + $0x30] sm:$0xff]
        %v5173 = vld [vmem:[%s304 + $0x38] sm:$0xff]
        %v5174 = vld [vmem:[%s304 + $0x48] sm:$0xff]
        %v5175 = vld [vmem:[%s304 + $0x50] sm:$0xff]
        %v5176 = vld [vmem:[%s304 + $0x60] sm:$0xff]
        %v5177 = vld [vmem:[%s304 + $0x68] sm:$0xff]
        %v5178 = vld [vmem:[%s304 + $0x78] sm:$0xff]
        %v5179 = vld [vmem:[%s304 + $0x80] sm:$0xff]
        %v5180 = vld [vmem:[%s304 + $0x90] sm:$0xff]
        %v5181 = vld [vmem:[%s304 + $0x98] sm:$0xff]
        %v5182 = vld [vmem:[%s304 + $0xa8] sm:$0xff]
        %v5183 = vld [vmem:[%s304 + $0xb0] sm:$0xff]
        %v5184 = vld [vmem:[%s304 + $0xc0] sm:$0xff]
        %v5185 = vld [vmem:[%s304 + $0xc8] sm:$0xff]
        %v5186 = vld [vmem:[%s304 + $0xd8] sm:$0xff]
        %v5187 = vld [vmem:[%s304 + $0xe0] sm:$0xff]
        %v5188 = vld [vmem:[%s304 + $0xf0] sm:$0xff]
        %v5189 = vld [vmem:[%s304 + $0xf8] sm:$0xff]
        %v5190 = vld [vmem:[%s304 + $0x108] sm:$0xff]
        %v5191 = vld [vmem:[%s304 + $0x110] sm:$0xff]
        %v5192 = vld [vmem:[%s304 + $0x120] sm:$0xff]
        %v5193 = vld [vmem:[%s304 + $0x128] sm:$0xff]
        %v5194 = vld [vmem:[%s304 + $0x138] sm:$0xff]
        %v5195 = vld [vmem:[%s304 + $0x140] sm:$0xff]
        %v5196 = vld [vmem:[%s304 + $0x150] sm:$0xff]
        %v5197 = vld [vmem:[%s304 + $0x158] sm:$0xff]
        %v5198 = vld [vmem:[%s304 + $0x168] sm:$0xff]
        %v5199 = vld [vmem:[%s304 + $0x170] sm:$0xff]
        %v5200 = vld [vmem:[#allocation3] sm:$0xff]
        %v5201 = vld [vmem:[#allocation3 + $0x8] sm:$0xff]
        %v5202 = vld [vmem:[#allocation3 + $0x10] sm:$0xff]
        %v5203 = vld [vmem:[#allocation3 + $0x18] sm:$0xff]
        %v5204 = vld [vmem:[#allocation3 + $0x20] sm:$0xff]
        %v5205 = vld [vmem:[#allocation3 + $0x28] sm:$0xff]
        %v5206 = vld [vmem:[#allocation3 + $0x30] sm:$0xff]
        %v5207 = vld [vmem:[#allocation3 + $0x38] sm:$0xff]
        %v5208 = vld [vmem:[#allocation3 + $0x40] sm:$0xff]
        %v5209 = vld [vmem:[#allocation3 + $0x48] sm:$0xff]
        %v5210 = vld [vmem:[#allocation3 + $0x50] sm:$0xff]
        %v5211 = vld [vmem:[#allocation3 + $0x58] sm:$0xff]
        %v5212 = vld [vmem:[#allocation3 + $0x60] sm:$0xff]
        %v5213 = vld [vmem:[#allocation3 + $0x68] sm:$0xff]
        %v5214 = vld [vmem:[#allocation3 + $0x70] sm:$0xff]
        %v5215 = vld [vmem:[#allocation3 + $0x78] sm:$0xff]
        %v5216 = vld [vmem:[#allocation3 + $0x80] sm:$0xff]
        %v5217 = vld [vmem:[#allocation3 + $0x88] sm:$0xff]
        %v5218 = vld [vmem:[#allocation3 + $0x90] sm:$0xff]
        %v5219 = vld [vmem:[#allocation3 + $0x98] sm:$0xff]
        %v5220 = vld [vmem:[#allocation3 + $0xa0] sm:$0xff]
        %v5221 = vld [vmem:[#allocation3 + $0xa8] sm:$0xff]
        %v5222 = vld [vmem:[#allocation3 + $0xb0] sm:$0xff]
        %v5223 = vld [vmem:[#allocation3 + $0xb8] sm:$0xff]
        %v5224 = vld [vmem:[#allocation3 + $0xc0] sm:$0xff]
        %v5225 = vld [vmem:[#allocation3 + $0xc8] sm:$0xff]
        %v5226 = vld [vmem:[#allocation3 + $0xd0] sm:$0xff]
        %v5227 = vld [vmem:[#allocation3 + $0xd8] sm:$0xff]
        %v5228 = vld [vmem:[#allocation3 + $0xe0] sm:$0xff]
        %v5229 = vld [vmem:[#allocation3 + $0xe8] sm:$0xff]
        %v5230 = vld [vmem:[#allocation3 + $0xf0] sm:$0xff]
        %v5231 = vld [vmem:[#allocation3 + $0xf8] sm:$0xff]
        %s5232 = scalar_lea.vmem [#allocation7], 1536
        %v5233 = vld [vmem:[%s5232] sm:$0xff]
        %v5234 = vld [vmem:[%s5232 + $0x8] sm:$0xff]
        %v5235 = vld [vmem:[%s5232 + $0x10] sm:$0xff]
        %v5236 = vld [vmem:[%s5232 + $0x18] sm:$0xff]
        %v5237 = vld [vmem:[%s5232 + $0x20] sm:$0xff]
        %v5238 = vld [vmem:[%s5232 + $0x28] sm:$0xff]
        %v5239 = vld [vmem:[%s5232 + $0x30] sm:$0xff]
        %v5240 = vld [vmem:[%s5232 + $0x38] sm:$0xff]
        %v5241 = vld [vmem:[%s5232 + $0x40] sm:$0xff]
        %v5242 = vld [vmem:[%s5232 + $0x48] sm:$0xff]
        %v5243 = vld [vmem:[%s5232 + $0x50] sm:$0xff]
        %v5244 = vld [vmem:[%s5232 + $0x58] sm:$0xff]
        %v5245 = vld [vmem:[%s5232 + $0x60] sm:$0xff]
        %v5246 = vld [vmem:[%s5232 + $0x68] sm:$0xff]
        %v5247 = vld [vmem:[%s5232 + $0x70] sm:$0xff]
        %v5248 = vld [vmem:[%s5232 + $0x78] sm:$0xff]
        %5249 = vmatprep.subr.mxu0 0.0
        %5250 = vmatpush1.msra.mxu0 %v5248
        %5251 = vmatprep.subr.mxu0 0.0
        %5252 = vmatpush1.msra.mxu0 %v5247
        %5253 = vmatprep.subr.mxu0 0.0
        %5254 = vmatpush1.msra.mxu0 %v5246
        %5255 = vmatprep.subr.mxu0 0.0
        %5256 = vmatpush1.msra.mxu0 %v5245
        %5257 = vmatprep.subr.mxu0 0.0
        %5258 = vmatpush1.msra.mxu0 %v5244
        %5259 = vmatprep.subr.mxu0 0.0
        %5260 = vmatpush1.msra.mxu0 %v5243
        %5261 = vmatprep.subr.mxu0 0.0
        %5262 = vmatpush1.msra.mxu0 %v5242
        %5263 = vmatprep.subr.mxu0 0.0
        %5264 = vmatpush1.msra.mxu0 %v5241
        %5265 = vmatprep.subr.mxu0 0.0
        %5266 = vmatpush1.msra.mxu0 %v5240
        %5267 = vmatprep.subr.mxu0 0.0
        %5268 = vmatpush1.msra.mxu0 %v5239
        %5269 = vmatprep.subr.mxu0 0.0
        %5270 = vmatpush1.msra.mxu0 %v5238
        %5271 = vmatprep.subr.mxu0 0.0
        %5272 = vmatpush1.msra.mxu0 %v5237
        %5273 = vmatprep.subr.mxu0 0.0
        %5274 = vmatpush1.msra.mxu0 %v5236
        %5275 = vmatprep.subr.mxu0 0.0
        %5276 = vmatpush1.msra.mxu0 %v5235
        %5277 = vmatprep.subr.mxu0 0.0
        %5278 = vmatpush1.msra.mxu0 %v5234
        %5279 = vmatprep.subr.mxu0 0.0
        %5280 = vmatpush1.msra.mxu0 %v5233
        %5281 = vmatprep.subr.mxu0 0.0
        %5282 = vmatpush2.msra.mxu0 0.0
        %5283 = vmatprep.subr.mxu0 0.0
        %5284 = vmatpush2.msra.mxu0 0.0
        %5285 = vmatprep.subr.mxu0 0.0
        %5286 = vmatpush2.msra.mxu0 0.0
        %5287 = vmatprep.subr.mxu0 0.0
        %5288 = vmatpush2.msra.mxu0 0.0
        %5289 = vmatprep.subr.mxu0 0.0
        %5290 = vmatpush2.msra.mxu0 0.0
        %5291 = vmatprep.subr.mxu0 0.0
        %5292 = vmatpush2.msra.mxu0 0.0
        %5293 = vmatprep.subr.mxu0 0.0
        %5294 = vmatpush2.msra.mxu0 0.0
        %5295 = vmatprep.subr.mxu0 0.0
        %5296 = vmatpush2.msra.mxu0 0.0
        %5297 = vmatprep.subr.mxu0 0.0
        %5298 = vmatpush2.msra.mxu0 0.0
        %5299 = vmatprep.subr.mxu0 0.0
        %5300 = vmatpush2.msra.mxu0 0.0
        %5301 = vmatprep.subr.mxu0 0.0
        %5302 = vmatpush2.msra.mxu0 0.0
        %5303 = vmatprep.subr.mxu0 0.0
        %5304 = vmatpush2.msra.mxu0 0.0
        %5305 = vmatprep.subr.mxu0 0.0
        %5306 = vmatpush2.msra.mxu0 0.0
        %5307 = vmatprep.subr.mxu0 0.0
        %5308 = vmatpush2.msra.mxu0 0.0
        %5309 = vmatprep.subr.mxu0 0.0
        %5310 = vmatpush2.msra.mxu0 0.0
        %5311 = vmatprep.subr.mxu0 0.0
        %5312 = vmatpush2.msra.mxu0 0.0
        %5313 = vmatprep.mubr.f32.mxu0 0.0
        %5314 = vmatmul.mubr.f32.gmra.mxu0 %v5168
        %v5315 = vpop.f32.mrf.mxu0
        %v5316 = vadd.f32 0.0, %v5315
        %v5317 = vpop.f32.mrf.mxu0
        %5318 = vmatprep.mubr.f32.mxu0 0.0
        %5319 = vmatmul.mubr.f32.gmra.mxu0 %v5169
        %v5320 = vpop.f32.mrf.mxu0
        %v5321 = vadd.f32 0.0, %v5320
        %v5322 = vpop.f32.mrf.mxu0
        %5323 = vmatprep.mubr.f32.mxu0 0.0
        %5324 = vmatmul.mubr.f32.gmra.mxu0 %v5170
        %v5325 = vpop.f32.mrf.mxu0
        %v5326 = vadd.f32 0.0, %v5325
        %v5327 = vpop.f32.mrf.mxu0
        %5328 = vmatprep.mubr.f32.mxu0 0.0
        %5329 = vmatmul.mubr.f32.gmra.mxu0 %v5171
        %v5330 = vpop.f32.mrf.mxu0
        %v5331 = vadd.f32 0.0, %v5330
        %v5332 = vpop.f32.mrf.mxu0
        %5333 = vmatprep.mubr.f32.mxu0 0.0
        %5334 = vmatmul.mubr.f32.gmra.mxu0 %v5172
        %v5335 = vpop.f32.mrf.mxu0
        %v5336 = vadd.f32 0.0, %v5335
        %v5337 = vpop.f32.mrf.mxu0
        %5338 = vmatprep.mubr.f32.mxu0 0.0
        %5339 = vmatmul.mubr.f32.gmra.mxu0 %v5173
        %v5340 = vpop.f32.mrf.mxu0
        %v5341 = vadd.f32 0.0, %v5340
        %v5342 = vpop.f32.mrf.mxu0
        %5343 = vmatprep.mubr.f32.mxu0 0.0
        %5344 = vmatmul.mubr.f32.gmra.mxu0 %v5174
        %v5345 = vpop.f32.mrf.mxu0
        %v5346 = vadd.f32 0.0, %v5345
        %v5347 = vpop.f32.mrf.mxu0
        %5348 = vmatprep.mubr.f32.mxu0 0.0
        %5349 = vmatmul.mubr.f32.gmra.mxu0 %v5175
        %v5350 = vpop.f32.mrf.mxu0
        %v5351 = vadd.f32 0.0, %v5350
        %v5352 = vpop.f32.mrf.mxu0
        %5353 = vmatprep.mubr.f32.mxu0 0.0
        %5354 = vmatmul.mubr.f32.gmra.mxu0 %v5176
        %v5355 = vpop.f32.mrf.mxu0
        %v5356 = vadd.f32 0.0, %v5355
        %v5357 = vpop.f32.mrf.mxu0
        %5358 = vmatprep.mubr.f32.mxu0 0.0
        %5359 = vmatmul.mubr.f32.gmra.mxu0 %v5177
        %v5360 = vpop.f32.mrf.mxu0
        %v5361 = vadd.f32 0.0, %v5360
        %v5362 = vpop.f32.mrf.mxu0
        %5363 = vmatprep.mubr.f32.mxu0 0.0
        %5364 = vmatmul.mubr.f32.gmra.mxu0 %v5178
        %v5365 = vpop.f32.mrf.mxu0
        %v5366 = vadd.f32 0.0, %v5365
        %v5367 = vpop.f32.mrf.mxu0
        %5368 = vmatprep.mubr.f32.mxu0 0.0
        %5369 = vmatmul.mubr.f32.gmra.mxu0 %v5179
        %v5370 = vpop.f32.mrf.mxu0
        %v5371 = vadd.f32 0.0, %v5370
        %v5372 = vpop.f32.mrf.mxu0
        %5373 = vmatprep.mubr.f32.mxu0 0.0
        %5374 = vmatmul.mubr.f32.gmra.mxu0 %v5180
        %v5375 = vpop.f32.mrf.mxu0
        %v5376 = vadd.f32 0.0, %v5375
        %v5377 = vpop.f32.mrf.mxu0
        %5378 = vmatprep.mubr.f32.mxu0 0.0
        %5379 = vmatmul.mubr.f32.gmra.mxu0 %v5181
        %v5380 = vpop.f32.mrf.mxu0
        %v5381 = vadd.f32 0.0, %v5380
        %v5382 = vpop.f32.mrf.mxu0
        %5383 = vmatprep.mubr.f32.mxu0 0.0
        %5384 = vmatmul.mubr.f32.gmra.mxu0 %v5182
        %v5385 = vpop.f32.mrf.mxu0
        %v5386 = vadd.f32 0.0, %v5385
        %v5387 = vpop.f32.mrf.mxu0
        %5388 = vmatprep.mubr.f32.mxu0 0.0
        %5389 = vmatmul.mubr.f32.gmra.mxu0 %v5183
        %v5390 = vpop.f32.mrf.mxu0
        %v5391 = vadd.f32 0.0, %v5390
        %v5392 = vpop.f32.mrf.mxu0
        %5393 = vmatprep.mubr.f32.mxu0 0.0
        %5394 = vmatmul.mubr.f32.gmra.mxu0 %v5184
        %v5395 = vpop.f32.mrf.mxu0
        %v5396 = vadd.f32 0.0, %v5395
        %v5397 = vpop.f32.mrf.mxu0
        %5398 = vmatprep.mubr.f32.mxu0 0.0
        %5399 = vmatmul.mubr.f32.gmra.mxu0 %v5185
        %v5400 = vpop.f32.mrf.mxu0
        %v5401 = vadd.f32 0.0, %v5400
        %v5402 = vpop.f32.mrf.mxu0
        %5403 = vmatprep.mubr.f32.mxu0 0.0
        %5404 = vmatmul.mubr.f32.gmra.mxu0 %v5186
        %v5405 = vpop.f32.mrf.mxu0
        %v5406 = vadd.f32 0.0, %v5405
        %v5407 = vpop.f32.mrf.mxu0
        %5408 = vmatprep.mubr.f32.mxu0 0.0
        %5409 = vmatmul.mubr.f32.gmra.mxu0 %v5187
        %v5410 = vpop.f32.mrf.mxu0
        %v5411 = vadd.f32 0.0, %v5410
        %v5412 = vpop.f32.mrf.mxu0
        %5413 = vmatprep.mubr.f32.mxu0 0.0
        %5414 = vmatmul.mubr.f32.gmra.mxu0 %v5188
        %v5415 = vpop.f32.mrf.mxu0
        %v5416 = vadd.f32 0.0, %v5415
        %v5417 = vpop.f32.mrf.mxu0
        %5418 = vmatprep.mubr.f32.mxu0 0.0
        %5419 = vmatmul.mubr.f32.gmra.mxu0 %v5189
        %v5420 = vpop.f32.mrf.mxu0
        %v5421 = vadd.f32 0.0, %v5420
        %v5422 = vpop.f32.mrf.mxu0
        %5423 = vmatprep.mubr.f32.mxu0 0.0
        %5424 = vmatmul.mubr.f32.gmra.mxu0 %v5190
        %v5425 = vpop.f32.mrf.mxu0
        %v5426 = vadd.f32 0.0, %v5425
        %v5427 = vpop.f32.mrf.mxu0
        %5428 = vmatprep.mubr.f32.mxu0 0.0
        %5429 = vmatmul.mubr.f32.gmra.mxu0 %v5191
        %v5430 = vpop.f32.mrf.mxu0
        %v5431 = vadd.f32 0.0, %v5430
        %v5432 = vpop.f32.mrf.mxu0
        %5433 = vmatprep.mubr.f32.mxu0 0.0
        %5434 = vmatmul.mubr.f32.gmra.mxu0 %v5192
        %v5435 = vpop.f32.mrf.mxu0
        %v5436 = vadd.f32 0.0, %v5435
        %v5437 = vpop.f32.mrf.mxu0
        %5438 = vmatprep.mubr.f32.mxu0 0.0
        %5439 = vmatmul.mubr.f32.gmra.mxu0 %v5193
        %v5440 = vpop.f32.mrf.mxu0
        %v5441 = vadd.f32 0.0, %v5440
        %v5442 = vpop.f32.mrf.mxu0
        %5443 = vmatprep.mubr.f32.mxu0 0.0
        %5444 = vmatmul.mubr.f32.gmra.mxu0 %v5194
        %v5445 = vpop.f32.mrf.mxu0
        %v5446 = vadd.f32 0.0, %v5445
        %v5447 = vpop.f32.mrf.mxu0
        %5448 = vmatprep.mubr.f32.mxu0 0.0
        %5449 = vmatmul.mubr.f32.gmra.mxu0 %v5195
        %v5450 = vpop.f32.mrf.mxu0
        %v5451 = vadd.f32 0.0, %v5450
        %v5452 = vpop.f32.mrf.mxu0
        %5453 = vmatprep.mubr.f32.mxu0 0.0
        %5454 = vmatmul.mubr.f32.gmra.mxu0 %v5196
        %v5455 = vpop.f32.mrf.mxu0
        %v5456 = vadd.f32 0.0, %v5455
        %v5457 = vpop.f32.mrf.mxu0
        %5458 = vmatprep.mubr.f32.mxu0 0.0
        %5459 = vmatmul.mubr.f32.gmra.mxu0 %v5197
        %v5460 = vpop.f32.mrf.mxu0
        %v5461 = vadd.f32 0.0, %v5460
        %v5462 = vpop.f32.mrf.mxu0
        %5463 = vmatprep.mubr.f32.mxu0 0.0
        %5464 = vmatmul.mubr.f32.gmra.mxu0 %v5198
        %v5465 = vpop.f32.mrf.mxu0
        %v5466 = vadd.f32 0.0, %v5465
        %v5467 = vpop.f32.mrf.mxu0
        %5468 = vmatprep.mubr.f32.mxu0 0.0
        %5469 = vmatmul.mubr.f32.gmra.mxu0 %v5199
        %v5470 = vpop.f32.mrf.mxu0
        %v5471 = vadd.f32 0.0, %v5470
        %v5472 = vpop.f32.mrf.mxu0
        %5473 = vdwg.mxu0
        %v5474 = vadd.f32 %v5200, %v5316
        %v5475 = vadd.f32 %v5201, %v5321
        %v5476 = vadd.f32 %v5202, %v5326
        %v5477 = vadd.f32 %v5203, %v5331
        %v5478 = vadd.f32 %v5204, %v5336
        %v5479 = vadd.f32 %v5205, %v5341
        %v5480 = vadd.f32 %v5206, %v5346
        %v5481 = vadd.f32 %v5207, %v5351
        %v5482 = vadd.f32 %v5208, %v5356
        %v5483 = vadd.f32 %v5209, %v5361
        %v5484 = vadd.f32 %v5210, %v5366
        %v5485 = vadd.f32 %v5211, %v5371
        %v5486 = vadd.f32 %v5212, %v5376
        %v5487 = vadd.f32 %v5213, %v5381
        %v5488 = vadd.f32 %v5214, %v5386
        %v5489 = vadd.f32 %v5215, %v5391
        %v5490 = vadd.f32 %v5216, %v5396
        %v5491 = vadd.f32 %v5217, %v5401
        %v5492 = vadd.f32 %v5218, %v5406
        %v5493 = vadd.f32 %v5219, %v5411
        %v5494 = vadd.f32 %v5220, %v5416
        %v5495 = vadd.f32 %v5221, %v5421
        %v5496 = vadd.f32 %v5222, %v5426
        %v5497 = vadd.f32 %v5223, %v5431
        %v5498 = vadd.f32 %v5224, %v5436
        %v5499 = vadd.f32 %v5225, %v5441
        %v5500 = vadd.f32 %v5226, %v5446
        %v5501 = vadd.f32 %v5227, %v5451
        %v5502 = vadd.f32 %v5228, %v5456
        %v5503 = vadd.f32 %v5229, %v5461
        %v5504 = vadd.f32 %v5230, %v5466
        %v5505 = vadd.f32 %v5231, %v5471
        %5506 = vst [vmem:[#allocation3] sm:$0xff] %v5474
        %5507 = vst [vmem:[#allocation3 + $0x8] sm:$0xff] %v5475
        %5508 = vst [vmem:[#allocation3 + $0x10] sm:$0xff] %v5476
        %5509 = vst [vmem:[#allocation3 + $0x18] sm:$0xff] %v5477
        %5510 = vst [vmem:[#allocation3 + $0x20] sm:$0xff] %v5478
        %5511 = vst [vmem:[#allocation3 + $0x28] sm:$0xff] %v5479
        %5512 = vst [vmem:[#allocation3 + $0x30] sm:$0xff] %v5480
        %5513 = vst [vmem:[#allocation3 + $0x38] sm:$0xff] %v5481
        %5514 = vst [vmem:[#allocation3 + $0x40] sm:$0xff] %v5482
        %5515 = vst [vmem:[#allocation3 + $0x48] sm:$0xff] %v5483
        %5516 = vst [vmem:[#allocation3 + $0x50] sm:$0xff] %v5484
        %5517 = vst [vmem:[#allocation3 + $0x58] sm:$0xff] %v5485
        %5518 = vst [vmem:[#allocation3 + $0x60] sm:$0xff] %v5486
        %5519 = vst [vmem:[#allocation3 + $0x68] sm:$0xff] %v5487
        %5520 = vst [vmem:[#allocation3 + $0x70] sm:$0xff] %v5488
        %5521 = vst [vmem:[#allocation3 + $0x78] sm:$0xff] %v5489
        %5522 = vst [vmem:[#allocation3 + $0x80] sm:$0xff] %v5490
        %5523 = vst [vmem:[#allocation3 + $0x88] sm:$0xff] %v5491
        %5524 = vst [vmem:[#allocation3 + $0x90] sm:$0xff] %v5492
        %5525 = vst [vmem:[#allocation3 + $0x98] sm:$0xff] %v5493
        %5526 = vst [vmem:[#allocation3 + $0xa0] sm:$0xff] %v5494
        %5527 = vst [vmem:[#allocation3 + $0xa8] sm:$0xff] %v5495
        %5528 = vst [vmem:[#allocation3 + $0xb0] sm:$0xff] %v5496
        %5529 = vst [vmem:[#allocation3 + $0xb8] sm:$0xff] %v5497
        %5530 = vst [vmem:[#allocation3 + $0xc0] sm:$0xff] %v5498
        %5531 = vst [vmem:[#allocation3 + $0xc8] sm:$0xff] %v5499
        %5532 = vst [vmem:[#allocation3 + $0xd0] sm:$0xff] %v5500
        %5533 = vst [vmem:[#allocation3 + $0xd8] sm:$0xff] %v5501
        %5534 = vst [vmem:[#allocation3 + $0xe0] sm:$0xff] %v5502
        %5535 = vst [vmem:[#allocation3 + $0xe8] sm:$0xff] %v5503
        %5536 = vst [vmem:[#allocation3 + $0xf0] sm:$0xff] %v5504
        %5537 = vst [vmem:[#allocation3 + $0xf8] sm:$0xff] %v5505
        %v5538 = vld [vmem:[%s304 + $0x1] sm:$0xff]
        %v5539 = vld [vmem:[%s304 + $0x9] sm:$0xff]
        %v5540 = vld [vmem:[%s304 + $0x19] sm:$0xff]
        %v5541 = vld [vmem:[%s304 + $0x21] sm:$0xff]
        %v5542 = vld [vmem:[%s304 + $0x31] sm:$0xff]
        %v5543 = vld [vmem:[%s304 + $0x39] sm:$0xff]
        %v5544 = vld [vmem:[%s304 + $0x49] sm:$0xff]
        %v5545 = vld [vmem:[%s304 + $0x51] sm:$0xff]
        %v5546 = vld [vmem:[%s304 + $0x61] sm:$0xff]
        %v5547 = vld [vmem:[%s304 + $0x69] sm:$0xff]
        %v5548 = vld [vmem:[%s304 + $0x79] sm:$0xff]
        %v5549 = vld [vmem:[%s304 + $0x81] sm:$0xff]
        %v5550 = vld [vmem:[%s304 + $0x91] sm:$0xff]
        %v5551 = vld [vmem:[%s304 + $0x99] sm:$0xff]
        %v5552 = vld [vmem:[%s304 + $0xa9] sm:$0xff]
        %v5553 = vld [vmem:[%s304 + $0xb1] sm:$0xff]
        %v5554 = vld [vmem:[%s304 + $0xc1] sm:$0xff]
        %v5555 = vld [vmem:[%s304 + $0xc9] sm:$0xff]
        %v5556 = vld [vmem:[%s304 + $0xd9] sm:$0xff]
        %v5557 = vld [vmem:[%s304 + $0xe1] sm:$0xff]
        %v5558 = vld [vmem:[%s304 + $0xf1] sm:$0xff]
        %v5559 = vld [vmem:[%s304 + $0xf9] sm:$0xff]
        %v5560 = vld [vmem:[%s304 + $0x109] sm:$0xff]
        %v5561 = vld [vmem:[%s304 + $0x111] sm:$0xff]
        %v5562 = vld [vmem:[%s304 + $0x121] sm:$0xff]
        %v5563 = vld [vmem:[%s304 + $0x129] sm:$0xff]
        %v5564 = vld [vmem:[%s304 + $0x139] sm:$0xff]
        %v5565 = vld [vmem:[%s304 + $0x141] sm:$0xff]
        %v5566 = vld [vmem:[%s304 + $0x151] sm:$0xff]
        %v5567 = vld [vmem:[%s304 + $0x159] sm:$0xff]
        %v5568 = vld [vmem:[%s304 + $0x169] sm:$0xff]
        %v5569 = vld [vmem:[%s304 + $0x171] sm:$0xff]
        %v5570 = vld [vmem:[#allocation3] sm:$0xff]
        %v5571 = vld [vmem:[#allocation3 + $0x8] sm:$0xff]
        %v5572 = vld [vmem:[#allocation3 + $0x10] sm:$0xff]
        %v5573 = vld [vmem:[#allocation3 + $0x18] sm:$0xff]
        %v5574 = vld [vmem:[#allocation3 + $0x20] sm:$0xff]
        %v5575 = vld [vmem:[#allocation3 + $0x28] sm:$0xff]
        %v5576 = vld [vmem:[#allocation3 + $0x30] sm:$0xff]
        %v5577 = vld [vmem:[#allocation3 + $0x38] sm:$0xff]
        %v5578 = vld [vmem:[#allocation3 + $0x40] sm:$0xff]
        %v5579 = vld [vmem:[#allocation3 + $0x48] sm:$0xff]
        %v5580 = vld [vmem:[#allocation3 + $0x50] sm:$0xff]
        %v5581 = vld [vmem:[#allocation3 + $0x58] sm:$0xff]
        %v5582 = vld [vmem:[#allocation3 + $0x60] sm:$0xff]
        %v5583 = vld [vmem:[#allocation3 + $0x68] sm:$0xff]
        %v5584 = vld [vmem:[#allocation3 + $0x70] sm:$0xff]
        %v5585 = vld [vmem:[#allocation3 + $0x78] sm:$0xff]
        %v5586 = vld [vmem:[#allocation3 + $0x80] sm:$0xff]
        %v5587 = vld [vmem:[#allocation3 + $0x88] sm:$0xff]
        %v5588 = vld [vmem:[#allocation3 + $0x90] sm:$0xff]
        %v5589 = vld [vmem:[#allocation3 + $0x98] sm:$0xff]
        %v5590 = vld [vmem:[#allocation3 + $0xa0] sm:$0xff]
        %v5591 = vld [vmem:[#allocation3 + $0xa8] sm:$0xff]
        %v5592 = vld [vmem:[#allocation3 + $0xb0] sm:$0xff]
        %v5593 = vld [vmem:[#allocation3 + $0xb8] sm:$0xff]
        %v5594 = vld [vmem:[#allocation3 + $0xc0] sm:$0xff]
        %v5595 = vld [vmem:[#allocation3 + $0xc8] sm:$0xff]
        %v5596 = vld [vmem:[#allocation3 + $0xd0] sm:$0xff]
        %v5597 = vld [vmem:[#allocation3 + $0xd8] sm:$0xff]
        %v5598 = vld [vmem:[#allocation3 + $0xe0] sm:$0xff]
        %v5599 = vld [vmem:[#allocation3 + $0xe8] sm:$0xff]
        %v5600 = vld [vmem:[#allocation3 + $0xf0] sm:$0xff]
        %v5601 = vld [vmem:[#allocation3 + $0xf8] sm:$0xff]
        %s5602 = scalar_lea.vmem [#allocation7], 1664
        %v5603 = vld [vmem:[%s5602] sm:$0xff]
        %v5604 = vld [vmem:[%s5602 + $0x8] sm:$0xff]
        %v5605 = vld [vmem:[%s5602 + $0x10] sm:$0xff]
        %v5606 = vld [vmem:[%s5602 + $0x18] sm:$0xff]
        %v5607 = vld [vmem:[%s5602 + $0x20] sm:$0xff]
        %v5608 = vld [vmem:[%s5602 + $0x28] sm:$0xff]
        %v5609 = vld [vmem:[%s5602 + $0x30] sm:$0xff]
        %v5610 = vld [vmem:[%s5602 + $0x38] sm:$0xff]
        %v5611 = vld [vmem:[%s5602 + $0x40] sm:$0xff]
        %v5612 = vld [vmem:[%s5602 + $0x48] sm:$0xff]
        %v5613 = vld [vmem:[%s5602 + $0x50] sm:$0xff]
        %v5614 = vld [vmem:[%s5602 + $0x58] sm:$0xff]
        %v5615 = vld [vmem:[%s5602 + $0x60] sm:$0xff]
        %v5616 = vld [vmem:[%s5602 + $0x68] sm:$0xff]
        %v5617 = vld [vmem:[%s5602 + $0x70] sm:$0xff]
        %v5618 = vld [vmem:[%s5602 + $0x78] sm:$0xff]
        %5619 = vmatprep.subr.mxu0 0.0
        %5620 = vmatpush1.msra.mxu0 %v5618
        %5621 = vmatprep.subr.mxu0 0.0
        %5622 = vmatpush1.msra.mxu0 %v5617
        %5623 = vmatprep.subr.mxu0 0.0
        %5624 = vmatpush1.msra.mxu0 %v5616
        %5625 = vmatprep.subr.mxu0 0.0
        %5626 = vmatpush1.msra.mxu0 %v5615
        %5627 = vmatprep.subr.mxu0 0.0
        %5628 = vmatpush1.msra.mxu0 %v5614
        %5629 = vmatprep.subr.mxu0 0.0
        %5630 = vmatpush1.msra.mxu0 %v5613
        %5631 = vmatprep.subr.mxu0 0.0
        %5632 = vmatpush1.msra.mxu0 %v5612
        %5633 = vmatprep.subr.mxu0 0.0
        %5634 = vmatpush1.msra.mxu0 %v5611
        %5635 = vmatprep.subr.mxu0 0.0
        %5636 = vmatpush1.msra.mxu0 %v5610
        %5637 = vmatprep.subr.mxu0 0.0
        %5638 = vmatpush1.msra.mxu0 %v5609
        %5639 = vmatprep.subr.mxu0 0.0
        %5640 = vmatpush1.msra.mxu0 %v5608
        %5641 = vmatprep.subr.mxu0 0.0
        %5642 = vmatpush1.msra.mxu0 %v5607
        %5643 = vmatprep.subr.mxu0 0.0
        %5644 = vmatpush1.msra.mxu0 %v5606
        %5645 = vmatprep.subr.mxu0 0.0
        %5646 = vmatpush1.msra.mxu0 %v5605
        %5647 = vmatprep.subr.mxu0 0.0
        %5648 = vmatpush1.msra.mxu0 %v5604
        %5649 = vmatprep.subr.mxu0 0.0
        %5650 = vmatpush1.msra.mxu0 %v5603
        %5651 = vmatprep.subr.mxu0 0.0
        %5652 = vmatpush2.msra.mxu0 0.0
        %5653 = vmatprep.subr.mxu0 0.0
        %5654 = vmatpush2.msra.mxu0 0.0
        %5655 = vmatprep.subr.mxu0 0.0
        %5656 = vmatpush2.msra.mxu0 0.0
        %5657 = vmatprep.subr.mxu0 0.0
        %5658 = vmatpush2.msra.mxu0 0.0
        %5659 = vmatprep.subr.mxu0 0.0
        %5660 = vmatpush2.msra.mxu0 0.0
        %5661 = vmatprep.subr.mxu0 0.0
        %5662 = vmatpush2.msra.mxu0 0.0
        %5663 = vmatprep.subr.mxu0 0.0
        %5664 = vmatpush2.msra.mxu0 0.0
        %5665 = vmatprep.subr.mxu0 0.0
        %5666 = vmatpush2.msra.mxu0 0.0
        %5667 = vmatprep.subr.mxu0 0.0
        %5668 = vmatpush2.msra.mxu0 0.0
        %5669 = vmatprep.subr.mxu0 0.0
        %5670 = vmatpush2.msra.mxu0 0.0
        %5671 = vmatprep.subr.mxu0 0.0
        %5672 = vmatpush2.msra.mxu0 0.0
        %5673 = vmatprep.subr.mxu0 0.0
        %5674 = vmatpush2.msra.mxu0 0.0
        %5675 = vmatprep.subr.mxu0 0.0
        %5676 = vmatpush2.msra.mxu0 0.0
        %5677 = vmatprep.subr.mxu0 0.0
        %5678 = vmatpush2.msra.mxu0 0.0
        %5679 = vmatprep.subr.mxu0 0.0
        %5680 = vmatpush2.msra.mxu0 0.0
        %5681 = vmatprep.subr.mxu0 0.0
        %5682 = vmatpush2.msra.mxu0 0.0
        %5683 = vmatprep.mubr.f32.mxu0 0.0
        %5684 = vmatmul.mubr.f32.gmra.mxu0 %v5538
        %v5685 = vpop.f32.mrf.mxu0
        %v5686 = vadd.f32 0.0, %v5685
        %v5687 = vpop.f32.mrf.mxu0
        %5688 = vmatprep.mubr.f32.mxu0 0.0
        %5689 = vmatmul.mubr.f32.gmra.mxu0 %v5539
        %v5690 = vpop.f32.mrf.mxu0
        %v5691 = vadd.f32 0.0, %v5690
        %v5692 = vpop.f32.mrf.mxu0
        %5693 = vmatprep.mubr.f32.mxu0 0.0
        %5694 = vmatmul.mubr.f32.gmra.mxu0 %v5540
        %v5695 = vpop.f32.mrf.mxu0
        %v5696 = vadd.f32 0.0, %v5695
        %v5697 = vpop.f32.mrf.mxu0
        %5698 = vmatprep.mubr.f32.mxu0 0.0
        %5699 = vmatmul.mubr.f32.gmra.mxu0 %v5541
        %v5700 = vpop.f32.mrf.mxu0
        %v5701 = vadd.f32 0.0, %v5700
        %v5702 = vpop.f32.mrf.mxu0
        %5703 = vmatprep.mubr.f32.mxu0 0.0
        %5704 = vmatmul.mubr.f32.gmra.mxu0 %v5542
        %v5705 = vpop.f32.mrf.mxu0
        %v5706 = vadd.f32 0.0, %v5705
        %v5707 = vpop.f32.mrf.mxu0
        %5708 = vmatprep.mubr.f32.mxu0 0.0
        %5709 = vmatmul.mubr.f32.gmra.mxu0 %v5543
        %v5710 = vpop.f32.mrf.mxu0
        %v5711 = vadd.f32 0.0, %v5710
        %v5712 = vpop.f32.mrf.mxu0
        %5713 = vmatprep.mubr.f32.mxu0 0.0
        %5714 = vmatmul.mubr.f32.gmra.mxu0 %v5544
        %v5715 = vpop.f32.mrf.mxu0
        %v5716 = vadd.f32 0.0, %v5715
        %v5717 = vpop.f32.mrf.mxu0
        %5718 = vmatprep.mubr.f32.mxu0 0.0
        %5719 = vmatmul.mubr.f32.gmra.mxu0 %v5545
        %v5720 = vpop.f32.mrf.mxu0
        %v5721 = vadd.f32 0.0, %v5720
        %v5722 = vpop.f32.mrf.mxu0
        %5723 = vmatprep.mubr.f32.mxu0 0.0
        %5724 = vmatmul.mubr.f32.gmra.mxu0 %v5546
        %v5725 = vpop.f32.mrf.mxu0
        %v5726 = vadd.f32 0.0, %v5725
        %v5727 = vpop.f32.mrf.mxu0
        %5728 = vmatprep.mubr.f32.mxu0 0.0
        %5729 = vmatmul.mubr.f32.gmra.mxu0 %v5547
        %v5730 = vpop.f32.mrf.mxu0
        %v5731 = vadd.f32 0.0, %v5730
        %v5732 = vpop.f32.mrf.mxu0
        %5733 = vmatprep.mubr.f32.mxu0 0.0
        %5734 = vmatmul.mubr.f32.gmra.mxu0 %v5548
        %v5735 = vpop.f32.mrf.mxu0
        %v5736 = vadd.f32 0.0, %v5735
        %v5737 = vpop.f32.mrf.mxu0
        %5738 = vmatprep.mubr.f32.mxu0 0.0
        %5739 = vmatmul.mubr.f32.gmra.mxu0 %v5549
        %v5740 = vpop.f32.mrf.mxu0
        %v5741 = vadd.f32 0.0, %v5740
        %v5742 = vpop.f32.mrf.mxu0
        %5743 = vmatprep.mubr.f32.mxu0 0.0
        %5744 = vmatmul.mubr.f32.gmra.mxu0 %v5550
        %v5745 = vpop.f32.mrf.mxu0
        %v5746 = vadd.f32 0.0, %v5745
        %v5747 = vpop.f32.mrf.mxu0
        %5748 = vmatprep.mubr.f32.mxu0 0.0
        %5749 = vmatmul.mubr.f32.gmra.mxu0 %v5551
        %v5750 = vpop.f32.mrf.mxu0
        %v5751 = vadd.f32 0.0, %v5750
        %v5752 = vpop.f32.mrf.mxu0
        %5753 = vmatprep.mubr.f32.mxu0 0.0
        %5754 = vmatmul.mubr.f32.gmra.mxu0 %v5552
        %v5755 = vpop.f32.mrf.mxu0
        %v5756 = vadd.f32 0.0, %v5755
        %v5757 = vpop.f32.mrf.mxu0
        %5758 = vmatprep.mubr.f32.mxu0 0.0
        %5759 = vmatmul.mubr.f32.gmra.mxu0 %v5553
        %v5760 = vpop.f32.mrf.mxu0
        %v5761 = vadd.f32 0.0, %v5760
        %v5762 = vpop.f32.mrf.mxu0
        %5763 = vmatprep.mubr.f32.mxu0 0.0
        %5764 = vmatmul.mubr.f32.gmra.mxu0 %v5554
        %v5765 = vpop.f32.mrf.mxu0
        %v5766 = vadd.f32 0.0, %v5765
        %v5767 = vpop.f32.mrf.mxu0
        %5768 = vmatprep.mubr.f32.mxu0 0.0
        %5769 = vmatmul.mubr.f32.gmra.mxu0 %v5555
        %v5770 = vpop.f32.mrf.mxu0
        %v5771 = vadd.f32 0.0, %v5770
        %v5772 = vpop.f32.mrf.mxu0
        %5773 = vmatprep.mubr.f32.mxu0 0.0
        %5774 = vmatmul.mubr.f32.gmra.mxu0 %v5556
        %v5775 = vpop.f32.mrf.mxu0
        %v5776 = vadd.f32 0.0, %v5775
        %v5777 = vpop.f32.mrf.mxu0
        %5778 = vmatprep.mubr.f32.mxu0 0.0
        %5779 = vmatmul.mubr.f32.gmra.mxu0 %v5557
        %v5780 = vpop.f32.mrf.mxu0
        %v5781 = vadd.f32 0.0, %v5780
        %v5782 = vpop.f32.mrf.mxu0
        %5783 = vmatprep.mubr.f32.mxu0 0.0
        %5784 = vmatmul.mubr.f32.gmra.mxu0 %v5558
        %v5785 = vpop.f32.mrf.mxu0
        %v5786 = vadd.f32 0.0, %v5785
        %v5787 = vpop.f32.mrf.mxu0
        %5788 = vmatprep.mubr.f32.mxu0 0.0
        %5789 = vmatmul.mubr.f32.gmra.mxu0 %v5559
        %v5790 = vpop.f32.mrf.mxu0
        %v5791 = vadd.f32 0.0, %v5790
        %v5792 = vpop.f32.mrf.mxu0
        %5793 = vmatprep.mubr.f32.mxu0 0.0
        %5794 = vmatmul.mubr.f32.gmra.mxu0 %v5560
        %v5795 = vpop.f32.mrf.mxu0
        %v5796 = vadd.f32 0.0, %v5795
        %v5797 = vpop.f32.mrf.mxu0
        %5798 = vmatprep.mubr.f32.mxu0 0.0
        %5799 = vmatmul.mubr.f32.gmra.mxu0 %v5561
        %v5800 = vpop.f32.mrf.mxu0
        %v5801 = vadd.f32 0.0, %v5800
        %v5802 = vpop.f32.mrf.mxu0
        %5803 = vmatprep.mubr.f32.mxu0 0.0
        %5804 = vmatmul.mubr.f32.gmra.mxu0 %v5562
        %v5805 = vpop.f32.mrf.mxu0
        %v5806 = vadd.f32 0.0, %v5805
        %v5807 = vpop.f32.mrf.mxu0
        %5808 = vmatprep.mubr.f32.mxu0 0.0
        %5809 = vmatmul.mubr.f32.gmra.mxu0 %v5563
        %v5810 = vpop.f32.mrf.mxu0
        %v5811 = vadd.f32 0.0, %v5810
        %v5812 = vpop.f32.mrf.mxu0
        %5813 = vmatprep.mubr.f32.mxu0 0.0
        %5814 = vmatmul.mubr.f32.gmra.mxu0 %v5564
        %v5815 = vpop.f32.mrf.mxu0
        %v5816 = vadd.f32 0.0, %v5815
        %v5817 = vpop.f32.mrf.mxu0
        %5818 = vmatprep.mubr.f32.mxu0 0.0
        %5819 = vmatmul.mubr.f32.gmra.mxu0 %v5565
        %v5820 = vpop.f32.mrf.mxu0
        %v5821 = vadd.f32 0.0, %v5820
        %v5822 = vpop.f32.mrf.mxu0
        %5823 = vmatprep.mubr.f32.mxu0 0.0
        %5824 = vmatmul.mubr.f32.gmra.mxu0 %v5566
        %v5825 = vpop.f32.mrf.mxu0
        %v5826 = vadd.f32 0.0, %v5825
        %v5827 = vpop.f32.mrf.mxu0
        %5828 = vmatprep.mubr.f32.mxu0 0.0
        %5829 = vmatmul.mubr.f32.gmra.mxu0 %v5567
        %v5830 = vpop.f32.mrf.mxu0
        %v5831 = vadd.f32 0.0, %v5830
        %v5832 = vpop.f32.mrf.mxu0
        %5833 = vmatprep.mubr.f32.mxu0 0.0
        %5834 = vmatmul.mubr.f32.gmra.mxu0 %v5568
        %v5835 = vpop.f32.mrf.mxu0
        %v5836 = vadd.f32 0.0, %v5835
        %v5837 = vpop.f32.mrf.mxu0
        %5838 = vmatprep.mubr.f32.mxu0 0.0
        %5839 = vmatmul.mubr.f32.gmra.mxu0 %v5569
        %v5840 = vpop.f32.mrf.mxu0
        %v5841 = vadd.f32 0.0, %v5840
        %v5842 = vpop.f32.mrf.mxu0
        %5843 = vdwg.mxu0
        %v5844 = vadd.f32 %v5570, %v5686
        %v5845 = vadd.f32 %v5571, %v5691
        %v5846 = vadd.f32 %v5572, %v5696
        %v5847 = vadd.f32 %v5573, %v5701
        %v5848 = vadd.f32 %v5574, %v5706
        %v5849 = vadd.f32 %v5575, %v5711
        %v5850 = vadd.f32 %v5576, %v5716
        %v5851 = vadd.f32 %v5577, %v5721
        %v5852 = vadd.f32 %v5578, %v5726
        %v5853 = vadd.f32 %v5579, %v5731
        %v5854 = vadd.f32 %v5580, %v5736
        %v5855 = vadd.f32 %v5581, %v5741
        %v5856 = vadd.f32 %v5582, %v5746
        %v5857 = vadd.f32 %v5583, %v5751
        %v5858 = vadd.f32 %v5584, %v5756
        %v5859 = vadd.f32 %v5585, %v5761
        %v5860 = vadd.f32 %v5586, %v5766
        %v5861 = vadd.f32 %v5587, %v5771
        %v5862 = vadd.f32 %v5588, %v5776
        %v5863 = vadd.f32 %v5589, %v5781
        %v5864 = vadd.f32 %v5590, %v5786
        %v5865 = vadd.f32 %v5591, %v5791
        %v5866 = vadd.f32 %v5592, %v5796
        %v5867 = vadd.f32 %v5593, %v5801
        %v5868 = vadd.f32 %v5594, %v5806
        %v5869 = vadd.f32 %v5595, %v5811
        %v5870 = vadd.f32 %v5596, %v5816
        %v5871 = vadd.f32 %v5597, %v5821
        %v5872 = vadd.f32 %v5598, %v5826
        %v5873 = vadd.f32 %v5599, %v5831
        %v5874 = vadd.f32 %v5600, %v5836
        %v5875 = vadd.f32 %v5601, %v5841
        %5876 = vst [vmem:[#allocation3] sm:$0xff] %v5844
        %5877 = vst [vmem:[#allocation3 + $0x8] sm:$0xff] %v5845
        %5878 = vst [vmem:[#allocation3 + $0x10] sm:$0xff] %v5846
        %5879 = vst [vmem:[#allocation3 + $0x18] sm:$0xff] %v5847
        %5880 = vst [vmem:[#allocation3 + $0x20] sm:$0xff] %v5848
        %5881 = vst [vmem:[#allocation3 + $0x28] sm:$0xff] %v5849
        %5882 = vst [vmem:[#allocation3 + $0x30] sm:$0xff] %v5850
        %5883 = vst [vmem:[#allocation3 + $0x38] sm:$0xff] %v5851
        %5884 = vst [vmem:[#allocation3 + $0x40] sm:$0xff] %v5852
        %5885 = vst [vmem:[#allocation3 + $0x48] sm:$0xff] %v5853
        %5886 = vst [vmem:[#allocation3 + $0x50] sm:$0xff] %v5854
        %5887 = vst [vmem:[#allocation3 + $0x58] sm:$0xff] %v5855
        %5888 = vst [vmem:[#allocation3 + $0x60] sm:$0xff] %v5856
        %5889 = vst [vmem:[#allocation3 + $0x68] sm:$0xff] %v5857
        %5890 = vst [vmem:[#allocation3 + $0x70] sm:$0xff] %v5858
        %5891 = vst [vmem:[#allocation3 + $0x78] sm:$0xff] %v5859
        %5892 = vst [vmem:[#allocation3 + $0x80] sm:$0xff] %v5860
        %5893 = vst [vmem:[#allocation3 + $0x88] sm:$0xff] %v5861
        %5894 = vst [vmem:[#allocation3 + $0x90] sm:$0xff] %v5862
        %5895 = vst [vmem:[#allocation3 + $0x98] sm:$0xff] %v5863
        %5896 = vst [vmem:[#allocation3 + $0xa0] sm:$0xff] %v5864
        %5897 = vst [vmem:[#allocation3 + $0xa8] sm:$0xff] %v5865
        %5898 = vst [vmem:[#allocation3 + $0xb0] sm:$0xff] %v5866
        %5899 = vst [vmem:[#allocation3 + $0xb8] sm:$0xff] %v5867
        %5900 = vst [vmem:[#allocation3 + $0xc0] sm:$0xff] %v5868
        %5901 = vst [vmem:[#allocation3 + $0xc8] sm:$0xff] %v5869
        %5902 = vst [vmem:[#allocation3 + $0xd0] sm:$0xff] %v5870
        %5903 = vst [vmem:[#allocation3 + $0xd8] sm:$0xff] %v5871
        %5904 = vst [vmem:[#allocation3 + $0xe0] sm:$0xff] %v5872
        %5905 = vst [vmem:[#allocation3 + $0xe8] sm:$0xff] %v5873
        %5906 = vst [vmem:[#allocation3 + $0xf0] sm:$0xff] %v5874
        %5907 = vst [vmem:[#allocation3 + $0xf8] sm:$0xff] %v5875
        %v5908 = vld [vmem:[%s304 + $0x2] sm:$0xff]
        %v5909 = vld [vmem:[%s304 + $0xa] sm:$0xff]
        %v5910 = vld [vmem:[%s304 + $0x1a] sm:$0xff]
        %v5911 = vld [vmem:[%s304 + $0x22] sm:$0xff]
        %v5912 = vld [vmem:[%s304 + $0x32] sm:$0xff]
        %v5913 = vld [vmem:[%s304 + $0x3a] sm:$0xff]
        %v5914 = vld [vmem:[%s304 + $0x4a] sm:$0xff]
        %v5915 = vld [vmem:[%s304 + $0x52] sm:$0xff]
        %v5916 = vld [vmem:[%s304 + $0x62] sm:$0xff]
        %v5917 = vld [vmem:[%s304 + $0x6a] sm:$0xff]
        %v5918 = vld [vmem:[%s304 + $0x7a] sm:$0xff]
        %v5919 = vld [vmem:[%s304 + $0x82] sm:$0xff]
        %v5920 = vld [vmem:[%s304 + $0x92] sm:$0xff]
        %v5921 = vld [vmem:[%s304 + $0x9a] sm:$0xff]
        %v5922 = vld [vmem:[%s304 + $0xaa] sm:$0xff]
        %v5923 = vld [vmem:[%s304 + $0xb2] sm:$0xff]
        %v5924 = vld [vmem:[%s304 + $0xc2] sm:$0xff]
        %v5925 = vld [vmem:[%s304 + $0xca] sm:$0xff]
        %v5926 = vld [vmem:[%s304 + $0xda] sm:$0xff]
        %v5927 = vld [vmem:[%s304 + $0xe2] sm:$0xff]
        %v5928 = vld [vmem:[%s304 + $0xf2] sm:$0xff]
        %v5929 = vld [vmem:[%s304 + $0xfa] sm:$0xff]
        %v5930 = vld [vmem:[%s304 + $0x10a] sm:$0xff]
        %v5931 = vld [vmem:[%s304 + $0x112] sm:$0xff]
        %v5932 = vld [vmem:[%s304 + $0x122] sm:$0xff]
        %v5933 = vld [vmem:[%s304 + $0x12a] sm:$0xff]
        %v5934 = vld [vmem:[%s304 + $0x13a] sm:$0xff]
        %v5935 = vld [vmem:[%s304 + $0x142] sm:$0xff]
        %v5936 = vld [vmem:[%s304 + $0x152] sm:$0xff]
        %v5937 = vld [vmem:[%s304 + $0x15a] sm:$0xff]
        %v5938 = vld [vmem:[%s304 + $0x16a] sm:$0xff]
        %v5939 = vld [vmem:[%s304 + $0x172] sm:$0xff]
        %v5940 = vld [vmem:[#allocation3] sm:$0xff]
        %v5941 = vld [vmem:[#allocation3 + $0x8] sm:$0xff]
        %v5942 = vld [vmem:[#allocation3 + $0x10] sm:$0xff]
        %v5943 = vld [vmem:[#allocation3 + $0x18] sm:$0xff]
        %v5944 = vld [vmem:[#allocation3 + $0x20] sm:$0xff]
        %v5945 = vld [vmem:[#allocation3 + $0x28] sm:$0xff]
        %v5946 = vld [vmem:[#allocation3 + $0x30] sm:$0xff]
        %v5947 = vld [vmem:[#allocation3 + $0x38] sm:$0xff]
        %v5948 = vld [vmem:[#allocation3 + $0x40] sm:$0xff]
        %v5949 = vld [vmem:[#allocation3 + $0x48] sm:$0xff]
        %v5950 = vld [vmem:[#allocation3 + $0x50] sm:$0xff]
        %v5951 = vld [vmem:[#allocation3 + $0x58] sm:$0xff]
        %v5952 = vld [vmem:[#allocation3 + $0x60] sm:$0xff]
        %v5953 = vld [vmem:[#allocation3 + $0x68] sm:$0xff]
        %v5954 = vld [vmem:[#allocation3 + $0x70] sm:$0xff]
        %v5955 = vld [vmem:[#allocation3 + $0x78] sm:$0xff]
        %v5956 = vld [vmem:[#allocation3 + $0x80] sm:$0xff]
        %v5957 = vld [vmem:[#allocation3 + $0x88] sm:$0xff]
        %v5958 = vld [vmem:[#allocation3 + $0x90] sm:$0xff]
        %v5959 = vld [vmem:[#allocation3 + $0x98] sm:$0xff]
        %v5960 = vld [vmem:[#allocation3 + $0xa0] sm:$0xff]
        %v5961 = vld [vmem:[#allocation3 + $0xa8] sm:$0xff]
        %v5962 = vld [vmem:[#allocation3 + $0xb0] sm:$0xff]
        %v5963 = vld [vmem:[#allocation3 + $0xb8] sm:$0xff]
        %v5964 = vld [vmem:[#allocation3 + $0xc0] sm:$0xff]
        %v5965 = vld [vmem:[#allocation3 + $0xc8] sm:$0xff]
        %v5966 = vld [vmem:[#allocation3 + $0xd0] sm:$0xff]
        %v5967 = vld [vmem:[#allocation3 + $0xd8] sm:$0xff]
        %v5968 = vld [vmem:[#allocation3 + $0xe0] sm:$0xff]
        %v5969 = vld [vmem:[#allocation3 + $0xe8] sm:$0xff]
        %v5970 = vld [vmem:[#allocation3 + $0xf0] sm:$0xff]
        %v5971 = vld [vmem:[#allocation3 + $0xf8] sm:$0xff]
        %s5972 = scalar_lea.vmem [#allocation7], 1792
        %v5973 = vld [vmem:[%s5972] sm:$0xff]
        %v5974 = vld [vmem:[%s5972 + $0x8] sm:$0xff]
        %v5975 = vld [vmem:[%s5972 + $0x10] sm:$0xff]
        %v5976 = vld [vmem:[%s5972 + $0x18] sm:$0xff]
        %v5977 = vld [vmem:[%s5972 + $0x20] sm:$0xff]
        %v5978 = vld [vmem:[%s5972 + $0x28] sm:$0xff]
        %v5979 = vld [vmem:[%s5972 + $0x30] sm:$0xff]
        %v5980 = vld [vmem:[%s5972 + $0x38] sm:$0xff]
        %v5981 = vld [vmem:[%s5972 + $0x40] sm:$0xff]
        %v5982 = vld [vmem:[%s5972 + $0x48] sm:$0xff]
        %v5983 = vld [vmem:[%s5972 + $0x50] sm:$0xff]
        %v5984 = vld [vmem:[%s5972 + $0x58] sm:$0xff]
        %v5985 = vld [vmem:[%s5972 + $0x60] sm:$0xff]
        %v5986 = vld [vmem:[%s5972 + $0x68] sm:$0xff]
        %v5987 = vld [vmem:[%s5972 + $0x70] sm:$0xff]
        %v5988 = vld [vmem:[%s5972 + $0x78] sm:$0xff]
        %5989 = vmatprep.subr.mxu0 0.0
        %5990 = vmatpush1.msra.mxu0 %v5988
        %5991 = vmatprep.subr.mxu0 0.0
        %5992 = vmatpush1.msra.mxu0 %v5987
        %5993 = vmatprep.subr.mxu0 0.0
        %5994 = vmatpush1.msra.mxu0 %v5986
        %5995 = vmatprep.subr.mxu0 0.0
        %5996 = vmatpush1.msra.mxu0 %v5985
        %5997 = vmatprep.subr.mxu0 0.0
        %5998 = vmatpush1.msra.mxu0 %v5984
        %5999 = vmatprep.subr.mxu0 0.0
        %6000 = vmatpush1.msra.mxu0 %v5983
        %6001 = vmatprep.subr.mxu0 0.0
        %6002 = vmatpush1.msra.mxu0 %v5982
        %6003 = vmatprep.subr.mxu0 0.0
        %6004 = vmatpush1.msra.mxu0 %v5981
        %6005 = vmatprep.subr.mxu0 0.0
        %6006 = vmatpush1.msra.mxu0 %v5980
        %6007 = vmatprep.subr.mxu0 0.0
        %6008 = vmatpush1.msra.mxu0 %v5979
        %6009 = vmatprep.subr.mxu0 0.0
        %6010 = vmatpush1.msra.mxu0 %v5978
        %6011 = vmatprep.subr.mxu0 0.0
        %6012 = vmatpush1.msra.mxu0 %v5977
        %6013 = vmatprep.subr.mxu0 0.0
        %6014 = vmatpush1.msra.mxu0 %v5976
        %6015 = vmatprep.subr.mxu0 0.0
        %6016 = vmatpush1.msra.mxu0 %v5975
        %6017 = vmatprep.subr.mxu0 0.0
        %6018 = vmatpush1.msra.mxu0 %v5974
        %6019 = vmatprep.subr.mxu0 0.0
        %6020 = vmatpush1.msra.mxu0 %v5973
        %6021 = vmatprep.subr.mxu0 0.0
        %6022 = vmatpush2.msra.mxu0 0.0
        %6023 = vmatprep.subr.mxu0 0.0
        %6024 = vmatpush2.msra.mxu0 0.0
        %6025 = vmatprep.subr.mxu0 0.0
        %6026 = vmatpush2.msra.mxu0 0.0
        %6027 = vmatprep.subr.mxu0 0.0
        %6028 = vmatpush2.msra.mxu0 0.0
        %6029 = vmatprep.subr.mxu0 0.0
        %6030 = vmatpush2.msra.mxu0 0.0
        %6031 = vmatprep.subr.mxu0 0.0
        %6032 = vmatpush2.msra.mxu0 0.0
        %6033 = vmatprep.subr.mxu0 0.0
        %6034 = vmatpush2.msra.mxu0 0.0
        %6035 = vmatprep.subr.mxu0 0.0
        %6036 = vmatpush2.msra.mxu0 0.0
        %6037 = vmatprep.subr.mxu0 0.0
        %6038 = vmatpush2.msra.mxu0 0.0
        %6039 = vmatprep.subr.mxu0 0.0
        %6040 = vmatpush2.msra.mxu0 0.0
        %6041 = vmatprep.subr.mxu0 0.0
        %6042 = vmatpush2.msra.mxu0 0.0
        %6043 = vmatprep.subr.mxu0 0.0
        %6044 = vmatpush2.msra.mxu0 0.0
        %6045 = vmatprep.subr.mxu0 0.0
        %6046 = vmatpush2.msra.mxu0 0.0
        %6047 = vmatprep.subr.mxu0 0.0
        %6048 = vmatpush2.msra.mxu0 0.0
        %6049 = vmatprep.subr.mxu0 0.0
        %6050 = vmatpush2.msra.mxu0 0.0
        %6051 = vmatprep.subr.mxu0 0.0
        %6052 = vmatpush2.msra.mxu0 0.0
        %6053 = vmatprep.mubr.f32.mxu0 0.0
        %6054 = vmatmul.mubr.f32.gmra.mxu0 %v5908
        %v6055 = vpop.f32.mrf.mxu0
        %v6056 = vadd.f32 0.0, %v6055
        %v6057 = vpop.f32.mrf.mxu0
        %6058 = vmatprep.mubr.f32.mxu0 0.0
        %6059 = vmatmul.mubr.f32.gmra.mxu0 %v5909
        %v6060 = vpop.f32.mrf.mxu0
        %v6061 = vadd.f32 0.0, %v6060
        %v6062 = vpop.f32.mrf.mxu0
        %6063 = vmatprep.mubr.f32.mxu0 0.0
        %6064 = vmatmul.mubr.f32.gmra.mxu0 %v5910
        %v6065 = vpop.f32.mrf.mxu0
        %v6066 = vadd.f32 0.0, %v6065
        %v6067 = vpop.f32.mrf.mxu0
        %6068 = vmatprep.mubr.f32.mxu0 0.0
        %6069 = vmatmul.mubr.f32.gmra.mxu0 %v5911
        %v6070 = vpop.f32.mrf.mxu0
        %v6071 = vadd.f32 0.0, %v6070
        %v6072 = vpop.f32.mrf.mxu0
        %6073 = vmatprep.mubr.f32.mxu0 0.0
        %6074 = vmatmul.mubr.f32.gmra.mxu0 %v5912
        %v6075 = vpop.f32.mrf.mxu0
        %v6076 = vadd.f32 0.0, %v6075
        %v6077 = vpop.f32.mrf.mxu0
        %6078 = vmatprep.mubr.f32.mxu0 0.0
        %6079 = vmatmul.mubr.f32.gmra.mxu0 %v5913
        %v6080 = vpop.f32.mrf.mxu0
        %v6081 = vadd.f32 0.0, %v6080
        %v6082 = vpop.f32.mrf.mxu0
        %6083 = vmatprep.mubr.f32.mxu0 0.0
        %6084 = vmatmul.mubr.f32.gmra.mxu0 %v5914
        %v6085 = vpop.f32.mrf.mxu0
        %v6086 = vadd.f32 0.0, %v6085
        %v6087 = vpop.f32.mrf.mxu0
        %6088 = vmatprep.mubr.f32.mxu0 0.0
        %6089 = vmatmul.mubr.f32.gmra.mxu0 %v5915
        %v6090 = vpop.f32.mrf.mxu0
        %v6091 = vadd.f32 0.0, %v6090
        %v6092 = vpop.f32.mrf.mxu0
        %6093 = vmatprep.mubr.f32.mxu0 0.0
        %6094 = vmatmul.mubr.f32.gmra.mxu0 %v5916
        %v6095 = vpop.f32.mrf.mxu0
        %v6096 = vadd.f32 0.0, %v6095
        %v6097 = vpop.f32.mrf.mxu0
        %6098 = vmatprep.mubr.f32.mxu0 0.0
        %6099 = vmatmul.mubr.f32.gmra.mxu0 %v5917
        %v6100 = vpop.f32.mrf.mxu0
        %v6101 = vadd.f32 0.0, %v6100
        %v6102 = vpop.f32.mrf.mxu0
        %6103 = vmatprep.mubr.f32.mxu0 0.0
        %6104 = vmatmul.mubr.f32.gmra.mxu0 %v5918
        %v6105 = vpop.f32.mrf.mxu0
        %v6106 = vadd.f32 0.0, %v6105
        %v6107 = vpop.f32.mrf.mxu0
        %6108 = vmatprep.mubr.f32.mxu0 0.0
        %6109 = vmatmul.mubr.f32.gmra.mxu0 %v5919
        %v6110 = vpop.f32.mrf.mxu0
        %v6111 = vadd.f32 0.0, %v6110
        %v6112 = vpop.f32.mrf.mxu0
        %6113 = vmatprep.mubr.f32.mxu0 0.0
        %6114 = vmatmul.mubr.f32.gmra.mxu0 %v5920
        %v6115 = vpop.f32.mrf.mxu0
        %v6116 = vadd.f32 0.0, %v6115
        %v6117 = vpop.f32.mrf.mxu0
        %6118 = vmatprep.mubr.f32.mxu0 0.0
        %6119 = vmatmul.mubr.f32.gmra.mxu0 %v5921
        %v6120 = vpop.f32.mrf.mxu0
        %v6121 = vadd.f32 0.0, %v6120
        %v6122 = vpop.f32.mrf.mxu0
        %6123 = vmatprep.mubr.f32.mxu0 0.0
        %6124 = vmatmul.mubr.f32.gmra.mxu0 %v5922
        %v6125 = vpop.f32.mrf.mxu0
        %v6126 = vadd.f32 0.0, %v6125
        %v6127 = vpop.f32.mrf.mxu0
        %6128 = vmatprep.mubr.f32.mxu0 0.0
        %6129 = vmatmul.mubr.f32.gmra.mxu0 %v5923
        %v6130 = vpop.f32.mrf.mxu0
        %v6131 = vadd.f32 0.0, %v6130
        %v6132 = vpop.f32.mrf.mxu0
        %6133 = vmatprep.mubr.f32.mxu0 0.0
        %6134 = vmatmul.mubr.f32.gmra.mxu0 %v5924
        %v6135 = vpop.f32.mrf.mxu0
        %v6136 = vadd.f32 0.0, %v6135
        %v6137 = vpop.f32.mrf.mxu0
        %6138 = vmatprep.mubr.f32.mxu0 0.0
        %6139 = vmatmul.mubr.f32.gmra.mxu0 %v5925
        %v6140 = vpop.f32.mrf.mxu0
        %v6141 = vadd.f32 0.0, %v6140
        %v6142 = vpop.f32.mrf.mxu0
        %6143 = vmatprep.mubr.f32.mxu0 0.0
        %6144 = vmatmul.mubr.f32.gmra.mxu0 %v5926
        %v6145 = vpop.f32.mrf.mxu0
        %v6146 = vadd.f32 0.0, %v6145
        %v6147 = vpop.f32.mrf.mxu0
        %6148 = vmatprep.mubr.f32.mxu0 0.0
        %6149 = vmatmul.mubr.f32.gmra.mxu0 %v5927
        %v6150 = vpop.f32.mrf.mxu0
        %v6151 = vadd.f32 0.0, %v6150
        %v6152 = vpop.f32.mrf.mxu0
        %6153 = vmatprep.mubr.f32.mxu0 0.0
        %6154 = vmatmul.mubr.f32.gmra.mxu0 %v5928
        %v6155 = vpop.f32.mrf.mxu0
        %v6156 = vadd.f32 0.0, %v6155
        %v6157 = vpop.f32.mrf.mxu0
        %6158 = vmatprep.mubr.f32.mxu0 0.0
        %6159 = vmatmul.mubr.f32.gmra.mxu0 %v5929
        %v6160 = vpop.f32.mrf.mxu0
        %v6161 = vadd.f32 0.0, %v6160
        %v6162 = vpop.f32.mrf.mxu0
        %6163 = vmatprep.mubr.f32.mxu0 0.0
        %6164 = vmatmul.mubr.f32.gmra.mxu0 %v5930
        %v6165 = vpop.f32.mrf.mxu0
        %v6166 = vadd.f32 0.0, %v6165
        %v6167 = vpop.f32.mrf.mxu0
        %6168 = vmatprep.mubr.f32.mxu0 0.0
        %6169 = vmatmul.mubr.f32.gmra.mxu0 %v5931
        %v6170 = vpop.f32.mrf.mxu0
        %v6171 = vadd.f32 0.0, %v6170
        %v6172 = vpop.f32.mrf.mxu0
        %6173 = vmatprep.mubr.f32.mxu0 0.0
        %6174 = vmatmul.mubr.f32.gmra.mxu0 %v5932
        %v6175 = vpop.f32.mrf.mxu0
        %v6176 = vadd.f32 0.0, %v6175
        %v6177 = vpop.f32.mrf.mxu0
        %6178 = vmatprep.mubr.f32.mxu0 0.0
        %6179 = vmatmul.mubr.f32.gmra.mxu0 %v5933
        %v6180 = vpop.f32.mrf.mxu0
        %v6181 = vadd.f32 0.0, %v6180
        %v6182 = vpop.f32.mrf.mxu0
        %6183 = vmatprep.mubr.f32.mxu0 0.0
        %6184 = vmatmul.mubr.f32.gmra.mxu0 %v5934
        %v6185 = vpop.f32.mrf.mxu0
        %v6186 = vadd.f32 0.0, %v6185
        %v6187 = vpop.f32.mrf.mxu0
        %6188 = vmatprep.mubr.f32.mxu0 0.0
        %6189 = vmatmul.mubr.f32.gmra.mxu0 %v5935
        %v6190 = vpop.f32.mrf.mxu0
        %v6191 = vadd.f32 0.0, %v6190
        %v6192 = vpop.f32.mrf.mxu0
        %6193 = vmatprep.mubr.f32.mxu0 0.0
        %6194 = vmatmul.mubr.f32.gmra.mxu0 %v5936
        %v6195 = vpop.f32.mrf.mxu0
        %v6196 = vadd.f32 0.0, %v6195
        %v6197 = vpop.f32.mrf.mxu0
        %6198 = vmatprep.mubr.f32.mxu0 0.0
        %6199 = vmatmul.mubr.f32.gmra.mxu0 %v5937
        %v6200 = vpop.f32.mrf.mxu0
        %v6201 = vadd.f32 0.0, %v6200
        %v6202 = vpop.f32.mrf.mxu0
        %6203 = vmatprep.mubr.f32.mxu0 0.0
        %6204 = vmatmul.mubr.f32.gmra.mxu0 %v5938
        %v6205 = vpop.f32.mrf.mxu0
        %v6206 = vadd.f32 0.0, %v6205
        %v6207 = vpop.f32.mrf.mxu0
        %6208 = vmatprep.mubr.f32.mxu0 0.0
        %6209 = vmatmul.mubr.f32.gmra.mxu0 %v5939
        %v6210 = vpop.f32.mrf.mxu0
        %v6211 = vadd.f32 0.0, %v6210
        %v6212 = vpop.f32.mrf.mxu0
        %6213 = vdwg.mxu0
        %v6214 = vadd.f32 %v5940, %v6056
        %v6215 = vadd.f32 %v5941, %v6061
        %v6216 = vadd.f32 %v5942, %v6066
        %v6217 = vadd.f32 %v5943, %v6071
        %v6218 = vadd.f32 %v5944, %v6076
        %v6219 = vadd.f32 %v5945, %v6081
        %v6220 = vadd.f32 %v5946, %v6086
        %v6221 = vadd.f32 %v5947, %v6091
        %v6222 = vadd.f32 %v5948, %v6096
        %v6223 = vadd.f32 %v5949, %v6101
        %v6224 = vadd.f32 %v5950, %v6106
        %v6225 = vadd.f32 %v5951, %v6111
        %v6226 = vadd.f32 %v5952, %v6116
        %v6227 = vadd.f32 %v5953, %v6121
        %v6228 = vadd.f32 %v5954, %v6126
        %v6229 = vadd.f32 %v5955, %v6131
        %v6230 = vadd.f32 %v5956, %v6136
        %v6231 = vadd.f32 %v5957, %v6141
        %v6232 = vadd.f32 %v5958, %v6146
        %v6233 = vadd.f32 %v5959, %v6151
        %v6234 = vadd.f32 %v5960, %v6156
        %v6235 = vadd.f32 %v5961, %v6161
        %v6236 = vadd.f32 %v5962, %v6166
        %v6237 = vadd.f32 %v5963, %v6171
        %v6238 = vadd.f32 %v5964, %v6176
        %v6239 = vadd.f32 %v5965, %v6181
        %v6240 = vadd.f32 %v5966, %v6186
        %v6241 = vadd.f32 %v5967, %v6191
        %v6242 = vadd.f32 %v5968, %v6196
        %v6243 = vadd.f32 %v5969, %v6201
        %v6244 = vadd.f32 %v5970, %v6206
        %v6245 = vadd.f32 %v5971, %v6211
        %6246 = vst [vmem:[#allocation3] sm:$0xff] %v6214
        %6247 = vst [vmem:[#allocation3 + $0x8] sm:$0xff] %v6215
        %6248 = vst [vmem:[#allocation3 + $0x10] sm:$0xff] %v6216
        %6249 = vst [vmem:[#allocation3 + $0x18] sm:$0xff] %v6217
        %6250 = vst [vmem:[#allocation3 + $0x20] sm:$0xff] %v6218
        %6251 = vst [vmem:[#allocation3 + $0x28] sm:$0xff] %v6219
        %6252 = vst [vmem:[#allocation3 + $0x30] sm:$0xff] %v6220
        %6253 = vst [vmem:[#allocation3 + $0x38] sm:$0xff] %v6221
        %6254 = vst [vmem:[#allocation3 + $0x40] sm:$0xff] %v6222
        %6255 = vst [vmem:[#allocation3 + $0x48] sm:$0xff] %v6223
        %6256 = vst [vmem:[#allocation3 + $0x50] sm:$0xff] %v6224
        %6257 = vst [vmem:[#allocation3 + $0x58] sm:$0xff] %v6225
        %6258 = vst [vmem:[#allocation3 + $0x60] sm:$0xff] %v6226
        %6259 = vst [vmem:[#allocation3 + $0x68] sm:$0xff] %v6227
        %6260 = vst [vmem:[#allocation3 + $0x70] sm:$0xff] %v6228
        %6261 = vst [vmem:[#allocation3 + $0x78] sm:$0xff] %v6229
        %6262 = vst [vmem:[#allocation3 + $0x80] sm:$0xff] %v6230
        %6263 = vst [vmem:[#allocation3 + $0x88] sm:$0xff] %v6231
        %6264 = vst [vmem:[#allocation3 + $0x90] sm:$0xff] %v6232
        %6265 = vst [vmem:[#allocation3 + $0x98] sm:$0xff] %v6233
        %6266 = vst [vmem:[#allocation3 + $0xa0] sm:$0xff] %v6234
        %6267 = vst [vmem:[#allocation3 + $0xa8] sm:$0xff] %v6235
        %6268 = vst [vmem:[#allocation3 + $0xb0] sm:$0xff] %v6236
        %6269 = vst [vmem:[#allocation3 + $0xb8] sm:$0xff] %v6237
        %6270 = vst [vmem:[#allocation3 + $0xc0] sm:$0xff] %v6238
        %6271 = vst [vmem:[#allocation3 + $0xc8] sm:$0xff] %v6239
        %6272 = vst [vmem:[#allocation3 + $0xd0] sm:$0xff] %v6240
        %6273 = vst [vmem:[#allocation3 + $0xd8] sm:$0xff] %v6241
        %6274 = vst [vmem:[#allocation3 + $0xe0] sm:$0xff] %v6242
        %6275 = vst [vmem:[#allocation3 + $0xe8] sm:$0xff] %v6243
        %6276 = vst [vmem:[#allocation3 + $0xf0] sm:$0xff] %v6244
        %6277 = vst [vmem:[#allocation3 + $0xf8] sm:$0xff] %v6245
        %v6278 = vld [vmem:[%s2588] sm:$0xff]
        %v6279 = vld [vmem:[%s2588 + $0x8] sm:$0xff]
        %v6280 = vld [vmem:[%s2588 + $0x18] sm:$0xff]
        %v6281 = vld [vmem:[%s2588 + $0x20] sm:$0xff]
        %v6282 = vld [vmem:[%s2588 + $0x30] sm:$0xff]
        %v6283 = vld [vmem:[%s2588 + $0x38] sm:$0xff]
        %v6284 = vld [vmem:[%s2588 + $0x48] sm:$0xff]
        %v6285 = vld [vmem:[%s2588 + $0x50] sm:$0xff]
        %v6286 = vld [vmem:[%s2588 + $0x60] sm:$0xff]
        %v6287 = vld [vmem:[%s2588 + $0x68] sm:$0xff]
        %v6288 = vld [vmem:[%s2588 + $0x78] sm:$0xff]
        %v6289 = vld [vmem:[%s2588 + $0x80] sm:$0xff]
        %v6290 = vld [vmem:[%s2588 + $0x90] sm:$0xff]
        %v6291 = vld [vmem:[%s2588 + $0x98] sm:$0xff]
        %v6292 = vld [vmem:[%s2588 + $0xa8] sm:$0xff]
        %v6293 = vld [vmem:[%s2588 + $0xb0] sm:$0xff]
        %v6294 = vld [vmem:[%s2588 + $0xc0] sm:$0xff]
        %v6295 = vld [vmem:[%s2588 + $0xc8] sm:$0xff]
        %v6296 = vld [vmem:[%s2588 + $0xd8] sm:$0xff]
        %v6297 = vld [vmem:[%s2588 + $0xe0] sm:$0xff]
        %v6298 = vld [vmem:[%s2588 + $0xf0] sm:$0xff]
        %v6299 = vld [vmem:[%s2588 + $0xf8] sm:$0xff]
        %v6300 = vld [vmem:[%s2588 + $0x108] sm:$0xff]
        %v6301 = vld [vmem:[%s2588 + $0x110] sm:$0xff]
        %v6302 = vld [vmem:[%s2588 + $0x120] sm:$0xff]
        %v6303 = vld [vmem:[%s2588 + $0x128] sm:$0xff]
        %v6304 = vld [vmem:[%s2588 + $0x138] sm:$0xff]
        %v6305 = vld [vmem:[%s2588 + $0x140] sm:$0xff]
        %v6306 = vld [vmem:[%s2588 + $0x150] sm:$0xff]
        %v6307 = vld [vmem:[%s2588 + $0x158] sm:$0xff]
        %v6308 = vld [vmem:[%s2588 + $0x168] sm:$0xff]
        %v6309 = vld [vmem:[%s2588 + $0x170] sm:$0xff]
        %v6310 = vld [vmem:[#allocation3] sm:$0xff]
        %v6311 = vld [vmem:[#allocation3 + $0x8] sm:$0xff]
        %v6312 = vld [vmem:[#allocation3 + $0x10] sm:$0xff]
        %v6313 = vld [vmem:[#allocation3 + $0x18] sm:$0xff]
        %v6314 = vld [vmem:[#allocation3 + $0x20] sm:$0xff]
        %v6315 = vld [vmem:[#allocation3 + $0x28] sm:$0xff]
        %v6316 = vld [vmem:[#allocation3 + $0x30] sm:$0xff]
        %v6317 = vld [vmem:[#allocation3 + $0x38] sm:$0xff]
        %v6318 = vld [vmem:[#allocation3 + $0x40] sm:$0xff]
        %v6319 = vld [vmem:[#allocation3 + $0x48] sm:$0xff]
        %v6320 = vld [vmem:[#allocation3 + $0x50] sm:$0xff]
        %v6321 = vld [vmem:[#allocation3 + $0x58] sm:$0xff]
        %v6322 = vld [vmem:[#allocation3 + $0x60] sm:$0xff]
        %v6323 = vld [vmem:[#allocation3 + $0x68] sm:$0xff]
        %v6324 = vld [vmem:[#allocation3 + $0x70] sm:$0xff]
        %v6325 = vld [vmem:[#allocation3 + $0x78] sm:$0xff]
        %v6326 = vld [vmem:[#allocation3 + $0x80] sm:$0xff]
        %v6327 = vld [vmem:[#allocation3 + $0x88] sm:$0xff]
        %v6328 = vld [vmem:[#allocation3 + $0x90] sm:$0xff]
        %v6329 = vld [vmem:[#allocation3 + $0x98] sm:$0xff]
        %v6330 = vld [vmem:[#allocation3 + $0xa0] sm:$0xff]
        %v6331 = vld [vmem:[#allocation3 + $0xa8] sm:$0xff]
        %v6332 = vld [vmem:[#allocation3 + $0xb0] sm:$0xff]
        %v6333 = vld [vmem:[#allocation3 + $0xb8] sm:$0xff]
        %v6334 = vld [vmem:[#allocation3 + $0xc0] sm:$0xff]
        %v6335 = vld [vmem:[#allocation3 + $0xc8] sm:$0xff]
        %v6336 = vld [vmem:[#allocation3 + $0xd0] sm:$0xff]
        %v6337 = vld [vmem:[#allocation3 + $0xd8] sm:$0xff]
        %v6338 = vld [vmem:[#allocation3 + $0xe0] sm:$0xff]
        %v6339 = vld [vmem:[#allocation3 + $0xe8] sm:$0xff]
        %v6340 = vld [vmem:[#allocation3 + $0xf0] sm:$0xff]
        %v6341 = vld [vmem:[#allocation3 + $0xf8] sm:$0xff]
        %s6342 = scalar_lea.vmem [#allocation7], 1920
        %v6343 = vld [vmem:[%s6342] sm:$0xff]
        %v6344 = vld [vmem:[%s6342 + $0x8] sm:$0xff]
        %v6345 = vld [vmem:[%s6342 + $0x10] sm:$0xff]
        %v6346 = vld [vmem:[%s6342 + $0x18] sm:$0xff]
        %v6347 = vld [vmem:[%s6342 + $0x20] sm:$0xff]
        %v6348 = vld [vmem:[%s6342 + $0x28] sm:$0xff]
        %v6349 = vld [vmem:[%s6342 + $0x30] sm:$0xff]
        %v6350 = vld [vmem:[%s6342 + $0x38] sm:$0xff]
        %v6351 = vld [vmem:[%s6342 + $0x40] sm:$0xff]
        %v6352 = vld [vmem:[%s6342 + $0x48] sm:$0xff]
        %v6353 = vld [vmem:[%s6342 + $0x50] sm:$0xff]
        %v6354 = vld [vmem:[%s6342 + $0x58] sm:$0xff]
        %v6355 = vld [vmem:[%s6342 + $0x60] sm:$0xff]
        %v6356 = vld [vmem:[%s6342 + $0x68] sm:$0xff]
        %v6357 = vld [vmem:[%s6342 + $0x70] sm:$0xff]
        %v6358 = vld [vmem:[%s6342 + $0x78] sm:$0xff]
        %6359 = vmatprep.subr.mxu0 0.0
        %6360 = vmatpush1.msra.mxu0 %v6358
        %6361 = vmatprep.subr.mxu0 0.0
        %6362 = vmatpush1.msra.mxu0 %v6357
        %6363 = vmatprep.subr.mxu0 0.0
        %6364 = vmatpush1.msra.mxu0 %v6356
        %6365 = vmatprep.subr.mxu0 0.0
        %6366 = vmatpush1.msra.mxu0 %v6355
        %6367 = vmatprep.subr.mxu0 0.0
        %6368 = vmatpush1.msra.mxu0 %v6354
        %6369 = vmatprep.subr.mxu0 0.0
        %6370 = vmatpush1.msra.mxu0 %v6353
        %6371 = vmatprep.subr.mxu0 0.0
        %6372 = vmatpush1.msra.mxu0 %v6352
        %6373 = vmatprep.subr.mxu0 0.0
        %6374 = vmatpush1.msra.mxu0 %v6351
        %6375 = vmatprep.subr.mxu0 0.0
        %6376 = vmatpush1.msra.mxu0 %v6350
        %6377 = vmatprep.subr.mxu0 0.0
        %6378 = vmatpush1.msra.mxu0 %v6349
        %6379 = vmatprep.subr.mxu0 0.0
        %6380 = vmatpush1.msra.mxu0 %v6348
        %6381 = vmatprep.subr.mxu0 0.0
        %6382 = vmatpush1.msra.mxu0 %v6347
        %6383 = vmatprep.subr.mxu0 0.0
        %6384 = vmatpush1.msra.mxu0 %v6346
        %6385 = vmatprep.subr.mxu0 0.0
        %6386 = vmatpush1.msra.mxu0 %v6345
        %6387 = vmatprep.subr.mxu0 0.0
        %6388 = vmatpush1.msra.mxu0 %v6344
        %6389 = vmatprep.subr.mxu0 0.0
        %6390 = vmatpush1.msra.mxu0 %v6343
        %6391 = vmatprep.subr.mxu0 0.0
        %6392 = vmatpush2.msra.mxu0 0.0
        %6393 = vmatprep.subr.mxu0 0.0
        %6394 = vmatpush2.msra.mxu0 0.0
        %6395 = vmatprep.subr.mxu0 0.0
        %6396 = vmatpush2.msra.mxu0 0.0
        %6397 = vmatprep.subr.mxu0 0.0
        %6398 = vmatpush2.msra.mxu0 0.0
        %6399 = vmatprep.subr.mxu0 0.0
        %6400 = vmatpush2.msra.mxu0 0.0
        %6401 = vmatprep.subr.mxu0 0.0
        %6402 = vmatpush2.msra.mxu0 0.0
        %6403 = vmatprep.subr.mxu0 0.0
        %6404 = vmatpush2.msra.mxu0 0.0
        %6405 = vmatprep.subr.mxu0 0.0
        %6406 = vmatpush2.msra.mxu0 0.0
        %6407 = vmatprep.subr.mxu0 0.0
        %6408 = vmatpush2.msra.mxu0 0.0
        %6409 = vmatprep.subr.mxu0 0.0
        %6410 = vmatpush2.msra.mxu0 0.0
        %6411 = vmatprep.subr.mxu0 0.0
        %6412 = vmatpush2.msra.mxu0 0.0
        %6413 = vmatprep.subr.mxu0 0.0
        %6414 = vmatpush2.msra.mxu0 0.0
        %6415 = vmatprep.subr.mxu0 0.0
        %6416 = vmatpush2.msra.mxu0 0.0
        %6417 = vmatprep.subr.mxu0 0.0
        %6418 = vmatpush2.msra.mxu0 0.0
        %6419 = vmatprep.subr.mxu0 0.0
        %6420 = vmatpush2.msra.mxu0 0.0
        %6421 = vmatprep.subr.mxu0 0.0
        %6422 = vmatpush2.msra.mxu0 0.0
        %6423 = vmatprep.mubr.f32.mxu0 0.0
        %6424 = vmatmul.mubr.f32.gmra.mxu0 %v6278
        %v6425 = vpop.f32.mrf.mxu0
        %v6426 = vadd.f32 0.0, %v6425
        %v6427 = vpop.f32.mrf.mxu0
        %6428 = vmatprep.mubr.f32.mxu0 0.0
        %6429 = vmatmul.mubr.f32.gmra.mxu0 %v6279
        %v6430 = vpop.f32.mrf.mxu0
        %v6431 = vadd.f32 0.0, %v6430
        %v6432 = vpop.f32.mrf.mxu0
        %6433 = vmatprep.mubr.f32.mxu0 0.0
        %6434 = vmatmul.mubr.f32.gmra.mxu0 %v6280
        %v6435 = vpop.f32.mrf.mxu0
        %v6436 = vadd.f32 0.0, %v6435
        %v6437 = vpop.f32.mrf.mxu0
        %6438 = vmatprep.mubr.f32.mxu0 0.0
        %6439 = vmatmul.mubr.f32.gmra.mxu0 %v6281
        %v6440 = vpop.f32.mrf.mxu0
        %v6441 = vadd.f32 0.0, %v6440
        %v6442 = vpop.f32.mrf.mxu0
        %6443 = vmatprep.mubr.f32.mxu0 0.0
        %6444 = vmatmul.mubr.f32.gmra.mxu0 %v6282
        %v6445 = vpop.f32.mrf.mxu0
        %v6446 = vadd.f32 0.0, %v6445
        %v6447 = vpop.f32.mrf.mxu0
        %6448 = vmatprep.mubr.f32.mxu0 0.0
        %6449 = vmatmul.mubr.f32.gmra.mxu0 %v6283
        %v6450 = vpop.f32.mrf.mxu0
        %v6451 = vadd.f32 0.0, %v6450
        %v6452 = vpop.f32.mrf.mxu0
        %6453 = vmatprep.mubr.f32.mxu0 0.0
        %6454 = vmatmul.mubr.f32.gmra.mxu0 %v6284
        %v6455 = vpop.f32.mrf.mxu0
        %v6456 = vadd.f32 0.0, %v6455
        %v6457 = vpop.f32.mrf.mxu0
        %6458 = vmatprep.mubr.f32.mxu0 0.0
        %6459 = vmatmul.mubr.f32.gmra.mxu0 %v6285
        %v6460 = vpop.f32.mrf.mxu0
        %v6461 = vadd.f32 0.0, %v6460
        %v6462 = vpop.f32.mrf.mxu0
        %6463 = vmatprep.mubr.f32.mxu0 0.0
        %6464 = vmatmul.mubr.f32.gmra.mxu0 %v6286
        %v6465 = vpop.f32.mrf.mxu0
        %v6466 = vadd.f32 0.0, %v6465
        %v6467 = vpop.f32.mrf.mxu0
        %6468 = vmatprep.mubr.f32.mxu0 0.0
        %6469 = vmatmul.mubr.f32.gmra.mxu0 %v6287
        %v6470 = vpop.f32.mrf.mxu0
        %v6471 = vadd.f32 0.0, %v6470
        %v6472 = vpop.f32.mrf.mxu0
        %6473 = vmatprep.mubr.f32.mxu0 0.0
        %6474 = vmatmul.mubr.f32.gmra.mxu0 %v6288
        %v6475 = vpop.f32.mrf.mxu0
        %v6476 = vadd.f32 0.0, %v6475
        %v6477 = vpop.f32.mrf.mxu0
        %6478 = vmatprep.mubr.f32.mxu0 0.0
        %6479 = vmatmul.mubr.f32.gmra.mxu0 %v6289
        %v6480 = vpop.f32.mrf.mxu0
        %v6481 = vadd.f32 0.0, %v6480
        %v6482 = vpop.f32.mrf.mxu0
        %6483 = vmatprep.mubr.f32.mxu0 0.0
        %6484 = vmatmul.mubr.f32.gmra.mxu0 %v6290
        %v6485 = vpop.f32.mrf.mxu0
        %v6486 = vadd.f32 0.0, %v6485
        %v6487 = vpop.f32.mrf.mxu0
        %6488 = vmatprep.mubr.f32.mxu0 0.0
        %6489 = vmatmul.mubr.f32.gmra.mxu0 %v6291
        %v6490 = vpop.f32.mrf.mxu0
        %v6491 = vadd.f32 0.0, %v6490
        %v6492 = vpop.f32.mrf.mxu0
        %6493 = vmatprep.mubr.f32.mxu0 0.0
        %6494 = vmatmul.mubr.f32.gmra.mxu0 %v6292
        %v6495 = vpop.f32.mrf.mxu0
        %v6496 = vadd.f32 0.0, %v6495
        %v6497 = vpop.f32.mrf.mxu0
        %6498 = vmatprep.mubr.f32.mxu0 0.0
        %6499 = vmatmul.mubr.f32.gmra.mxu0 %v6293
        %v6500 = vpop.f32.mrf.mxu0
        %v6501 = vadd.f32 0.0, %v6500
        %v6502 = vpop.f32.mrf.mxu0
        %6503 = vmatprep.mubr.f32.mxu0 0.0
        %6504 = vmatmul.mubr.f32.gmra.mxu0 %v6294
        %v6505 = vpop.f32.mrf.mxu0
        %v6506 = vadd.f32 0.0, %v6505
        %v6507 = vpop.f32.mrf.mxu0
        %6508 = vmatprep.mubr.f32.mxu0 0.0
        %6509 = vmatmul.mubr.f32.gmra.mxu0 %v6295
        %v6510 = vpop.f32.mrf.mxu0
        %v6511 = vadd.f32 0.0, %v6510
        %v6512 = vpop.f32.mrf.mxu0
        %6513 = vmatprep.mubr.f32.mxu0 0.0
        %6514 = vmatmul.mubr.f32.gmra.mxu0 %v6296
        %v6515 = vpop.f32.mrf.mxu0
        %v6516 = vadd.f32 0.0, %v6515
        %v6517 = vpop.f32.mrf.mxu0
        %6518 = vmatprep.mubr.f32.mxu0 0.0
        %6519 = vmatmul.mubr.f32.gmra.mxu0 %v6297
        %v6520 = vpop.f32.mrf.mxu0
        %v6521 = vadd.f32 0.0, %v6520
        %v6522 = vpop.f32.mrf.mxu0
        %6523 = vmatprep.mubr.f32.mxu0 0.0
        %6524 = vmatmul.mubr.f32.gmra.mxu0 %v6298
        %v6525 = vpop.f32.mrf.mxu0
        %v6526 = vadd.f32 0.0, %v6525
        %v6527 = vpop.f32.mrf.mxu0
        %6528 = vmatprep.mubr.f32.mxu0 0.0
        %6529 = vmatmul.mubr.f32.gmra.mxu0 %v6299
        %v6530 = vpop.f32.mrf.mxu0
        %v6531 = vadd.f32 0.0, %v6530
        %v6532 = vpop.f32.mrf.mxu0
        %6533 = vmatprep.mubr.f32.mxu0 0.0
        %6534 = vmatmul.mubr.f32.gmra.mxu0 %v6300
        %v6535 = vpop.f32.mrf.mxu0
        %v6536 = vadd.f32 0.0, %v6535
        %v6537 = vpop.f32.mrf.mxu0
        %6538 = vmatprep.mubr.f32.mxu0 0.0
        %6539 = vmatmul.mubr.f32.gmra.mxu0 %v6301
        %v6540 = vpop.f32.mrf.mxu0
        %v6541 = vadd.f32 0.0, %v6540
        %v6542 = vpop.f32.mrf.mxu0
        %6543 = vmatprep.mubr.f32.mxu0 0.0
        %6544 = vmatmul.mubr.f32.gmra.mxu0 %v6302
        %v6545 = vpop.f32.mrf.mxu0
        %v6546 = vadd.f32 0.0, %v6545
        %v6547 = vpop.f32.mrf.mxu0
        %6548 = vmatprep.mubr.f32.mxu0 0.0
        %6549 = vmatmul.mubr.f32.gmra.mxu0 %v6303
        %v6550 = vpop.f32.mrf.mxu0
        %v6551 = vadd.f32 0.0, %v6550
        %v6552 = vpop.f32.mrf.mxu0
        %6553 = vmatprep.mubr.f32.mxu0 0.0
        %6554 = vmatmul.mubr.f32.gmra.mxu0 %v6304
        %v6555 = vpop.f32.mrf.mxu0
        %v6556 = vadd.f32 0.0, %v6555
        %v6557 = vpop.f32.mrf.mxu0
        %6558 = vmatprep.mubr.f32.mxu0 0.0
        %6559 = vmatmul.mubr.f32.gmra.mxu0 %v6305
        %v6560 = vpop.f32.mrf.mxu0
        %v6561 = vadd.f32 0.0, %v6560
        %v6562 = vpop.f32.mrf.mxu0
        %6563 = vmatprep.mubr.f32.mxu0 0.0
        %6564 = vmatmul.mubr.f32.gmra.mxu0 %v6306
        %v6565 = vpop.f32.mrf.mxu0
        %v6566 = vadd.f32 0.0, %v6565
        %v6567 = vpop.f32.mrf.mxu0
        %6568 = vmatprep.mubr.f32.mxu0 0.0
        %6569 = vmatmul.mubr.f32.gmra.mxu0 %v6307
        %v6570 = vpop.f32.mrf.mxu0
        %v6571 = vadd.f32 0.0, %v6570
        %v6572 = vpop.f32.mrf.mxu0
        %6573 = vmatprep.mubr.f32.mxu0 0.0
        %6574 = vmatmul.mubr.f32.gmra.mxu0 %v6308
        %v6575 = vpop.f32.mrf.mxu0
        %v6576 = vadd.f32 0.0, %v6575
        %v6577 = vpop.f32.mrf.mxu0
        %6578 = vmatprep.mubr.f32.mxu0 0.0
        %6579 = vmatmul.mubr.f32.gmra.mxu0 %v6309
        %v6580 = vpop.f32.mrf.mxu0
        %v6581 = vadd.f32 0.0, %v6580
        %v6582 = vpop.f32.mrf.mxu0
        %6583 = vdwg.mxu0
        %v6584 = vadd.f32 %v6310, %v6426
        %v6585 = vadd.f32 %v6311, %v6431
        %v6586 = vadd.f32 %v6312, %v6436
        %v6587 = vadd.f32 %v6313, %v6441
        %v6588 = vadd.f32 %v6314, %v6446
        %v6589 = vadd.f32 %v6315, %v6451
        %v6590 = vadd.f32 %v6316, %v6456
        %v6591 = vadd.f32 %v6317, %v6461
        %v6592 = vadd.f32 %v6318, %v6466
        %v6593 = vadd.f32 %v6319, %v6471
        %v6594 = vadd.f32 %v6320, %v6476
        %v6595 = vadd.f32 %v6321, %v6481
        %v6596 = vadd.f32 %v6322, %v6486
        %v6597 = vadd.f32 %v6323, %v6491
        %v6598 = vadd.f32 %v6324, %v6496
        %v6599 = vadd.f32 %v6325, %v6501
        %v6600 = vadd.f32 %v6326, %v6506
        %v6601 = vadd.f32 %v6327, %v6511
        %v6602 = vadd.f32 %v6328, %v6516
        %v6603 = vadd.f32 %v6329, %v6521
        %v6604 = vadd.f32 %v6330, %v6526
        %v6605 = vadd.f32 %v6331, %v6531
        %v6606 = vadd.f32 %v6332, %v6536
        %v6607 = vadd.f32 %v6333, %v6541
        %v6608 = vadd.f32 %v6334, %v6546
        %v6609 = vadd.f32 %v6335, %v6551
        %v6610 = vadd.f32 %v6336, %v6556
        %v6611 = vadd.f32 %v6337, %v6561
        %v6612 = vadd.f32 %v6338, %v6566
        %v6613 = vadd.f32 %v6339, %v6571
        %v6614 = vadd.f32 %v6340, %v6576
        %v6615 = vadd.f32 %v6341, %v6581
        %6616 = vst [vmem:[#allocation3] sm:$0xff] %v6584
        %6617 = vst [vmem:[#allocation3 + $0x8] sm:$0xff] %v6585
        %6618 = vst [vmem:[#allocation3 + $0x10] sm:$0xff] %v6586
        %6619 = vst [vmem:[#allocation3 + $0x18] sm:$0xff] %v6587
        %6620 = vst [vmem:[#allocation3 + $0x20] sm:$0xff] %v6588
        %6621 = vst [vmem:[#allocation3 + $0x28] sm:$0xff] %v6589
        %6622 = vst [vmem:[#allocation3 + $0x30] sm:$0xff] %v6590
        %6623 = vst [vmem:[#allocation3 + $0x38] sm:$0xff] %v6591
        %6624 = vst [vmem:[#allocation3 + $0x40] sm:$0xff] %v6592
        %6625 = vst [vmem:[#allocation3 + $0x48] sm:$0xff] %v6593
        %6626 = vst [vmem:[#allocation3 + $0x50] sm:$0xff] %v6594
        %6627 = vst [vmem:[#allocation3 + $0x58] sm:$0xff] %v6595
        %6628 = vst [vmem:[#allocation3 + $0x60] sm:$0xff] %v6596
        %6629 = vst [vmem:[#allocation3 + $0x68] sm:$0xff] %v6597
        %6630 = vst [vmem:[#allocation3 + $0x70] sm:$0xff] %v6598
        %6631 = vst [vmem:[#allocation3 + $0x78] sm:$0xff] %v6599
        %6632 = vst [vmem:[#allocation3 + $0x80] sm:$0xff] %v6600
        %6633 = vst [vmem:[#allocation3 + $0x88] sm:$0xff] %v6601
        %6634 = vst [vmem:[#allocation3 + $0x90] sm:$0xff] %v6602
        %6635 = vst [vmem:[#allocation3 + $0x98] sm:$0xff] %v6603
        %6636 = vst [vmem:[#allocation3 + $0xa0] sm:$0xff] %v6604
        %6637 = vst [vmem:[#allocation3 + $0xa8] sm:$0xff] %v6605
        %6638 = vst [vmem:[#allocation3 + $0xb0] sm:$0xff] %v6606
        %6639 = vst [vmem:[#allocation3 + $0xb8] sm:$0xff] %v6607
        %6640 = vst [vmem:[#allocation3 + $0xc0] sm:$0xff] %v6608
        %6641 = vst [vmem:[#allocation3 + $0xc8] sm:$0xff] %v6609
        %6642 = vst [vmem:[#allocation3 + $0xd0] sm:$0xff] %v6610
        %6643 = vst [vmem:[#allocation3 + $0xd8] sm:$0xff] %v6611
        %6644 = vst [vmem:[#allocation3 + $0xe0] sm:$0xff] %v6612
        %6645 = vst [vmem:[#allocation3 + $0xe8] sm:$0xff] %v6613
        %6646 = vst [vmem:[#allocation3 + $0xf0] sm:$0xff] %v6614
        %6647 = vst [vmem:[#allocation3 + $0xf8] sm:$0xff] %v6615
        %v6648 = vld [vmem:[%s2588 + $0x1] sm:$0xff]
        %v6649 = vld [vmem:[%s2588 + $0x9] sm:$0xff]
        %v6650 = vld [vmem:[%s2588 + $0x19] sm:$0xff]
        %v6651 = vld [vmem:[%s2588 + $0x21] sm:$0xff]
        %v6652 = vld [vmem:[%s2588 + $0x31] sm:$0xff]
        %v6653 = vld [vmem:[%s2588 + $0x39] sm:$0xff]
        %v6654 = vld [vmem:[%s2588 + $0x49] sm:$0xff]
        %v6655 = vld [vmem:[%s2588 + $0x51] sm:$0xff]
        %v6656 = vld [vmem:[%s2588 + $0x61] sm:$0xff]
        %v6657 = vld [vmem:[%s2588 + $0x69] sm:$0xff]
        %v6658 = vld [vmem:[%s2588 + $0x79] sm:$0xff]
        %v6659 = vld [vmem:[%s2588 + $0x81] sm:$0xff]
        %v6660 = vld [vmem:[%s2588 + $0x91] sm:$0xff]
        %v6661 = vld [vmem:[%s2588 + $0x99] sm:$0xff]
        %v6662 = vld [vmem:[%s2588 + $0xa9] sm:$0xff]
        %v6663 = vld [vmem:[%s2588 + $0xb1] sm:$0xff]
        %v6664 = vld [vmem:[%s2588 + $0xc1] sm:$0xff]
        %v6665 = vld [vmem:[%s2588 + $0xc9] sm:$0xff]
        %v6666 = vld [vmem:[%s2588 + $0xd9] sm:$0xff]
        %v6667 = vld [vmem:[%s2588 + $0xe1] sm:$0xff]
        %v6668 = vld [vmem:[%s2588 + $0xf1] sm:$0xff]
        %v6669 = vld [vmem:[%s2588 + $0xf9] sm:$0xff]
        %v6670 = vld [vmem:[%s2588 + $0x109] sm:$0xff]
        %v6671 = vld [vmem:[%s2588 + $0x111] sm:$0xff]
        %v6672 = vld [vmem:[%s2588 + $0x121] sm:$0xff]
        %v6673 = vld [vmem:[%s2588 + $0x129] sm:$0xff]
        %v6674 = vld [vmem:[%s2588 + $0x139] sm:$0xff]
        %v6675 = vld [vmem:[%s2588 + $0x141] sm:$0xff]
        %v6676 = vld [vmem:[%s2588 + $0x151] sm:$0xff]
        %v6677 = vld [vmem:[%s2588 + $0x159] sm:$0xff]
        %v6678 = vld [vmem:[%s2588 + $0x169] sm:$0xff]
        %v6679 = vld [vmem:[%s2588 + $0x171] sm:$0xff]
        %v6680 = vld [vmem:[#allocation3] sm:$0xff]
        %v6681 = vld [vmem:[#allocation3 + $0x8] sm:$0xff]
        %v6682 = vld [vmem:[#allocation3 + $0x10] sm:$0xff]
        %v6683 = vld [vmem:[#allocation3 + $0x18] sm:$0xff]
        %v6684 = vld [vmem:[#allocation3 + $0x20] sm:$0xff]
        %v6685 = vld [vmem:[#allocation3 + $0x28] sm:$0xff]
        %v6686 = vld [vmem:[#allocation3 + $0x30] sm:$0xff]
        %v6687 = vld [vmem:[#allocation3 + $0x38] sm:$0xff]
        %v6688 = vld [vmem:[#allocation3 + $0x40] sm:$0xff]
        %v6689 = vld [vmem:[#allocation3 + $0x48] sm:$0xff]
        %v6690 = vld [vmem:[#allocation3 + $0x50] sm:$0xff]
        %v6691 = vld [vmem:[#allocation3 + $0x58] sm:$0xff]
        %v6692 = vld [vmem:[#allocation3 + $0x60] sm:$0xff]
        %v6693 = vld [vmem:[#allocation3 + $0x68] sm:$0xff]
        %v6694 = vld [vmem:[#allocation3 + $0x70] sm:$0xff]
        %v6695 = vld [vmem:[#allocation3 + $0x78] sm:$0xff]
        %v6696 = vld [vmem:[#allocation3 + $0x80] sm:$0xff]
        %v6697 = vld [vmem:[#allocation3 + $0x88] sm:$0xff]
        %v6698 = vld [vmem:[#allocation3 + $0x90] sm:$0xff]
        %v6699 = vld [vmem:[#allocation3 + $0x98] sm:$0xff]
        %v6700 = vld [vmem:[#allocation3 + $0xa0] sm:$0xff]
        %v6701 = vld [vmem:[#allocation3 + $0xa8] sm:$0xff]
        %v6702 = vld [vmem:[#allocation3 + $0xb0] sm:$0xff]
        %v6703 = vld [vmem:[#allocation3 + $0xb8] sm:$0xff]
        %v6704 = vld [vmem:[#allocation3 + $0xc0] sm:$0xff]
        %v6705 = vld [vmem:[#allocation3 + $0xc8] sm:$0xff]
        %v6706 = vld [vmem:[#allocation3 + $0xd0] sm:$0xff]
        %v6707 = vld [vmem:[#allocation3 + $0xd8] sm:$0xff]
        %v6708 = vld [vmem:[#allocation3 + $0xe0] sm:$0xff]
        %v6709 = vld [vmem:[#allocation3 + $0xe8] sm:$0xff]
        %v6710 = vld [vmem:[#allocation3 + $0xf0] sm:$0xff]
        %v6711 = vld [vmem:[#allocation3 + $0xf8] sm:$0xff]
        %s6712 = scalar_lea.vmem [#allocation7], 2048
        %v6713 = vld [vmem:[%s6712] sm:$0xff]
        %v6714 = vld [vmem:[%s6712 + $0x8] sm:$0xff]
        %v6715 = vld [vmem:[%s6712 + $0x10] sm:$0xff]
        %v6716 = vld [vmem:[%s6712 + $0x18] sm:$0xff]
        %v6717 = vld [vmem:[%s6712 + $0x20] sm:$0xff]
        %v6718 = vld [vmem:[%s6712 + $0x28] sm:$0xff]
        %v6719 = vld [vmem:[%s6712 + $0x30] sm:$0xff]
        %v6720 = vld [vmem:[%s6712 + $0x38] sm:$0xff]
        %v6721 = vld [vmem:[%s6712 + $0x40] sm:$0xff]
        %v6722 = vld [vmem:[%s6712 + $0x48] sm:$0xff]
        %v6723 = vld [vmem:[%s6712 + $0x50] sm:$0xff]
        %v6724 = vld [vmem:[%s6712 + $0x58] sm:$0xff]
        %v6725 = vld [vmem:[%s6712 + $0x60] sm:$0xff]
        %v6726 = vld [vmem:[%s6712 + $0x68] sm:$0xff]
        %v6727 = vld [vmem:[%s6712 + $0x70] sm:$0xff]
        %v6728 = vld [vmem:[%s6712 + $0x78] sm:$0xff]
        %6729 = vmatprep.subr.mxu0 0.0
        %6730 = vmatpush1.msra.mxu0 %v6728
        %6731 = vmatprep.subr.mxu0 0.0
        %6732 = vmatpush1.msra.mxu0 %v6727
        %6733 = vmatprep.subr.mxu0 0.0
        %6734 = vmatpush1.msra.mxu0 %v6726
        %6735 = vmatprep.subr.mxu0 0.0
        %6736 = vmatpush1.msra.mxu0 %v6725
        %6737 = vmatprep.subr.mxu0 0.0
        %6738 = vmatpush1.msra.mxu0 %v6724
        %6739 = vmatprep.subr.mxu0 0.0
        %6740 = vmatpush1.msra.mxu0 %v6723
        %6741 = vmatprep.subr.mxu0 0.0
        %6742 = vmatpush1.msra.mxu0 %v6722
        %6743 = vmatprep.subr.mxu0 0.0
        %6744 = vmatpush1.msra.mxu0 %v6721
        %6745 = vmatprep.subr.mxu0 0.0
        %6746 = vmatpush1.msra.mxu0 %v6720
        %6747 = vmatprep.subr.mxu0 0.0
        %6748 = vmatpush1.msra.mxu0 %v6719
        %6749 = vmatprep.subr.mxu0 0.0
        %6750 = vmatpush1.msra.mxu0 %v6718
        %6751 = vmatprep.subr.mxu0 0.0
        %6752 = vmatpush1.msra.mxu0 %v6717
        %6753 = vmatprep.subr.mxu0 0.0
        %6754 = vmatpush1.msra.mxu0 %v6716
        %6755 = vmatprep.subr.mxu0 0.0
        %6756 = vmatpush1.msra.mxu0 %v6715
        %6757 = vmatprep.subr.mxu0 0.0
        %6758 = vmatpush1.msra.mxu0 %v6714
        %6759 = vmatprep.subr.mxu0 0.0
        %6760 = vmatpush1.msra.mxu0 %v6713
        %6761 = vmatprep.subr.mxu0 0.0
        %6762 = vmatpush2.msra.mxu0 0.0
        %6763 = vmatprep.subr.mxu0 0.0
        %6764 = vmatpush2.msra.mxu0 0.0
        %6765 = vmatprep.subr.mxu0 0.0
        %6766 = vmatpush2.msra.mxu0 0.0
        %6767 = vmatprep.subr.mxu0 0.0
        %6768 = vmatpush2.msra.mxu0 0.0
        %6769 = vmatprep.subr.mxu0 0.0
        %6770 = vmatpush2.msra.mxu0 0.0
        %6771 = vmatprep.subr.mxu0 0.0
        %6772 = vmatpush2.msra.mxu0 0.0
        %6773 = vmatprep.subr.mxu0 0.0
        %6774 = vmatpush2.msra.mxu0 0.0
        %6775 = vmatprep.subr.mxu0 0.0
        %6776 = vmatpush2.msra.mxu0 0.0
        %6777 = vmatprep.subr.mxu0 0.0
        %6778 = vmatpush2.msra.mxu0 0.0
        %6779 = vmatprep.subr.mxu0 0.0
        %6780 = vmatpush2.msra.mxu0 0.0
        %6781 = vmatprep.subr.mxu0 0.0
        %6782 = vmatpush2.msra.mxu0 0.0
        %6783 = vmatprep.subr.mxu0 0.0
        %6784 = vmatpush2.msra.mxu0 0.0
        %6785 = vmatprep.subr.mxu0 0.0
        %6786 = vmatpush2.msra.mxu0 0.0
        %6787 = vmatprep.subr.mxu0 0.0
        %6788 = vmatpush2.msra.mxu0 0.0
        %6789 = vmatprep.subr.mxu0 0.0
        %6790 = vmatpush2.msra.mxu0 0.0
        %6791 = vmatprep.subr.mxu0 0.0
        %6792 = vmatpush2.msra.mxu0 0.0
        %6793 = vmatprep.mubr.f32.mxu0 0.0
        %6794 = vmatmul.mubr.f32.gmra.mxu0 %v6648
        %v6795 = vpop.f32.mrf.mxu0
        %v6796 = vadd.f32 0.0, %v6795
        %v6797 = vpop.f32.mrf.mxu0
        %6798 = vmatprep.mubr.f32.mxu0 0.0
        %6799 = vmatmul.mubr.f32.gmra.mxu0 %v6649
        %v6800 = vpop.f32.mrf.mxu0
        %v6801 = vadd.f32 0.0, %v6800
        %v6802 = vpop.f32.mrf.mxu0
        %6803 = vmatprep.mubr.f32.mxu0 0.0
        %6804 = vmatmul.mubr.f32.gmra.mxu0 %v6650
        %v6805 = vpop.f32.mrf.mxu0
        %v6806 = vadd.f32 0.0, %v6805
        %v6807 = vpop.f32.mrf.mxu0
        %6808 = vmatprep.mubr.f32.mxu0 0.0
        %6809 = vmatmul.mubr.f32.gmra.mxu0 %v6651
        %v6810 = vpop.f32.mrf.mxu0
        %v6811 = vadd.f32 0.0, %v6810
        %v6812 = vpop.f32.mrf.mxu0
        %6813 = vmatprep.mubr.f32.mxu0 0.0
        %6814 = vmatmul.mubr.f32.gmra.mxu0 %v6652
        %v6815 = vpop.f32.mrf.mxu0
        %v6816 = vadd.f32 0.0, %v6815
        %v6817 = vpop.f32.mrf.mxu0
        %6818 = vmatprep.mubr.f32.mxu0 0.0
        %6819 = vmatmul.mubr.f32.gmra.mxu0 %v6653
        %v6820 = vpop.f32.mrf.mxu0
        %v6821 = vadd.f32 0.0, %v6820
        %v6822 = vpop.f32.mrf.mxu0
        %6823 = vmatprep.mubr.f32.mxu0 0.0
        %6824 = vmatmul.mubr.f32.gmra.mxu0 %v6654
        %v6825 = vpop.f32.mrf.mxu0
        %v6826 = vadd.f32 0.0, %v6825
        %v6827 = vpop.f32.mrf.mxu0
        %6828 = vmatprep.mubr.f32.mxu0 0.0
        %6829 = vmatmul.mubr.f32.gmra.mxu0 %v6655
        %v6830 = vpop.f32.mrf.mxu0
        %v6831 = vadd.f32 0.0, %v6830
        %v6832 = vpop.f32.mrf.mxu0
        %6833 = vmatprep.mubr.f32.mxu0 0.0
        %6834 = vmatmul.mubr.f32.gmra.mxu0 %v6656
        %v6835 = vpop.f32.mrf.mxu0
        %v6836 = vadd.f32 0.0, %v6835
        %v6837 = vpop.f32.mrf.mxu0
        %6838 = vmatprep.mubr.f32.mxu0 0.0
        %6839 = vmatmul.mubr.f32.gmra.mxu0 %v6657
        %v6840 = vpop.f32.mrf.mxu0
        %v6841 = vadd.f32 0.0, %v6840
        %v6842 = vpop.f32.mrf.mxu0
        %6843 = vmatprep.mubr.f32.mxu0 0.0
        %6844 = vmatmul.mubr.f32.gmra.mxu0 %v6658
        %v6845 = vpop.f32.mrf.mxu0
        %v6846 = vadd.f32 0.0, %v6845
        %v6847 = vpop.f32.mrf.mxu0
        %6848 = vmatprep.mubr.f32.mxu0 0.0
        %6849 = vmatmul.mubr.f32.gmra.mxu0 %v6659
        %v6850 = vpop.f32.mrf.mxu0
        %v6851 = vadd.f32 0.0, %v6850
        %v6852 = vpop.f32.mrf.mxu0
        %6853 = vmatprep.mubr.f32.mxu0 0.0
        %6854 = vmatmul.mubr.f32.gmra.mxu0 %v6660
        %v6855 = vpop.f32.mrf.mxu0
        %v6856 = vadd.f32 0.0, %v6855
        %v6857 = vpop.f32.mrf.mxu0
        %6858 = vmatprep.mubr.f32.mxu0 0.0
        %6859 = vmatmul.mubr.f32.gmra.mxu0 %v6661
        %v6860 = vpop.f32.mrf.mxu0
        %v6861 = vadd.f32 0.0, %v6860
        %v6862 = vpop.f32.mrf.mxu0
        %6863 = vmatprep.mubr.f32.mxu0 0.0
        %6864 = vmatmul.mubr.f32.gmra.mxu0 %v6662
        %v6865 = vpop.f32.mrf.mxu0
        %v6866 = vadd.f32 0.0, %v6865
        %v6867 = vpop.f32.mrf.mxu0
        %6868 = vmatprep.mubr.f32.mxu0 0.0
        %6869 = vmatmul.mubr.f32.gmra.mxu0 %v6663
        %v6870 = vpop.f32.mrf.mxu0
        %v6871 = vadd.f32 0.0, %v6870
        %v6872 = vpop.f32.mrf.mxu0
        %6873 = vmatprep.mubr.f32.mxu0 0.0
        %6874 = vmatmul.mubr.f32.gmra.mxu0 %v6664
        %v6875 = vpop.f32.mrf.mxu0
        %v6876 = vadd.f32 0.0, %v6875
        %v6877 = vpop.f32.mrf.mxu0
        %6878 = vmatprep.mubr.f32.mxu0 0.0
        %6879 = vmatmul.mubr.f32.gmra.mxu0 %v6665
        %v6880 = vpop.f32.mrf.mxu0
        %v6881 = vadd.f32 0.0, %v6880
        %v6882 = vpop.f32.mrf.mxu0
        %6883 = vmatprep.mubr.f32.mxu0 0.0
        %6884 = vmatmul.mubr.f32.gmra.mxu0 %v6666
        %v6885 = vpop.f32.mrf.mxu0
        %v6886 = vadd.f32 0.0, %v6885
        %v6887 = vpop.f32.mrf.mxu0
        %6888 = vmatprep.mubr.f32.mxu0 0.0
        %6889 = vmatmul.mubr.f32.gmra.mxu0 %v6667
        %v6890 = vpop.f32.mrf.mxu0
        %v6891 = vadd.f32 0.0, %v6890
        %v6892 = vpop.f32.mrf.mxu0
        %6893 = vmatprep.mubr.f32.mxu0 0.0
        %6894 = vmatmul.mubr.f32.gmra.mxu0 %v6668
        %v6895 = vpop.f32.mrf.mxu0
        %v6896 = vadd.f32 0.0, %v6895
        %v6897 = vpop.f32.mrf.mxu0
        %6898 = vmatprep.mubr.f32.mxu0 0.0
        %6899 = vmatmul.mubr.f32.gmra.mxu0 %v6669
        %v6900 = vpop.f32.mrf.mxu0
        %v6901 = vadd.f32 0.0, %v6900
        %v6902 = vpop.f32.mrf.mxu0
        %6903 = vmatprep.mubr.f32.mxu0 0.0
        %6904 = vmatmul.mubr.f32.gmra.mxu0 %v6670
        %v6905 = vpop.f32.mrf.mxu0
        %v6906 = vadd.f32 0.0, %v6905
        %v6907 = vpop.f32.mrf.mxu0
        %6908 = vmatprep.mubr.f32.mxu0 0.0
        %6909 = vmatmul.mubr.f32.gmra.mxu0 %v6671
        %v6910 = vpop.f32.mrf.mxu0
        %v6911 = vadd.f32 0.0, %v6910
        %v6912 = vpop.f32.mrf.mxu0
        %6913 = vmatprep.mubr.f32.mxu0 0.0
        %6914 = vmatmul.mubr.f32.gmra.mxu0 %v6672
        %v6915 = vpop.f32.mrf.mxu0
        %v6916 = vadd.f32 0.0, %v6915
        %v6917 = vpop.f32.mrf.mxu0
        %6918 = vmatprep.mubr.f32.mxu0 0.0
        %6919 = vmatmul.mubr.f32.gmra.mxu0 %v6673
        %v6920 = vpop.f32.mrf.mxu0
        %v6921 = vadd.f32 0.0, %v6920
        %v6922 = vpop.f32.mrf.mxu0
        %6923 = vmatprep.mubr.f32.mxu0 0.0
        %6924 = vmatmul.mubr.f32.gmra.mxu0 %v6674
        %v6925 = vpop.f32.mrf.mxu0
        %v6926 = vadd.f32 0.0, %v6925
        %v6927 = vpop.f32.mrf.mxu0
        %6928 = vmatprep.mubr.f32.mxu0 0.0
        %6929 = vmatmul.mubr.f32.gmra.mxu0 %v6675
        %v6930 = vpop.f32.mrf.mxu0
        %v6931 = vadd.f32 0.0, %v6930
        %v6932 = vpop.f32.mrf.mxu0
        %6933 = vmatprep.mubr.f32.mxu0 0.0
        %6934 = vmatmul.mubr.f32.gmra.mxu0 %v6676
        %v6935 = vpop.f32.mrf.mxu0
        %v6936 = vadd.f32 0.0, %v6935
        %v6937 = vpop.f32.mrf.mxu0
        %6938 = vmatprep.mubr.f32.mxu0 0.0
        %6939 = vmatmul.mubr.f32.gmra.mxu0 %v6677
        %v6940 = vpop.f32.mrf.mxu0
        %v6941 = vadd.f32 0.0, %v6940
        %v6942 = vpop.f32.mrf.mxu0
        %6943 = vmatprep.mubr.f32.mxu0 0.0
        %6944 = vmatmul.mubr.f32.gmra.mxu0 %v6678
        %v6945 = vpop.f32.mrf.mxu0
        %v6946 = vadd.f32 0.0, %v6945
        %v6947 = vpop.f32.mrf.mxu0
        %6948 = vmatprep.mubr.f32.mxu0 0.0
        %6949 = vmatmul.mubr.f32.gmra.mxu0 %v6679
        %v6950 = vpop.f32.mrf.mxu0
        %v6951 = vadd.f32 0.0, %v6950
        %v6952 = vpop.f32.mrf.mxu0
        %6953 = vdwg.mxu0
        %v6954 = vadd.f32 %v6680, %v6796
        %v6955 = vadd.f32 %v6681, %v6801
        %v6956 = vadd.f32 %v6682, %v6806
        %v6957 = vadd.f32 %v6683, %v6811
        %v6958 = vadd.f32 %v6684, %v6816
        %v6959 = vadd.f32 %v6685, %v6821
        %v6960 = vadd.f32 %v6686, %v6826
        %v6961 = vadd.f32 %v6687, %v6831
        %v6962 = vadd.f32 %v6688, %v6836
        %v6963 = vadd.f32 %v6689, %v6841
        %v6964 = vadd.f32 %v6690, %v6846
        %v6965 = vadd.f32 %v6691, %v6851
        %v6966 = vadd.f32 %v6692, %v6856
        %v6967 = vadd.f32 %v6693, %v6861
        %v6968 = vadd.f32 %v6694, %v6866
        %v6969 = vadd.f32 %v6695, %v6871
        %v6970 = vadd.f32 %v6696, %v6876
        %v6971 = vadd.f32 %v6697, %v6881
        %v6972 = vadd.f32 %v6698, %v6886
        %v6973 = vadd.f32 %v6699, %v6891
        %v6974 = vadd.f32 %v6700, %v6896
        %v6975 = vadd.f32 %v6701, %v6901
        %v6976 = vadd.f32 %v6702, %v6906
        %v6977 = vadd.f32 %v6703, %v6911
        %v6978 = vadd.f32 %v6704, %v6916
        %v6979 = vadd.f32 %v6705, %v6921
        %v6980 = vadd.f32 %v6706, %v6926
        %v6981 = vadd.f32 %v6707, %v6931
        %v6982 = vadd.f32 %v6708, %v6936
        %v6983 = vadd.f32 %v6709, %v6941
        %v6984 = vadd.f32 %v6710, %v6946
        %v6985 = vadd.f32 %v6711, %v6951
        %6986 = vst [vmem:[#allocation3] sm:$0xff] %v6954
        %6987 = vst [vmem:[#allocation3 + $0x8] sm:$0xff] %v6955
        %6988 = vst [vmem:[#allocation3 + $0x10] sm:$0xff] %v6956
        %6989 = vst [vmem:[#allocation3 + $0x18] sm:$0xff] %v6957
        %6990 = vst [vmem:[#allocation3 + $0x20] sm:$0xff] %v6958
        %6991 = vst [vmem:[#allocation3 + $0x28] sm:$0xff] %v6959
        %6992 = vst [vmem:[#allocation3 + $0x30] sm:$0xff] %v6960
        %6993 = vst [vmem:[#allocation3 + $0x38] sm:$0xff] %v6961
        %6994 = vst [vmem:[#allocation3 + $0x40] sm:$0xff] %v6962
        %6995 = vst [vmem:[#allocation3 + $0x48] sm:$0xff] %v6963
        %6996 = vst [vmem:[#allocation3 + $0x50] sm:$0xff] %v6964
        %6997 = vst [vmem:[#allocation3 + $0x58] sm:$0xff] %v6965
        %6998 = vst [vmem:[#allocation3 + $0x60] sm:$0xff] %v6966
        %6999 = vst [vmem:[#allocation3 + $0x68] sm:$0xff] %v6967
        %7000 = vst [vmem:[#allocation3 + $0x70] sm:$0xff] %v6968
        %7001 = vst [vmem:[#allocation3 + $0x78] sm:$0xff] %v6969
        %7002 = vst [vmem:[#allocation3 + $0x80] sm:$0xff] %v6970
        %7003 = vst [vmem:[#allocation3 + $0x88] sm:$0xff] %v6971
        %7004 = vst [vmem:[#allocation3 + $0x90] sm:$0xff] %v6972
        %7005 = vst [vmem:[#allocation3 + $0x98] sm:$0xff] %v6973
        %7006 = vst [vmem:[#allocation3 + $0xa0] sm:$0xff] %v6974
        %7007 = vst [vmem:[#allocation3 + $0xa8] sm:$0xff] %v6975
        %7008 = vst [vmem:[#allocation3 + $0xb0] sm:$0xff] %v6976
        %7009 = vst [vmem:[#allocation3 + $0xb8] sm:$0xff] %v6977
        %7010 = vst [vmem:[#allocation3 + $0xc0] sm:$0xff] %v6978
        %7011 = vst [vmem:[#allocation3 + $0xc8] sm:$0xff] %v6979
        %7012 = vst [vmem:[#allocation3 + $0xd0] sm:$0xff] %v6980
        %7013 = vst [vmem:[#allocation3 + $0xd8] sm:$0xff] %v6981
        %7014 = vst [vmem:[#allocation3 + $0xe0] sm:$0xff] %v6982
        %7015 = vst [vmem:[#allocation3 + $0xe8] sm:$0xff] %v6983
        %7016 = vst [vmem:[#allocation3 + $0xf0] sm:$0xff] %v6984
        %7017 = vst [vmem:[#allocation3 + $0xf8] sm:$0xff] %v6985
        %v7018 = vld [vmem:[%s2588 + $0x2] sm:$0xff]
        %v7019 = vld [vmem:[%s2588 + $0xa] sm:$0xff]
        %v7020 = vld [vmem:[%s2588 + $0x1a] sm:$0xff]
        %v7021 = vld [vmem:[%s2588 + $0x22] sm:$0xff]
        %v7022 = vld [vmem:[%s2588 + $0x32] sm:$0xff]
        %v7023 = vld [vmem:[%s2588 + $0x3a] sm:$0xff]
        %v7024 = vld [vmem:[%s2588 + $0x4a] sm:$0xff]
        %v7025 = vld [vmem:[%s2588 + $0x52] sm:$0xff]
        %v7026 = vld [vmem:[%s2588 + $0x62] sm:$0xff]
        %v7027 = vld [vmem:[%s2588 + $0x6a] sm:$0xff]
        %v7028 = vld [vmem:[%s2588 + $0x7a] sm:$0xff]
        %v7029 = vld [vmem:[%s2588 + $0x82] sm:$0xff]
        %v7030 = vld [vmem:[%s2588 + $0x92] sm:$0xff]
        %v7031 = vld [vmem:[%s2588 + $0x9a] sm:$0xff]
        %v7032 = vld [vmem:[%s2588 + $0xaa] sm:$0xff]
        %v7033 = vld [vmem:[%s2588 + $0xb2] sm:$0xff]
        %v7034 = vld [vmem:[%s2588 + $0xc2] sm:$0xff]
        %v7035 = vld [vmem:[%s2588 + $0xca] sm:$0xff]
        %v7036 = vld [vmem:[%s2588 + $0xda] sm:$0xff]
        %v7037 = vld [vmem:[%s2588 + $0xe2] sm:$0xff]
        %v7038 = vld [vmem:[%s2588 + $0xf2] sm:$0xff]
        %v7039 = vld [vmem:[%s2588 + $0xfa] sm:$0xff]
        %v7040 = vld [vmem:[%s2588 + $0x10a] sm:$0xff]
        %v7041 = vld [vmem:[%s2588 + $0x112] sm:$0xff]
        %v7042 = vld [vmem:[%s2588 + $0x122] sm:$0xff]
        %v7043 = vld [vmem:[%s2588 + $0x12a] sm:$0xff]
        %v7044 = vld [vmem:[%s2588 + $0x13a] sm:$0xff]
        %v7045 = vld [vmem:[%s2588 + $0x142] sm:$0xff]
        %v7046 = vld [vmem:[%s2588 + $0x152] sm:$0xff]
        %v7047 = vld [vmem:[%s2588 + $0x15a] sm:$0xff]
        %v7048 = vld [vmem:[%s2588 + $0x16a] sm:$0xff]
        %v7049 = vld [vmem:[%s2588 + $0x172] sm:$0xff]
        %v7050 = vld [vmem:[#allocation3] sm:$0xff]
        %v7051 = vld [vmem:[#allocation3 + $0x8] sm:$0xff]
        %v7052 = vld [vmem:[#allocation3 + $0x10] sm:$0xff]
        %v7053 = vld [vmem:[#allocation3 + $0x18] sm:$0xff]
        %v7054 = vld [vmem:[#allocation3 + $0x20] sm:$0xff]
        %v7055 = vld [vmem:[#allocation3 + $0x28] sm:$0xff]
        %v7056 = vld [vmem:[#allocation3 + $0x30] sm:$0xff]
        %v7057 = vld [vmem:[#allocation3 + $0x38] sm:$0xff]
        %v7058 = vld [vmem:[#allocation3 + $0x40] sm:$0xff]
        %v7059 = vld [vmem:[#allocation3 + $0x48] sm:$0xff]
        %v7060 = vld [vmem:[#allocation3 + $0x50] sm:$0xff]
        %v7061 = vld [vmem:[#allocation3 + $0x58] sm:$0xff]
        %v7062 = vld [vmem:[#allocation3 + $0x60] sm:$0xff]
        %v7063 = vld [vmem:[#allocation3 + $0x68] sm:$0xff]
        %v7064 = vld [vmem:[#allocation3 + $0x70] sm:$0xff]
        %v7065 = vld [vmem:[#allocation3 + $0x78] sm:$0xff]
        %v7066 = vld [vmem:[#allocation3 + $0x80] sm:$0xff]
        %v7067 = vld [vmem:[#allocation3 + $0x88] sm:$0xff]
        %v7068 = vld [vmem:[#allocation3 + $0x90] sm:$0xff]
        %v7069 = vld [vmem:[#allocation3 + $0x98] sm:$0xff]
        %v7070 = vld [vmem:[#allocation3 + $0xa0] sm:$0xff]
        %v7071 = vld [vmem:[#allocation3 + $0xa8] sm:$0xff]
        %v7072 = vld [vmem:[#allocation3 + $0xb0] sm:$0xff]
        %v7073 = vld [vmem:[#allocation3 + $0xb8] sm:$0xff]
        %v7074 = vld [vmem:[#allocation3 + $0xc0] sm:$0xff]
        %v7075 = vld [vmem:[#allocation3 + $0xc8] sm:$0xff]
        %v7076 = vld [vmem:[#allocation3 + $0xd0] sm:$0xff]
        %v7077 = vld [vmem:[#allocation3 + $0xd8] sm:$0xff]
        %v7078 = vld [vmem:[#allocation3 + $0xe0] sm:$0xff]
        %v7079 = vld [vmem:[#allocation3 + $0xe8] sm:$0xff]
        %v7080 = vld [vmem:[#allocation3 + $0xf0] sm:$0xff]
        %v7081 = vld [vmem:[#allocation3 + $0xf8] sm:$0xff]
        %s7082 = scalar_lea.vmem [#allocation7], 2176
        %v7083 = vld [vmem:[%s7082] sm:$0xff]
        %v7084 = vld [vmem:[%s7082 + $0x8] sm:$0xff]
        %v7085 = vld [vmem:[%s7082 + $0x10] sm:$0xff]
        %v7086 = vld [vmem:[%s7082 + $0x18] sm:$0xff]
        %v7087 = vld [vmem:[%s7082 + $0x20] sm:$0xff]
        %v7088 = vld [vmem:[%s7082 + $0x28] sm:$0xff]
        %v7089 = vld [vmem:[%s7082 + $0x30] sm:$0xff]
        %v7090 = vld [vmem:[%s7082 + $0x38] sm:$0xff]
        %v7091 = vld [vmem:[%s7082 + $0x40] sm:$0xff]
        %v7092 = vld [vmem:[%s7082 + $0x48] sm:$0xff]
        %v7093 = vld [vmem:[%s7082 + $0x50] sm:$0xff]
        %v7094 = vld [vmem:[%s7082 + $0x58] sm:$0xff]
        %v7095 = vld [vmem:[%s7082 + $0x60] sm:$0xff]
        %v7096 = vld [vmem:[%s7082 + $0x68] sm:$0xff]
        %v7097 = vld [vmem:[%s7082 + $0x70] sm:$0xff]
        %v7098 = vld [vmem:[%s7082 + $0x78] sm:$0xff]
        %7099 = vmatprep.subr.mxu0 0.0
        %7100 = vmatpush1.msra.mxu0 %v7098
        %7101 = vmatprep.subr.mxu0 0.0
        %7102 = vmatpush1.msra.mxu0 %v7097
        %7103 = vmatprep.subr.mxu0 0.0
        %7104 = vmatpush1.msra.mxu0 %v7096
        %7105 = vmatprep.subr.mxu0 0.0
        %7106 = vmatpush1.msra.mxu0 %v7095
        %7107 = vmatprep.subr.mxu0 0.0
        %7108 = vmatpush1.msra.mxu0 %v7094
        %7109 = vmatprep.subr.mxu0 0.0
        %7110 = vmatpush1.msra.mxu0 %v7093
        %7111 = vmatprep.subr.mxu0 0.0
        %7112 = vmatpush1.msra.mxu0 %v7092
        %7113 = vmatprep.subr.mxu0 0.0
        %7114 = vmatpush1.msra.mxu0 %v7091
        %7115 = vmatprep.subr.mxu0 0.0
        %7116 = vmatpush1.msra.mxu0 %v7090
        %7117 = vmatprep.subr.mxu0 0.0
        %7118 = vmatpush1.msra.mxu0 %v7089
        %7119 = vmatprep.subr.mxu0 0.0
        %7120 = vmatpush1.msra.mxu0 %v7088
        %7121 = vmatprep.subr.mxu0 0.0
        %7122 = vmatpush1.msra.mxu0 %v7087
        %7123 = vmatprep.subr.mxu0 0.0
        %7124 = vmatpush1.msra.mxu0 %v7086
        %7125 = vmatprep.subr.mxu0 0.0
        %7126 = vmatpush1.msra.mxu0 %v7085
        %7127 = vmatprep.subr.mxu0 0.0
        %7128 = vmatpush1.msra.mxu0 %v7084
        %7129 = vmatprep.subr.mxu0 0.0
        %7130 = vmatpush1.msra.mxu0 %v7083
        %7131 = vmatprep.subr.mxu0 0.0
        %7132 = vmatpush2.msra.mxu0 0.0
        %7133 = vmatprep.subr.mxu0 0.0
        %7134 = vmatpush2.msra.mxu0 0.0
        %7135 = vmatprep.subr.mxu0 0.0
        %7136 = vmatpush2.msra.mxu0 0.0
        %7137 = vmatprep.subr.mxu0 0.0
        %7138 = vmatpush2.msra.mxu0 0.0
        %7139 = vmatprep.subr.mxu0 0.0
        %7140 = vmatpush2.msra.mxu0 0.0
        %7141 = vmatprep.subr.mxu0 0.0
        %7142 = vmatpush2.msra.mxu0 0.0
        %7143 = vmatprep.subr.mxu0 0.0
        %7144 = vmatpush2.msra.mxu0 0.0
        %7145 = vmatprep.subr.mxu0 0.0
        %7146 = vmatpush2.msra.mxu0 0.0
        %7147 = vmatprep.subr.mxu0 0.0
        %7148 = vmatpush2.msra.mxu0 0.0
        %7149 = vmatprep.subr.mxu0 0.0
        %7150 = vmatpush2.msra.mxu0 0.0
        %7151 = vmatprep.subr.mxu0 0.0
        %7152 = vmatpush2.msra.mxu0 0.0
        %7153 = vmatprep.subr.mxu0 0.0
        %7154 = vmatpush2.msra.mxu0 0.0
        %7155 = vmatprep.subr.mxu0 0.0
        %7156 = vmatpush2.msra.mxu0 0.0
        %7157 = vmatprep.subr.mxu0 0.0
        %7158 = vmatpush2.msra.mxu0 0.0
        %7159 = vmatprep.subr.mxu0 0.0
        %7160 = vmatpush2.msra.mxu0 0.0
        %7161 = vmatprep.subr.mxu0 0.0
        %7162 = vmatpush2.msra.mxu0 0.0
        %7163 = vmatprep.mubr.f32.mxu0 0.0
        %7164 = vmatmul.mubr.f32.gmra.mxu0 %v7018
        %v7165 = vpop.f32.mrf.mxu0
        %v7166 = vadd.f32 0.0, %v7165
        %v7167 = vpop.f32.mrf.mxu0
        %7168 = vmatprep.mubr.f32.mxu0 0.0
        %7169 = vmatmul.mubr.f32.gmra.mxu0 %v7019
        %v7170 = vpop.f32.mrf.mxu0
        %v7171 = vadd.f32 0.0, %v7170
        %v7172 = vpop.f32.mrf.mxu0
        %7173 = vmatprep.mubr.f32.mxu0 0.0
        %7174 = vmatmul.mubr.f32.gmra.mxu0 %v7020
        %v7175 = vpop.f32.mrf.mxu0
        %v7176 = vadd.f32 0.0, %v7175
        %v7177 = vpop.f32.mrf.mxu0
        %7178 = vmatprep.mubr.f32.mxu0 0.0
        %7179 = vmatmul.mubr.f32.gmra.mxu0 %v7021
        %v7180 = vpop.f32.mrf.mxu0
        %v7181 = vadd.f32 0.0, %v7180
        %v7182 = vpop.f32.mrf.mxu0
        %7183 = vmatprep.mubr.f32.mxu0 0.0
        %7184 = vmatmul.mubr.f32.gmra.mxu0 %v7022
        %v7185 = vpop.f32.mrf.mxu0
        %v7186 = vadd.f32 0.0, %v7185
        %v7187 = vpop.f32.mrf.mxu0
        %7188 = vmatprep.mubr.f32.mxu0 0.0
        %7189 = vmatmul.mubr.f32.gmra.mxu0 %v7023
        %v7190 = vpop.f32.mrf.mxu0
        %v7191 = vadd.f32 0.0, %v7190
        %v7192 = vpop.f32.mrf.mxu0
        %7193 = vmatprep.mubr.f32.mxu0 0.0
        %7194 = vmatmul.mubr.f32.gmra.mxu0 %v7024
        %v7195 = vpop.f32.mrf.mxu0
        %v7196 = vadd.f32 0.0, %v7195
        %v7197 = vpop.f32.mrf.mxu0
        %7198 = vmatprep.mubr.f32.mxu0 0.0
        %7199 = vmatmul.mubr.f32.gmra.mxu0 %v7025
        %v7200 = vpop.f32.mrf.mxu0
        %v7201 = vadd.f32 0.0, %v7200
        %v7202 = vpop.f32.mrf.mxu0
        %7203 = vmatprep.mubr.f32.mxu0 0.0
        %7204 = vmatmul.mubr.f32.gmra.mxu0 %v7026
        %v7205 = vpop.f32.mrf.mxu0
        %v7206 = vadd.f32 0.0, %v7205
        %v7207 = vpop.f32.mrf.mxu0
        %7208 = vmatprep.mubr.f32.mxu0 0.0
        %7209 = vmatmul.mubr.f32.gmra.mxu0 %v7027
        %v7210 = vpop.f32.mrf.mxu0
        %v7211 = vadd.f32 0.0, %v7210
        %v7212 = vpop.f32.mrf.mxu0
        %7213 = vmatprep.mubr.f32.mxu0 0.0
        %7214 = vmatmul.mubr.f32.gmra.mxu0 %v7028
        %v7215 = vpop.f32.mrf.mxu0
        %v7216 = vadd.f32 0.0, %v7215
        %v7217 = vpop.f32.mrf.mxu0
        %7218 = vmatprep.mubr.f32.mxu0 0.0
        %7219 = vmatmul.mubr.f32.gmra.mxu0 %v7029
        %v7220 = vpop.f32.mrf.mxu0
        %v7221 = vadd.f32 0.0, %v7220
        %v7222 = vpop.f32.mrf.mxu0
        %7223 = vmatprep.mubr.f32.mxu0 0.0
        %7224 = vmatmul.mubr.f32.gmra.mxu0 %v7030
        %v7225 = vpop.f32.mrf.mxu0
        %v7226 = vadd.f32 0.0, %v7225
        %v7227 = vpop.f32.mrf.mxu0
        %7228 = vmatprep.mubr.f32.mxu0 0.0
        %7229 = vmatmul.mubr.f32.gmra.mxu0 %v7031
        %v7230 = vpop.f32.mrf.mxu0
        %v7231 = vadd.f32 0.0, %v7230
        %v7232 = vpop.f32.mrf.mxu0
        %7233 = vmatprep.mubr.f32.mxu0 0.0
        %7234 = vmatmul.mubr.f32.gmra.mxu0 %v7032
        %v7235 = vpop.f32.mrf.mxu0
        %v7236 = vadd.f32 0.0, %v7235
        %v7237 = vpop.f32.mrf.mxu0
        %7238 = vmatprep.mubr.f32.mxu0 0.0
        %7239 = vmatmul.mubr.f32.gmra.mxu0 %v7033
        %v7240 = vpop.f32.mrf.mxu0
        %v7241 = vadd.f32 0.0, %v7240
        %v7242 = vpop.f32.mrf.mxu0
        %7243 = vmatprep.mubr.f32.mxu0 0.0
        %7244 = vmatmul.mubr.f32.gmra.mxu0 %v7034
        %v7245 = vpop.f32.mrf.mxu0
        %v7246 = vadd.f32 0.0, %v7245
        %v7247 = vpop.f32.mrf.mxu0
        %7248 = vmatprep.mubr.f32.mxu0 0.0
        %7249 = vmatmul.mubr.f32.gmra.mxu0 %v7035
        %v7250 = vpop.f32.mrf.mxu0
        %v7251 = vadd.f32 0.0, %v7250
        %v7252 = vpop.f32.mrf.mxu0
        %7253 = vmatprep.mubr.f32.mxu0 0.0
        %7254 = vmatmul.mubr.f32.gmra.mxu0 %v7036
        %v7255 = vpop.f32.mrf.mxu0
        %v7256 = vadd.f32 0.0, %v7255
        %v7257 = vpop.f32.mrf.mxu0
        %7258 = vmatprep.mubr.f32.mxu0 0.0
        %7259 = vmatmul.mubr.f32.gmra.mxu0 %v7037
        %v7260 = vpop.f32.mrf.mxu0
        %v7261 = vadd.f32 0.0, %v7260
        %v7262 = vpop.f32.mrf.mxu0
        %7263 = vmatprep.mubr.f32.mxu0 0.0
        %7264 = vmatmul.mubr.f32.gmra.mxu0 %v7038
        %v7265 = vpop.f32.mrf.mxu0
        %v7266 = vadd.f32 0.0, %v7265
        %v7267 = vpop.f32.mrf.mxu0
        %7268 = vmatprep.mubr.f32.mxu0 0.0
        %7269 = vmatmul.mubr.f32.gmra.mxu0 %v7039
        %v7270 = vpop.f32.mrf.mxu0
        %v7271 = vadd.f32 0.0, %v7270
        %v7272 = vpop.f32.mrf.mxu0
        %7273 = vmatprep.mubr.f32.mxu0 0.0
        %7274 = vmatmul.mubr.f32.gmra.mxu0 %v7040
        %v7275 = vpop.f32.mrf.mxu0
        %v7276 = vadd.f32 0.0, %v7275
        %v7277 = vpop.f32.mrf.mxu0
        %7278 = vmatprep.mubr.f32.mxu0 0.0
        %7279 = vmatmul.mubr.f32.gmra.mxu0 %v7041
        %v7280 = vpop.f32.mrf.mxu0
        %v7281 = vadd.f32 0.0, %v7280
        %v7282 = vpop.f32.mrf.mxu0
        %7283 = vmatprep.mubr.f32.mxu0 0.0
        %7284 = vmatmul.mubr.f32.gmra.mxu0 %v7042
        %v7285 = vpop.f32.mrf.mxu0
        %v7286 = vadd.f32 0.0, %v7285
        %v7287 = vpop.f32.mrf.mxu0
        %7288 = vmatprep.mubr.f32.mxu0 0.0
        %7289 = vmatmul.mubr.f32.gmra.mxu0 %v7043
        %v7290 = vpop.f32.mrf.mxu0
        %v7291 = vadd.f32 0.0, %v7290
        %v7292 = vpop.f32.mrf.mxu0
        %7293 = vmatprep.mubr.f32.mxu0 0.0
        %7294 = vmatmul.mubr.f32.gmra.mxu0 %v7044
        %v7295 = vpop.f32.mrf.mxu0
        %v7296 = vadd.f32 0.0, %v7295
        %v7297 = vpop.f32.mrf.mxu0
        %7298 = vmatprep.mubr.f32.mxu0 0.0
        %7299 = vmatmul.mubr.f32.gmra.mxu0 %v7045
        %v7300 = vpop.f32.mrf.mxu0
        %v7301 = vadd.f32 0.0, %v7300
        %v7302 = vpop.f32.mrf.mxu0
        %7303 = vmatprep.mubr.f32.mxu0 0.0
        %7304 = vmatmul.mubr.f32.gmra.mxu0 %v7046
        %v7305 = vpop.f32.mrf.mxu0
        %v7306 = vadd.f32 0.0, %v7305
        %v7307 = vpop.f32.mrf.mxu0
        %7308 = vmatprep.mubr.f32.mxu0 0.0
        %7309 = vmatmul.mubr.f32.gmra.mxu0 %v7047
        %v7310 = vpop.f32.mrf.mxu0
        %v7311 = vadd.f32 0.0, %v7310
        %v7312 = vpop.f32.mrf.mxu0
        %7313 = vmatprep.mubr.f32.mxu0 0.0
        %7314 = vmatmul.mubr.f32.gmra.mxu0 %v7048
        %v7315 = vpop.f32.mrf.mxu0
        %v7316 = vadd.f32 0.0, %v7315
        %v7317 = vpop.f32.mrf.mxu0
        %7318 = vmatprep.mubr.f32.mxu0 0.0
        %7319 = vmatmul.mubr.f32.gmra.mxu0 %v7049
        %v7320 = vpop.f32.mrf.mxu0
        %v7321 = vadd.f32 0.0, %v7320
        %v7322 = vpop.f32.mrf.mxu0
        %7323 = vdwg.mxu0
        %v7324 = vadd.f32 %v7050, %v7166
        %v7325 = vadd.f32 %v7051, %v7171
        %v7326 = vadd.f32 %v7052, %v7176
        %v7327 = vadd.f32 %v7053, %v7181
        %v7328 = vadd.f32 %v7054, %v7186
        %v7329 = vadd.f32 %v7055, %v7191
        %v7330 = vadd.f32 %v7056, %v7196
        %v7331 = vadd.f32 %v7057, %v7201
        %v7332 = vadd.f32 %v7058, %v7206
        %v7333 = vadd.f32 %v7059, %v7211
        %v7334 = vadd.f32 %v7060, %v7216
        %v7335 = vadd.f32 %v7061, %v7221
        %v7336 = vadd.f32 %v7062, %v7226
        %v7337 = vadd.f32 %v7063, %v7231
        %v7338 = vadd.f32 %v7064, %v7236
        %v7339 = vadd.f32 %v7065, %v7241
        %v7340 = vadd.f32 %v7066, %v7246
        %v7341 = vadd.f32 %v7067, %v7251
        %v7342 = vadd.f32 %v7068, %v7256
        %v7343 = vadd.f32 %v7069, %v7261
        %v7344 = vadd.f32 %v7070, %v7266
        %v7345 = vadd.f32 %v7071, %v7271
        %v7346 = vadd.f32 %v7072, %v7276
        %v7347 = vadd.f32 %v7073, %v7281
        %v7348 = vadd.f32 %v7074, %v7286
        %v7349 = vadd.f32 %v7075, %v7291
        %v7350 = vadd.f32 %v7076, %v7296
        %v7351 = vadd.f32 %v7077, %v7301
        %v7352 = vadd.f32 %v7078, %v7306
        %v7353 = vadd.f32 %v7079, %v7311
        %v7354 = vadd.f32 %v7080, %v7316
        %v7355 = vadd.f32 %v7081, %v7321
        %7356 = vst [vmem:[#allocation3] sm:$0xff] %v7324
        %7357 = vst [vmem:[#allocation3 + $0x8] sm:$0xff] %v7325
        %7358 = vst [vmem:[#allocation3 + $0x10] sm:$0xff] %v7326
        %7359 = vst [vmem:[#allocation3 + $0x18] sm:$0xff] %v7327
        %7360 = vst [vmem:[#allocation3 + $0x20] sm:$0xff] %v7328
        %7361 = vst [vmem:[#allocation3 + $0x28] sm:$0xff] %v7329
        %7362 = vst [vmem:[#allocation3 + $0x30] sm:$0xff] %v7330
        %7363 = vst [vmem:[#allocation3 + $0x38] sm:$0xff] %v7331
        %7364 = vst [vmem:[#allocation3 + $0x40] sm:$0xff] %v7332
        %7365 = vst [vmem:[#allocation3 + $0x48] sm:$0xff] %v7333
        %7366 = vst [vmem:[#allocation3 + $0x50] sm:$0xff] %v7334
        %7367 = vst [vmem:[#allocation3 + $0x58] sm:$0xff] %v7335
        %7368 = vst [vmem:[#allocation3 + $0x60] sm:$0xff] %v7336
        %7369 = vst [vmem:[#allocation3 + $0x68] sm:$0xff] %v7337
        %7370 = vst [vmem:[#allocation3 + $0x70] sm:$0xff] %v7338
        %7371 = vst [vmem:[#allocation3 + $0x78] sm:$0xff] %v7339
        %7372 = vst [vmem:[#allocation3 + $0x80] sm:$0xff] %v7340
        %7373 = vst [vmem:[#allocation3 + $0x88] sm:$0xff] %v7341
        %7374 = vst [vmem:[#allocation3 + $0x90] sm:$0xff] %v7342
        %7375 = vst [vmem:[#allocation3 + $0x98] sm:$0xff] %v7343
        %7376 = vst [vmem:[#allocation3 + $0xa0] sm:$0xff] %v7344
        %7377 = vst [vmem:[#allocation3 + $0xa8] sm:$0xff] %v7345
        %7378 = vst [vmem:[#allocation3 + $0xb0] sm:$0xff] %v7346
        %7379 = vst [vmem:[#allocation3 + $0xb8] sm:$0xff] %v7347
        %7380 = vst [vmem:[#allocation3 + $0xc0] sm:$0xff] %v7348
        %7381 = vst [vmem:[#allocation3 + $0xc8] sm:$0xff] %v7349
        %7382 = vst [vmem:[#allocation3 + $0xd0] sm:$0xff] %v7350
        %7383 = vst [vmem:[#allocation3 + $0xd8] sm:$0xff] %v7351
        %7384 = vst [vmem:[#allocation3 + $0xe0] sm:$0xff] %v7352
        %7385 = vst [vmem:[#allocation3 + $0xe8] sm:$0xff] %v7353
        %7386 = vst [vmem:[#allocation3 + $0xf0] sm:$0xff] %v7354
        %7387 = vst [vmem:[#allocation3 + $0xf8] sm:$0xff] %v7355
        %v7388 = vld [vmem:[#allocation3] sm:$0xff]
        %v7389 = vld [vmem:[#allocation3 + $0x8] sm:$0xff]
        %v7390 = vld [vmem:[#allocation3 + $0x10] sm:$0xff]
        %v7391 = vld [vmem:[#allocation3 + $0x18] sm:$0xff]
        %v7392 = vld [vmem:[#allocation3 + $0x20] sm:$0xff]
        %v7393 = vld [vmem:[#allocation3 + $0x28] sm:$0xff]
        %v7394 = vld [vmem:[#allocation3 + $0x30] sm:$0xff]
        %v7395 = vld [vmem:[#allocation3 + $0x38] sm:$0xff]
        %v7396 = vld [vmem:[#allocation3 + $0x40] sm:$0xff]
        %v7397 = vld [vmem:[#allocation3 + $0x48] sm:$0xff]
        %v7398 = vld [vmem:[#allocation3 + $0x50] sm:$0xff]
        %v7399 = vld [vmem:[#allocation3 + $0x58] sm:$0xff]
        %v7400 = vld [vmem:[#allocation3 + $0x60] sm:$0xff]
        %v7401 = vld [vmem:[#allocation3 + $0x68] sm:$0xff]
        %v7402 = vld [vmem:[#allocation3 + $0x70] sm:$0xff]
        %v7403 = vld [vmem:[#allocation3 + $0x78] sm:$0xff]
        %v7404 = vld [vmem:[#allocation3 + $0x80] sm:$0xff]
        %v7405 = vld [vmem:[#allocation3 + $0x88] sm:$0xff]
        %v7406 = vld [vmem:[#allocation3 + $0x90] sm:$0xff]
        %v7407 = vld [vmem:[#allocation3 + $0x98] sm:$0xff]
        %v7408 = vld [vmem:[#allocation3 + $0xa0] sm:$0xff]
        %v7409 = vld [vmem:[#allocation3 + $0xa8] sm:$0xff]
        %v7410 = vld [vmem:[#allocation3 + $0xb0] sm:$0xff]
        %v7411 = vld [vmem:[#allocation3 + $0xb8] sm:$0xff]
        %v7412 = vld [vmem:[#allocation3 + $0xc0] sm:$0xff]
        %v7413 = vld [vmem:[#allocation3 + $0xc8] sm:$0xff]
        %v7414 = vld [vmem:[#allocation3 + $0xd0] sm:$0xff]
        %v7415 = vld [vmem:[#allocation3 + $0xd8] sm:$0xff]
        %v7416 = vld [vmem:[#allocation3 + $0xe0] sm:$0xff]
        %v7417 = vld [vmem:[#allocation3 + $0xe8] sm:$0xff]
        %v7418 = vld [vmem:[#allocation3 + $0xf0] sm:$0xff]
        %v7419 = vld [vmem:[#allocation3 + $0xf8] sm:$0xff]
        %s7420 = scalar_lea.vmem [#allocation9], 1
        %v7421 = vld [vmem:[%s7420] sm:$0x1]
        %v7423 = vlaneseq
        %v7424 = vshrl.u32 %v7423, 7
        %v7425 = vsub.s32 0, %v7424
        %v7426 = vrot.slane %v7421, %v7425
        %v7428 = vadd.f32 %v7388, %v7426
        %v7429 = vadd.f32 %v7389, %v7426
        %v7430 = vadd.f32 %v7390, %v7426
        %v7431 = vadd.f32 %v7391, %v7426
        %v7432 = vadd.f32 %v7392, %v7426
        %v7433 = vadd.f32 %v7393, %v7426
        %v7434 = vadd.f32 %v7394, %v7426
        %v7435 = vadd.f32 %v7395, %v7426
        %v7436 = vadd.f32 %v7396, %v7426
        %v7437 = vadd.f32 %v7397, %v7426
        %v7438 = vadd.f32 %v7398, %v7426
        %v7439 = vadd.f32 %v7399, %v7426
        %v7440 = vadd.f32 %v7400, %v7426
        %v7441 = vadd.f32 %v7401, %v7426
        %v7442 = vadd.f32 %v7402, %v7426
        %v7443 = vadd.f32 %v7403, %v7426
        %v7444 = vadd.f32 %v7404, %v7426
        %v7445 = vadd.f32 %v7405, %v7426
        %v7446 = vadd.f32 %v7406, %v7426
        %v7447 = vadd.f32 %v7407, %v7426
        %v7448 = vadd.f32 %v7408, %v7426
        %v7449 = vadd.f32 %v7409, %v7426
        %v7450 = vadd.f32 %v7410, %v7426
        %v7451 = vadd.f32 %v7411, %v7426
        %v7452 = vadd.f32 %v7412, %v7426
        %v7453 = vadd.f32 %v7413, %v7426
        %v7454 = vadd.f32 %v7414, %v7426
        %v7455 = vadd.f32 %v7415, %v7426
        %v7456 = vadd.f32 %v7416, %v7426
        %v7457 = vadd.f32 %v7417, %v7426
        %v7458 = vadd.f32 %v7418, %v7426
        %v7459 = vadd.f32 %v7419, %v7426
        %v7460 = vxor.u32 %v7428, 2147483648
        %v7461 = vxor.u32 %v7429, 2147483648
        %v7462 = vxor.u32 %v7430, 2147483648
        %v7463 = vxor.u32 %v7431, 2147483648
        %v7464 = vxor.u32 %v7432, 2147483648
        %v7465 = vxor.u32 %v7433, 2147483648
        %v7466 = vxor.u32 %v7434, 2147483648
        %v7467 = vxor.u32 %v7435, 2147483648
        %v7468 = vxor.u32 %v7436, 2147483648
        %v7469 = vxor.u32 %v7437, 2147483648
        %v7470 = vxor.u32 %v7438, 2147483648
        %v7471 = vxor.u32 %v7439, 2147483648
        %v7472 = vxor.u32 %v7440, 2147483648
        %v7473 = vxor.u32 %v7441, 2147483648
        %v7474 = vxor.u32 %v7442, 2147483648
        %v7475 = vxor.u32 %v7443, 2147483648
        %v7476 = vxor.u32 %v7444, 2147483648
        %v7477 = vxor.u32 %v7445, 2147483648
        %v7478 = vxor.u32 %v7446, 2147483648
        %v7479 = vxor.u32 %v7447, 2147483648
        %v7480 = vxor.u32 %v7448, 2147483648
        %v7481 = vxor.u32 %v7449, 2147483648
        %v7482 = vxor.u32 %v7450, 2147483648
        %v7483 = vxor.u32 %v7451, 2147483648
        %v7484 = vxor.u32 %v7452, 2147483648
        %v7485 = vxor.u32 %v7453, 2147483648
        %v7486 = vxor.u32 %v7454, 2147483648
        %v7487 = vxor.u32 %v7455, 2147483648
        %v7488 = vxor.u32 %v7456, 2147483648
        %v7489 = vxor.u32 %v7457, 2147483648
        %v7490 = vxor.u32 %v7458, 2147483648
        %v7491 = vxor.u32 %v7459, 2147483648
        %v7492 = vmul.f32 %v7460, 1.442695
        %v7493 = vpow.pop %v7492
        %v7494 = vmul.f32 %v7461, 1.442695
        %v7495 = vpow.pop %v7494
        %v7496 = vmul.f32 %v7462, 1.442695
        %v7497 = vpow.pop %v7496
        %v7498 = vmul.f32 %v7463, 1.442695
        %v7499 = vpow.pop %v7498
        %v7500 = vmul.f32 %v7464, 1.442695
        %v7501 = vpow.pop %v7500
        %v7502 = vmul.f32 %v7465, 1.442695
        %v7503 = vpow.pop %v7502
        %v7504 = vmul.f32 %v7466, 1.442695
        %v7505 = vpow.pop %v7504
        %v7506 = vmul.f32 %v7467, 1.442695
        %v7507 = vpow.pop %v7506
        %v7508 = vmul.f32 %v7468, 1.442695
        %v7509 = vpow.pop %v7508
        %v7510 = vmul.f32 %v7469, 1.442695
        %v7511 = vpow.pop %v7510
        %v7512 = vmul.f32 %v7470, 1.442695
        %v7513 = vpow.pop %v7512
        %v7514 = vmul.f32 %v7471, 1.442695
        %v7515 = vpow.pop %v7514
        %v7516 = vmul.f32 %v7472, 1.442695
        %v7517 = vpow.pop %v7516
        %v7518 = vmul.f32 %v7473, 1.442695
        %v7519 = vpow.pop %v7518
        %v7520 = vmul.f32 %v7474, 1.442695
        %v7521 = vpow.pop %v7520
        %v7522 = vmul.f32 %v7475, 1.442695
        %v7523 = vpow.pop %v7522
        %v7524 = vmul.f32 %v7476, 1.442695
        %v7525 = vpow.pop %v7524
        %v7526 = vmul.f32 %v7477, 1.442695
        %v7527 = vpow.pop %v7526
        %v7528 = vmul.f32 %v7478, 1.442695
        %v7529 = vpow.pop %v7528
        %v7530 = vmul.f32 %v7479, 1.442695
        %v7531 = vpow.pop %v7530
        %v7532 = vmul.f32 %v7480, 1.442695
        %v7533 = vpow.pop %v7532
        %v7534 = vmul.f32 %v7481, 1.442695
        %v7535 = vpow.pop %v7534
        %v7536 = vmul.f32 %v7482, 1.442695
        %v7537 = vpow.pop %v7536
        %v7538 = vmul.f32 %v7483, 1.442695
        %v7539 = vpow.pop %v7538
        %v7540 = vmul.f32 %v7484, 1.442695
        %v7541 = vpow.pop %v7540
        %v7542 = vmul.f32 %v7485, 1.442695
        %v7543 = vpow.pop %v7542
        %v7544 = vmul.f32 %v7486, 1.442695
        %v7545 = vpow.pop %v7544
        %v7546 = vmul.f32 %v7487, 1.442695
        %v7547 = vpow.pop %v7546
        %v7548 = vmul.f32 %v7488, 1.442695
        %v7549 = vpow.pop %v7548
        %v7550 = vmul.f32 %v7489, 1.442695
        %v7551 = vpow.pop %v7550
        %v7552 = vmul.f32 %v7490, 1.442695
        %v7553 = vpow.pop %v7552
        %v7554 = vmul.f32 %v7491, 1.442695
        %v7555 = vpow.pop %v7554
        %v7556 = vadd.f32 %v7493, 1.0
        %v7557 = vadd.f32 %v7495, 1.0
        %v7558 = vadd.f32 %v7497, 1.0
        %v7559 = vadd.f32 %v7499, 1.0
        %v7560 = vadd.f32 %v7501, 1.0
        %v7561 = vadd.f32 %v7503, 1.0
        %v7562 = vadd.f32 %v7505, 1.0
        %v7563 = vadd.f32 %v7507, 1.0
        %v7564 = vadd.f32 %v7509, 1.0
        %v7565 = vadd.f32 %v7511, 1.0
        %v7566 = vadd.f32 %v7513, 1.0
        %v7567 = vadd.f32 %v7515, 1.0
        %v7568 = vadd.f32 %v7517, 1.0
        %v7569 = vadd.f32 %v7519, 1.0
        %v7570 = vadd.f32 %v7521, 1.0
        %v7571 = vadd.f32 %v7523, 1.0
        %v7572 = vadd.f32 %v7525, 1.0
        %v7573 = vadd.f32 %v7527, 1.0
        %v7574 = vadd.f32 %v7529, 1.0
        %v7575 = vadd.f32 %v7531, 1.0
        %v7576 = vadd.f32 %v7533, 1.0
        %v7577 = vadd.f32 %v7535, 1.0
        %v7578 = vadd.f32 %v7537, 1.0
        %v7579 = vadd.f32 %v7539, 1.0
        %v7580 = vadd.f32 %v7541, 1.0
        %v7581 = vadd.f32 %v7543, 1.0
        %v7582 = vadd.f32 %v7545, 1.0
        %v7583 = vadd.f32 %v7547, 1.0
        %v7584 = vadd.f32 %v7549, 1.0
        %v7585 = vadd.f32 %v7551, 1.0
        %v7586 = vadd.f32 %v7553, 1.0
        %v7587 = vadd.f32 %v7555, 1.0
        %v7588 = vrcp.pop %v7556
        %v7589 = vmul.f32 1.0, %v7588
        %v7590 = vrcp.pop %v7557
        %v7591 = vmul.f32 1.0, %v7590
        %v7592 = vrcp.pop %v7558
        %v7593 = vmul.f32 1.0, %v7592
        %v7594 = vrcp.pop %v7559
        %v7595 = vmul.f32 1.0, %v7594
        %v7596 = vrcp.pop %v7560
        %v7597 = vmul.f32 1.0, %v7596
        %v7598 = vrcp.pop %v7561
        %v7599 = vmul.f32 1.0, %v7598
        %v7600 = vrcp.pop %v7562
        %v7601 = vmul.f32 1.0, %v7600
        %v7602 = vrcp.pop %v7563
        %v7603 = vmul.f32 1.0, %v7602
        %v7604 = vrcp.pop %v7564
        %v7605 = vmul.f32 1.0, %v7604
        %v7606 = vrcp.pop %v7565
        %v7607 = vmul.f32 1.0, %v7606
        %v7608 = vrcp.pop %v7566
        %v7609 = vmul.f32 1.0, %v7608
        %v7610 = vrcp.pop %v7567
        %v7611 = vmul.f32 1.0, %v7610
        %v7612 = vrcp.pop %v7568
        %v7613 = vmul.f32 1.0, %v7612
        %v7614 = vrcp.pop %v7569
        %v7615 = vmul.f32 1.0, %v7614
        %v7616 = vrcp.pop %v7570
        %v7617 = vmul.f32 1.0, %v7616
        %v7618 = vrcp.pop %v7571
        %v7619 = vmul.f32 1.0, %v7618
        %v7620 = vrcp.pop %v7572
        %v7621 = vmul.f32 1.0, %v7620
        %v7622 = vrcp.pop %v7573
        %v7623 = vmul.f32 1.0, %v7622
        %v7624 = vrcp.pop %v7574
        %v7625 = vmul.f32 1.0, %v7624
        %v7626 = vrcp.pop %v7575
        %v7627 = vmul.f32 1.0, %v7626
        %v7628 = vrcp.pop %v7576
        %v7629 = vmul.f32 1.0, %v7628
        %v7630 = vrcp.pop %v7577
        %v7631 = vmul.f32 1.0, %v7630
        %v7632 = vrcp.pop %v7578
        %v7633 = vmul.f32 1.0, %v7632
        %v7634 = vrcp.pop %v7579
        %v7635 = vmul.f32 1.0, %v7634
        %v7636 = vrcp.pop %v7580
        %v7637 = vmul.f32 1.0, %v7636
        %v7638 = vrcp.pop %v7581
        %v7639 = vmul.f32 1.0, %v7638
        %v7640 = vrcp.pop %v7582
        %v7641 = vmul.f32 1.0, %v7640
        %v7642 = vrcp.pop %v7583
        %v7643 = vmul.f32 1.0, %v7642
        %v7644 = vrcp.pop %v7584
        %v7645 = vmul.f32 1.0, %v7644
        %v7646 = vrcp.pop %v7585
        %v7647 = vmul.f32 1.0, %v7646
        %v7648 = vrcp.pop %v7586
        %v7649 = vmul.f32 1.0, %v7648
        %v7650 = vrcp.pop %v7587
        %v7651 = vmul.f32 1.0, %v7650
        %v7652 = vmul.f32 %v7428, %v7589
        %v7653 = vmul.f32 %v7429, %v7591
        %v7654 = vmul.f32 %v7430, %v7593
        %v7655 = vmul.f32 %v7431, %v7595
        %v7656 = vmul.f32 %v7432, %v7597
        %v7657 = vmul.f32 %v7433, %v7599
        %v7658 = vmul.f32 %v7434, %v7601
        %v7659 = vmul.f32 %v7435, %v7603
        %v7660 = vmul.f32 %v7436, %v7605
        %v7661 = vmul.f32 %v7437, %v7607
        %v7662 = vmul.f32 %v7438, %v7609
        %v7663 = vmul.f32 %v7439, %v7611
        %v7664 = vmul.f32 %v7440, %v7613
        %v7665 = vmul.f32 %v7441, %v7615
        %v7666 = vmul.f32 %v7442, %v7617
        %v7667 = vmul.f32 %v7443, %v7619
        %v7668 = vmul.f32 %v7444, %v7621
        %v7669 = vmul.f32 %v7445, %v7623
        %v7670 = vmul.f32 %v7446, %v7625
        %v7671 = vmul.f32 %v7447, %v7627
        %v7672 = vmul.f32 %v7448, %v7629
        %v7673 = vmul.f32 %v7449, %v7631
        %v7674 = vmul.f32 %v7450, %v7633
        %v7675 = vmul.f32 %v7451, %v7635
        %v7676 = vmul.f32 %v7452, %v7637
        %v7677 = vmul.f32 %v7453, %v7639
        %v7678 = vmul.f32 %v7454, %v7641
        %v7679 = vmul.f32 %v7455, %v7643
        %v7680 = vmul.f32 %v7456, %v7645
        %v7681 = vmul.f32 %v7457, %v7647
        %v7682 = vmul.f32 %v7458, %v7649
        %v7683 = vmul.f32 %v7459, %v7651
        %7684 = vst [vmem:[%s217] sm:$0xff] %v7652
        %7685 = vst [vmem:[%s217 + $0x8] sm:$0xff] %v7653
        %7686 = vst [vmem:[%s217 + $0x10] sm:$0xff] %v7654
        %7687 = vst [vmem:[%s217 + $0x18] sm:$0xff] %v7655
        %7688 = vst [vmem:[%s217 + $0x20] sm:$0xff] %v7656
        %7689 = vst [vmem:[%s217 + $0x28] sm:$0xff] %v7657
        %7690 = vst [vmem:[%s217 + $0x30] sm:$0xff] %v7658
        %7691 = vst [vmem:[%s217 + $0x38] sm:$0xff] %v7659
        %7692 = vst [vmem:[%s217 + $0x40] sm:$0xff] %v7660
        %7693 = vst [vmem:[%s217 + $0x48] sm:$0xff] %v7661
        %7694 = vst [vmem:[%s217 + $0x50] sm:$0xff] %v7662
        %7695 = vst [vmem:[%s217 + $0x58] sm:$0xff] %v7663
        %7696 = vst [vmem:[%s217 + $0x60] sm:$0xff] %v7664
        %7697 = vst [vmem:[%s217 + $0x68] sm:$0xff] %v7665
        %7698 = vst [vmem:[%s217 + $0x70] sm:$0xff] %v7666
        %7699 = vst [vmem:[%s217 + $0x78] sm:$0xff] %v7667
        %7700 = vst [vmem:[%s217 + $0x80] sm:$0xff] %v7668
        %7701 = vst [vmem:[%s217 + $0x88] sm:$0xff] %v7669
        %7702 = vst [vmem:[%s217 + $0x90] sm:$0xff] %v7670
        %7703 = vst [vmem:[%s217 + $0x98] sm:$0xff] %v7671
        %7704 = vst [vmem:[%s217 + $0xa0] sm:$0xff] %v7672
        %7705 = vst [vmem:[%s217 + $0xa8] sm:$0xff] %v7673
        %7706 = vst [vmem:[%s217 + $0xb0] sm:$0xff] %v7674
        %7707 = vst [vmem:[%s217 + $0xb8] sm:$0xff] %v7675
        %7708 = vst [vmem:[%s217 + $0xc0] sm:$0xff] %v7676
        %7709 = vst [vmem:[%s217 + $0xc8] sm:$0xff] %v7677
        %7710 = vst [vmem:[%s217 + $0xd0] sm:$0xff] %v7678
        %7711 = vst [vmem:[%s217 + $0xd8] sm:$0xff] %v7679
        %7712 = vst [vmem:[%s217 + $0xe0] sm:$0xff] %v7680
        %7713 = vst [vmem:[%s217 + $0xe8] sm:$0xff] %v7681
        %7714 = vst [vmem:[%s217 + $0xf0] sm:$0xff] %v7682
        %7715 = vst [vmem:[%s217 + $0xf8] sm:$0xff] %v7683
        %s7716 = sand.u32 %s97, 1
        %s7717 = scalar_lea.sflag [#allocation6], %s7716
        %s7718 = sand.u32 %s97, 1
        %s7719 = smul.addr %s7718, 256
        %s7720 = scalar_lea.vmem [#allocation10], %s7719
        // Predicated region
        $region45: #{tpu_custom_call.1} parent=31 // pred_check
          %p7721 = pneg %p107
        $region46: #{tpu_custom_call.1} parent=31 // pred_check_branch
          %7723 = sbr.rel (%p7721) target = $region48
        $region47: #{tpu_custom_call.1} parent=31 // pred_region
          %s7725 = ssub.s32 4096, 4096
          %7726 = vsyncadd %s7717, %s7725
          %s7727 = smul.addr %s21, 32
          %s7728 = smul.addr %s7727, 128
          %s7729 = scalar_lea.hbm %s3, %s7728
          %s7730 = sshll.u32 %s7720, 4
          %s7731 = int_to_ptr.vmem [resolvable:$true] %s7730
          %7736 = dma.vmem_to_hbm [thread:$0]  %s7731, 4096, %s7729, %s7717, 128, 128, 8
        $region48: #{tpu_custom_call.1} parent=31 // pred_fallthru
          _
      $region32: #{tpu_custom_call.1} parent=5 // pred_fallthru
        _
      %p7737 = scmp.le.s32.totalorder 2, %s16
      // Predicated region
      $region49: #{tpu_custom_call.1} parent=5 // pred_check
        %p7738 = pneg %p7737
      $region50: #{tpu_custom_call.1} parent=5 // pred_check_branch
        %7740 = sbr.rel (%p7738) target = $region52
      $region51: #{tpu_custom_call.1} parent=5 // pred_region
        %s7741 = ssub.s32 %s16, 2
        // Predicated region
        $region53: #{tpu_custom_call.1} parent=51 // pred_check
          %p7742 = pneg %p113
        $region54: #{tpu_custom_call.1} parent=51 // pred_check_branch
          %7744 = sbr.rel (%p7742) target = $region56
        $region55: #{tpu_custom_call.1} parent=51 // pred_region
          %s7745 = sand.u32 %s98, 1
          %s7746 = scalar_lea.sflag [#allocation6], %s7745
          %s7747 = sand.u32 %s98, 1
          %s7748 = smul.addr %s7747, 256
          %s7749 = scalar_lea.vmem [#allocation10], %s7748
          %7750 = dma.done %s7746, 4096
        $region56: #{tpu_custom_call.1} parent=51 // pred_fallthru
          _
      $region52: #{tpu_custom_call.1} parent=5 // pred_fallthru
        _
    $region6: #{tpu_custom_call.1} parent=1 // loop_footer
      %s20 = sadd.s32 1, %s16
    $region7: #{tpu_custom_call.1} parent=1 // loop_footer_branch
      %15 = sbr.rel target = $region3
    $region8: #{tpu_custom_call.1} parent=1 // loop_exit
      _
    %7751 = vsyncpa [#allocation5], 1
    %s7752 = scalar_lea.sflag [#allocation5], 1
    %7753 = vsyncpa %s7752, 1
    %7754 = vsyncpa [#allocation8], 1
    %7755 = vsyncpa [#allocation6], 1
    %s7756 = scalar_lea.sflag [#allocation6], 1
    %7757 = vsyncpa %s7756, 1

</llo_original>
